<compile_context>
chip_gen: v5e
topology: v5e:2x2
jax: 0.10.0
libtpu: 0.0.40
codegen_flags: <defaults>
</compile_context>

<pallas_src>
import functools

import jax
import jax.numpy as jnp
from jax.experimental import pallas as pl
from jax.experimental.pallas import tpu as pltpu


_TM = 256                        # row-tile size (256-512 recommended)
_VMEM_LIMIT = 32 * 1024 * 1024   # explicit scoped-VMEM budget (safe on v5e/v6e/v7x)


# ---------------------------------------------------------------------------
# Pallas kernels
# ---------------------------------------------------------------------------
def _matmul_bias_act_kernel(x_ref, w_ref, b_ref, o_ref, *, apply_relu, in_scale):
    """out_tile = act((x_tile * in_scale) @ w + b); bf16 MXU operands, f32 epilogue."""
    x = x_ref[...]
    if in_scale != 1.0:
        x = x * jnp.float32(in_scale)          # f32 scaling (fused /255 for conv1)
    acc = jnp.dot(x.astype(jnp.bfloat16), w_ref[...],
                  preferred_element_type=jnp.float32)
    acc = acc + b_ref[...]
    if apply_relu:
        acc = jnp.maximum(acc, 0.0)
    o_ref[...] = acc


def _fc_fused_kernel(x_ref, w1_ref, b1_ref, w2_ref, b2_ref, o_ref):
    """q = relu(x @ w1 + b1) @ w2 + b2, both weights resident in VMEM."""
    h = jnp.dot(x_ref[...].astype(jnp.bfloat16), w1_ref[...],
                preferred_element_type=jnp.float32)
    h = jnp.maximum(h + b1_ref[...], 0.0)
    q = jnp.dot(h.astype(jnp.bfloat16), w2_ref[...],
                preferred_element_type=jnp.float32)
    o_ref[...] = q + b2_ref[...]


# ---------------------------------------------------------------------------
# Pallas wrappers
# ---------------------------------------------------------------------------
def _compiler_params():
    return pltpu.CompilerParams(
        dimension_semantics=("parallel",),     # shard row tiles across TCs (v7x)
        vmem_limit_bytes=_VMEM_LIMIT,
    )


def linear_pallas(x, w_bf16, b_row, *, apply_relu, in_scale=1.0, tm=_TM):
    """x: (M, K) f32, w_bf16: (K, N) bf16, b_row: (1, N) f32 -> (M, N) f32."""
    M, K = x.shape
    Kw, N = w_bf16.shape
    assert K == Kw, (K, Kw)

    # Tile rows; K and N use the full extent (no activation padding needed).
    tm_eff = tm if M > tm else M
    grid = (pl.cdiv(M, tm_eff),)

    return pl.pallas_call(
        functools.partial(_matmul_bias_act_kernel,
                          apply_relu=apply_relu, in_scale=in_scale),
        out_shape=jax.ShapeDtypeStruct((M, N), jnp.float32),
        grid=grid,
        in_specs=[
            pl.BlockSpec((tm_eff, K), lambda i: (i, 0)),   # streamed row tiles
            pl.BlockSpec((K, N), lambda i: (0, 0)),        # resident weight
            pl.BlockSpec((1, N), lambda i: (0, 0)),        # resident bias
        ],
        out_specs=pl.BlockSpec((tm_eff, N), lambda i: (i, 0)),
        compiler_params=_compiler_params(),
    )(x, w_bf16, b_row)


def fc_fused_pallas(x, w1_bf16, b1_row, w2_bf16, b2_row, *, tm=_TM):
    """Fused fc1(ReLU)+fc2: x (M, K) f32 -> (M, N) f32."""
    M, K = x.shape
    K1, H = w1_bf16.shape
    H2, N = w2_bf16.shape
    assert K == K1 and H == H2, (K, K1, H, H2)

    tm_eff = tm if M > tm else M
    grid = (pl.cdiv(M, tm_eff),)

    return pl.pallas_call(
        _fc_fused_kernel,
        out_shape=jax.ShapeDtypeStruct((M, N), jnp.float32),
        grid=grid,
        in_specs=[
            pl.BlockSpec((tm_eff, K), lambda i: (i, 0)),
            pl.BlockSpec((K, H), lambda i: (0, 0)),
            pl.BlockSpec((1, H), lambda i: (0, 0)),
            pl.BlockSpec((H, N), lambda i: (0, 0)),
            pl.BlockSpec((1, N), lambda i: (0, 0)),
        ],
        out_specs=pl.BlockSpec((tm_eff, N), lambda i: (i, 0)),
        compiler_params=_compiler_params(),
    )(x, w1_bf16, b1_row, w2_bf16, b2_row)


# ---------------------------------------------------------------------------
# im2col glue (plain JAX, NHWC) — feature ordering (kh, kw, c), matching the
# conv-weight permutation done once in prepare_params().
# ---------------------------------------------------------------------------
def _im2col_nhwc(x, k, s):
    B, H, W, C = x.shape
    Ho = (H - k) // s + 1
    Wo = (W - k) // s + 1
    cols = []
    for i in range(k):
        for j in range(k):
            cols.append(x[:, i:i + s * Ho:s, j:j + s * Wo:s, :])   # (B,Ho,Wo,C)
    patches = jnp.stack(cols, axis=3)                   # (B, Ho, Wo, k*k, C)
    patches = patches.reshape(B * Ho * Wo, k * k * C)   # (M, K), (kh,kw,c) order
    return patches, Ho, Wo


def conv2d_pallas(x_nhwc, w2d_bf16, b_row, *, k, stride, in_scale=1.0, tm=_TM):
    """x: (B, H, W, Cin) f32; w2d: (k*k*Cin, Cout) bf16 -> (B, Ho, Wo, Cout) f32."""
    B = x_nhwc.shape[0]
    Cout = w2d_bf16.shape[1]
    patches, Ho, Wo = _im2col_nhwc(x_nhwc, k, stride)
    y = linear_pallas(patches, w2d_bf16, b_row,
                      apply_relu=True, in_scale=in_scale, tm=tm)
    return y.reshape(B, Ho, Wo, Cout)                   # stays NHWC, no transpose


# ---------------------------------------------------------------------------
# QNetwork parameters (PyTorch layout) + one-time preprocessing + forward
# ---------------------------------------------------------------------------
def init_qnetwork_params(key, action_dim):
    ks = jax.random.split(key, 10)

    def uni(k, shape, fan_in):
        bound = 1.0 / jnp.sqrt(jnp.float32(fan_in))
        return jax.random.uniform(k, shape, jnp.float32, -bound, bound)

    return {
        "conv1_w": uni(ks[0], (32, 3, 8, 8), 3 * 8 * 8),
        "conv1_b": uni(ks[1], (32,), 3 * 8 * 8),
        "conv2_w": uni(ks[2], (64, 32, 4, 4), 32 * 4 * 4),
        "conv2_b": uni(ks[3], (64,), 32 * 4 * 4),
        "conv3_w": uni(ks[4], (64, 64, 3, 3), 64 * 3 * 3),
        "conv3_b": uni(ks[5], (64,), 64 * 3 * 3),
        "fc1_w": uni(ks[6], (512, 7 * 7 * 64), 7 * 7 * 64),   # PyTorch (out, in)
        "fc1_b": uni(ks[7], (512,), 7 * 7 * 64),
        "fc2_w": uni(ks[8], (action_dim, 512), 512),
        "fc2_b": uni(ks[9], (action_dim,), 512),
    }


def prepare_params(params):
    """One-time layout/reshape/bf16 prep, hoisted out of the forward path."""
    def prep_conv(w, b):
        O, C, kh, kw = w.shape
        # (O, C, kh, kw) -> (kh, kw, C, O) -> (kh*kw*C, O): matches NHWC im2col order.
        w2 = jnp.transpose(w, (2, 3, 1, 0)).reshape(kh * kw * C, O)
        return w2.astype(jnp.bfloat16), b.astype(jnp.float32).reshape(1, O)

    c1w, c1b = prep_conv(params["conv1_w"], params["conv1_b"])
    c2w, c2b = prep_conv(params["conv2_w"], params["conv2_b"])
    c3w, c3b = prep_conv(params["conv3_w"], params["conv3_b"])

    # fc1 expects PyTorch NCHW flatten order (C=64, H=7, W=7); internal
    # activations are NHWC, so permute the input-feature axis once here.
    out_f, in_f = params["fc1_w"].shape
    fc1_w = (params["fc1_w"].reshape(out_f, 64, 7, 7)
             .transpose(0, 2, 3, 1).reshape(out_f, in_f))
    fc1_w = fc1_w.T.astype(jnp.bfloat16)                 # (3136, 512)
    fc2_w = params["fc2_w"].T.astype(jnp.bfloat16)       # (512, action_dim)

    return {
        "c1_w": c1w, "c1_b": c1b,
        "c2_w": c2w, "c2_b": c2b,
        "c3_w": c3w, "c3_b": c3b,
        "fc1_w": fc1_w, "fc1_b": params["fc1_b"].astype(jnp.float32).reshape(1, -1),
        "fc2_w": fc2_w, "fc2_b": params["fc2_b"].astype(jnp.float32).reshape(1, -1),
    }


def qnetwork_forward(prepped, x_nchw):
    # x: (B, 3, 84, 84) f32 raw pixels. Single layout change to NHWC up front;
    # x/255 is fused into the first conv kernel (in_scale).
    x = jnp.transpose(x_nchw, (0, 2, 3, 1))                        # (B, 84, 84, 3)
    h = conv2d_pallas(x, prepped["c1_w"], prepped["c1_b"],
                      k=8, stride=4, in_scale=1.0 / 255.0)          # (B, 20, 20, 32)
    h = conv2d_pallas(h, prepped["c2_w"], prepped["c2_b"],
                      k=4, stride=2)                                # (B, 9, 9, 64)
    h = conv2d_pallas(h, prepped["c3_w"], prepped["c3_b"],
                      k=3, stride=1)                                # (B, 7, 7, 64)
    B = h.shape[0]
    h = h.reshape(B, -1)               # NHWC flatten, matches permuted fc1_w
    q = fc_fused_pallas(h, prepped["fc1_w"], prepped["fc1_b"],
                        prepped["fc2_w"], prepped["fc2_b"])
    return q


# ---------------------------------------------------------------------------
# References (correctness check only)
# ---------------------------------------------------------------------------
def qnetwork_reference_f32(params, x):
    hp = jax.lax.Precision.HIGHEST
    h = x / 255.0

    def conv(h, w, b, s):
        y = jax.lax.conv_general_dilated(
            h, w, (s, s), "VALID",
            dimension_numbers=("NCHW", "OIHW", "NCHW"), precision=hp)
        return jax.nn.relu(y + b[None, :, None, None])

    h = conv(h, params["conv1_w"], params["conv1_b"], 4)
    h = conv(h, params["conv2_w"], params["conv2_b"], 2)
    h = conv(h, params["conv3_w"], params["conv3_b"], 1)
    h = h.reshape(h.shape[0], -1)
    h = jax.nn.relu(jnp.dot(h, params["fc1_w"].T, precision=hp) + params["fc1_b"])
    return jnp.dot(h, params["fc2_w"].T, precision=hp) + params["fc2_b"]


def qnetwork_reference_bf16(params, x):
    """Same math as the kernels: bf16 operands, f32 accumulation/epilogue."""
    bf = jnp.bfloat16

    def conv(h, w, b, s):
        y = jax.lax.conv_general_dilated(
            h.astype(bf), w.astype(bf), (s, s), "VALID",
            dimension_numbers=("NCHW", "OIHW", "NCHW"),
            preferred_element_type=jnp.float32)
        return jax.nn.relu(y + b[None, :, None, None])

    h = conv(x * jnp.float32(1.0 / 255.0), params["conv1_w"], params["conv1_b"], 4)
    h = conv(h, params["conv2_w"], params["conv2_b"], 2)
    h = conv(h, params["conv3_w"], params["conv3_b"], 1)
    h = h.reshape(h.shape[0], -1)
    h = jax.nn.relu(jnp.dot(h.astype(bf), params["fc1_w"].T.astype(bf),
                            preferred_element_type=jnp.float32) + params["fc1_b"])
    return jnp.dot(h.astype(bf), params["fc2_w"].T.astype(bf),
                   preferred_element_type=jnp.float32) + params["fc2_b"]


if __name__ == "__main__":
    key = jax.random.PRNGKey(0)
    k_param, k_x = jax.random.split(key)

    action_dim = 4       # Breakout action space size
    batch = 2
    # fc1 expects 7*7*64 features -> 84x84 input spatial dims (module invariant).
    x = jax.random.uniform(k_x, (batch, 3, 84, 84), jnp.float32, 0.0, 255.0)

    params = init_qnetwork_params(k_param, action_dim)
    prepped = prepare_params(params)          # one-time weight prep (hoisted)

    fwd = jax.jit(qnetwork_forward)
    q = jax.block_until_ready(fwd(prepped, x))
    assert q.shape == (batch, action_dim), q.shape

    # Tight check vs a reference using the exact same bf16-operand / f32-accum math.
    q_bf16_ref = jax.block_until_ready(qnetwork_reference_bf16(params, x))
    err_bf16 = float(jnp.max(jnp.abs(q - q_bf16_ref)))
    assert err_bf16 < 5e-3, f"mismatch vs bf16-aware reference: {err_bf16}"

    # Looser sanity check vs the full-f32 PyTorch-equivalent reference.
    q_f32_ref = jax.block_until_ready(qnetwork_reference_f32(params, x))
    err_f32 = float(jnp.max(jnp.abs(q - q_f32_ref)))
    assert err_f32 < 5e-2, f"mismatch vs f32 reference: {err_f32}"

    print("KERNEL_OK")
</pallas_src>

<mosaic_0001>
module attributes {stable_mosaic.version = 11 : i64} {
  func.func @_matmul_bias_act_kernel(%arg0: i32, %arg1: memref<256x192xf32, #tpu.memory_space<vmem>>, %arg2: memref<192x32xbf16, #tpu.memory_space<vmem>>, %arg3: memref<1x32xf32, #tpu.memory_space<vmem>>, %arg4: memref<256x32xf32, #tpu.memory_space<vmem>>) attributes {dimension_semantics = [#tpu.dimension_semantics<parallel>], iteration_bounds = array<i64: 4>, scalar_prefetch = 0 : i64, scratch_operands = 0 : i64, tpu.core_type = #tpu.core_type<tc>, window_params = [{transform_indices = @transform_0, window_bounds = array<i64: 256, 192>}, {pipeline_mode = #tpu.pipeline_mode<synchronous>, transform_indices = @transform_1, window_bounds = array<i64: 192, 32>}, {pipeline_mode = #tpu.pipeline_mode<synchronous>, transform_indices = @transform_2, window_bounds = array<i64: 1, 32>}, {transform_indices = @transform_3, window_bounds = array<i64: 256, 32>}]} {
    %c0 = arith.constant 0 : index
    %c0_0 = arith.constant 0 : index
    %0 = vector.load %arg1[%c0, %c0_0] : memref<256x192xf32, #tpu.memory_space<vmem>>, vector<256x192xf32>
    %cst = arith.constant 0.00392156886 : f32
    %1 = vector.broadcast %cst : f32 to vector<256x192xf32>
    %2 = arith.mulf %0, %1 : vector<256x192xf32>
    %3 = arith.truncf %2 : vector<256x192xf32> to vector<256x192xbf16>
    %c0_1 = arith.constant 0 : index
    %c0_2 = arith.constant 0 : index
    %4 = vector.load %arg2[%c0_1, %c0_2] : memref<192x32xbf16, #tpu.memory_space<vmem>>, vector<192x32xbf16>
    %cst_3 = arith.constant dense<0.000000e+00> : vector<256x32xf32>
    %5 = tpu.matmul %3, %4, %cst_3 {dimension_numbers = #tpu.dot_dimension_numbers<[1], [0], [0], [1], [0, 0, 1, 1], [], []>} : vector<256x192xbf16>, vector<192x32xbf16>, vector<256x32xf32> -> vector<256x32xf32>
    %c0_4 = arith.constant 0 : index
    %c0_5 = arith.constant 0 : index
    %6 = vector.load %arg3[%c0_4, %c0_5] : memref<1x32xf32, #tpu.memory_space<vmem>>, vector<1x32xf32>
    %7 = vector.broadcast %6 : vector<1x32xf32> to vector<256x32xf32>
    %8 = arith.addf %5, %7 : vector<256x32xf32>
    %cst_6 = arith.constant 0.000000e+00 : f32
    %9 = vector.broadcast %cst_6 : f32 to vector<256x32xf32>
    %10 = arith.maximumf %8, %9 : vector<256x32xf32>
    %c0_7 = arith.constant 0 : index
    %c0_8 = arith.constant 0 : index
    %11 = vector.load %arg4[%c0_7, %c0_8] : memref<256x32xf32, #tpu.memory_space<vmem>>, vector<256x32xf32>
    tpu.vector_store %arg4[%c0_7, %c0_8], %10 {strides = array<i32>} : memref<256x32xf32, #tpu.memory_space<vmem>>, vector<256x32xf32>,
    return
  }
  func.func @transform_0(%arg0: i32) -> (i32, i32) {
    %c0_i32 = arith.constant 0 : i32
    %c0_i32_0 = arith.constant 0 : i32
    return %arg0, %c0_i32 : i32, i32
  }
  func.func @transform_1(%arg0: i32) -> (i32, i32) {
    %c0_i32 = arith.constant 0 : i32
    %c0_i32_0 = arith.constant 0 : i32
    %c0_i32_1 = arith.constant 0 : i32
    return %c0_i32, %c0_i32_0 : i32, i32
  }
  func.func @transform_2(%arg0: i32) -> (i32, i32) {
    %c0_i32 = arith.constant 0 : i32
    %c0_i32_0 = arith.constant 0 : i32
    %c0_i32_1 = arith.constant 0 : i32
    return %c0_i32, %c0_i32_0 : i32, i32
  }
  func.func @transform_3(%arg0: i32) -> (i32, i32) {
    %c0_i32 = arith.constant 0 : i32
    %c0_i32_0 = arith.constant 0 : i32
    return %arg0, %c0_i32 : i32, i32
  }
}

module attributes {stable_mosaic.version = 11 : i64} {
  func.func @_matmul_bias_act_kernel(%arg0: i32, %arg1: memref<162x512xf32, #tpu.memory_space<vmem>>, %arg2: memref<512x64xbf16, #tpu.memory_space<vmem>>, %arg3: memref<1x64xf32, #tpu.memory_space<vmem>>, %arg4: memref<162x64xf32, #tpu.memory_space<vmem>>) attributes {dimension_semantics = [#tpu.dimension_semantics<parallel>], iteration_bounds = array<i64: 1>, scalar_prefetch = 0 : i64, scratch_operands = 0 : i64, tpu.core_type = #tpu.core_type<tc>, window_params = [{transform_indices = @transform_0, window_bounds = array<i64: 162, 512>}, {pipeline_mode = #tpu.pipeline_mode<synchronous>, transform_indices = @transform_1, window_bounds = array<i64: 512, 64>}, {pipeline_mode = #tpu.pipeline_mode<synchronous>, transform_indices = @transform_2, window_bounds = array<i64: 1, 64>}, {transform_indices = @transform_3, window_bounds = array<i64: 162, 64>}]} {
    %c0 = arith.constant 0 : index
    %c0_0 = arith.constant 0 : index
    %0 = vector.load %arg1[%c0, %c0_0] : memref<162x512xf32, #tpu.memory_space<vmem>>, vector<162x512xf32>
    %1 = arith.truncf %0 : vector<162x512xf32> to vector<162x512xbf16>
    %c0_1 = arith.constant 0 : index
    %c0_2 = arith.constant 0 : index
    %2 = vector.load %arg2[%c0_1, %c0_2] : memref<512x64xbf16, #tpu.memory_space<vmem>>, vector<512x64xbf16>
    %cst = arith.constant dense<0.000000e+00> : vector<162x64xf32>
    %3 = tpu.matmul %1, %2, %cst {dimension_numbers = #tpu.dot_dimension_numbers<[1], [0], [0], [1], [0, 0, 1, 1], [], []>} : vector<162x512xbf16>, vector<512x64xbf16>, vector<162x64xf32> -> vector<162x64xf32>
    %c0_3 = arith.constant 0 : index
    %c0_4 = arith.constant 0 : index
    %4 = vector.load %arg3[%c0_3, %c0_4] : memref<1x64xf32, #tpu.memory_space<vmem>>, vector<1x64xf32>
    %5 = vector.broadcast %4 : vector<1x64xf32> to vector<162x64xf32>
    %6 = arith.addf %3, %5 : vector<162x64xf32>
    %cst_5 = arith.constant 0.000000e+00 : f32
    %7 = vector.broadcast %cst_5 : f32 to vector<162x64xf32>
    %8 = arith.maximumf %6, %7 : vector<162x64xf32>
    %c0_6 = arith.constant 0 : index
    %c0_7 = arith.constant 0 : index
    %9 = vector.load %arg4[%c0_6, %c0_7] : memref<162x64xf32, #tpu.memory_space<vmem>>, vector<162x64xf32>
    tpu.vector_store %arg4[%c0_6, %c0_7], %8 {strides = array<i32>} : memref<162x64xf32, #tpu.memory_space<vmem>>, vector<162x64xf32>,
    return
  }
  func.func @transform_0(%arg0: i32) -> (i32, i32) {
    %c0_i32 = arith.constant 0 : i32
    %c0_i32_0 = arith.constant 0 : i32
    return %arg0, %c0_i32 : i32, i32
  }
  func.func @transform_1(%arg0: i32) -> (i32, i32) {
    %c0_i32 = arith.constant 0 : i32
    %c0_i32_0 = arith.constant 0 : i32
    %c0_i32_1 = arith.constant 0 : i32
    return %c0_i32, %c0_i32_0 : i32, i32
  }
  func.func @transform_2(%arg0: i32) -> (i32, i32) {
    %c0_i32 = arith.constant 0 : i32
    %c0_i32_0 = arith.constant 0 : i32
    %c0_i32_1 = arith.constant 0 : i32
    return %c0_i32, %c0_i32_0 : i32, i32
  }
  func.func @transform_3(%arg0: i32) -> (i32, i32) {
    %c0_i32 = arith.constant 0 : i32
    %c0_i32_0 = arith.constant 0 : i32
    return %arg0, %c0_i32 : i32, i32
  }
}

module attributes {stable_mosaic.version = 11 : i64} {
  func.func @_matmul_bias_act_kernel(%arg0: i32, %arg1: memref<98x576xf32, #tpu.memory_space<vmem>>, %arg2: memref<576x64xbf16, #tpu.memory_space<vmem>>, %arg3: memref<1x64xf32, #tpu.memory_space<vmem>>, %arg4: memref<98x64xf32, #tpu.memory_space<vmem>>) attributes {dimension_semantics = [#tpu.dimension_semantics<parallel>], iteration_bounds = array<i64: 1>, scalar_prefetch = 0 : i64, scratch_operands = 0 : i64, tpu.core_type = #tpu.core_type<tc>, window_params = [{transform_indices = @transform_0, window_bounds = array<i64: 98, 576>}, {pipeline_mode = #tpu.pipeline_mode<synchronous>, transform_indices = @transform_1, window_bounds = array<i64: 576, 64>}, {pipeline_mode = #tpu.pipeline_mode<synchronous>, transform_indices = @transform_2, window_bounds = array<i64: 1, 64>}, {transform_indices = @transform_3, window_bounds = array<i64: 98, 64>}]} {
    %c0 = arith.constant 0 : index
    %c0_0 = arith.constant 0 : index
    %0 = vector.load %arg1[%c0, %c0_0] : memref<98x576xf32, #tpu.memory_space<vmem>>, vector<98x576xf32>
    %1 = arith.truncf %0 : vector<98x576xf32> to vector<98x576xbf16>
    %c0_1 = arith.constant 0 : index
    %c0_2 = arith.constant 0 : index
    %2 = vector.load %arg2[%c0_1, %c0_2] : memref<576x64xbf16, #tpu.memory_space<vmem>>, vector<576x64xbf16>
    %cst = arith.constant dense<0.000000e+00> : vector<98x64xf32>
    %3 = tpu.matmul %1, %2, %cst {dimension_numbers = #tpu.dot_dimension_numbers<[1], [0], [0], [1], [0, 0, 1, 1], [], []>} : vector<98x576xbf16>, vector<576x64xbf16>, vector<98x64xf32> -> vector<98x64xf32>
    %c0_3 = arith.constant 0 : index
    %c0_4 = arith.constant 0 : index
    %4 = vector.load %arg3[%c0_3, %c0_4] : memref<1x64xf32, #tpu.memory_space<vmem>>, vector<1x64xf32>
    %5 = vector.broadcast %4 : vector<1x64xf32> to vector<98x64xf32>
    %6 = arith.addf %3, %5 : vector<98x64xf32>
    %cst_5 = arith.constant 0.000000e+00 : f32
    %7 = vector.broadcast %cst_5 : f32 to vector<98x64xf32>
    %8 = arith.maximumf %6, %7 : vector<98x64xf32>
    %c0_6 = arith.constant 0 : index
    %c0_7 = arith.constant 0 : index
    %9 = vector.load %arg4[%c0_6, %c0_7] : memref<98x64xf32, #tpu.memory_space<vmem>>, vector<98x64xf32>
    tpu.vector_store %arg4[%c0_6, %c0_7], %8 {strides = array<i32>} : memref<98x64xf32, #tpu.memory_space<vmem>>, vector<98x64xf32>,
    return
  }
  func.func @transform_0(%arg0: i32) -> (i32, i32) {
    %c0_i32 = arith.constant 0 : i32
    %c0_i32_0 = arith.constant 0 : i32
    return %arg0, %c0_i32 : i32, i32
  }
  func.func @transform_1(%arg0: i32) -> (i32, i32) {
    %c0_i32 = arith.constant 0 : i32
    %c0_i32_0 = arith.constant 0 : i32
    %c0_i32_1 = arith.constant 0 : i32
    return %c0_i32, %c0_i32_0 : i32, i32
  }
  func.func @transform_2(%arg0: i32) -> (i32, i32) {
    %c0_i32 = arith.constant 0 : i32
    %c0_i32_0 = arith.constant 0 : i32
    %c0_i32_1 = arith.constant 0 : i32
    return %c0_i32, %c0_i32_0 : i32, i32
  }
  func.func @transform_3(%arg0: i32) -> (i32, i32) {
    %c0_i32 = arith.constant 0 : i32
    %c0_i32_0 = arith.constant 0 : i32
    return %arg0, %c0_i32 : i32, i32
  }
}

module attributes {stable_mosaic.version = 11 : i64} {
  func.func @_fc_fused_kernel(%arg0: i32, %arg1: memref<2x3136xf32, #tpu.memory_space<vmem>>, %arg2: memref<3136x512xbf16, #tpu.memory_space<vmem>>, %arg3: memref<1x512xf32, #tpu.memory_space<vmem>>, %arg4: memref<512x4xbf16, #tpu.memory_space<vmem>>, %arg5: memref<1x4xf32, #tpu.memory_space<vmem>>, %arg6: memref<2x4xf32, #tpu.memory_space<vmem>>) attributes {dimension_semantics = [#tpu.dimension_semantics<parallel>], iteration_bounds = array<i64: 1>, scalar_prefetch = 0 : i64, scratch_operands = 0 : i64, tpu.core_type = #tpu.core_type<tc>, window_params = [{transform_indices = @transform_0, window_bounds = array<i64: 2, 3136>}, {pipeline_mode = #tpu.pipeline_mode<synchronous>, transform_indices = @transform_1, window_bounds = array<i64: 3136, 512>}, {pipeline_mode = #tpu.pipeline_mode<synchronous>, transform_indices = @transform_2, window_bounds = array<i64: 1, 512>}, {pipeline_mode = #tpu.pipeline_mode<synchronous>, transform_indices = @transform_3, window_bounds = array<i64: 512, 4>}, {pipeline_mode = #tpu.pipeline_mode<synchronous>, transform_indices = @transform_4, window_bounds = array<i64: 1, 4>}, {transform_indices = @transform_5, window_bounds = array<i64: 2, 4>}]} {
    %c0 = arith.constant 0 : index
    %c0_0 = arith.constant 0 : index
    %0 = vector.load %arg1[%c0, %c0_0] : memref<2x3136xf32, #tpu.memory_space<vmem>>, vector<2x3136xf32>
    %1 = arith.truncf %0 : vector<2x3136xf32> to vector<2x3136xbf16>
    %c0_1 = arith.constant 0 : index
    %c0_2 = arith.constant 0 : index
    %2 = vector.load %arg2[%c0_1, %c0_2] : memref<3136x512xbf16, #tpu.memory_space<vmem>>, vector<3136x512xbf16>
    %cst = arith.constant dense<0.000000e+00> : vector<2x512xf32>
    %3 = tpu.matmul %1, %2, %cst {dimension_numbers = #tpu.dot_dimension_numbers<[1], [0], [0], [1], [0, 0, 1, 1], [], []>} : vector<2x3136xbf16>, vector<3136x512xbf16>, vector<2x512xf32> -> vector<2x512xf32>
    %c0_3 = arith.constant 0 : index
    %c0_4 = arith.constant 0 : index
    %4 = vector.load %arg3[%c0_3, %c0_4] : memref<1x512xf32, #tpu.memory_space<vmem>>, vector<1x512xf32>
    %5 = vector.broadcast %4 : vector<1x512xf32> to vector<2x512xf32>
    %6 = arith.addf %3, %5 : vector<2x512xf32>
    %cst_5 = arith.constant 0.000000e+00 : f32
    %7 = vector.broadcast %cst_5 : f32 to vector<2x512xf32>
    %8 = arith.maximumf %6, %7 : vector<2x512xf32>
    %9 = arith.truncf %8 : vector<2x512xf32> to vector<2x512xbf16>
    %c0_6 = arith.constant 0 : index
    %c0_7 = arith.constant 0 : index
    %10 = vector.load %arg4[%c0_6, %c0_7] : memref<512x4xbf16, #tpu.memory_space<vmem>>, vector<512x4xbf16>
    %cst_8 = arith.constant dense<0.000000e+00> : vector<2x4xf32>
    %11 = tpu.matmul %9, %10, %cst_8 {dimension_numbers = #tpu.dot_dimension_numbers<[1], [0], [0], [1], [0, 0, 1, 1], [], []>} : vector<2x512xbf16>, vector<512x4xbf16>, vector<2x4xf32> -> vector<2x4xf32>
    %c0_9 = arith.constant 0 : index
    %c0_10 = arith.constant 0 : index
    %12 = vector.load %arg5[%c0_9, %c0_10] : memref<1x4xf32, #tpu.memory_space<vmem>>, vector<1x4xf32>
    %13 = vector.broadcast %12 : vector<1x4xf32> to vector<2x4xf32>
    %14 = arith.addf %11, %13 : vector<2x4xf32>
    %c0_11 = arith.constant 0 : index
    %c0_12 = arith.constant 0 : index
    %15 = vector.load %arg6[%c0_11, %c0_12] : memref<2x4xf32, #tpu.memory_space<vmem>>, vector<2x4xf32>
    tpu.vector_store %arg6[%c0_11, %c0_12], %14 {strides = array<i32>} : memref<2x4xf32, #tpu.memory_space<vmem>>, vector<2x4xf32>,
    return
  }
  func.func @transform_0(%arg0: i32) -> (i32, i32) {
    %c0_i32 = arith.constant 0 : i32
    %c0_i32_0 = arith.constant 0 : i32
    return %arg0, %c0_i32 : i32, i32
  }
  func.func @transform_1(%arg0: i32) -> (i32, i32) {
    %c0_i32 = arith.constant 0 : i32
    %c0_i32_0 = arith.constant 0 : i32
    %c0_i32_1 = arith.constant 0 : i32
    return %c0_i32, %c0_i32_0 : i32, i32
  }
  func.func @transform_2(%arg0: i32) -> (i32, i32) {
    %c0_i32 = arith.constant 0 : i32
    %c0_i32_0 = arith.constant 0 : i32
    %c0_i32_1 = arith.constant 0 : i32
    return %c0_i32, %c0_i32_0 : i32, i32
  }
  func.func @transform_3(%arg0: i32) -> (i32, i32) {
    %c0_i32 = arith.constant 0 : i32
    %c0_i32_0 = arith.constant 0 : i32
    %c0_i32_1 = arith.constant 0 : i32
    return %c0_i32, %c0_i32_0 : i32, i32
  }
  func.func @transform_4(%arg0: i32) -> (i32, i32) {
    %c0_i32 = arith.constant 0 : i32
    %c0_i32_0 = arith.constant 0 : i32
    %c0_i32_1 = arith.constant 0 : i32
    return %c0_i32, %c0_i32_0 : i32, i32
  }
  func.func @transform_5(%arg0: i32) -> (i32, i32) {
    %c0_i32 = arith.constant 0 : i32
    %c0_i32_0 = arith.constant 0 : i32
    return %arg0, %c0_i32 : i32, i32
  }
}

</mosaic_0001>

<llo_original>
// kernel: qnetwork_forward.4
$region0: #{qnetwork_forward.4}
  #allocation0 [shape = 'u32[]', space=smem, size = 0x4, offset = 0x4, fixed_abs, tag = 'smem constant byte address 0x4 - core index']
  #allocation1 [shape = 'u32[72,128]{1,0:T(1,128)}', space=vmem, size = 0x9000, scoped, tag = 'internal scratch']
  %s0 = inlined_call_operand.vmem [shape: f32[800,192], index: 0, kind: input, shape index: {}]
  %s1 = inlined_call_operand.vmem [shape: bf16[192,32], index: 1, kind: input, shape index: {}]
  %s2 = inlined_call_operand.vmem [shape: f32[1,32], index: 2, kind: input, shape index: {}]
  %s3 = inlined_call_operand.vmem [shape: f32[800,32], index: 3, kind: output, shape index: {}]
  %s4 = sld [smem:[#allocation0]]
  $region93: #{qnetwork_forward.4} parent=0
    _
  %s6 = ssub.s32 1, %s4
  %s7 = scalar_select 0, %s6, %s4
  $region1: #{qnetwork_forward.4} parent=0
    #allocation2 [shape = 'u8[262144]{0}', space=vmem, size = 0x40000, scoped, tag = 'output window, operand 0']
    loop: start=0, step=1, limit=6
    $region2: #{qnetwork_forward.4} parent=1 // loop_pre_header
      _
    $region3: #{qnetwork_forward.4} parent=1 // loop_header
      %s9 = sphi 0, %s13
      %p10 = scmp.ge.s32.totalorder %s9, 6
      %s19 = sphi 0, %s21
      %s22 = sphi 0, %s19
      %s23 = sphi 0, %s22
      %s39 = sphi 0, %s23
      %s43 = sphi 0, %s43
      %s45 = sphi 0, %s43
      %s46 = sphi 0, %s45
      %s60 = sphi 0, %s46
      %s64 = sphi 0, %s64
      %s66 = sphi 0, %s64
      %s67 = sphi 0, %s66
      %s81 = sphi 0, %s67
      %s87 = sphi 0, %s89
      %s90 = sphi 0, %s87
      %s91 = sphi 0, %s90
      %s107 = sphi 0, %s91
    $region4: #{qnetwork_forward.4} parent=1 // loop_header_branch
      %12 = sbr.rel (%p10) target = $region8
    $region5: #{qnetwork_forward.4} parent=1 // loop_body
      %s14 = ssub.s32 %s9, 1
      %s15 = ssub.s32 %s9, 2
      %s16 = sadd.s32 %s9, 1
      %s17 = ssub.s32 %s9, %s16
      %p18 = scmp.eq.s32.totalorder %s17, 0
      %s20 = sadd.s32 %s19, 1
      %s21 = scalar_select %p18, %s19, %s20
      %p24 = pneg %p18
      %p25 = scmp.eq.s32.totalorder %s9, 3
      %p26 = por %p24, %p25
      %p27 = scmp.ne.s32.totalorder %s19, %s22
      %p28 = scmp.eq.s32.totalorder %s9, 0
      %p29 = por %p27, %p28
      %p30 = scmp.ne.s32.totalorder %s19, %s22
      %p31 = scmp.eq.s32.totalorder %s14, 3
      %p32 = por %p30, %p31
      %p33 = scmp.ne.s32.totalorder %s22, %s23
      %p34 = scmp.eq.s32.totalorder %s14, 0
      %p35 = por %p33, %p34
      %p36 = scmp.ne.s32.totalorder %s22, %s23
      %p37 = scmp.eq.s32.totalorder %s15, 3
      %p38 = por %p36, %p37
      %p40 = scmp.ne.s32.totalorder %s23, %s39
      %p41 = scmp.eq.s32.totalorder %s15, 0
      %p42 = por %p40, %p41
      %s44 = sadd.s32 %s43, 1
      %p47 = scmp.eq.s32.totalorder %s9, 3
      %p48 = scmp.ne.s32.totalorder %s43, %s45
      %p49 = scmp.eq.s32.totalorder %s9, 0
      %p50 = por %p48, %p49
      %p51 = scmp.ne.s32.totalorder %s43, %s45
      %p52 = scmp.eq.s32.totalorder %s14, 3
      %p53 = por %p51, %p52
      %p54 = scmp.ne.s32.totalorder %s45, %s46
      %p55 = scmp.eq.s32.totalorder %s14, 0
      %p56 = por %p54, %p55
      %p57 = scmp.ne.s32.totalorder %s45, %s46
      %p58 = scmp.eq.s32.totalorder %s15, 3
      %p59 = por %p57, %p58
      %p61 = scmp.ne.s32.totalorder %s46, %s60
      %p62 = scmp.eq.s32.totalorder %s15, 0
      %p63 = por %p61, %p62
      %s65 = sadd.s32 %s64, 1
      %p68 = scmp.eq.s32.totalorder %s9, 3
      %p69 = scmp.ne.s32.totalorder %s64, %s66
      %p70 = scmp.eq.s32.totalorder %s9, 0
      %p71 = por %p69, %p70
      %p72 = scmp.ne.s32.totalorder %s64, %s66
      %p73 = scmp.eq.s32.totalorder %s14, 3
      %p74 = por %p72, %p73
      %p75 = scmp.ne.s32.totalorder %s66, %s67
      %p76 = scmp.eq.s32.totalorder %s14, 0
      %p77 = por %p75, %p76
      %p78 = scmp.ne.s32.totalorder %s66, %s67
      %p79 = scmp.eq.s32.totalorder %s15, 3
      %p80 = por %p78, %p79
      %p82 = scmp.ne.s32.totalorder %s67, %s81
      %p83 = scmp.eq.s32.totalorder %s15, 0
      %p84 = por %p82, %p83
      %s85 = ssub.s32 %s9, %s16
      %p86 = scmp.eq.s32.totalorder %s85, 0
      %s88 = sadd.s32 %s87, 1
      %s89 = scalar_select %p86, %s87, %s88
      %p92 = pneg %p86
      %p93 = scmp.eq.s32.totalorder %s9, 3
      %p94 = por %p92, %p93
      %p95 = scmp.ne.s32.totalorder %s87, %s90
      %p96 = scmp.eq.s32.totalorder %s9, 0
      %p97 = por %p95, %p96
      %p98 = scmp.ne.s32.totalorder %s87, %s90
      %p99 = scmp.eq.s32.totalorder %s14, 3
      %p100 = por %p98, %p99
      %p101 = scmp.ne.s32.totalorder %s90, %s91
      %p102 = scmp.eq.s32.totalorder %s14, 0
      %p103 = por %p101, %p102
      %p104 = scmp.ne.s32.totalorder %s90, %s91
      %p105 = scmp.eq.s32.totalorder %s15, 3
      %p106 = por %p104, %p105
      %p108 = scmp.ne.s32.totalorder %s91, %s107
      %p109 = scmp.eq.s32.totalorder %s15, 0
      %p110 = por %p108, %p109
      %p111 = scmp.le.s32.totalorder 1, %s9
      %p112 = scmp.lt.s32.totalorder %s9, 5
      %p113 = pnand %p111, %p112
      %p114 = pneg %p113
      // Predicated region
      $region9: #{qnetwork_forward.4} parent=5 // pred_check
        _
      $region10: #{qnetwork_forward.4} parent=5 // pred_check_branch
        %116 = sbr.rel (%p113) target = $region12
      $region11: #{qnetwork_forward.4} parent=5 // pred_region
        %s117 = ssub.s32 %s9, 1
        // Predicated region
        $region13: #{qnetwork_forward.4} parent=11 // pred_check
          %p118 = pneg %p56
        $region14: #{qnetwork_forward.4} parent=11 // pred_check_branch
          %120 = sbr.rel (%p118) target = $region16
        $region15: #{qnetwork_forward.4} parent=11 // pred_region
          _
        $region16: #{qnetwork_forward.4} parent=11 // pred_fallthru
          _
        // Predicated region
        $region17: #{qnetwork_forward.4} parent=11 // pred_check
          %p121 = pneg %p77
        $region18: #{qnetwork_forward.4} parent=11 // pred_check_branch
          %123 = sbr.rel (%p121) target = $region20
        $region19: #{qnetwork_forward.4} parent=11 // pred_region
          _
        $region20: #{qnetwork_forward.4} parent=11 // pred_fallthru
          _
      $region12: #{qnetwork_forward.4} parent=5 // pred_fallthru
        _
      %p124 = scmp.lt.s32.totalorder %s9, 4
      // Predicated region
      $region21: #{qnetwork_forward.4} parent=5 // pred_check
        %p125 = pneg %p124
      $region22: #{qnetwork_forward.4} parent=5 // pred_check_branch
        %127 = sbr.rel (%p125) target = $region24
      $region23: #{qnetwork_forward.4} parent=5 // pred_region
        // Predicated region
        $region25: #{qnetwork_forward.4} parent=23 // pred_check
          %p128 = pneg %p29
        $region26: #{qnetwork_forward.4} parent=23 // pred_check_branch
          %130 = sbr.rel (%p128) target = $region28
        $region27: #{qnetwork_forward.4} parent=23 // pred_region
          %s131 = smul.u32 32, %s9
          %s132 = ssub.s32 100, %s131
          %p133 = scmp.lt.s32.totalorder %s132, 32
          %s134 = scalar_select %p133, %s132, 32
          %s135 = smul.u32 8, %s134
          %s136 = smul.u32 %s135, 2
          %p137 = scmp.lt.s32.totalorder %s131, 99
          %s138 = scalar_select %p137, %s131, 99
          %s139 = smul.addr %s138, 2
          %s140 = smul.addr %s139, 8
          %s141 = scalar_lea.vmem %s0, %s140
          %s142 = smul.u32 32, %s9
          %s143 = ssub.s32 100, %s142
          %p144 = scmp.lt.s32.totalorder %s143, 32
          %s145 = scalar_select %p144, %s143, 32
          %s146 = smul.u32 8, %s145
          %s147 = smul.u32 %s146, 2
        $region28: #{qnetwork_forward.4} parent=23 // pred_fallthru
          _
      $region24: #{qnetwork_forward.4} parent=5 // pred_fallthru
        _
      %p148 = scmp.le.s32.totalorder 1, %s9
      %p149 = scmp.lt.s32.totalorder %s9, 5
      %p150 = pnand %p148, %p149
      %p151 = pneg %p150
      // Predicated region
      $region29: #{qnetwork_forward.4} parent=5 // pred_check
        _
      $region30: #{qnetwork_forward.4} parent=5 // pred_check_branch
        %153 = sbr.rel (%p150) target = $region32
      $region31: #{qnetwork_forward.4} parent=5 // pred_region
        %s154 = ssub.s32 %s9, 1
        %s155 = smul.u32 32, %s14
        %s156 = ssub.s32 100, %s155
        %p157 = scmp.lt.s32.totalorder %s156, 32
        %s158 = scalar_select %p157, %s156, 32
        %s159 = smul.u32 8, %s158
        %s160 = smul.u32 %s159, 2
        %p161 = scmp.lt.s32.totalorder %s155, 99
        %s162 = scalar_select %p161, %s155, 99
        %s163 = smul.addr %s162, 2
        %s164 = smul.addr %s163, 8
        %s165 = scalar_lea.vmem %s0, %s164
        %p166 = pneg %p35
        %p167 = pneg %p32
        %p168 = pneg %p56
        %p169 = pneg %p53
        %p170 = pneg %p77
        %p171 = pneg %p74
        %p172 = pneg %p103
        %p173 = pneg %p100
        %s174 = sand.u32 %s90, 1
        %s175 = sand.u32 %s90, 1
        %s176 = smul.addr %s175, 256
        %s177 = scalar_lea.vmem [#allocation2], %s176
        %s178 = smul.u32 32, %s14
        %s179 = ssub.s32 100, %s178
        %p180 = scmp.lt.s32.totalorder %s179, 32
        %s181 = scalar_select %p180, %s179, 32
        %s182 = smul.u32 8, %s181
        %s183 = smul.u32 %s182, 2
        %p184 = scmp.lt.s32.totalorder %s178, 99
        %s185 = scalar_select %p184, %s178, 99
        %s186 = smul.addr %s185, 2
        %s187 = smul.addr %s186, 8
        %s188 = scalar_lea.vmem %s0, %s187
        %s189 = smul.u32 32, %s14
        %s190 = ssub.s32 100, %s189
        %p191 = scmp.lt.s32.totalorder %s190, 32
        %s192 = scalar_select %p191, %s190, 32
        %s193 = smul.u32 8, %s192
        %s194 = smul.u32 %s193, 2
        %s195 = smul.u32 32, %s14
        %s196 = ssub.s32 100, %s195
        %p197 = scmp.lt.s32.totalorder %s196, 32
        %s198 = scalar_select %p197, %s196, 32
        %s199 = smul.u32 8, %s198
        %v201 = vld [vmem:[%s188] sm:$0xff]
        %v202 = vld [vmem:[%s188 + $0x8] sm:$0xff]
        %v203 = vld [vmem:[%s188 + $0x10] sm:$0xff]
        %v204 = vld [vmem:[%s188 + $0x18] sm:$0xff]
        %v205 = vld [vmem:[%s188 + $0x20] sm:$0xff]
        %v206 = vld [vmem:[%s188 + $0x28] sm:$0xff]
        %v207 = vld [vmem:[%s188 + $0x30] sm:$0xff]
        %v208 = vld [vmem:[%s188 + $0x38] sm:$0xff]
        %v209 = vld [vmem:[%s188 + $0x40] sm:$0xff]
        %v210 = vld [vmem:[%s188 + $0x48] sm:$0xff]
        %v211 = vld [vmem:[%s188 + $0x50] sm:$0xff]
        %v212 = vld [vmem:[%s188 + $0x58] sm:$0xff]
        %v213 = vld [vmem:[%s188 + $0x60] sm:$0xff]
        %v214 = vld [vmem:[%s188 + $0x68] sm:$0xff]
        %v215 = vld [vmem:[%s188 + $0x70] sm:$0xff]
        %v216 = vld [vmem:[%s188 + $0x78] sm:$0xff]
        %v217 = vld [vmem:[%s188 + $0x80] sm:$0xff]
        %v218 = vld [vmem:[%s188 + $0x88] sm:$0xff]
        %v219 = vld [vmem:[%s188 + $0x90] sm:$0xff]
        %v220 = vld [vmem:[%s188 + $0x98] sm:$0xff]
        %v221 = vld [vmem:[%s188 + $0xa0] sm:$0xff]
        %v222 = vld [vmem:[%s188 + $0xa8] sm:$0xff]
        %v223 = vld [vmem:[%s188 + $0xb0] sm:$0xff]
        %v224 = vld [vmem:[%s188 + $0xb8] sm:$0xff]
        %v225 = vld [vmem:[%s188 + $0xc0] sm:$0xff]
        %v226 = vld [vmem:[%s188 + $0xc8] sm:$0xff]
        %v227 = vld [vmem:[%s188 + $0xd0] sm:$0xff]
        %v228 = vld [vmem:[%s188 + $0xd8] sm:$0xff]
        %v229 = vld [vmem:[%s188 + $0xe0] sm:$0xff]
        %v230 = vld [vmem:[%s188 + $0xe8] sm:$0xff]
        %v231 = vld [vmem:[%s188 + $0xf0] sm:$0xff]
        %v232 = vld [vmem:[%s188 + $0xf8] sm:$0xff]
        %v233 = vld [vmem:[%s188 + $0x100] sm:$0xff]
        %v234 = vld [vmem:[%s188 + $0x108] sm:$0xff]
        %v235 = vld [vmem:[%s188 + $0x110] sm:$0xff]
        %v236 = vld [vmem:[%s188 + $0x118] sm:$0xff]
        %v237 = vld [vmem:[%s188 + $0x120] sm:$0xff]
        %v238 = vld [vmem:[%s188 + $0x128] sm:$0xff]
        %v239 = vld [vmem:[%s188 + $0x130] sm:$0xff]
        %v240 = vld [vmem:[%s188 + $0x138] sm:$0xff]
        %v241 = vld [vmem:[%s188 + $0x140] sm:$0xff]
        %v242 = vld [vmem:[%s188 + $0x148] sm:$0xff]
        %v243 = vld [vmem:[%s188 + $0x150] sm:$0xff]
        %v244 = vld [vmem:[%s188 + $0x158] sm:$0xff]
        %v245 = vld [vmem:[%s188 + $0x160] sm:$0xff]
        %v246 = vld [vmem:[%s188 + $0x168] sm:$0xff]
        %v247 = vld [vmem:[%s188 + $0x170] sm:$0xff]
        %v248 = vld [vmem:[%s188 + $0x178] sm:$0xff]
        %v249 = vld [vmem:[%s188 + $0x180] sm:$0xff]
        %v250 = vld [vmem:[%s188 + $0x188] sm:$0xff]
        %v251 = vld [vmem:[%s188 + $0x190] sm:$0xff]
        %v252 = vld [vmem:[%s188 + $0x198] sm:$0xff]
        %v253 = vld [vmem:[%s188 + $0x1a0] sm:$0xff]
        %v254 = vld [vmem:[%s188 + $0x1a8] sm:$0xff]
        %v255 = vld [vmem:[%s188 + $0x1b0] sm:$0xff]
        %v256 = vld [vmem:[%s188 + $0x1b8] sm:$0xff]
        %v257 = vld [vmem:[%s188 + $0x1c0] sm:$0xff]
        %v258 = vld [vmem:[%s188 + $0x1c8] sm:$0xff]
        %v259 = vld [vmem:[%s188 + $0x1d0] sm:$0xff]
        %v260 = vld [vmem:[%s188 + $0x1d8] sm:$0xff]
        %v261 = vld [vmem:[%s188 + $0x1e0] sm:$0xff]
        %v262 = vld [vmem:[%s188 + $0x1e8] sm:$0xff]
        %v263 = vld [vmem:[%s188 + $0x1f0] sm:$0xff]
        %v264 = vld [vmem:[%s188 + $0x1f8] sm:$0xff]
        %v265 = vmul.f32 %v201, 0.003921569
        %v266 = vmul.f32 %v202, 0.003921569
        %v267 = vmul.f32 %v203, 0.003921569
        %v268 = vmul.f32 %v204, 0.003921569
        %v269 = vmul.f32 %v205, 0.003921569
        %v270 = vmul.f32 %v206, 0.003921569
        %v271 = vmul.f32 %v207, 0.003921569
        %v272 = vmul.f32 %v208, 0.003921569
        %v273 = vmul.f32 %v209, 0.003921569
        %v274 = vmul.f32 %v210, 0.003921569
        %v275 = vmul.f32 %v211, 0.003921569
        %v276 = vmul.f32 %v212, 0.003921569
        %v277 = vmul.f32 %v213, 0.003921569
        %v278 = vmul.f32 %v214, 0.003921569
        %v279 = vmul.f32 %v215, 0.003921569
        %v280 = vmul.f32 %v216, 0.003921569
        %v281 = vmul.f32 %v217, 0.003921569
        %v282 = vmul.f32 %v218, 0.003921569
        %v283 = vmul.f32 %v219, 0.003921569
        %v284 = vmul.f32 %v220, 0.003921569
        %v285 = vmul.f32 %v221, 0.003921569
        %v286 = vmul.f32 %v222, 0.003921569
        %v287 = vmul.f32 %v223, 0.003921569
        %v288 = vmul.f32 %v224, 0.003921569
        %v289 = vmul.f32 %v225, 0.003921569
        %v290 = vmul.f32 %v226, 0.003921569
        %v291 = vmul.f32 %v227, 0.003921569
        %v292 = vmul.f32 %v228, 0.003921569
        %v293 = vmul.f32 %v229, 0.003921569
        %v294 = vmul.f32 %v230, 0.003921569
        %v295 = vmul.f32 %v231, 0.003921569
        %v296 = vmul.f32 %v232, 0.003921569
        %v297 = vmul.f32 %v233, 0.003921569
        %v298 = vmul.f32 %v234, 0.003921569
        %v299 = vmul.f32 %v235, 0.003921569
        %v300 = vmul.f32 %v236, 0.003921569
        %v301 = vmul.f32 %v237, 0.003921569
        %v302 = vmul.f32 %v238, 0.003921569
        %v303 = vmul.f32 %v239, 0.003921569
        %v304 = vmul.f32 %v240, 0.003921569
        %v305 = vmul.f32 %v241, 0.003921569
        %v306 = vmul.f32 %v242, 0.003921569
        %v307 = vmul.f32 %v243, 0.003921569
        %v308 = vmul.f32 %v244, 0.003921569
        %v309 = vmul.f32 %v245, 0.003921569
        %v310 = vmul.f32 %v246, 0.003921569
        %v311 = vmul.f32 %v247, 0.003921569
        %v312 = vmul.f32 %v248, 0.003921569
        %v313 = vmul.f32 %v249, 0.003921569
        %v314 = vmul.f32 %v250, 0.003921569
        %v315 = vmul.f32 %v251, 0.003921569
        %v316 = vmul.f32 %v252, 0.003921569
        %v317 = vmul.f32 %v253, 0.003921569
        %v318 = vmul.f32 %v254, 0.003921569
        %v319 = vmul.f32 %v255, 0.003921569
        %v320 = vmul.f32 %v256, 0.003921569
        %v321 = vmul.f32 %v257, 0.003921569
        %v322 = vmul.f32 %v258, 0.003921569
        %v323 = vmul.f32 %v259, 0.003921569
        %v324 = vmul.f32 %v260, 0.003921569
        %v325 = vmul.f32 %v261, 0.003921569
        %v326 = vmul.f32 %v262, 0.003921569
        %v327 = vmul.f32 %v263, 0.003921569
        %v328 = vmul.f32 %v264, 0.003921569
        %v329 = vpack.c.bf16 %v267, %v265
        %v330 = vpack.c.bf16 %v268, %v266
        %v331 = vpack.c.bf16 %v271, %v269
        %v332 = vpack.c.bf16 %v272, %v270
        %v333 = vpack.c.bf16 %v275, %v273
        %v334 = vpack.c.bf16 %v276, %v274
        %v335 = vpack.c.bf16 %v279, %v277
        %v336 = vpack.c.bf16 %v280, %v278
        %v337 = vpack.c.bf16 %v283, %v281
        %v338 = vpack.c.bf16 %v284, %v282
        %v339 = vpack.c.bf16 %v287, %v285
        %v340 = vpack.c.bf16 %v288, %v286
        %v341 = vpack.c.bf16 %v291, %v289
        %v342 = vpack.c.bf16 %v292, %v290
        %v343 = vpack.c.bf16 %v295, %v293
        %v344 = vpack.c.bf16 %v296, %v294
        %v345 = vpack.c.bf16 %v299, %v297
        %v346 = vpack.c.bf16 %v300, %v298
        %v347 = vpack.c.bf16 %v303, %v301
        %v348 = vpack.c.bf16 %v304, %v302
        %v349 = vpack.c.bf16 %v307, %v305
        %v350 = vpack.c.bf16 %v308, %v306
        %v351 = vpack.c.bf16 %v311, %v309
        %v352 = vpack.c.bf16 %v312, %v310
        %v353 = vpack.c.bf16 %v315, %v313
        %v354 = vpack.c.bf16 %v316, %v314
        %v355 = vpack.c.bf16 %v319, %v317
        %v356 = vpack.c.bf16 %v320, %v318
        %v357 = vpack.c.bf16 %v323, %v321
        %v358 = vpack.c.bf16 %v324, %v322
        %v359 = vpack.c.bf16 %v327, %v325
        %v360 = vpack.c.bf16 %v328, %v326
        %v361 = vld [vmem:[%s1] sm:$0xf]
        %v362 = vld [vmem:[%s1 + $0x4] sm:$0xf]
        %v363 = vld [vmem:[%s1 + $0x8] sm:$0xf]
        %v364 = vld [vmem:[%s1 + $0xc] sm:$0xf]
        %v365 = vld [vmem:[%s1 + $0x10] sm:$0xf]
        %v366 = vld [vmem:[%s1 + $0x14] sm:$0xf]
        %v367 = vld [vmem:[%s1 + $0x18] sm:$0xf]
        %v368 = vld [vmem:[%s1 + $0x1c] sm:$0xf]
        %v369 = vld [vmem:[%s1 + $0x20] sm:$0xf]
        %v370 = vld [vmem:[%s1 + $0x24] sm:$0xf]
        %v371 = vld [vmem:[%s1 + $0x28] sm:$0xf]
        %v372 = vld [vmem:[%s1 + $0x2c] sm:$0xf]
        %v373 = vld [vmem:[%s1 + $0x30] sm:$0xf]
        %v374 = vld [vmem:[%s1 + $0x34] sm:$0xf]
        %v375 = vld [vmem:[%s1 + $0x38] sm:$0xf]
        %v376 = vld [vmem:[%s1 + $0x3c] sm:$0xf]
        %v377 = vld [vmem:[%s1 + $0x40] sm:$0xf]
        %v378 = vld [vmem:[%s1 + $0x44] sm:$0xf]
        %v379 = vld [vmem:[%s1 + $0x48] sm:$0xf]
        %v380 = vld [vmem:[%s1 + $0x4c] sm:$0xf]
        %v381 = vld [vmem:[%s1 + $0x50] sm:$0xf]
        %v382 = vld [vmem:[%s1 + $0x54] sm:$0xf]
        %v383 = vld [vmem:[%s1 + $0x58] sm:$0xf]
        %v384 = vld [vmem:[%s1 + $0x5c] sm:$0xf]
        %v385 = vld [vmem:[%s2] sm:$0x1]
        %v387 = vperm.slane %v385, 0
        %v413 = vunpack.c.l.b16 %v361
        %v414 = vunpack.c.l.b16 %v362
        %v415 = vunpack.c.l.b16 %v363
        %v416 = vunpack.c.l.b16 %v364
        %v417 = vunpack.c.l.b16 %v365
        %v418 = vunpack.c.l.b16 %v366
        %v419 = vunpack.c.l.b16 %v367
        %v420 = vunpack.c.l.b16 %v368
        %v421 = vunpack.c.l.b16 %v369
        %v422 = vunpack.c.l.b16 %v370
        %v423 = vunpack.c.l.b16 %v371
        %v424 = vunpack.c.l.b16 %v372
        %v425 = vunpack.c.l.b16 %v373
        %v426 = vunpack.c.l.b16 %v374
        %v427 = vunpack.c.l.b16 %v375
        %v428 = vunpack.c.l.b16 %v376
        %v429 = vunpack.c.l.b16 %v377
        %v430 = vunpack.c.l.b16 %v378
        %v431 = vunpack.c.l.b16 %v379
        %v432 = vunpack.c.l.b16 %v380
        %v433 = vunpack.c.l.b16 %v381
        %v434 = vunpack.c.l.b16 %v382
        %v435 = vunpack.c.l.b16 %v383
        %v436 = vunpack.c.l.b16 %v384
        %v437 = vpack.c.b16 %v414, %v413
        %v438 = vpack.c.b16 %v416, %v415
        %v439 = vpack.c.b16 %v418, %v417
        %v440 = vpack.c.b16 %v420, %v419
        %v441 = vpack.c.b16 %v422, %v421
        %v442 = vpack.c.b16 %v424, %v423
        %v443 = vpack.c.b16 %v426, %v425
        %v444 = vpack.c.b16 %v428, %v427
        %v445 = vpack.c.b16 %v430, %v429
        %v446 = vpack.c.b16 %v432, %v431
        %v447 = vpack.c.b16 %v434, %v433
        %v448 = vpack.c.b16 %v436, %v435
        %vm461 = vcmask 523264
        %v463 = vsel %vm461, %v330, 0
        %v466 = vsel %vm461, %v332, 0
        %v469 = vsel %vm461, %v334, 0
        %v472 = vsel %vm461, %v336, 0
        %v475 = vsel %vm461, %v338, 0
        %v478 = vsel %vm461, %v340, 0
        %v481 = vsel %vm461, %v342, 0
        %v484 = vsel %vm461, %v344, 0
        %v487 = vsel %vm461, %v346, 0
        %v490 = vsel %vm461, %v348, 0
        %v493 = vsel %vm461, %v350, 0
        %v496 = vsel %vm461, %v352, 0
        %v499 = vsel %vm461, %v354, 0
        %v502 = vsel %vm461, %v356, 0
        %v505 = vsel %vm461, %v358, 0
        %v508 = vsel %vm461, %v360, 0
        %510 = vmatpush.bf16.msra.mxu0 %v444
        %511 = vmatpush.bf16.msra.mxu0 %v443
        %512 = vmatpush.bf16.msra.mxu0 %v442
        %513 = vmatpush.bf16.msra.mxu0 %v441
        %514 = vmatpush.bf16.msra.mxu0 %v440
        %515 = vmatpush.bf16.msra.mxu0 %v439
        %516 = vmatpush.bf16.msra.mxu0 %v438
        %517 = vmatpush.bf16.msra.mxu0 %v437
        %518 = vmatmul.bf16.gmra.mxu0 %v329
        %v519 = vpop.f32.mrf.mxu0
        %v520 = vadd.f32 %v387, %v519
        %v521 = vpop.f32.mrf.mxu0
        %v522 = vadd.f32 %v387, %v521
        %523 = vmatmul.bf16.gmra.mxu0 %v331
        %v524 = vpop.f32.mrf.mxu0
        %v525 = vadd.f32 %v387, %v524
        %v526 = vpop.f32.mrf.mxu0
        %v527 = vadd.f32 %v387, %v526
        %528 = vmatmul.bf16.gmra.mxu0 %v333
        %v529 = vpop.f32.mrf.mxu0
        %v530 = vadd.f32 %v387, %v529
        %v531 = vpop.f32.mrf.mxu0
        %v532 = vadd.f32 %v387, %v531
        %533 = vmatmul.bf16.gmra.mxu0 %v335
        %v534 = vpop.f32.mrf.mxu0
        %v535 = vadd.f32 %v387, %v534
        %v536 = vpop.f32.mrf.mxu0
        %v537 = vadd.f32 %v387, %v536
        %538 = vmatmul.bf16.gmra.mxu0 %v337
        %v539 = vpop.f32.mrf.mxu0
        %v540 = vadd.f32 %v387, %v539
        %v541 = vpop.f32.mrf.mxu0
        %v542 = vadd.f32 %v387, %v541
        %543 = vmatmul.bf16.gmra.mxu0 %v339
        %v544 = vpop.f32.mrf.mxu0
        %v545 = vadd.f32 %v387, %v544
        %v546 = vpop.f32.mrf.mxu0
        %v547 = vadd.f32 %v387, %v546
        %548 = vmatmul.bf16.gmra.mxu0 %v341
        %v549 = vpop.f32.mrf.mxu0
        %v550 = vadd.f32 %v387, %v549
        %v551 = vpop.f32.mrf.mxu0
        %v552 = vadd.f32 %v387, %v551
        %553 = vmatmul.bf16.gmra.mxu0 %v343
        %v554 = vpop.f32.mrf.mxu0
        %v555 = vadd.f32 %v387, %v554
        %v556 = vpop.f32.mrf.mxu0
        %v557 = vadd.f32 %v387, %v556
        %558 = vmatmul.bf16.gmra.mxu0 %v345
        %v559 = vpop.f32.mrf.mxu0
        %v560 = vadd.f32 %v387, %v559
        %v561 = vpop.f32.mrf.mxu0
        %v562 = vadd.f32 %v387, %v561
        %563 = vmatmul.bf16.gmra.mxu0 %v347
        %v564 = vpop.f32.mrf.mxu0
        %v565 = vadd.f32 %v387, %v564
        %v566 = vpop.f32.mrf.mxu0
        %v567 = vadd.f32 %v387, %v566
        %568 = vmatmul.bf16.gmra.mxu0 %v349
        %v569 = vpop.f32.mrf.mxu0
        %v570 = vadd.f32 %v387, %v569
        %v571 = vpop.f32.mrf.mxu0
        %v572 = vadd.f32 %v387, %v571
        %573 = vmatmul.bf16.gmra.mxu0 %v351
        %v574 = vpop.f32.mrf.mxu0
        %v575 = vadd.f32 %v387, %v574
        %v576 = vpop.f32.mrf.mxu0
        %v577 = vadd.f32 %v387, %v576
        %578 = vmatmul.bf16.gmra.mxu0 %v353
        %v579 = vpop.f32.mrf.mxu0
        %v580 = vadd.f32 %v387, %v579
        %v581 = vpop.f32.mrf.mxu0
        %v582 = vadd.f32 %v387, %v581
        %583 = vmatmul.bf16.gmra.mxu0 %v355
        %v584 = vpop.f32.mrf.mxu0
        %v585 = vadd.f32 %v387, %v584
        %v586 = vpop.f32.mrf.mxu0
        %v587 = vadd.f32 %v387, %v586
        %588 = vmatmul.bf16.gmra.mxu0 %v357
        %v589 = vpop.f32.mrf.mxu0
        %v590 = vadd.f32 %v387, %v589
        %v591 = vpop.f32.mrf.mxu0
        %v592 = vadd.f32 %v387, %v591
        %593 = vmatmul.bf16.gmra.mxu0 %v359
        %v594 = vpop.f32.mrf.mxu0
        %v595 = vadd.f32 %v387, %v594
        %v596 = vpop.f32.mrf.mxu0
        %v597 = vadd.f32 %v387, %v596
        %598 = vdwg.mxu0
        %599 = vmatpush.bf16.msra.mxu0 0
        %600 = vmatpush.bf16.msra.mxu0 0
        %601 = vmatpush.bf16.msra.mxu0 0
        %602 = vmatpush.bf16.msra.mxu0 0
        %603 = vmatpush.bf16.msra.mxu0 %v448
        %604 = vmatpush.bf16.msra.mxu0 %v447
        %605 = vmatpush.bf16.msra.mxu0 %v446
        %606 = vmatpush.bf16.msra.mxu0 %v445
        %607 = vmatmul.bf16.gmra.mxu0 %v463
        %v608 = vpop.f32.mrf.mxu0
        %v609 = vadd.f32 %v520, %v608
        %v610 = vpop.f32.mrf.mxu0
        %v611 = vadd.f32 %v522, %v610
        %612 = vmatmul.bf16.gmra.mxu0 %v466
        %v613 = vpop.f32.mrf.mxu0
        %v614 = vadd.f32 %v525, %v613
        %v615 = vpop.f32.mrf.mxu0
        %v616 = vadd.f32 %v527, %v615
        %617 = vmatmul.bf16.gmra.mxu0 %v469
        %v618 = vpop.f32.mrf.mxu0
        %v619 = vadd.f32 %v530, %v618
        %v620 = vpop.f32.mrf.mxu0
        %v621 = vadd.f32 %v532, %v620
        %622 = vmatmul.bf16.gmra.mxu0 %v472
        %v623 = vpop.f32.mrf.mxu0
        %v624 = vadd.f32 %v535, %v623
        %v625 = vpop.f32.mrf.mxu0
        %v626 = vadd.f32 %v537, %v625
        %627 = vmatmul.bf16.gmra.mxu0 %v475
        %v628 = vpop.f32.mrf.mxu0
        %v629 = vadd.f32 %v540, %v628
        %v630 = vpop.f32.mrf.mxu0
        %v631 = vadd.f32 %v542, %v630
        %632 = vmatmul.bf16.gmra.mxu0 %v478
        %v633 = vpop.f32.mrf.mxu0
        %v634 = vadd.f32 %v545, %v633
        %v635 = vpop.f32.mrf.mxu0
        %v636 = vadd.f32 %v547, %v635
        %637 = vmatmul.bf16.gmra.mxu0 %v481
        %v638 = vpop.f32.mrf.mxu0
        %v639 = vadd.f32 %v550, %v638
        %v640 = vpop.f32.mrf.mxu0
        %v641 = vadd.f32 %v552, %v640
        %642 = vmatmul.bf16.gmra.mxu0 %v484
        %v643 = vpop.f32.mrf.mxu0
        %v644 = vadd.f32 %v555, %v643
        %v645 = vpop.f32.mrf.mxu0
        %v646 = vadd.f32 %v557, %v645
        %647 = vmatmul.bf16.gmra.mxu0 %v487
        %v648 = vpop.f32.mrf.mxu0
        %v649 = vadd.f32 %v560, %v648
        %v650 = vpop.f32.mrf.mxu0
        %v651 = vadd.f32 %v562, %v650
        %652 = vmatmul.bf16.gmra.mxu0 %v490
        %v653 = vpop.f32.mrf.mxu0
        %v654 = vadd.f32 %v565, %v653
        %v655 = vpop.f32.mrf.mxu0
        %v656 = vadd.f32 %v567, %v655
        %657 = vmatmul.bf16.gmra.mxu0 %v493
        %v658 = vpop.f32.mrf.mxu0
        %v659 = vadd.f32 %v570, %v658
        %v660 = vpop.f32.mrf.mxu0
        %v661 = vadd.f32 %v572, %v660
        %662 = vmatmul.bf16.gmra.mxu0 %v496
        %v663 = vpop.f32.mrf.mxu0
        %v664 = vadd.f32 %v575, %v663
        %v665 = vpop.f32.mrf.mxu0
        %v666 = vadd.f32 %v577, %v665
        %667 = vmatmul.bf16.gmra.mxu0 %v499
        %v668 = vpop.f32.mrf.mxu0
        %v669 = vadd.f32 %v580, %v668
        %v670 = vpop.f32.mrf.mxu0
        %v671 = vadd.f32 %v582, %v670
        %672 = vmatmul.bf16.gmra.mxu0 %v502
        %v673 = vpop.f32.mrf.mxu0
        %v674 = vadd.f32 %v585, %v673
        %v675 = vpop.f32.mrf.mxu0
        %v676 = vadd.f32 %v587, %v675
        %677 = vmatmul.bf16.gmra.mxu0 %v505
        %v678 = vpop.f32.mrf.mxu0
        %v679 = vadd.f32 %v590, %v678
        %v680 = vpop.f32.mrf.mxu0
        %v681 = vadd.f32 %v592, %v680
        %682 = vmatmul.bf16.gmra.mxu0 %v508
        %v683 = vpop.f32.mrf.mxu0
        %v684 = vadd.f32 %v595, %v683
        %v685 = vpop.f32.mrf.mxu0
        %v686 = vadd.f32 %v597, %v685
        %687 = vdwg.mxu0
        %v688 = vmax.f32 %v609, 0.0
        %v689 = vmax.f32 %v611, 0.0
        %v690 = vmax.f32 %v614, 0.0
        %v691 = vmax.f32 %v616, 0.0
        %v692 = vmax.f32 %v619, 0.0
        %v693 = vmax.f32 %v621, 0.0
        %v694 = vmax.f32 %v624, 0.0
        %v695 = vmax.f32 %v626, 0.0
        %v696 = vmax.f32 %v629, 0.0
        %v697 = vmax.f32 %v631, 0.0
        %v698 = vmax.f32 %v634, 0.0
        %v699 = vmax.f32 %v636, 0.0
        %v700 = vmax.f32 %v639, 0.0
        %v701 = vmax.f32 %v641, 0.0
        %v702 = vmax.f32 %v644, 0.0
        %v703 = vmax.f32 %v646, 0.0
        %v704 = vmax.f32 %v649, 0.0
        %v705 = vmax.f32 %v651, 0.0
        %v706 = vmax.f32 %v654, 0.0
        %v707 = vmax.f32 %v656, 0.0
        %v708 = vmax.f32 %v659, 0.0
        %v709 = vmax.f32 %v661, 0.0
        %v710 = vmax.f32 %v664, 0.0
        %v711 = vmax.f32 %v666, 0.0
        %v712 = vmax.f32 %v669, 0.0
        %v713 = vmax.f32 %v671, 0.0
        %v714 = vmax.f32 %v674, 0.0
        %v715 = vmax.f32 %v676, 0.0
        %v716 = vmax.f32 %v679, 0.0
        %v717 = vmax.f32 %v681, 0.0
        %v718 = vmax.f32 %v684, 0.0
        %v719 = vmax.f32 %v686, 0.0
        %vm720 = vcmask 261120
        %721 = vst.msk [vmem:[%s177] sm:$0xff] %vm720, %v688
        %722 = vst.msk [vmem:[%s177 + $0x8] sm:$0xff] %vm720, %v689
        %723 = vst.msk [vmem:[%s177 + $0x10] sm:$0xff] %vm720, %v690
        %724 = vst.msk [vmem:[%s177 + $0x18] sm:$0xff] %vm720, %v691
        %725 = vst.msk [vmem:[%s177 + $0x20] sm:$0xff] %vm720, %v692
        %726 = vst.msk [vmem:[%s177 + $0x28] sm:$0xff] %vm720, %v693
        %727 = vst.msk [vmem:[%s177 + $0x30] sm:$0xff] %vm720, %v694
        %728 = vst.msk [vmem:[%s177 + $0x38] sm:$0xff] %vm720, %v695
        %729 = vst.msk [vmem:[%s177 + $0x40] sm:$0xff] %vm720, %v696
        %730 = vst.msk [vmem:[%s177 + $0x48] sm:$0xff] %vm720, %v697
        %731 = vst.msk [vmem:[%s177 + $0x50] sm:$0xff] %vm720, %v698
        %732 = vst.msk [vmem:[%s177 + $0x58] sm:$0xff] %vm720, %v699
        %733 = vst.msk [vmem:[%s177 + $0x60] sm:$0xff] %vm720, %v700
        %734 = vst.msk [vmem:[%s177 + $0x68] sm:$0xff] %vm720, %v701
        %735 = vst.msk [vmem:[%s177 + $0x70] sm:$0xff] %vm720, %v702
        %736 = vst.msk [vmem:[%s177 + $0x78] sm:$0xff] %vm720, %v703
        %737 = vst.msk [vmem:[%s177 + $0x80] sm:$0xff] %vm720, %v704
        %738 = vst.msk [vmem:[%s177 + $0x88] sm:$0xff] %vm720, %v705
        %739 = vst.msk [vmem:[%s177 + $0x90] sm:$0xff] %vm720, %v706
        %740 = vst.msk [vmem:[%s177 + $0x98] sm:$0xff] %vm720, %v707
        %741 = vst.msk [vmem:[%s177 + $0xa0] sm:$0xff] %vm720, %v708
        %742 = vst.msk [vmem:[%s177 + $0xa8] sm:$0xff] %vm720, %v709
        %743 = vst.msk [vmem:[%s177 + $0xb0] sm:$0xff] %vm720, %v710
        %744 = vst.msk [vmem:[%s177 + $0xb8] sm:$0xff] %vm720, %v711
        %745 = vst.msk [vmem:[%s177 + $0xc0] sm:$0xff] %vm720, %v712
        %746 = vst.msk [vmem:[%s177 + $0xc8] sm:$0xff] %vm720, %v713
        %747 = vst.msk [vmem:[%s177 + $0xd0] sm:$0xff] %vm720, %v714
        %748 = vst.msk [vmem:[%s177 + $0xd8] sm:$0xff] %vm720, %v715
        %749 = vst.msk [vmem:[%s177 + $0xe0] sm:$0xff] %vm720, %v716
        %750 = vst.msk [vmem:[%s177 + $0xe8] sm:$0xff] %vm720, %v717
        %751 = vst.msk [vmem:[%s177 + $0xf0] sm:$0xff] %vm720, %v718
        %752 = vst.msk [vmem:[%s177 + $0xf8] sm:$0xff] %vm720, %v719
        %s753 = sand.u32 %s90, 1
        %s754 = sand.u32 %s90, 1
        %s755 = smul.addr %s754, 256
        %s756 = scalar_lea.vmem [#allocation2], %s755
        // Predicated region
        $region33: #{qnetwork_forward.4} parent=31 // pred_check
          %p757 = pneg %p100
        $region34: #{qnetwork_forward.4} parent=31 // pred_check_branch
          %759 = sbr.rel (%p757) target = $region36
        $region35: #{qnetwork_forward.4} parent=31 // pred_region
          %s760 = smul.u32 32, %s14
          %s761 = ssub.s32 100, %s760
          %p762 = scmp.lt.s32.totalorder %s761, 32
          %s763 = scalar_select %p762, %s761, 32
          %s764 = smul.u32 8, %s763
          %p765 = scmp.ne.s32.totalorder 0, %s764
          %s766 = smul.addr %s760, 8
          %s767 = scalar_lea.vmem %s3, %s766
          // Predicated region
          $region37: #{qnetwork_forward.4} parent=35 // pred_check
            %p768 = pneg %p765
          $region38: #{qnetwork_forward.4} parent=35 // pred_check_branch
            %770 = sbr.rel (%p768) target = $region40
          $region39: #{qnetwork_forward.4} parent=35 // pred_region
            // Predicated region
            $region41: #{qnetwork_forward.4} parent=39 // pred_check
              _
            $region42: #{qnetwork_forward.4} parent=39 // pred_check_branch
              %772 = sbr.rel (0) target = $region44
            $region43: #{qnetwork_forward.4} parent=39 // pred_region
              // Predicated region
              $region63: #{qnetwork_forward.4} parent=43 // pred_check
                _
              $region64: #{qnetwork_forward.4} parent=43 // pred_check_branch
                %884 = sbr.rel (0) target = $region66
              $region65: #{qnetwork_forward.4} parent=43 // pred_region
                %s885 = sshrl.u32 %s763, 5
                // While loop
                $region67: #{qnetwork_forward.4} parent=65 // loop_pre_header
                  _
                $region68: #{qnetwork_forward.4} parent=65 // loop_header
                  %s887 = sphi 0, %s889
                  %p888 = scmp.ge.s32.totalorder %s887, %s885
                  %s892 = sphi 0, %s961
                  %s893 = sphi %s756, %s964
                  %s894 = sphi %s767, %s965
                $region69: #{qnetwork_forward.4} parent=65 // loop_header_branch
                  %891 = sbr.rel (%p888) target = $region73
                $region70: #{qnetwork_forward.4} parent=65 // loop_body
                  %v895 = vld [vmem:[%s893] sm:$0xff]
                  %896 = vst [vmem:[%s894] sm:$0xff] %v895
                  %v897 = vld [vmem:[%s893 + $0x8] sm:$0xff]
                  %898 = vst [vmem:[%s894 + $0x8] sm:$0xff] %v897
                  %v899 = vld [vmem:[%s893 + $0x10] sm:$0xff]
                  %900 = vst [vmem:[%s894 + $0x10] sm:$0xff] %v899
                  %v901 = vld [vmem:[%s893 + $0x18] sm:$0xff]
                  %902 = vst [vmem:[%s894 + $0x18] sm:$0xff] %v901
                  %v903 = vld [vmem:[%s893 + $0x20] sm:$0xff]
                  %904 = vst [vmem:[%s894 + $0x20] sm:$0xff] %v903
                  %v905 = vld [vmem:[%s893 + $0x28] sm:$0xff]
                  %906 = vst [vmem:[%s894 + $0x28] sm:$0xff] %v905
                  %v907 = vld [vmem:[%s893 + $0x30] sm:$0xff]
                  %908 = vst [vmem:[%s894 + $0x30] sm:$0xff] %v907
                  %v909 = vld [vmem:[%s893 + $0x38] sm:$0xff]
                  %910 = vst [vmem:[%s894 + $0x38] sm:$0xff] %v909
                  %v911 = vld [vmem:[%s893 + $0x40] sm:$0xff]
                  %912 = vst [vmem:[%s894 + $0x40] sm:$0xff] %v911
                  %v913 = vld [vmem:[%s893 + $0x48] sm:$0xff]
                  %914 = vst [vmem:[%s894 + $0x48] sm:$0xff] %v913
                  %v915 = vld [vmem:[%s893 + $0x50] sm:$0xff]
                  %916 = vst [vmem:[%s894 + $0x50] sm:$0xff] %v915
                  %v917 = vld [vmem:[%s893 + $0x58] sm:$0xff]
                  %918 = vst [vmem:[%s894 + $0x58] sm:$0xff] %v917
                  %v919 = vld [vmem:[%s893 + $0x60] sm:$0xff]
                  %920 = vst [vmem:[%s894 + $0x60] sm:$0xff] %v919
                  %v921 = vld [vmem:[%s893 + $0x68] sm:$0xff]
                  %922 = vst [vmem:[%s894 + $0x68] sm:$0xff] %v921
                  %v923 = vld [vmem:[%s893 + $0x70] sm:$0xff]
                  %924 = vst [vmem:[%s894 + $0x70] sm:$0xff] %v923
                  %v925 = vld [vmem:[%s893 + $0x78] sm:$0xff]
                  %926 = vst [vmem:[%s894 + $0x78] sm:$0xff] %v925
                  %v927 = vld [vmem:[%s893 + $0x80] sm:$0xff]
                  %928 = vst [vmem:[%s894 + $0x80] sm:$0xff] %v927
                  %v929 = vld [vmem:[%s893 + $0x88] sm:$0xff]
                  %930 = vst [vmem:[%s894 + $0x88] sm:$0xff] %v929
                  %v931 = vld [vmem:[%s893 + $0x90] sm:$0xff]
                  %932 = vst [vmem:[%s894 + $0x90] sm:$0xff] %v931
                  %v933 = vld [vmem:[%s893 + $0x98] sm:$0xff]
                  %934 = vst [vmem:[%s894 + $0x98] sm:$0xff] %v933
                  %v935 = vld [vmem:[%s893 + $0xa0] sm:$0xff]
                  %936 = vst [vmem:[%s894 + $0xa0] sm:$0xff] %v935
                  %v937 = vld [vmem:[%s893 + $0xa8] sm:$0xff]
                  %938 = vst [vmem:[%s894 + $0xa8] sm:$0xff] %v937
                  %v939 = vld [vmem:[%s893 + $0xb0] sm:$0xff]
                  %940 = vst [vmem:[%s894 + $0xb0] sm:$0xff] %v939
                  %v941 = vld [vmem:[%s893 + $0xb8] sm:$0xff]
                  %942 = vst [vmem:[%s894 + $0xb8] sm:$0xff] %v941
                  %v943 = vld [vmem:[%s893 + $0xc0] sm:$0xff]
                  %944 = vst [vmem:[%s894 + $0xc0] sm:$0xff] %v943
                  %v945 = vld [vmem:[%s893 + $0xc8] sm:$0xff]
                  %946 = vst [vmem:[%s894 + $0xc8] sm:$0xff] %v945
                  %v947 = vld [vmem:[%s893 + $0xd0] sm:$0xff]
                  %948 = vst [vmem:[%s894 + $0xd0] sm:$0xff] %v947
                  %v949 = vld [vmem:[%s893 + $0xd8] sm:$0xff]
                  %950 = vst [vmem:[%s894 + $0xd8] sm:$0xff] %v949
                  %v951 = vld [vmem:[%s893 + $0xe0] sm:$0xff]
                  %952 = vst [vmem:[%s894 + $0xe0] sm:$0xff] %v951
                  %v953 = vld [vmem:[%s893 + $0xe8] sm:$0xff]
                  %954 = vst [vmem:[%s894 + $0xe8] sm:$0xff] %v953
                  %v955 = vld [vmem:[%s893 + $0xf0] sm:$0xff]
                  %956 = vst [vmem:[%s894 + $0xf0] sm:$0xff] %v955
                  %v957 = vld [vmem:[%s893 + $0xf8] sm:$0xff]
                  %958 = vst [vmem:[%s894 + $0xf8] sm:$0xff] %v957
                  %s959 = sadd.s32 1, %s892
                  %p960 = scmp.ge.s32.totalorder %s959, %s885
                  %s961 = scalar_select %p960, 0, %s959
                  %s962 = smul.u32 %s961, 256
                  %s963 = smul.u32 %s961, 256
                  %s964 = scalar_lea.vmem %s756, %s962 [#allocation2]
                  %s965 = scalar_lea.vmem %s767, %s963
                $region71: #{qnetwork_forward.4} parent=65 // loop_footer
                  %s889 = sadd.s32 %s887, 1
                $region72: #{qnetwork_forward.4} parent=65 // loop_footer_branch
                  %886 = sbr.rel target = $region68
                $region73: #{qnetwork_forward.4} parent=65 // loop_exit
                  _
                %s966 = sshrl.u32 %s763, 5
                %s967 = sand.u32 %s763, 31
                %s968 = smul.u32 %s966, 32
                %s969 = smul.u32 8, %s968
                %s970 = scalar_lea.vmem %s756, %s969 [#allocation2]
                %s971 = smul.u32 8, %s968
                %s972 = scalar_lea.vmem %s767, %s971
                // While loop
                $region74: #{qnetwork_forward.4} parent=65 // loop_pre_header
                  _
                $region75: #{qnetwork_forward.4} parent=65 // loop_header
                  %s974 = sphi 0, %s976
                  %p975 = scmp.ge.s32.totalorder %s974, %s967
                  %s979 = sphi 0, %s986
                  %s980 = sphi %s970, %s989
                  %s981 = sphi %s972, %s990
                $region76: #{qnetwork_forward.4} parent=65 // loop_header_branch
                  %978 = sbr.rel (%p975) target = $region80
                $region77: #{qnetwork_forward.4} parent=65 // loop_body
                  %v982 = vld [vmem:[%s980] sm:$0xff]
                  %983 = vst [vmem:[%s981] sm:$0xff] %v982
                  %s984 = sadd.s32 1, %s979
                  %p985 = scmp.ge.s32.totalorder %s984, %s967
                  %s986 = scalar_select %p985, 0, %s984
                  %s987 = smul.u32 %s986, 8
                  %s988 = smul.u32 %s986, 8
                  %s989 = scalar_lea.vmem %s970, %s987 [#allocation2]
                  %s990 = scalar_lea.vmem %s972, %s988
                $region78: #{qnetwork_forward.4} parent=65 // loop_footer
                  %s976 = sadd.s32 %s974, 1
                $region79: #{qnetwork_forward.4} parent=65 // loop_footer_branch
                  %973 = sbr.rel target = $region75
                $region80: #{qnetwork_forward.4} parent=65 // loop_exit
                  _
              $region66: #{qnetwork_forward.4} parent=43 // pred_fallthru
                _
              // Predicated region
              $region81: #{qnetwork_forward.4} parent=43 // pred_check
                _
              $region82: #{qnetwork_forward.4} parent=43 // pred_check_branch
                %992 = sbr.rel target = $region84
              $region83: #{qnetwork_forward.4} parent=43 // pred_region
                _
              $region84: #{qnetwork_forward.4} parent=43 // pred_fallthru
                _
            $region44: #{qnetwork_forward.4} parent=39 // pred_fallthru
              _
            // Predicated region
            $region45: #{qnetwork_forward.4} parent=39 // pred_check
              _
            $region46: #{qnetwork_forward.4} parent=39 // pred_check_branch
              %774 = sbr.rel target = $region48
            $region47: #{qnetwork_forward.4} parent=39 // pred_region
              %s776 = ssub.s32 256, 1
              %s777 = sshrl.u32 %s763, 5
              // While loop
              $region49: #{qnetwork_forward.4} parent=47 // loop_pre_header
                _
              $region50: #{qnetwork_forward.4} parent=47 // loop_header
                %s779 = sphi 0, %s781
                %p780 = scmp.ge.s32.totalorder %s779, %s777
                %s784 = sphi 0, %s853
                %s785 = sphi %s756, %s856
                %s786 = sphi %s767, %s857
              $region51: #{qnetwork_forward.4} parent=47 // loop_header_branch
                %783 = sbr.rel (%p780) target = $region55
              $region52: #{qnetwork_forward.4} parent=47 // loop_body
                %v787 = vld [vmem:[%s785] sm:%s776]
                %788 = vst [vmem:[%s786] sm:%s776] %v787
                %v789 = vld [vmem:[%s785 + $0x8] sm:%s776]
                %790 = vst [vmem:[%s786 + $0x8] sm:%s776] %v789
                %v791 = vld [vmem:[%s785 + $0x10] sm:%s776]
                %792 = vst [vmem:[%s786 + $0x10] sm:%s776] %v791
                %v793 = vld [vmem:[%s785 + $0x18] sm:%s776]
                %794 = vst [vmem:[%s786 + $0x18] sm:%s776] %v793
                %v795 = vld [vmem:[%s785 + $0x20] sm:%s776]
                %796 = vst [vmem:[%s786 + $0x20] sm:%s776] %v795
                %v797 = vld [vmem:[%s785 + $0x28] sm:%s776]
                %798 = vst [vmem:[%s786 + $0x28] sm:%s776] %v797
                %v799 = vld [vmem:[%s785 + $0x30] sm:%s776]
                %800 = vst [vmem:[%s786 + $0x30] sm:%s776] %v799
                %v801 = vld [vmem:[%s785 + $0x38] sm:%s776]
                %802 = vst [vmem:[%s786 + $0x38] sm:%s776] %v801
                %v803 = vld [vmem:[%s785 + $0x40] sm:%s776]
                %804 = vst [vmem:[%s786 + $0x40] sm:%s776] %v803
                %v805 = vld [vmem:[%s785 + $0x48] sm:%s776]
                %806 = vst [vmem:[%s786 + $0x48] sm:%s776] %v805
                %v807 = vld [vmem:[%s785 + $0x50] sm:%s776]
                %808 = vst [vmem:[%s786 + $0x50] sm:%s776] %v807
                %v809 = vld [vmem:[%s785 + $0x58] sm:%s776]
                %810 = vst [vmem:[%s786 + $0x58] sm:%s776] %v809
                %v811 = vld [vmem:[%s785 + $0x60] sm:%s776]
                %812 = vst [vmem:[%s786 + $0x60] sm:%s776] %v811
                %v813 = vld [vmem:[%s785 + $0x68] sm:%s776]
                %814 = vst [vmem:[%s786 + $0x68] sm:%s776] %v813
                %v815 = vld [vmem:[%s785 + $0x70] sm:%s776]
                %816 = vst [vmem:[%s786 + $0x70] sm:%s776] %v815
                %v817 = vld [vmem:[%s785 + $0x78] sm:%s776]
                %818 = vst [vmem:[%s786 + $0x78] sm:%s776] %v817
                %v819 = vld [vmem:[%s785 + $0x80] sm:%s776]
                %820 = vst [vmem:[%s786 + $0x80] sm:%s776] %v819
                %v821 = vld [vmem:[%s785 + $0x88] sm:%s776]
                %822 = vst [vmem:[%s786 + $0x88] sm:%s776] %v821
                %v823 = vld [vmem:[%s785 + $0x90] sm:%s776]
                %824 = vst [vmem:[%s786 + $0x90] sm:%s776] %v823
                %v825 = vld [vmem:[%s785 + $0x98] sm:%s776]
                %826 = vst [vmem:[%s786 + $0x98] sm:%s776] %v825
                %v827 = vld [vmem:[%s785 + $0xa0] sm:%s776]
                %828 = vst [vmem:[%s786 + $0xa0] sm:%s776] %v827
                %v829 = vld [vmem:[%s785 + $0xa8] sm:%s776]
                %830 = vst [vmem:[%s786 + $0xa8] sm:%s776] %v829
                %v831 = vld [vmem:[%s785 + $0xb0] sm:%s776]
                %832 = vst [vmem:[%s786 + $0xb0] sm:%s776] %v831
                %v833 = vld [vmem:[%s785 + $0xb8] sm:%s776]
                %834 = vst [vmem:[%s786 + $0xb8] sm:%s776] %v833
                %v835 = vld [vmem:[%s785 + $0xc0] sm:%s776]
                %836 = vst [vmem:[%s786 + $0xc0] sm:%s776] %v835
                %v837 = vld [vmem:[%s785 + $0xc8] sm:%s776]
                %838 = vst [vmem:[%s786 + $0xc8] sm:%s776] %v837
                %v839 = vld [vmem:[%s785 + $0xd0] sm:%s776]
                %840 = vst [vmem:[%s786 + $0xd0] sm:%s776] %v839
                %v841 = vld [vmem:[%s785 + $0xd8] sm:%s776]
                %842 = vst [vmem:[%s786 + $0xd8] sm:%s776] %v841
                %v843 = vld [vmem:[%s785 + $0xe0] sm:%s776]
                %844 = vst [vmem:[%s786 + $0xe0] sm:%s776] %v843
                %v845 = vld [vmem:[%s785 + $0xe8] sm:%s776]
                %846 = vst [vmem:[%s786 + $0xe8] sm:%s776] %v845
                %v847 = vld [vmem:[%s785 + $0xf0] sm:%s776]
                %848 = vst [vmem:[%s786 + $0xf0] sm:%s776] %v847
                %v849 = vld [vmem:[%s785 + $0xf8] sm:%s776]
                %850 = vst [vmem:[%s786 + $0xf8] sm:%s776] %v849
                %s851 = sadd.s32 1, %s784
                %p852 = scmp.ge.s32.totalorder %s851, %s777
                %s853 = scalar_select %p852, 0, %s851
                %s854 = smul.u32 %s853, 256
                %s855 = smul.u32 %s853, 256
                %s856 = scalar_lea.vmem %s756, %s854 [#allocation2]
                %s857 = scalar_lea.vmem %s767, %s855
              $region53: #{qnetwork_forward.4} parent=47 // loop_footer
                %s781 = sadd.s32 %s779, 1
              $region54: #{qnetwork_forward.4} parent=47 // loop_footer_branch
                %778 = sbr.rel target = $region50
              $region55: #{qnetwork_forward.4} parent=47 // loop_exit
                _
              %s858 = sshrl.u32 %s763, 5
              %s859 = sand.u32 %s763, 31
              %s860 = smul.u32 %s858, 32
              %s861 = smul.u32 8, %s860
              %s862 = scalar_lea.vmem %s756, %s861 [#allocation2]
              %s863 = smul.u32 8, %s860
              %s864 = scalar_lea.vmem %s767, %s863
              // While loop
              $region56: #{qnetwork_forward.4} parent=47 // loop_pre_header
                _
              $region57: #{qnetwork_forward.4} parent=47 // loop_header
                %s866 = sphi 0, %s868
                %p867 = scmp.ge.s32.totalorder %s866, %s859
                %s871 = sphi 0, %s878
                %s872 = sphi %s862, %s881
                %s873 = sphi %s864, %s882
              $region58: #{qnetwork_forward.4} parent=47 // loop_header_branch
                %870 = sbr.rel (%p867) target = $region62
              $region59: #{qnetwork_forward.4} parent=47 // loop_body
                %v874 = vld [vmem:[%s872] sm:%s776]
                %875 = vst [vmem:[%s873] sm:%s776] %v874
                %s876 = sadd.s32 1, %s871
                %p877 = scmp.ge.s32.totalorder %s876, %s859
                %s878 = scalar_select %p877, 0, %s876
                %s879 = smul.u32 %s878, 8
                %s880 = smul.u32 %s878, 8
                %s881 = scalar_lea.vmem %s862, %s879 [#allocation2]
                %s882 = scalar_lea.vmem %s864, %s880
              $region60: #{qnetwork_forward.4} parent=47 // loop_footer
                %s868 = sadd.s32 %s866, 1
              $region61: #{qnetwork_forward.4} parent=47 // loop_footer_branch
                %865 = sbr.rel target = $region57
              $region62: #{qnetwork_forward.4} parent=47 // loop_exit
                _
            $region48: #{qnetwork_forward.4} parent=39 // pred_fallthru
              _
          $region40: #{qnetwork_forward.4} parent=35 // pred_fallthru
            _
          %993 = vnop
        $region36: #{qnetwork_forward.4} parent=31 // pred_fallthru
          _
      $region32: #{qnetwork_forward.4} parent=5 // pred_fallthru
        _
      %p994 = scmp.le.s32.totalorder 2, %s9
      // Predicated region
      $region85: #{qnetwork_forward.4} parent=5 // pred_check
        %p995 = pneg %p994
      $region86: #{qnetwork_forward.4} parent=5 // pred_check_branch
        %997 = sbr.rel (%p995) target = $region88
      $region87: #{qnetwork_forward.4} parent=5 // pred_region
        %s998 = ssub.s32 %s9, 2
        // Predicated region
        $region89: #{qnetwork_forward.4} parent=87 // pred_check
          %p999 = pneg %p106
        $region90: #{qnetwork_forward.4} parent=87 // pred_check_branch
          %1001 = sbr.rel (%p999) target = $region92
        $region91: #{qnetwork_forward.4} parent=87 // pred_region
          %s1002 = sand.u32 %s91, 1
          %s1003 = sand.u32 %s91, 1
          %s1004 = smul.addr %s1003, 256
          %s1005 = scalar_lea.vmem [#allocation2], %s1004
        $region92: #{qnetwork_forward.4} parent=87 // pred_fallthru
          _
      $region88: #{qnetwork_forward.4} parent=5 // pred_fallthru
        _
    $region6: #{qnetwork_forward.4} parent=1 // loop_footer
      %s13 = sadd.s32 1, %s9
    $region7: #{qnetwork_forward.4} parent=1 // loop_footer_branch
      %8 = sbr.rel target = $region3
    $region8: #{qnetwork_forward.4} parent=1 // loop_exit
      _

// kernel: qnetwork_forward.5
$region0: #{qnetwork_forward.5}
  #allocation0 [shape = 'u32[]', space=smem, size = 0x4, offset = 0x4, fixed_abs, tag = 'smem constant byte address 0x4 - core index']
  #allocation1 [shape = 'u32[72,128]{1,0:T(1,128)}', space=vmem, size = 0x9000, scoped, tag = 'internal scratch']
  %s0 = inlined_call_operand.vmem [shape: f32[162,512], index: 0, kind: input, shape index: {}]
  %s1 = inlined_call_operand.vmem [shape: bf16[512,64], index: 1, kind: input, shape index: {}]
  %s2 = inlined_call_operand.vmem [shape: f32[1,64], index: 2, kind: input, shape index: {}]
  %s3 = inlined_call_operand.vmem [shape: f32[162,64], index: 3, kind: output, shape index: {}]
  %s4 = sld [smem:[#allocation0]]
  $region22: #{qnetwork_forward.5} parent=0
    _
  %s6 = ssub.s32 1, %s4
  %s7 = scalar_select 0, %s6, %s4
  // Predicated region
  $region2: #{qnetwork_forward.5} parent=0 // pred_check
    _
  $region3: #{qnetwork_forward.5} parent=0 // pred_check_branch
    %9 = sbr.rel (0) target = $region5
  $region4: #{qnetwork_forward.5} parent=0 // pred_region
    _
  $region5: #{qnetwork_forward.5} parent=0 // pred_fallthru
    _
  // Predicated region
  $region6: #{qnetwork_forward.5} parent=0 // pred_check
    _
  $region7: #{qnetwork_forward.5} parent=0 // pred_check_branch
    %11 = sbr.rel (0) target = $region9
  $region8: #{qnetwork_forward.5} parent=0 // pred_region
    _
  $region9: #{qnetwork_forward.5} parent=0 // pred_fallthru
    _
  // Predicated region
  $region10: #{qnetwork_forward.5} parent=0 // pred_check
    _
  $region11: #{qnetwork_forward.5} parent=0 // pred_check_branch
    %13 = sbr.rel (0) target = $region13
  $region12: #{qnetwork_forward.5} parent=0 // pred_region
    _
  $region13: #{qnetwork_forward.5} parent=0 // pred_fallthru
    _
  %v14 = vld [vmem:[%s0] sm:$0xff]
  %v15 = vld [vmem:[%s0 + $0x8] sm:$0xff]
  %v16 = vld [vmem:[%s0 + $0x10] sm:$0xff]
  %v17 = vld [vmem:[%s0 + $0x18] sm:$0xff]
  %v18 = vld [vmem:[%s0 + $0x20] sm:$0xff]
  %v19 = vld [vmem:[%s0 + $0x28] sm:$0xff]
  %v20 = vld [vmem:[%s0 + $0x30] sm:$0xff]
  %v21 = vld [vmem:[%s0 + $0x38] sm:$0xff]
  %v22 = vld [vmem:[%s0 + $0x40] sm:$0xff]
  %v23 = vld [vmem:[%s0 + $0x48] sm:$0xff]
  %v24 = vld [vmem:[%s0 + $0x50] sm:$0xff]
  %v25 = vld [vmem:[%s0 + $0x58] sm:$0xff]
  %v26 = vld [vmem:[%s0 + $0x60] sm:$0xff]
  %v27 = vld [vmem:[%s0 + $0x68] sm:$0xff]
  %v28 = vld [vmem:[%s0 + $0x70] sm:$0xff]
  %v29 = vld [vmem:[%s0 + $0x78] sm:$0xff]
  %v30 = vld [vmem:[%s0 + $0x80] sm:$0xff]
  %v31 = vld [vmem:[%s0 + $0x88] sm:$0xff]
  %v32 = vld [vmem:[%s0 + $0x90] sm:$0xff]
  %v33 = vld [vmem:[%s0 + $0x98] sm:$0xff]
  %v34 = vld [vmem:[%s0 + $0xa0] sm:$0xff]
  %v35 = vld [vmem:[%s0 + $0xa8] sm:$0xff]
  %v36 = vld [vmem:[%s0 + $0xb0] sm:$0xff]
  %v37 = vld [vmem:[%s0 + $0xb8] sm:$0xff]
  %v38 = vld [vmem:[%s0 + $0xc0] sm:$0xff]
  %v39 = vld [vmem:[%s0 + $0xc8] sm:$0xff]
  %v40 = vld [vmem:[%s0 + $0xd0] sm:$0xff]
  %v41 = vld [vmem:[%s0 + $0xd8] sm:$0xff]
  %v42 = vld [vmem:[%s0 + $0xe0] sm:$0xff]
  %v43 = vld [vmem:[%s0 + $0xe8] sm:$0xff]
  %v44 = vld [vmem:[%s0 + $0xf0] sm:$0xff]
  %v45 = vld [vmem:[%s0 + $0xf8] sm:$0xff]
  %v46 = vld [vmem:[%s0 + $0x100] sm:$0xff]
  %v47 = vld [vmem:[%s0 + $0x108] sm:$0xff]
  %v48 = vld [vmem:[%s0 + $0x110] sm:$0xff]
  %v49 = vld [vmem:[%s0 + $0x118] sm:$0xff]
  %v50 = vld [vmem:[%s0 + $0x120] sm:$0xff]
  %v51 = vld [vmem:[%s0 + $0x128] sm:$0xff]
  %v52 = vld [vmem:[%s0 + $0x130] sm:$0xff]
  %v53 = vld [vmem:[%s0 + $0x138] sm:$0xff]
  %v54 = vld [vmem:[%s0 + $0x140] sm:$0xff]
  %v55 = vld [vmem:[%s0 + $0x148] sm:$0xff]
  %v56 = vld [vmem:[%s0 + $0x150] sm:$0xff]
  %v57 = vld [vmem:[%s0 + $0x158] sm:$0xff]
  %v58 = vld [vmem:[%s0 + $0x160] sm:$0xff]
  %v59 = vld [vmem:[%s0 + $0x168] sm:$0xff]
  %v60 = vld [vmem:[%s0 + $0x170] sm:$0xff]
  %v61 = vld [vmem:[%s0 + $0x178] sm:$0xff]
  %v62 = vld [vmem:[%s0 + $0x180] sm:$0xff]
  %v63 = vld [vmem:[%s0 + $0x188] sm:$0xff]
  %v64 = vld [vmem:[%s0 + $0x190] sm:$0xff]
  %v65 = vld [vmem:[%s0 + $0x198] sm:$0xff]
  %v66 = vld [vmem:[%s0 + $0x1a0] sm:$0xff]
  %v67 = vld [vmem:[%s0 + $0x1a8] sm:$0xff]
  %v68 = vld [vmem:[%s0 + $0x1b0] sm:$0xff]
  %v69 = vld [vmem:[%s0 + $0x1b8] sm:$0xff]
  %v70 = vld [vmem:[%s0 + $0x1c0] sm:$0xff]
  %v71 = vld [vmem:[%s0 + $0x1c8] sm:$0xff]
  %v72 = vld [vmem:[%s0 + $0x1d0] sm:$0xff]
  %v73 = vld [vmem:[%s0 + $0x1d8] sm:$0xff]
  %v74 = vld [vmem:[%s0 + $0x1e0] sm:$0xff]
  %v75 = vld [vmem:[%s0 + $0x1e8] sm:$0xff]
  %v76 = vld [vmem:[%s0 + $0x1f0] sm:$0xff]
  %v77 = vld [vmem:[%s0 + $0x1f8] sm:$0xff]
  %v78 = vld [vmem:[%s0 + $0x200] sm:$0xff]
  %v79 = vld [vmem:[%s0 + $0x208] sm:$0xff]
  %v80 = vld [vmem:[%s0 + $0x210] sm:$0xff]
  %v81 = vld [vmem:[%s0 + $0x218] sm:$0xff]
  %v82 = vld [vmem:[%s0 + $0x220] sm:$0xff]
  %v83 = vld [vmem:[%s0 + $0x228] sm:$0xff]
  %v84 = vld [vmem:[%s0 + $0x230] sm:$0xff]
  %v85 = vld [vmem:[%s0 + $0x238] sm:$0xff]
  %v86 = vld [vmem:[%s0 + $0x240] sm:$0xff]
  %v87 = vld [vmem:[%s0 + $0x248] sm:$0xff]
  %v88 = vld [vmem:[%s0 + $0x250] sm:$0xff]
  %v89 = vld [vmem:[%s0 + $0x258] sm:$0xff]
  %v90 = vld [vmem:[%s0 + $0x260] sm:$0xff]
  %v91 = vld [vmem:[%s0 + $0x268] sm:$0xff]
  %v92 = vld [vmem:[%s0 + $0x270] sm:$0xff]
  %v93 = vld [vmem:[%s0 + $0x278] sm:$0xff]
  %v94 = vld [vmem:[%s0 + $0x280] sm:$0x3]
  %v95 = vld [vmem:[%s0 + $0x288] sm:$0x3]
  %v96 = vld [vmem:[%s0 + $0x290] sm:$0x3]
  %v97 = vld [vmem:[%s0 + $0x298] sm:$0x3]
  %v98 = vpack.c.bf16 %v18, %v14
  %v99 = vpack.c.bf16 %v19, %v15
  %v100 = vpack.c.bf16 %v20, %v16
  %v101 = vpack.c.bf16 %v21, %v17
  %v102 = vpack.c.bf16 %v26, %v22
  %v103 = vpack.c.bf16 %v27, %v23
  %v104 = vpack.c.bf16 %v28, %v24
  %v105 = vpack.c.bf16 %v29, %v25
  %v106 = vpack.c.bf16 %v34, %v30
  %v107 = vpack.c.bf16 %v35, %v31
  %v108 = vpack.c.bf16 %v36, %v32
  %v109 = vpack.c.bf16 %v37, %v33
  %v110 = vpack.c.bf16 %v42, %v38
  %v111 = vpack.c.bf16 %v43, %v39
  %v112 = vpack.c.bf16 %v44, %v40
  %v113 = vpack.c.bf16 %v45, %v41
  %v114 = vpack.c.bf16 %v50, %v46
  %v115 = vpack.c.bf16 %v51, %v47
  %v116 = vpack.c.bf16 %v52, %v48
  %v117 = vpack.c.bf16 %v53, %v49
  %v118 = vpack.c.bf16 %v58, %v54
  %v119 = vpack.c.bf16 %v59, %v55
  %v120 = vpack.c.bf16 %v60, %v56
  %v121 = vpack.c.bf16 %v61, %v57
  %v122 = vpack.c.bf16 %v66, %v62
  %v123 = vpack.c.bf16 %v67, %v63
  %v124 = vpack.c.bf16 %v68, %v64
  %v125 = vpack.c.bf16 %v69, %v65
  %v126 = vpack.c.bf16 %v74, %v70
  %v127 = vpack.c.bf16 %v75, %v71
  %v128 = vpack.c.bf16 %v76, %v72
  %v129 = vpack.c.bf16 %v77, %v73
  %v130 = vpack.c.bf16 %v82, %v78
  %v131 = vpack.c.bf16 %v83, %v79
  %v132 = vpack.c.bf16 %v84, %v80
  %v133 = vpack.c.bf16 %v85, %v81
  %v134 = vpack.c.bf16 %v90, %v86
  %v135 = vpack.c.bf16 %v91, %v87
  %v136 = vpack.c.bf16 %v92, %v88
  %v137 = vpack.c.bf16 %v93, %v89
  %v138 = vpack.c.bf16 %v94, %v94
  %v139 = vpack.c.bf16 %v95, %v95
  %v140 = vpack.c.bf16 %v96, %v96
  %v141 = vpack.c.bf16 %v97, %v97
  %v142 = vld [vmem:[%s1] sm:$0xf]
  %v143 = vld [vmem:[%s1 + $0x4] sm:$0xf]
  %v144 = vld [vmem:[%s1 + $0x8] sm:$0xf]
  %v145 = vld [vmem:[%s1 + $0xc] sm:$0xf]
  %v146 = vld [vmem:[%s1 + $0x10] sm:$0xf]
  %v147 = vld [vmem:[%s1 + $0x14] sm:$0xf]
  %v148 = vld [vmem:[%s1 + $0x18] sm:$0xf]
  %v149 = vld [vmem:[%s1 + $0x1c] sm:$0xf]
  %v150 = vld [vmem:[%s1 + $0x20] sm:$0xf]
  %v151 = vld [vmem:[%s1 + $0x24] sm:$0xf]
  %v152 = vld [vmem:[%s1 + $0x28] sm:$0xf]
  %v153 = vld [vmem:[%s1 + $0x2c] sm:$0xf]
  %v154 = vld [vmem:[%s1 + $0x30] sm:$0xf]
  %v155 = vld [vmem:[%s1 + $0x34] sm:$0xf]
  %v156 = vld [vmem:[%s1 + $0x38] sm:$0xf]
  %v157 = vld [vmem:[%s1 + $0x3c] sm:$0xf]
  %v158 = vld [vmem:[%s1 + $0x40] sm:$0xf]
  %v159 = vld [vmem:[%s1 + $0x44] sm:$0xf]
  %v160 = vld [vmem:[%s1 + $0x48] sm:$0xf]
  %v161 = vld [vmem:[%s1 + $0x4c] sm:$0xf]
  %v162 = vld [vmem:[%s1 + $0x50] sm:$0xf]
  %v163 = vld [vmem:[%s1 + $0x54] sm:$0xf]
  %v164 = vld [vmem:[%s1 + $0x58] sm:$0xf]
  %v165 = vld [vmem:[%s1 + $0x5c] sm:$0xf]
  %v166 = vld [vmem:[%s1 + $0x60] sm:$0xf]
  %v167 = vld [vmem:[%s1 + $0x64] sm:$0xf]
  %v168 = vld [vmem:[%s1 + $0x68] sm:$0xf]
  %v169 = vld [vmem:[%s1 + $0x6c] sm:$0xf]
  %v170 = vld [vmem:[%s1 + $0x70] sm:$0xf]
  %v171 = vld [vmem:[%s1 + $0x74] sm:$0xf]
  %v172 = vld [vmem:[%s1 + $0x78] sm:$0xf]
  %v173 = vld [vmem:[%s1 + $0x7c] sm:$0xf]
  %v174 = vld [vmem:[%s1 + $0x80] sm:$0xf]
  %v175 = vld [vmem:[%s1 + $0x84] sm:$0xf]
  %v176 = vld [vmem:[%s1 + $0x88] sm:$0xf]
  %v177 = vld [vmem:[%s1 + $0x8c] sm:$0xf]
  %v178 = vld [vmem:[%s1 + $0x90] sm:$0xf]
  %v179 = vld [vmem:[%s1 + $0x94] sm:$0xf]
  %v180 = vld [vmem:[%s1 + $0x98] sm:$0xf]
  %v181 = vld [vmem:[%s1 + $0x9c] sm:$0xf]
  %v182 = vld [vmem:[%s1 + $0xa0] sm:$0xf]
  %v183 = vld [vmem:[%s1 + $0xa4] sm:$0xf]
  %v184 = vld [vmem:[%s1 + $0xa8] sm:$0xf]
  %v185 = vld [vmem:[%s1 + $0xac] sm:$0xf]
  %v186 = vld [vmem:[%s1 + $0xb0] sm:$0xf]
  %v187 = vld [vmem:[%s1 + $0xb4] sm:$0xf]
  %v188 = vld [vmem:[%s1 + $0xb8] sm:$0xf]
  %v189 = vld [vmem:[%s1 + $0xbc] sm:$0xf]
  %v190 = vld [vmem:[%s1 + $0xc0] sm:$0xf]
  %v191 = vld [vmem:[%s1 + $0xc4] sm:$0xf]
  %v192 = vld [vmem:[%s1 + $0xc8] sm:$0xf]
  %v193 = vld [vmem:[%s1 + $0xcc] sm:$0xf]
  %v194 = vld [vmem:[%s1 + $0xd0] sm:$0xf]
  %v195 = vld [vmem:[%s1 + $0xd4] sm:$0xf]
  %v196 = vld [vmem:[%s1 + $0xd8] sm:$0xf]
  %v197 = vld [vmem:[%s1 + $0xdc] sm:$0xf]
  %v198 = vld [vmem:[%s1 + $0xe0] sm:$0xf]
  %v199 = vld [vmem:[%s1 + $0xe4] sm:$0xf]
  %v200 = vld [vmem:[%s1 + $0xe8] sm:$0xf]
  %v201 = vld [vmem:[%s1 + $0xec] sm:$0xf]
  %v202 = vld [vmem:[%s1 + $0xf0] sm:$0xf]
  %v203 = vld [vmem:[%s1 + $0xf4] sm:$0xf]
  %v204 = vld [vmem:[%s1 + $0xf8] sm:$0xf]
  %v205 = vld [vmem:[%s1 + $0xfc] sm:$0xf]
  %v206 = vld [vmem:[%s2] sm:$0x1]
  %v208 = vperm.slane %v206, 0
  %v274 = vunpack.c.l.b16 %v142
  %v275 = vunpack.c.l.b16 %v143
  %v276 = vunpack.c.l.b16 %v144
  %v277 = vunpack.c.l.b16 %v145
  %v278 = vunpack.c.l.b16 %v146
  %v279 = vunpack.c.l.b16 %v147
  %v280 = vunpack.c.l.b16 %v148
  %v281 = vunpack.c.l.b16 %v149
  %v282 = vunpack.c.l.b16 %v150
  %v283 = vunpack.c.l.b16 %v151
  %v284 = vunpack.c.l.b16 %v152
  %v285 = vunpack.c.l.b16 %v153
  %v286 = vunpack.c.l.b16 %v154
  %v287 = vunpack.c.l.b16 %v155
  %v288 = vunpack.c.l.b16 %v156
  %v289 = vunpack.c.l.b16 %v157
  %v290 = vunpack.c.l.b16 %v158
  %v291 = vunpack.c.l.b16 %v159
  %v292 = vunpack.c.l.b16 %v160
  %v293 = vunpack.c.l.b16 %v161
  %v294 = vunpack.c.l.b16 %v162
  %v295 = vunpack.c.l.b16 %v163
  %v296 = vunpack.c.l.b16 %v164
  %v297 = vunpack.c.l.b16 %v165
  %v298 = vunpack.c.l.b16 %v166
  %v299 = vunpack.c.l.b16 %v167
  %v300 = vunpack.c.l.b16 %v168
  %v301 = vunpack.c.l.b16 %v169
  %v302 = vunpack.c.l.b16 %v170
  %v303 = vunpack.c.l.b16 %v171
  %v304 = vunpack.c.l.b16 %v172
  %v305 = vunpack.c.l.b16 %v173
  %v306 = vunpack.c.l.b16 %v174
  %v307 = vunpack.c.l.b16 %v175
  %v308 = vunpack.c.l.b16 %v176
  %v309 = vunpack.c.l.b16 %v177
  %v310 = vunpack.c.l.b16 %v178
  %v311 = vunpack.c.l.b16 %v179
  %v312 = vunpack.c.l.b16 %v180
  %v313 = vunpack.c.l.b16 %v181
  %v314 = vunpack.c.l.b16 %v182
  %v315 = vunpack.c.l.b16 %v183
  %v316 = vunpack.c.l.b16 %v184
  %v317 = vunpack.c.l.b16 %v185
  %v318 = vunpack.c.l.b16 %v186
  %v319 = vunpack.c.l.b16 %v187
  %v320 = vunpack.c.l.b16 %v188
  %v321 = vunpack.c.l.b16 %v189
  %v322 = vunpack.c.l.b16 %v190
  %v323 = vunpack.c.l.b16 %v191
  %v324 = vunpack.c.l.b16 %v192
  %v325 = vunpack.c.l.b16 %v193
  %v326 = vunpack.c.l.b16 %v194
  %v327 = vunpack.c.l.b16 %v195
  %v328 = vunpack.c.l.b16 %v196
  %v329 = vunpack.c.l.b16 %v197
  %v330 = vunpack.c.l.b16 %v198
  %v331 = vunpack.c.l.b16 %v199
  %v332 = vunpack.c.l.b16 %v200
  %v333 = vunpack.c.l.b16 %v201
  %v334 = vunpack.c.l.b16 %v202
  %v335 = vunpack.c.l.b16 %v203
  %v336 = vunpack.c.l.b16 %v204
  %v337 = vunpack.c.l.b16 %v205
  %v338 = vpack.c.b16 %v275, %v274
  %v339 = vpack.c.b16 %v277, %v276
  %v340 = vpack.c.b16 %v279, %v278
  %v341 = vpack.c.b16 %v281, %v280
  %v342 = vpack.c.b16 %v283, %v282
  %v343 = vpack.c.b16 %v285, %v284
  %v344 = vpack.c.b16 %v287, %v286
  %v345 = vpack.c.b16 %v289, %v288
  %v346 = vpack.c.b16 %v291, %v290
  %v347 = vpack.c.b16 %v293, %v292
  %v348 = vpack.c.b16 %v295, %v294
  %v349 = vpack.c.b16 %v297, %v296
  %v350 = vpack.c.b16 %v299, %v298
  %v351 = vpack.c.b16 %v301, %v300
  %v352 = vpack.c.b16 %v303, %v302
  %v353 = vpack.c.b16 %v305, %v304
  %v354 = vpack.c.b16 %v307, %v306
  %v355 = vpack.c.b16 %v309, %v308
  %v356 = vpack.c.b16 %v311, %v310
  %v357 = vpack.c.b16 %v313, %v312
  %v358 = vpack.c.b16 %v315, %v314
  %v359 = vpack.c.b16 %v317, %v316
  %v360 = vpack.c.b16 %v319, %v318
  %v361 = vpack.c.b16 %v321, %v320
  %v362 = vpack.c.b16 %v323, %v322
  %v363 = vpack.c.b16 %v325, %v324
  %v364 = vpack.c.b16 %v327, %v326
  %v365 = vpack.c.b16 %v329, %v328
  %v366 = vpack.c.b16 %v331, %v330
  %v367 = vpack.c.b16 %v333, %v332
  %v368 = vpack.c.b16 %v335, %v334
  %v369 = vpack.c.b16 %v337, %v336
  %402 = vmatpush.bf16.msra.mxu0 %v345
  %403 = vmatpush.bf16.msra.mxu0 %v344
  %404 = vmatpush.bf16.msra.mxu0 %v343
  %405 = vmatpush.bf16.msra.mxu0 %v342
  %406 = vmatpush.bf16.msra.mxu0 %v341
  %407 = vmatpush.bf16.msra.mxu0 %v340
  %408 = vmatpush.bf16.msra.mxu0 %v339
  %409 = vmatpush.bf16.msra.mxu0 %v338
  %410 = vmatmul.bf16.gmra.mxu0 %v98
  %v411 = vpop.f32.mrf.mxu0
  %v412 = vadd.f32 %v208, %v411
  %v413 = vpop.f32.mrf.mxu0
  %v414 = vadd.f32 %v208, %v413
  %415 = vmatmul.bf16.gmra.mxu0 %v102
  %v416 = vpop.f32.mrf.mxu0
  %v417 = vadd.f32 %v208, %v416
  %v418 = vpop.f32.mrf.mxu0
  %v419 = vadd.f32 %v208, %v418
  %420 = vmatmul.bf16.gmra.mxu0 %v106
  %v421 = vpop.f32.mrf.mxu0
  %v422 = vadd.f32 %v208, %v421
  %v423 = vpop.f32.mrf.mxu0
  %v424 = vadd.f32 %v208, %v423
  %425 = vmatmul.bf16.gmra.mxu0 %v110
  %v426 = vpop.f32.mrf.mxu0
  %v427 = vadd.f32 %v208, %v426
  %v428 = vpop.f32.mrf.mxu0
  %v429 = vadd.f32 %v208, %v428
  %430 = vmatmul.bf16.gmra.mxu0 %v114
  %v431 = vpop.f32.mrf.mxu0
  %v432 = vadd.f32 %v208, %v431
  %v433 = vpop.f32.mrf.mxu0
  %v434 = vadd.f32 %v208, %v433
  %435 = vmatmul.bf16.gmra.mxu0 %v118
  %v436 = vpop.f32.mrf.mxu0
  %v437 = vadd.f32 %v208, %v436
  %v438 = vpop.f32.mrf.mxu0
  %v439 = vadd.f32 %v208, %v438
  %440 = vmatmul.bf16.gmra.mxu0 %v122
  %v441 = vpop.f32.mrf.mxu0
  %v442 = vadd.f32 %v208, %v441
  %v443 = vpop.f32.mrf.mxu0
  %v444 = vadd.f32 %v208, %v443
  %445 = vmatmul.bf16.gmra.mxu0 %v126
  %v446 = vpop.f32.mrf.mxu0
  %v447 = vadd.f32 %v208, %v446
  %v448 = vpop.f32.mrf.mxu0
  %v449 = vadd.f32 %v208, %v448
  %450 = vmatmul.bf16.gmra.mxu0 %v130
  %v451 = vpop.f32.mrf.mxu0
  %v452 = vadd.f32 %v208, %v451
  %v453 = vpop.f32.mrf.mxu0
  %v454 = vadd.f32 %v208, %v453
  %455 = vmatmul.bf16.gmra.mxu0 %v134
  %v456 = vpop.f32.mrf.mxu0
  %v457 = vadd.f32 %v208, %v456
  %v458 = vpop.f32.mrf.mxu0
  %v459 = vadd.f32 %v208, %v458
  %460 = vmatmul.bf16.gmra.mxu0 %v138
  %v461 = vpop.f32.mrf.mxu0
  %v462 = vadd.f32 %v208, %v461
  %v463 = vpop.f32.mrf.mxu0
  %464 = vdwg.mxu0
  %465 = vmatpush.bf16.msra.mxu0 %v353
  %466 = vmatpush.bf16.msra.mxu0 %v352
  %467 = vmatpush.bf16.msra.mxu0 %v351
  %468 = vmatpush.bf16.msra.mxu0 %v350
  %469 = vmatpush.bf16.msra.mxu0 %v349
  %470 = vmatpush.bf16.msra.mxu0 %v348
  %471 = vmatpush.bf16.msra.mxu0 %v347
  %472 = vmatpush.bf16.msra.mxu0 %v346
  %473 = vmatmul.bf16.gmra.mxu0 %v99
  %v474 = vpop.f32.mrf.mxu0
  %v475 = vadd.f32 %v412, %v474
  %v476 = vpop.f32.mrf.mxu0
  %v477 = vadd.f32 %v414, %v476
  %478 = vmatmul.bf16.gmra.mxu0 %v103
  %v479 = vpop.f32.mrf.mxu0
  %v480 = vadd.f32 %v417, %v479
  %v481 = vpop.f32.mrf.mxu0
  %v482 = vadd.f32 %v419, %v481
  %483 = vmatmul.bf16.gmra.mxu0 %v107
  %v484 = vpop.f32.mrf.mxu0
  %v485 = vadd.f32 %v422, %v484
  %v486 = vpop.f32.mrf.mxu0
  %v487 = vadd.f32 %v424, %v486
  %488 = vmatmul.bf16.gmra.mxu0 %v111
  %v489 = vpop.f32.mrf.mxu0
  %v490 = vadd.f32 %v427, %v489
  %v491 = vpop.f32.mrf.mxu0
  %v492 = vadd.f32 %v429, %v491
  %493 = vmatmul.bf16.gmra.mxu0 %v115
  %v494 = vpop.f32.mrf.mxu0
  %v495 = vadd.f32 %v432, %v494
  %v496 = vpop.f32.mrf.mxu0
  %v497 = vadd.f32 %v434, %v496
  %498 = vmatmul.bf16.gmra.mxu0 %v119
  %v499 = vpop.f32.mrf.mxu0
  %v500 = vadd.f32 %v437, %v499
  %v501 = vpop.f32.mrf.mxu0
  %v502 = vadd.f32 %v439, %v501
  %503 = vmatmul.bf16.gmra.mxu0 %v123
  %v504 = vpop.f32.mrf.mxu0
  %v505 = vadd.f32 %v442, %v504
  %v506 = vpop.f32.mrf.mxu0
  %v507 = vadd.f32 %v444, %v506
  %508 = vmatmul.bf16.gmra.mxu0 %v127
  %v509 = vpop.f32.mrf.mxu0
  %v510 = vadd.f32 %v447, %v509
  %v511 = vpop.f32.mrf.mxu0
  %v512 = vadd.f32 %v449, %v511
  %513 = vmatmul.bf16.gmra.mxu0 %v131
  %v514 = vpop.f32.mrf.mxu0
  %v515 = vadd.f32 %v452, %v514
  %v516 = vpop.f32.mrf.mxu0
  %v517 = vadd.f32 %v454, %v516
  %518 = vmatmul.bf16.gmra.mxu0 %v135
  %v519 = vpop.f32.mrf.mxu0
  %v520 = vadd.f32 %v457, %v519
  %v521 = vpop.f32.mrf.mxu0
  %v522 = vadd.f32 %v459, %v521
  %523 = vmatmul.bf16.gmra.mxu0 %v139
  %v524 = vpop.f32.mrf.mxu0
  %v525 = vadd.f32 %v462, %v524
  %v526 = vpop.f32.mrf.mxu0
  %527 = vdwg.mxu0
  %528 = vmatpush.bf16.msra.mxu0 %v361
  %529 = vmatpush.bf16.msra.mxu0 %v360
  %530 = vmatpush.bf16.msra.mxu0 %v359
  %531 = vmatpush.bf16.msra.mxu0 %v358
  %532 = vmatpush.bf16.msra.mxu0 %v357
  %533 = vmatpush.bf16.msra.mxu0 %v356
  %534 = vmatpush.bf16.msra.mxu0 %v355
  %535 = vmatpush.bf16.msra.mxu0 %v354
  %536 = vmatmul.bf16.gmra.mxu0 %v100
  %v537 = vpop.f32.mrf.mxu0
  %v538 = vadd.f32 %v475, %v537
  %v539 = vpop.f32.mrf.mxu0
  %v540 = vadd.f32 %v477, %v539
  %541 = vmatmul.bf16.gmra.mxu0 %v104
  %v542 = vpop.f32.mrf.mxu0
  %v543 = vadd.f32 %v480, %v542
  %v544 = vpop.f32.mrf.mxu0
  %v545 = vadd.f32 %v482, %v544
  %546 = vmatmul.bf16.gmra.mxu0 %v108
  %v547 = vpop.f32.mrf.mxu0
  %v548 = vadd.f32 %v485, %v547
  %v549 = vpop.f32.mrf.mxu0
  %v550 = vadd.f32 %v487, %v549
  %551 = vmatmul.bf16.gmra.mxu0 %v112
  %v552 = vpop.f32.mrf.mxu0
  %v553 = vadd.f32 %v490, %v552
  %v554 = vpop.f32.mrf.mxu0
  %v555 = vadd.f32 %v492, %v554
  %556 = vmatmul.bf16.gmra.mxu0 %v116
  %v557 = vpop.f32.mrf.mxu0
  %v558 = vadd.f32 %v495, %v557
  %v559 = vpop.f32.mrf.mxu0
  %v560 = vadd.f32 %v497, %v559
  %561 = vmatmul.bf16.gmra.mxu0 %v120
  %v562 = vpop.f32.mrf.mxu0
  %v563 = vadd.f32 %v500, %v562
  %v564 = vpop.f32.mrf.mxu0
  %v565 = vadd.f32 %v502, %v564
  %566 = vmatmul.bf16.gmra.mxu0 %v124
  %v567 = vpop.f32.mrf.mxu0
  %v568 = vadd.f32 %v505, %v567
  %v569 = vpop.f32.mrf.mxu0
  %v570 = vadd.f32 %v507, %v569
  %571 = vmatmul.bf16.gmra.mxu0 %v128
  %v572 = vpop.f32.mrf.mxu0
  %v573 = vadd.f32 %v510, %v572
  %v574 = vpop.f32.mrf.mxu0
  %v575 = vadd.f32 %v512, %v574
  %576 = vmatmul.bf16.gmra.mxu0 %v132
  %v577 = vpop.f32.mrf.mxu0
  %v578 = vadd.f32 %v515, %v577
  %v579 = vpop.f32.mrf.mxu0
  %v580 = vadd.f32 %v517, %v579
  %581 = vmatmul.bf16.gmra.mxu0 %v136
  %v582 = vpop.f32.mrf.mxu0
  %v583 = vadd.f32 %v520, %v582
  %v584 = vpop.f32.mrf.mxu0
  %v585 = vadd.f32 %v522, %v584
  %586 = vmatmul.bf16.gmra.mxu0 %v140
  %v587 = vpop.f32.mrf.mxu0
  %v588 = vadd.f32 %v525, %v587
  %v589 = vpop.f32.mrf.mxu0
  %590 = vdwg.mxu0
  %591 = vmatpush.bf16.msra.mxu0 %v369
  %592 = vmatpush.bf16.msra.mxu0 %v368
  %593 = vmatpush.bf16.msra.mxu0 %v367
  %594 = vmatpush.bf16.msra.mxu0 %v366
  %595 = vmatpush.bf16.msra.mxu0 %v365
  %596 = vmatpush.bf16.msra.mxu0 %v364
  %597 = vmatpush.bf16.msra.mxu0 %v363
  %598 = vmatpush.bf16.msra.mxu0 %v362
  %599 = vmatmul.bf16.gmra.mxu0 %v101
  %v600 = vpop.f32.mrf.mxu0
  %v601 = vadd.f32 %v538, %v600
  %v602 = vpop.f32.mrf.mxu0
  %v603 = vadd.f32 %v540, %v602
  %604 = vmatmul.bf16.gmra.mxu0 %v105
  %v605 = vpop.f32.mrf.mxu0
  %v606 = vadd.f32 %v543, %v605
  %v607 = vpop.f32.mrf.mxu0
  %v608 = vadd.f32 %v545, %v607
  %609 = vmatmul.bf16.gmra.mxu0 %v109
  %v610 = vpop.f32.mrf.mxu0
  %v611 = vadd.f32 %v548, %v610
  %v612 = vpop.f32.mrf.mxu0
  %v613 = vadd.f32 %v550, %v612
  %614 = vmatmul.bf16.gmra.mxu0 %v113
  %v615 = vpop.f32.mrf.mxu0
  %v616 = vadd.f32 %v553, %v615
  %v617 = vpop.f32.mrf.mxu0
  %v618 = vadd.f32 %v555, %v617
  %619 = vmatmul.bf16.gmra.mxu0 %v117
  %v620 = vpop.f32.mrf.mxu0
  %v621 = vadd.f32 %v558, %v620
  %v622 = vpop.f32.mrf.mxu0
  %v623 = vadd.f32 %v560, %v622
  %624 = vmatmul.bf16.gmra.mxu0 %v121
  %v625 = vpop.f32.mrf.mxu0
  %v626 = vadd.f32 %v563, %v625
  %v627 = vpop.f32.mrf.mxu0
  %v628 = vadd.f32 %v565, %v627
  %629 = vmatmul.bf16.gmra.mxu0 %v125
  %v630 = vpop.f32.mrf.mxu0
  %v631 = vadd.f32 %v568, %v630
  %v632 = vpop.f32.mrf.mxu0
  %v633 = vadd.f32 %v570, %v632
  %634 = vmatmul.bf16.gmra.mxu0 %v129
  %v635 = vpop.f32.mrf.mxu0
  %v636 = vadd.f32 %v573, %v635
  %v637 = vpop.f32.mrf.mxu0
  %v638 = vadd.f32 %v575, %v637
  %639 = vmatmul.bf16.gmra.mxu0 %v133
  %v640 = vpop.f32.mrf.mxu0
  %v641 = vadd.f32 %v578, %v640
  %v642 = vpop.f32.mrf.mxu0
  %v643 = vadd.f32 %v580, %v642
  %644 = vmatmul.bf16.gmra.mxu0 %v137
  %v645 = vpop.f32.mrf.mxu0
  %v646 = vadd.f32 %v583, %v645
  %v647 = vpop.f32.mrf.mxu0
  %v648 = vadd.f32 %v585, %v647
  %649 = vmatmul.bf16.gmra.mxu0 %v141
  %v650 = vpop.f32.mrf.mxu0
  %v651 = vadd.f32 %v588, %v650
  %v652 = vpop.f32.mrf.mxu0
  %653 = vdwg.mxu0
  %v654 = vmax.f32 %v601, 0.0
  %v655 = vmax.f32 %v603, 0.0
  %v656 = vmax.f32 %v606, 0.0
  %v657 = vmax.f32 %v608, 0.0
  %v658 = vmax.f32 %v611, 0.0
  %v659 = vmax.f32 %v613, 0.0
  %v660 = vmax.f32 %v616, 0.0
  %v661 = vmax.f32 %v618, 0.0
  %v662 = vmax.f32 %v621, 0.0
  %v663 = vmax.f32 %v623, 0.0
  %v664 = vmax.f32 %v626, 0.0
  %v665 = vmax.f32 %v628, 0.0
  %v666 = vmax.f32 %v631, 0.0
  %v667 = vmax.f32 %v633, 0.0
  %v668 = vmax.f32 %v636, 0.0
  %v669 = vmax.f32 %v638, 0.0
  %v670 = vmax.f32 %v641, 0.0
  %v671 = vmax.f32 %v643, 0.0
  %v672 = vmax.f32 %v646, 0.0
  %v673 = vmax.f32 %v648, 0.0
  %v674 = vmax.f32 %v651, 0.0
  %vm675 = vcmask 523264
  %676 = vst.msk [vmem:[%s3] sm:$0xff] %vm675, %v654
  %677 = vst.msk [vmem:[%s3 + $0x8] sm:$0xff] %vm675, %v655
  %678 = vst.msk [vmem:[%s3 + $0x10] sm:$0xff] %vm675, %v656
  %679 = vst.msk [vmem:[%s3 + $0x18] sm:$0xff] %vm675, %v657
  %680 = vst.msk [vmem:[%s3 + $0x20] sm:$0xff] %vm675, %v658
  %681 = vst.msk [vmem:[%s3 + $0x28] sm:$0xff] %vm675, %v659
  %682 = vst.msk [vmem:[%s3 + $0x30] sm:$0xff] %vm675, %v660
  %683 = vst.msk [vmem:[%s3 + $0x38] sm:$0xff] %vm675, %v661
  %684 = vst.msk [vmem:[%s3 + $0x40] sm:$0xff] %vm675, %v662
  %685 = vst.msk [vmem:[%s3 + $0x48] sm:$0xff] %vm675, %v663
  %686 = vst.msk [vmem:[%s3 + $0x50] sm:$0xff] %vm675, %v664
  %687 = vst.msk [vmem:[%s3 + $0x58] sm:$0xff] %vm675, %v665
  %688 = vst.msk [vmem:[%s3 + $0x60] sm:$0xff] %vm675, %v666
  %689 = vst.msk [vmem:[%s3 + $0x68] sm:$0xff] %vm675, %v667
  %690 = vst.msk [vmem:[%s3 + $0x70] sm:$0xff] %vm675, %v668
  %691 = vst.msk [vmem:[%s3 + $0x78] sm:$0xff] %vm675, %v669
  %692 = vst.msk [vmem:[%s3 + $0x80] sm:$0xff] %vm675, %v670
  %693 = vst.msk [vmem:[%s3 + $0x88] sm:$0xff] %vm675, %v671
  %694 = vst.msk [vmem:[%s3 + $0x90] sm:$0xff] %vm675, %v672
  %695 = vst.msk [vmem:[%s3 + $0x98] sm:$0xff] %vm675, %v673
  %vm696 = vcmask 517120
  %697 = vst.msk [vmem:[%s3 + $0xa0] sm:$0x3] %vm696, %v674
  // Predicated region
  $region14: #{qnetwork_forward.5} parent=0 // pred_check
    _
  $region15: #{qnetwork_forward.5} parent=0 // pred_check_branch
    %699 = sbr.rel (0) target = $region17
  $region16: #{qnetwork_forward.5} parent=0 // pred_region
    _
  $region17: #{qnetwork_forward.5} parent=0 // pred_fallthru
    _
  // Predicated region
  $region18: #{qnetwork_forward.5} parent=0 // pred_check
    _
  $region19: #{qnetwork_forward.5} parent=0 // pred_check_branch
    %701 = sbr.rel (0) target = $region21
  $region20: #{qnetwork_forward.5} parent=0 // pred_region
    _
  $region21: #{qnetwork_forward.5} parent=0 // pred_fallthru
    _

// kernel: qnetwork_forward.6
$region0: #{qnetwork_forward.6}
  #allocation0 [shape = 'u32[]', space=smem, size = 0x4, offset = 0x4, fixed_abs, tag = 'smem constant byte address 0x4 - core index']
  #allocation1 [shape = 'u32[72,128]{1,0:T(1,128)}', space=vmem, size = 0x9000, scoped, tag = 'internal scratch']
  %s0 = inlined_call_operand.vmem [shape: f32[98,576], index: 0, kind: input, shape index: {}]
  %s1 = inlined_call_operand.vmem [shape: bf16[576,64], index: 1, kind: input, shape index: {}]
  %s2 = inlined_call_operand.vmem [shape: f32[1,64], index: 2, kind: input, shape index: {}]
  %s3 = inlined_call_operand.vmem [shape: f32[98,64], index: 3, kind: output, shape index: {}]
  %s4 = sld [smem:[#allocation0]]
  $region22: #{qnetwork_forward.6} parent=0
    _
  %s6 = ssub.s32 1, %s4
  %s7 = scalar_select 0, %s6, %s4
  // Predicated region
  $region2: #{qnetwork_forward.6} parent=0 // pred_check
    _
  $region3: #{qnetwork_forward.6} parent=0 // pred_check_branch
    %9 = sbr.rel (0) target = $region5
  $region4: #{qnetwork_forward.6} parent=0 // pred_region
    _
  $region5: #{qnetwork_forward.6} parent=0 // pred_fallthru
    _
  // Predicated region
  $region6: #{qnetwork_forward.6} parent=0 // pred_check
    _
  $region7: #{qnetwork_forward.6} parent=0 // pred_check_branch
    %11 = sbr.rel (0) target = $region9
  $region8: #{qnetwork_forward.6} parent=0 // pred_region
    _
  $region9: #{qnetwork_forward.6} parent=0 // pred_fallthru
    _
  // Predicated region
  $region10: #{qnetwork_forward.6} parent=0 // pred_check
    _
  $region11: #{qnetwork_forward.6} parent=0 // pred_check_branch
    %13 = sbr.rel (0) target = $region13
  $region12: #{qnetwork_forward.6} parent=0 // pred_region
    _
  $region13: #{qnetwork_forward.6} parent=0 // pred_fallthru
    _
  %v15 = vld [vmem:[%s0] sm:$0xff]
  %v16 = vld [vmem:[%s0 + $0x8] sm:$0xff]
  %v17 = vld [vmem:[%s0 + $0x10] sm:$0xff]
  %v18 = vld [vmem:[%s0 + $0x18] sm:$0xff]
  %v19 = vld [vmem:[%s0 + $0x20] sm:$0xff]
  %v20 = vld [vmem:[%s0 + $0x28] sm:$0xff]
  %v21 = vld [vmem:[%s0 + $0x30] sm:$0xff]
  %v22 = vld [vmem:[%s0 + $0x38] sm:$0xff]
  %v23 = vld [vmem:[%s0 + $0x40] sm:$0xff]
  %v24 = vld [vmem:[%s0 + $0x48] sm:$0xff]
  %v25 = vld [vmem:[%s0 + $0x50] sm:$0xff]
  %v26 = vld [vmem:[%s0 + $0x58] sm:$0xff]
  %v27 = vld [vmem:[%s0 + $0x60] sm:$0xff]
  %v28 = vld [vmem:[%s0 + $0x68] sm:$0xff]
  %v29 = vld [vmem:[%s0 + $0x70] sm:$0xff]
  %v30 = vld [vmem:[%s0 + $0x78] sm:$0xff]
  %v31 = vld [vmem:[%s0 + $0x80] sm:$0xff]
  %v32 = vld [vmem:[%s0 + $0x88] sm:$0xff]
  %v33 = vld [vmem:[%s0 + $0x90] sm:$0xff]
  %v34 = vld [vmem:[%s0 + $0x98] sm:$0xff]
  %v35 = vld [vmem:[%s0 + $0xa0] sm:$0xff]
  %v36 = vld [vmem:[%s0 + $0xa8] sm:$0xff]
  %v37 = vld [vmem:[%s0 + $0xb0] sm:$0xff]
  %v38 = vld [vmem:[%s0 + $0xb8] sm:$0xff]
  %v39 = vld [vmem:[%s0 + $0xc0] sm:$0xff]
  %v40 = vld [vmem:[%s0 + $0xc8] sm:$0xff]
  %v41 = vld [vmem:[%s0 + $0xd0] sm:$0xff]
  %v42 = vld [vmem:[%s0 + $0xd8] sm:$0xff]
  %v43 = vld [vmem:[%s0 + $0xe0] sm:$0xff]
  %v44 = vld [vmem:[%s0 + $0xe8] sm:$0xff]
  %v45 = vld [vmem:[%s0 + $0xf0] sm:$0xff]
  %v46 = vld [vmem:[%s0 + $0xf8] sm:$0xff]
  %v47 = vld [vmem:[%s0 + $0x100] sm:$0xff]
  %v48 = vld [vmem:[%s0 + $0x108] sm:$0xff]
  %v49 = vld [vmem:[%s0 + $0x110] sm:$0xff]
  %v50 = vld [vmem:[%s0 + $0x118] sm:$0xff]
  %v51 = vld [vmem:[%s0 + $0x120] sm:$0xff]
  %v52 = vld [vmem:[%s0 + $0x128] sm:$0xff]
  %v53 = vld [vmem:[%s0 + $0x130] sm:$0xff]
  %v54 = vld [vmem:[%s0 + $0x138] sm:$0xff]
  %v55 = vld [vmem:[%s0 + $0x140] sm:$0xff]
  %v56 = vld [vmem:[%s0 + $0x148] sm:$0xff]
  %v57 = vld [vmem:[%s0 + $0x150] sm:$0xff]
  %v58 = vld [vmem:[%s0 + $0x158] sm:$0xff]
  %v59 = vld [vmem:[%s0 + $0x160] sm:$0xff]
  %v60 = vld [vmem:[%s0 + $0x168] sm:$0xff]
  %v61 = vld [vmem:[%s0 + $0x170] sm:$0xff]
  %v62 = vld [vmem:[%s0 + $0x178] sm:$0xff]
  %v63 = vld [vmem:[%s0 + $0x180] sm:$0xff]
  %v64 = vld [vmem:[%s0 + $0x188] sm:$0xff]
  %v65 = vld [vmem:[%s0 + $0x190] sm:$0xff]
  %v66 = vld [vmem:[%s0 + $0x198] sm:$0xff]
  %v67 = vld [vmem:[%s0 + $0x1a0] sm:$0xff]
  %v68 = vld [vmem:[%s0 + $0x1a8] sm:$0xff]
  %v69 = vld [vmem:[%s0 + $0x1b0] sm:$0xff]
  %v70 = vld [vmem:[%s0 + $0x1b8] sm:$0xff]
  %v71 = vld [vmem:[%s0 + $0x1c0] sm:$0xff]
  %v72 = vld [vmem:[%s0 + $0x1c8] sm:$0xff]
  %v73 = vld [vmem:[%s0 + $0x1d0] sm:$0xff]
  %v74 = vld [vmem:[%s0 + $0x1d8] sm:$0xff]
  %v75 = vld [vmem:[%s0 + $0x1e0] sm:$0x3]
  %v76 = vld [vmem:[%s0 + $0x1e8] sm:$0x3]
  %v77 = vld [vmem:[%s0 + $0x1f0] sm:$0x3]
  %v78 = vld [vmem:[%s0 + $0x1f8] sm:$0x3]
  %v79 = vld [vmem:[%s0 + $0x200] sm:$0x3]
  %v80 = vpack.c.bf16 %v20, %v15
  %v81 = vpack.c.bf16 %v21, %v16
  %v82 = vpack.c.bf16 %v22, %v17
  %v83 = vpack.c.bf16 %v23, %v18
  %v84 = vpack.c.bf16 %v24, %v19
  %v85 = vpack.c.bf16 %v30, %v25
  %v86 = vpack.c.bf16 %v31, %v26
  %v87 = vpack.c.bf16 %v32, %v27
  %v88 = vpack.c.bf16 %v33, %v28
  %v89 = vpack.c.bf16 %v34, %v29
  %v90 = vpack.c.bf16 %v40, %v35
  %v91 = vpack.c.bf16 %v41, %v36
  %v92 = vpack.c.bf16 %v42, %v37
  %v93 = vpack.c.bf16 %v43, %v38
  %v94 = vpack.c.bf16 %v44, %v39
  %v95 = vpack.c.bf16 %v50, %v45
  %v96 = vpack.c.bf16 %v51, %v46
  %v97 = vpack.c.bf16 %v52, %v47
  %v98 = vpack.c.bf16 %v53, %v48
  %v99 = vpack.c.bf16 %v54, %v49
  %v100 = vpack.c.bf16 %v60, %v55
  %v101 = vpack.c.bf16 %v61, %v56
  %v102 = vpack.c.bf16 %v62, %v57
  %v103 = vpack.c.bf16 %v63, %v58
  %v104 = vpack.c.bf16 %v64, %v59
  %v105 = vpack.c.bf16 %v70, %v65
  %v106 = vpack.c.bf16 %v71, %v66
  %v107 = vpack.c.bf16 %v72, %v67
  %v108 = vpack.c.bf16 %v73, %v68
  %v109 = vpack.c.bf16 %v74, %v69
  %v110 = vpack.c.bf16 %v75, %v75
  %v111 = vpack.c.bf16 %v76, %v76
  %v112 = vpack.c.bf16 %v77, %v77
  %v113 = vpack.c.bf16 %v78, %v78
  %v114 = vpack.c.bf16 %v79, %v79
  %v115 = vld [vmem:[%s1] sm:$0xf]
  %v116 = vld [vmem:[%s1 + $0x4] sm:$0xf]
  %v117 = vld [vmem:[%s1 + $0x8] sm:$0xf]
  %v118 = vld [vmem:[%s1 + $0xc] sm:$0xf]
  %v119 = vld [vmem:[%s1 + $0x10] sm:$0xf]
  %v120 = vld [vmem:[%s1 + $0x14] sm:$0xf]
  %v121 = vld [vmem:[%s1 + $0x18] sm:$0xf]
  %v122 = vld [vmem:[%s1 + $0x1c] sm:$0xf]
  %v123 = vld [vmem:[%s1 + $0x20] sm:$0xf]
  %v124 = vld [vmem:[%s1 + $0x24] sm:$0xf]
  %v125 = vld [vmem:[%s1 + $0x28] sm:$0xf]
  %v126 = vld [vmem:[%s1 + $0x2c] sm:$0xf]
  %v127 = vld [vmem:[%s1 + $0x30] sm:$0xf]
  %v128 = vld [vmem:[%s1 + $0x34] sm:$0xf]
  %v129 = vld [vmem:[%s1 + $0x38] sm:$0xf]
  %v130 = vld [vmem:[%s1 + $0x3c] sm:$0xf]
  %v131 = vld [vmem:[%s1 + $0x40] sm:$0xf]
  %v132 = vld [vmem:[%s1 + $0x44] sm:$0xf]
  %v133 = vld [vmem:[%s1 + $0x48] sm:$0xf]
  %v134 = vld [vmem:[%s1 + $0x4c] sm:$0xf]
  %v135 = vld [vmem:[%s1 + $0x50] sm:$0xf]
  %v136 = vld [vmem:[%s1 + $0x54] sm:$0xf]
  %v137 = vld [vmem:[%s1 + $0x58] sm:$0xf]
  %v138 = vld [vmem:[%s1 + $0x5c] sm:$0xf]
  %v139 = vld [vmem:[%s1 + $0x60] sm:$0xf]
  %v140 = vld [vmem:[%s1 + $0x64] sm:$0xf]
  %v141 = vld [vmem:[%s1 + $0x68] sm:$0xf]
  %v142 = vld [vmem:[%s1 + $0x6c] sm:$0xf]
  %v143 = vld [vmem:[%s1 + $0x70] sm:$0xf]
  %v144 = vld [vmem:[%s1 + $0x74] sm:$0xf]
  %v145 = vld [vmem:[%s1 + $0x78] sm:$0xf]
  %v146 = vld [vmem:[%s1 + $0x7c] sm:$0xf]
  %v147 = vld [vmem:[%s1 + $0x80] sm:$0xf]
  %v148 = vld [vmem:[%s1 + $0x84] sm:$0xf]
  %v149 = vld [vmem:[%s1 + $0x88] sm:$0xf]
  %v150 = vld [vmem:[%s1 + $0x8c] sm:$0xf]
  %v151 = vld [vmem:[%s1 + $0x90] sm:$0xf]
  %v152 = vld [vmem:[%s1 + $0x94] sm:$0xf]
  %v153 = vld [vmem:[%s1 + $0x98] sm:$0xf]
  %v154 = vld [vmem:[%s1 + $0x9c] sm:$0xf]
  %v155 = vld [vmem:[%s1 + $0xa0] sm:$0xf]
  %v156 = vld [vmem:[%s1 + $0xa4] sm:$0xf]
  %v157 = vld [vmem:[%s1 + $0xa8] sm:$0xf]
  %v158 = vld [vmem:[%s1 + $0xac] sm:$0xf]
  %v159 = vld [vmem:[%s1 + $0xb0] sm:$0xf]
  %v160 = vld [vmem:[%s1 + $0xb4] sm:$0xf]
  %v161 = vld [vmem:[%s1 + $0xb8] sm:$0xf]
  %v162 = vld [vmem:[%s1 + $0xbc] sm:$0xf]
  %v163 = vld [vmem:[%s1 + $0xc0] sm:$0xf]
  %v164 = vld [vmem:[%s1 + $0xc4] sm:$0xf]
  %v165 = vld [vmem:[%s1 + $0xc8] sm:$0xf]
  %v166 = vld [vmem:[%s1 + $0xcc] sm:$0xf]
  %v167 = vld [vmem:[%s1 + $0xd0] sm:$0xf]
  %v168 = vld [vmem:[%s1 + $0xd4] sm:$0xf]
  %v169 = vld [vmem:[%s1 + $0xd8] sm:$0xf]
  %v170 = vld [vmem:[%s1 + $0xdc] sm:$0xf]
  %v171 = vld [vmem:[%s1 + $0xe0] sm:$0xf]
  %v172 = vld [vmem:[%s1 + $0xe4] sm:$0xf]
  %v173 = vld [vmem:[%s1 + $0xe8] sm:$0xf]
  %v174 = vld [vmem:[%s1 + $0xec] sm:$0xf]
  %v175 = vld [vmem:[%s1 + $0xf0] sm:$0xf]
  %v176 = vld [vmem:[%s1 + $0xf4] sm:$0xf]
  %v177 = vld [vmem:[%s1 + $0xf8] sm:$0xf]
  %v178 = vld [vmem:[%s1 + $0xfc] sm:$0xf]
  %v179 = vld [vmem:[%s1 + $0x100] sm:$0xf]
  %v180 = vld [vmem:[%s1 + $0x104] sm:$0xf]
  %v181 = vld [vmem:[%s1 + $0x108] sm:$0xf]
  %v182 = vld [vmem:[%s1 + $0x10c] sm:$0xf]
  %v183 = vld [vmem:[%s1 + $0x110] sm:$0xf]
  %v184 = vld [vmem:[%s1 + $0x114] sm:$0xf]
  %v185 = vld [vmem:[%s1 + $0x118] sm:$0xf]
  %v186 = vld [vmem:[%s1 + $0x11c] sm:$0xf]
  %v187 = vld [vmem:[%s2] sm:$0x1]
  %v189 = vperm.slane %v187, 0
  %v263 = vunpack.c.l.b16 %v115
  %v264 = vunpack.c.l.b16 %v116
  %v265 = vunpack.c.l.b16 %v117
  %v266 = vunpack.c.l.b16 %v118
  %v267 = vunpack.c.l.b16 %v119
  %v268 = vunpack.c.l.b16 %v120
  %v269 = vunpack.c.l.b16 %v121
  %v270 = vunpack.c.l.b16 %v122
  %v271 = vunpack.c.l.b16 %v123
  %v272 = vunpack.c.l.b16 %v124
  %v273 = vunpack.c.l.b16 %v125
  %v274 = vunpack.c.l.b16 %v126
  %v275 = vunpack.c.l.b16 %v127
  %v276 = vunpack.c.l.b16 %v128
  %v277 = vunpack.c.l.b16 %v129
  %v278 = vunpack.c.l.b16 %v130
  %v279 = vunpack.c.l.b16 %v131
  %v280 = vunpack.c.l.b16 %v132
  %v281 = vunpack.c.l.b16 %v133
  %v282 = vunpack.c.l.b16 %v134
  %v283 = vunpack.c.l.b16 %v135
  %v284 = vunpack.c.l.b16 %v136
  %v285 = vunpack.c.l.b16 %v137
  %v286 = vunpack.c.l.b16 %v138
  %v287 = vunpack.c.l.b16 %v139
  %v288 = vunpack.c.l.b16 %v140
  %v289 = vunpack.c.l.b16 %v141
  %v290 = vunpack.c.l.b16 %v142
  %v291 = vunpack.c.l.b16 %v143
  %v292 = vunpack.c.l.b16 %v144
  %v293 = vunpack.c.l.b16 %v145
  %v294 = vunpack.c.l.b16 %v146
  %v295 = vunpack.c.l.b16 %v147
  %v296 = vunpack.c.l.b16 %v148
  %v297 = vunpack.c.l.b16 %v149
  %v298 = vunpack.c.l.b16 %v150
  %v299 = vunpack.c.l.b16 %v151
  %v300 = vunpack.c.l.b16 %v152
  %v301 = vunpack.c.l.b16 %v153
  %v302 = vunpack.c.l.b16 %v154
  %v303 = vunpack.c.l.b16 %v155
  %v304 = vunpack.c.l.b16 %v156
  %v305 = vunpack.c.l.b16 %v157
  %v306 = vunpack.c.l.b16 %v158
  %v307 = vunpack.c.l.b16 %v159
  %v308 = vunpack.c.l.b16 %v160
  %v309 = vunpack.c.l.b16 %v161
  %v310 = vunpack.c.l.b16 %v162
  %v311 = vunpack.c.l.b16 %v163
  %v312 = vunpack.c.l.b16 %v164
  %v313 = vunpack.c.l.b16 %v165
  %v314 = vunpack.c.l.b16 %v166
  %v315 = vunpack.c.l.b16 %v167
  %v316 = vunpack.c.l.b16 %v168
  %v317 = vunpack.c.l.b16 %v169
  %v318 = vunpack.c.l.b16 %v170
  %v319 = vunpack.c.l.b16 %v171
  %v320 = vunpack.c.l.b16 %v172
  %v321 = vunpack.c.l.b16 %v173
  %v322 = vunpack.c.l.b16 %v174
  %v323 = vunpack.c.l.b16 %v175
  %v324 = vunpack.c.l.b16 %v176
  %v325 = vunpack.c.l.b16 %v177
  %v326 = vunpack.c.l.b16 %v178
  %v327 = vunpack.c.l.b16 %v179
  %v328 = vunpack.c.l.b16 %v180
  %v329 = vunpack.c.l.b16 %v181
  %v330 = vunpack.c.l.b16 %v182
  %v331 = vunpack.c.l.b16 %v183
  %v332 = vunpack.c.l.b16 %v184
  %v333 = vunpack.c.l.b16 %v185
  %v334 = vunpack.c.l.b16 %v186
  %v335 = vpack.c.b16 %v264, %v263
  %v336 = vpack.c.b16 %v266, %v265
  %v337 = vpack.c.b16 %v268, %v267
  %v338 = vpack.c.b16 %v270, %v269
  %v339 = vpack.c.b16 %v272, %v271
  %v340 = vpack.c.b16 %v274, %v273
  %v341 = vpack.c.b16 %v276, %v275
  %v342 = vpack.c.b16 %v278, %v277
  %v343 = vpack.c.b16 %v280, %v279
  %v344 = vpack.c.b16 %v282, %v281
  %v345 = vpack.c.b16 %v284, %v283
  %v346 = vpack.c.b16 %v286, %v285
  %v347 = vpack.c.b16 %v288, %v287
  %v348 = vpack.c.b16 %v290, %v289
  %v349 = vpack.c.b16 %v292, %v291
  %v350 = vpack.c.b16 %v294, %v293
  %v351 = vpack.c.b16 %v296, %v295
  %v352 = vpack.c.b16 %v298, %v297
  %v353 = vpack.c.b16 %v300, %v299
  %v354 = vpack.c.b16 %v302, %v301
  %v355 = vpack.c.b16 %v304, %v303
  %v356 = vpack.c.b16 %v306, %v305
  %v357 = vpack.c.b16 %v308, %v307
  %v358 = vpack.c.b16 %v310, %v309
  %v359 = vpack.c.b16 %v312, %v311
  %v360 = vpack.c.b16 %v314, %v313
  %v361 = vpack.c.b16 %v316, %v315
  %v362 = vpack.c.b16 %v318, %v317
  %v363 = vpack.c.b16 %v320, %v319
  %v364 = vpack.c.b16 %v322, %v321
  %v365 = vpack.c.b16 %v324, %v323
  %v366 = vpack.c.b16 %v326, %v325
  %v367 = vpack.c.b16 %v328, %v327
  %v368 = vpack.c.b16 %v330, %v329
  %v369 = vpack.c.b16 %v332, %v331
  %v370 = vpack.c.b16 %v334, %v333
  %vm407 = vcmask 523264
  %v409 = vsel %vm407, %v84, 0
  %v412 = vsel %vm407, %v89, 0
  %v415 = vsel %vm407, %v94, 0
  %v418 = vsel %vm407, %v99, 0
  %v421 = vsel %vm407, %v104, 0
  %v424 = vsel %vm407, %v109, 0
  %v427 = vsel %vm407, %v114, 0
  %429 = vmatpush.bf16.msra.mxu0 %v342
  %430 = vmatpush.bf16.msra.mxu0 %v341
  %431 = vmatpush.bf16.msra.mxu0 %v340
  %432 = vmatpush.bf16.msra.mxu0 %v339
  %433 = vmatpush.bf16.msra.mxu0 %v338
  %434 = vmatpush.bf16.msra.mxu0 %v337
  %435 = vmatpush.bf16.msra.mxu0 %v336
  %436 = vmatpush.bf16.msra.mxu0 %v335
  %437 = vmatmul.bf16.gmra.mxu0 %v80
  %v438 = vpop.f32.mrf.mxu0
  %v439 = vadd.f32 %v189, %v438
  %v440 = vpop.f32.mrf.mxu0
  %v441 = vadd.f32 %v189, %v440
  %442 = vmatmul.bf16.gmra.mxu0 %v85
  %v443 = vpop.f32.mrf.mxu0
  %v444 = vadd.f32 %v189, %v443
  %v445 = vpop.f32.mrf.mxu0
  %v446 = vadd.f32 %v189, %v445
  %447 = vmatmul.bf16.gmra.mxu0 %v90
  %v448 = vpop.f32.mrf.mxu0
  %v449 = vadd.f32 %v189, %v448
  %v450 = vpop.f32.mrf.mxu0
  %v451 = vadd.f32 %v189, %v450
  %452 = vmatmul.bf16.gmra.mxu0 %v95
  %v453 = vpop.f32.mrf.mxu0
  %v454 = vadd.f32 %v189, %v453
  %v455 = vpop.f32.mrf.mxu0
  %v456 = vadd.f32 %v189, %v455
  %457 = vmatmul.bf16.gmra.mxu0 %v100
  %v458 = vpop.f32.mrf.mxu0
  %v459 = vadd.f32 %v189, %v458
  %v460 = vpop.f32.mrf.mxu0
  %v461 = vadd.f32 %v189, %v460
  %462 = vmatmul.bf16.gmra.mxu0 %v105
  %v463 = vpop.f32.mrf.mxu0
  %v464 = vadd.f32 %v189, %v463
  %v465 = vpop.f32.mrf.mxu0
  %v466 = vadd.f32 %v189, %v465
  %467 = vmatmul.bf16.gmra.mxu0 %v110
  %v468 = vpop.f32.mrf.mxu0
  %v469 = vadd.f32 %v189, %v468
  %v470 = vpop.f32.mrf.mxu0
  %471 = vdwg.mxu0
  %472 = vmatpush.bf16.msra.mxu0 %v350
  %473 = vmatpush.bf16.msra.mxu0 %v349
  %474 = vmatpush.bf16.msra.mxu0 %v348
  %475 = vmatpush.bf16.msra.mxu0 %v347
  %476 = vmatpush.bf16.msra.mxu0 %v346
  %477 = vmatpush.bf16.msra.mxu0 %v345
  %478 = vmatpush.bf16.msra.mxu0 %v344
  %479 = vmatpush.bf16.msra.mxu0 %v343
  %480 = vmatmul.bf16.gmra.mxu0 %v81
  %v481 = vpop.f32.mrf.mxu0
  %v482 = vadd.f32 %v439, %v481
  %v483 = vpop.f32.mrf.mxu0
  %v484 = vadd.f32 %v441, %v483
  %485 = vmatmul.bf16.gmra.mxu0 %v86
  %v486 = vpop.f32.mrf.mxu0
  %v487 = vadd.f32 %v444, %v486
  %v488 = vpop.f32.mrf.mxu0
  %v489 = vadd.f32 %v446, %v488
  %490 = vmatmul.bf16.gmra.mxu0 %v91
  %v491 = vpop.f32.mrf.mxu0
  %v492 = vadd.f32 %v449, %v491
  %v493 = vpop.f32.mrf.mxu0
  %v494 = vadd.f32 %v451, %v493
  %495 = vmatmul.bf16.gmra.mxu0 %v96
  %v496 = vpop.f32.mrf.mxu0
  %v497 = vadd.f32 %v454, %v496
  %v498 = vpop.f32.mrf.mxu0
  %v499 = vadd.f32 %v456, %v498
  %500 = vmatmul.bf16.gmra.mxu0 %v101
  %v501 = vpop.f32.mrf.mxu0
  %v502 = vadd.f32 %v459, %v501
  %v503 = vpop.f32.mrf.mxu0
  %v504 = vadd.f32 %v461, %v503
  %505 = vmatmul.bf16.gmra.mxu0 %v106
  %v506 = vpop.f32.mrf.mxu0
  %v507 = vadd.f32 %v464, %v506
  %v508 = vpop.f32.mrf.mxu0
  %v509 = vadd.f32 %v466, %v508
  %510 = vmatmul.bf16.gmra.mxu0 %v111
  %v511 = vpop.f32.mrf.mxu0
  %v512 = vadd.f32 %v469, %v511
  %v513 = vpop.f32.mrf.mxu0
  %514 = vdwg.mxu0
  %515 = vmatpush.bf16.msra.mxu0 %v358
  %516 = vmatpush.bf16.msra.mxu0 %v357
  %517 = vmatpush.bf16.msra.mxu0 %v356
  %518 = vmatpush.bf16.msra.mxu0 %v355
  %519 = vmatpush.bf16.msra.mxu0 %v354
  %520 = vmatpush.bf16.msra.mxu0 %v353
  %521 = vmatpush.bf16.msra.mxu0 %v352
  %522 = vmatpush.bf16.msra.mxu0 %v351
  %523 = vmatmul.bf16.gmra.mxu0 %v82
  %v524 = vpop.f32.mrf.mxu0
  %v525 = vadd.f32 %v482, %v524
  %v526 = vpop.f32.mrf.mxu0
  %v527 = vadd.f32 %v484, %v526
  %528 = vmatmul.bf16.gmra.mxu0 %v87
  %v529 = vpop.f32.mrf.mxu0
  %v530 = vadd.f32 %v487, %v529
  %v531 = vpop.f32.mrf.mxu0
  %v532 = vadd.f32 %v489, %v531
  %533 = vmatmul.bf16.gmra.mxu0 %v92
  %v534 = vpop.f32.mrf.mxu0
  %v535 = vadd.f32 %v492, %v534
  %v536 = vpop.f32.mrf.mxu0
  %v537 = vadd.f32 %v494, %v536
  %538 = vmatmul.bf16.gmra.mxu0 %v97
  %v539 = vpop.f32.mrf.mxu0
  %v540 = vadd.f32 %v497, %v539
  %v541 = vpop.f32.mrf.mxu0
  %v542 = vadd.f32 %v499, %v541
  %543 = vmatmul.bf16.gmra.mxu0 %v102
  %v544 = vpop.f32.mrf.mxu0
  %v545 = vadd.f32 %v502, %v544
  %v546 = vpop.f32.mrf.mxu0
  %v547 = vadd.f32 %v504, %v546
  %548 = vmatmul.bf16.gmra.mxu0 %v107
  %v549 = vpop.f32.mrf.mxu0
  %v550 = vadd.f32 %v507, %v549
  %v551 = vpop.f32.mrf.mxu0
  %v552 = vadd.f32 %v509, %v551
  %553 = vmatmul.bf16.gmra.mxu0 %v112
  %v554 = vpop.f32.mrf.mxu0
  %v555 = vadd.f32 %v512, %v554
  %v556 = vpop.f32.mrf.mxu0
  %557 = vdwg.mxu0
  %558 = vmatpush.bf16.msra.mxu0 %v366
  %559 = vmatpush.bf16.msra.mxu0 %v365
  %560 = vmatpush.bf16.msra.mxu0 %v364
  %561 = vmatpush.bf16.msra.mxu0 %v363
  %562 = vmatpush.bf16.msra.mxu0 %v362
  %563 = vmatpush.bf16.msra.mxu0 %v361
  %564 = vmatpush.bf16.msra.mxu0 %v360
  %565 = vmatpush.bf16.msra.mxu0 %v359
  %566 = vmatmul.bf16.gmra.mxu0 %v83
  %v567 = vpop.f32.mrf.mxu0
  %v568 = vadd.f32 %v525, %v567
  %v569 = vpop.f32.mrf.mxu0
  %v570 = vadd.f32 %v527, %v569
  %571 = vmatmul.bf16.gmra.mxu0 %v88
  %v572 = vpop.f32.mrf.mxu0
  %v573 = vadd.f32 %v530, %v572
  %v574 = vpop.f32.mrf.mxu0
  %v575 = vadd.f32 %v532, %v574
  %576 = vmatmul.bf16.gmra.mxu0 %v93
  %v577 = vpop.f32.mrf.mxu0
  %v578 = vadd.f32 %v535, %v577
  %v579 = vpop.f32.mrf.mxu0
  %v580 = vadd.f32 %v537, %v579
  %581 = vmatmul.bf16.gmra.mxu0 %v98
  %v582 = vpop.f32.mrf.mxu0
  %v583 = vadd.f32 %v540, %v582
  %v584 = vpop.f32.mrf.mxu0
  %v585 = vadd.f32 %v542, %v584
  %586 = vmatmul.bf16.gmra.mxu0 %v103
  %v587 = vpop.f32.mrf.mxu0
  %v588 = vadd.f32 %v545, %v587
  %v589 = vpop.f32.mrf.mxu0
  %v590 = vadd.f32 %v547, %v589
  %591 = vmatmul.bf16.gmra.mxu0 %v108
  %v592 = vpop.f32.mrf.mxu0
  %v593 = vadd.f32 %v550, %v592
  %v594 = vpop.f32.mrf.mxu0
  %v595 = vadd.f32 %v552, %v594
  %596 = vmatmul.bf16.gmra.mxu0 %v113
  %v597 = vpop.f32.mrf.mxu0
  %v598 = vadd.f32 %v555, %v597
  %v599 = vpop.f32.mrf.mxu0
  %600 = vdwg.mxu0
  %601 = vmatpush.bf16.msra.mxu0 0
  %602 = vmatpush.bf16.msra.mxu0 0
  %603 = vmatpush.bf16.msra.mxu0 0
  %604 = vmatpush.bf16.msra.mxu0 0
  %605 = vmatpush.bf16.msra.mxu0 %v370
  %606 = vmatpush.bf16.msra.mxu0 %v369
  %607 = vmatpush.bf16.msra.mxu0 %v368
  %608 = vmatpush.bf16.msra.mxu0 %v367
  %609 = vmatmul.bf16.gmra.mxu0 %v409
  %v610 = vpop.f32.mrf.mxu0
  %v611 = vadd.f32 %v568, %v610
  %v612 = vpop.f32.mrf.mxu0
  %v613 = vadd.f32 %v570, %v612
  %614 = vmatmul.bf16.gmra.mxu0 %v412
  %v615 = vpop.f32.mrf.mxu0
  %v616 = vadd.f32 %v573, %v615
  %v617 = vpop.f32.mrf.mxu0
  %v618 = vadd.f32 %v575, %v617
  %619 = vmatmul.bf16.gmra.mxu0 %v415
  %v620 = vpop.f32.mrf.mxu0
  %v621 = vadd.f32 %v578, %v620
  %v622 = vpop.f32.mrf.mxu0
  %v623 = vadd.f32 %v580, %v622
  %624 = vmatmul.bf16.gmra.mxu0 %v418
  %v625 = vpop.f32.mrf.mxu0
  %v626 = vadd.f32 %v583, %v625
  %v627 = vpop.f32.mrf.mxu0
  %v628 = vadd.f32 %v585, %v627
  %629 = vmatmul.bf16.gmra.mxu0 %v421
  %v630 = vpop.f32.mrf.mxu0
  %v631 = vadd.f32 %v588, %v630
  %v632 = vpop.f32.mrf.mxu0
  %v633 = vadd.f32 %v590, %v632
  %634 = vmatmul.bf16.gmra.mxu0 %v424
  %v635 = vpop.f32.mrf.mxu0
  %v636 = vadd.f32 %v593, %v635
  %v637 = vpop.f32.mrf.mxu0
  %v638 = vadd.f32 %v595, %v637
  %639 = vmatmul.bf16.gmra.mxu0 %v427
  %v640 = vpop.f32.mrf.mxu0
  %v641 = vadd.f32 %v598, %v640
  %v642 = vpop.f32.mrf.mxu0
  %643 = vdwg.mxu0
  %v644 = vmax.f32 %v611, 0.0
  %v645 = vmax.f32 %v613, 0.0
  %v646 = vmax.f32 %v616, 0.0
  %v647 = vmax.f32 %v618, 0.0
  %v648 = vmax.f32 %v621, 0.0
  %v649 = vmax.f32 %v623, 0.0
  %v650 = vmax.f32 %v626, 0.0
  %v651 = vmax.f32 %v628, 0.0
  %v652 = vmax.f32 %v631, 0.0
  %v653 = vmax.f32 %v633, 0.0
  %v654 = vmax.f32 %v636, 0.0
  %v655 = vmax.f32 %v638, 0.0
  %v656 = vmax.f32 %v641, 0.0
  %657 = vst.msk [vmem:[%s3] sm:$0xff] %vm407, %v644
  %658 = vst.msk [vmem:[%s3 + $0x8] sm:$0xff] %vm407, %v645
  %659 = vst.msk [vmem:[%s3 + $0x10] sm:$0xff] %vm407, %v646
  %660 = vst.msk [vmem:[%s3 + $0x18] sm:$0xff] %vm407, %v647
  %661 = vst.msk [vmem:[%s3 + $0x20] sm:$0xff] %vm407, %v648
  %662 = vst.msk [vmem:[%s3 + $0x28] sm:$0xff] %vm407, %v649
  %663 = vst.msk [vmem:[%s3 + $0x30] sm:$0xff] %vm407, %v650
  %664 = vst.msk [vmem:[%s3 + $0x38] sm:$0xff] %vm407, %v651
  %665 = vst.msk [vmem:[%s3 + $0x40] sm:$0xff] %vm407, %v652
  %666 = vst.msk [vmem:[%s3 + $0x48] sm:$0xff] %vm407, %v653
  %667 = vst.msk [vmem:[%s3 + $0x50] sm:$0xff] %vm407, %v654
  %668 = vst.msk [vmem:[%s3 + $0x58] sm:$0xff] %vm407, %v655
  %vm669 = vcmask 517120
  %670 = vst.msk [vmem:[%s3 + $0x60] sm:$0x3] %vm669, %v656
  // Predicated region
  $region14: #{qnetwork_forward.6} parent=0 // pred_check
    _
  $region15: #{qnetwork_forward.6} parent=0 // pred_check_branch
    %672 = sbr.rel (0) target = $region17
  $region16: #{qnetwork_forward.6} parent=0 // pred_region
    _
  $region17: #{qnetwork_forward.6} parent=0 // pred_fallthru
    _
  // Predicated region
  $region18: #{qnetwork_forward.6} parent=0 // pred_check
    _
  $region19: #{qnetwork_forward.6} parent=0 // pred_check_branch
    %674 = sbr.rel (0) target = $region21
  $region20: #{qnetwork_forward.6} parent=0 // pred_region
    _
  $region21: #{qnetwork_forward.6} parent=0 // pred_fallthru
    _

// kernel: qnetwork_forward.7
$region0: #{qnetwork_forward.7}
  #allocation0 [shape = 'u32[]', space=smem, size = 0x4, offset = 0x4, fixed_abs, tag = 'smem constant byte address 0x4 - core index']
  #allocation1 [shape = 'u32[72,128]{1,0:T(1,128)}', space=vmem, size = 0x9000, scoped, tag = 'internal scratch']
  %s0 = inlined_call_operand.vmem [shape: f32[2,3136], index: 0, kind: input, shape index: {}]
  %s1 = inlined_call_operand.vmem [shape: bf16[3136,512], index: 1, kind: input, shape index: {}]
  %s2 = inlined_call_operand.vmem [shape: f32[1,512], index: 2, kind: input, shape index: {}]
  %s3 = inlined_call_operand.vmem [shape: bf16[512,4], index: 3, kind: input, shape index: {}]
  %s4 = inlined_call_operand.vmem [shape: f32[1,4], index: 4, kind: input, shape index: {}]
  %s5 = inlined_call_operand.hbm [shape: f32[2,4], index: 5, kind: output, shape index: {}]
  %s6 = sld [smem:[#allocation0]]
  $region30: #{qnetwork_forward.7} parent=0
    _
  %s8 = ssub.s32 1, %s6
  %s9 = scalar_select 0, %s8, %s6
  $region1: #{qnetwork_forward.7} parent=0
    #allocation2 [shape = 'u8[1024]{0}', space=vmem, size = 0x400, scoped, tag = 'output window, operand 0, single buffered']
    #allocation3 [shape = 's32[1]{0}', space=sflag, size = 0x4, scoped, tag = 'scoped memory for qnetwork_forward.7']
    %10 = vsyncpa [#allocation3], 0
    // Predicated region
    $region2: #{qnetwork_forward.7} parent=1 // pred_check
      _
    $region3: #{qnetwork_forward.7} parent=1 // pred_check_branch
      %12 = sbr.rel (0) target = $region5
    $region4: #{qnetwork_forward.7} parent=1 // pred_region
      _
    $region5: #{qnetwork_forward.7} parent=1 // pred_fallthru
      _
    // Predicated region
    $region6: #{qnetwork_forward.7} parent=1 // pred_check
      _
    $region7: #{qnetwork_forward.7} parent=1 // pred_check_branch
      %14 = sbr.rel (0) target = $region9
    $region8: #{qnetwork_forward.7} parent=1 // pred_region
      _
    $region9: #{qnetwork_forward.7} parent=1 // pred_fallthru
      _
    // Predicated region
    $region10: #{qnetwork_forward.7} parent=1 // pred_check
      _
    $region11: #{qnetwork_forward.7} parent=1 // pred_check_branch
      %16 = sbr.rel (0) target = $region13
    $region12: #{qnetwork_forward.7} parent=1 // pred_region
      _
    $region13: #{qnetwork_forward.7} parent=1 // pred_fallthru
      _
    // Predicated region
    $region14: #{qnetwork_forward.7} parent=1 // pred_check
      _
    $region15: #{qnetwork_forward.7} parent=1 // pred_check_branch
      %18 = sbr.rel (0) target = $region17
    $region16: #{qnetwork_forward.7} parent=1 // pred_region
      _
    $region17: #{qnetwork_forward.7} parent=1 // pred_fallthru
      _
    // Predicated region
    $region18: #{qnetwork_forward.7} parent=1 // pred_check
      _
    $region19: #{qnetwork_forward.7} parent=1 // pred_check_branch
      %20 = sbr.rel (0) target = $region21
    $region20: #{qnetwork_forward.7} parent=1 // pred_region
      _
    $region21: #{qnetwork_forward.7} parent=1 // pred_fallthru
      _
    %v22 = vld [vmem:[%s0] sm:$0xff]
    %v23 = vld [vmem:[%s0 + $0x8] sm:$0xff]
    %v24 = vld [vmem:[%s0 + $0x10] sm:$0xff]
    %v25 = vld [vmem:[%s0 + $0x18] sm:$0xff]
    %v26 = vld [vmem:[%s0 + $0x20] sm:$0xff]
    %v27 = vld [vmem:[%s0 + $0x28] sm:$0xff]
    %v28 = vld [vmem:[%s0 + $0x30] sm:$0x3]
    %36 = vst [vmem:[#allocation1] ss:$4 sm:$0xff] %v22
    %s37 = scalar_lea.vmem [#allocation1], 32
    %38 = vst [vmem:[%s37] ss:$4 sm:$0xff] %v23
    %v39 = vld.sshfl [vmem:[#allocation1] sm:$0xff pattern:$0x73625140]
    %v40 = vld.sshfl [vmem:[#allocation1 + $0x8] sm:$0xff pattern:$0x73625140]
    %v41 = vld.sshfl [vmem:[#allocation1 + $0x10] sm:$0xff pattern:$0x73625140]
    %v42 = vld.sshfl [vmem:[#allocation1 + $0x18] sm:$0xff pattern:$0x73625140]
    %v43 = vld.sshfl [vmem:[#allocation1 + $0x20] sm:$0xff pattern:$0x73625140]
    %v44 = vld.sshfl [vmem:[#allocation1 + $0x28] sm:$0xff pattern:$0x73625140]
    %v45 = vld.sshfl [vmem:[#allocation1 + $0x30] sm:$0xff pattern:$0x73625140]
    %v46 = vld.sshfl [vmem:[#allocation1 + $0x38] sm:$0xff pattern:$0x73625140]
    %47 = vst [vmem:[#allocation1] ss:$4 sm:$0xff] %v24
    %48 = vst [vmem:[%s37] ss:$4 sm:$0xff] %v25
    %v49 = vld.sshfl [vmem:[#allocation1] sm:$0xff pattern:$0x73625140]
    %v50 = vld.sshfl [vmem:[#allocation1 + $0x8] sm:$0xff pattern:$0x73625140]
    %v51 = vld.sshfl [vmem:[#allocation1 + $0x10] sm:$0xff pattern:$0x73625140]
    %v52 = vld.sshfl [vmem:[#allocation1 + $0x18] sm:$0xff pattern:$0x73625140]
    %v53 = vld.sshfl [vmem:[#allocation1 + $0x20] sm:$0xff pattern:$0x73625140]
    %v54 = vld.sshfl [vmem:[#allocation1 + $0x28] sm:$0xff pattern:$0x73625140]
    %v55 = vld.sshfl [vmem:[#allocation1 + $0x30] sm:$0xff pattern:$0x73625140]
    %v56 = vld.sshfl [vmem:[#allocation1 + $0x38] sm:$0xff pattern:$0x73625140]
    %57 = vst [vmem:[#allocation1] ss:$4 sm:$0xff] %v26
    %58 = vst [vmem:[%s37] ss:$4 sm:$0xff] %v27
    %v59 = vld.sshfl [vmem:[#allocation1] sm:$0xff pattern:$0x73625140]
    %v60 = vld.sshfl [vmem:[#allocation1 + $0x8] sm:$0xff pattern:$0x73625140]
    %v61 = vld.sshfl [vmem:[#allocation1 + $0x10] sm:$0xff pattern:$0x73625140]
    %v62 = vld.sshfl [vmem:[#allocation1 + $0x18] sm:$0xff pattern:$0x73625140]
    %v63 = vld.sshfl [vmem:[#allocation1 + $0x20] sm:$0xff pattern:$0x73625140]
    %v64 = vld.sshfl [vmem:[#allocation1 + $0x28] sm:$0xff pattern:$0x73625140]
    %v65 = vld.sshfl [vmem:[#allocation1 + $0x30] sm:$0xff pattern:$0x73625140]
    %v66 = vld.sshfl [vmem:[#allocation1 + $0x38] sm:$0xff pattern:$0x73625140]
    %67 = vst [vmem:[#allocation1] ss:$4 sm:$0xff] %v28
    %v68 = vld.sshfl [vmem:[#allocation1] sm:$0xff pattern:$0x73625140]
    %v94 = vpack.c.bf16 %v39, %v39
    %v95 = vpack.c.bf16 %v40, %v40
    %v96 = vpack.c.bf16 %v41, %v41
    %v97 = vpack.c.bf16 %v42, %v42
    %v98 = vpack.c.bf16 %v43, %v43
    %v99 = vpack.c.bf16 %v44, %v44
    %v100 = vpack.c.bf16 %v45, %v45
    %v101 = vpack.c.bf16 %v46, %v46
    %v102 = vpack.c.bf16 %v49, %v49
    %v103 = vpack.c.bf16 %v50, %v50
    %v104 = vpack.c.bf16 %v51, %v51
    %v105 = vpack.c.bf16 %v52, %v52
    %v106 = vpack.c.bf16 %v53, %v53
    %v107 = vpack.c.bf16 %v54, %v54
    %v108 = vpack.c.bf16 %v55, %v55
    %v109 = vpack.c.bf16 %v56, %v56
    %v110 = vpack.c.bf16 %v59, %v59
    %v111 = vpack.c.bf16 %v60, %v60
    %v112 = vpack.c.bf16 %v61, %v61
    %v113 = vpack.c.bf16 %v62, %v62
    %v114 = vpack.c.bf16 %v63, %v63
    %v115 = vpack.c.bf16 %v64, %v64
    %v116 = vpack.c.bf16 %v65, %v65
    %v117 = vpack.c.bf16 %v66, %v66
    %v118 = vpack.c.bf16 %v68, %v68
    %v119 = vld [vmem:[%s1] sm:$0xff]
    %v120 = vld [vmem:[%s1 + $0x8] sm:$0xff]
    %v121 = vld [vmem:[%s1 + $0x10] sm:$0xff]
    %v122 = vld [vmem:[%s1 + $0x18] sm:$0xff]
    %v123 = vld [vmem:[%s1 + $0x20] sm:$0xff]
    %v124 = vld [vmem:[%s1 + $0x28] sm:$0xff]
    %v125 = vld [vmem:[%s1 + $0x30] sm:$0xff]
    %v126 = vld [vmem:[%s1 + $0x38] sm:$0xff]
    %v127 = vld [vmem:[%s1 + $0x40] sm:$0xff]
    %v128 = vld [vmem:[%s1 + $0x48] sm:$0xff]
    %v129 = vld [vmem:[%s1 + $0x50] sm:$0xff]
    %v130 = vld [vmem:[%s1 + $0x58] sm:$0xff]
    %v131 = vld [vmem:[%s1 + $0x60] sm:$0xff]
    %v132 = vld [vmem:[%s1 + $0x68] sm:$0xff]
    %v133 = vld [vmem:[%s1 + $0x70] sm:$0xff]
    %v134 = vld [vmem:[%s1 + $0x78] sm:$0xff]
    %v135 = vld [vmem:[%s1 + $0x80] sm:$0xff]
    %v136 = vld [vmem:[%s1 + $0x88] sm:$0xff]
    %v137 = vld [vmem:[%s1 + $0x90] sm:$0xff]
    %v138 = vld [vmem:[%s1 + $0x98] sm:$0xff]
    %v139 = vld [vmem:[%s1 + $0xa0] sm:$0xff]
    %v140 = vld [vmem:[%s1 + $0xa8] sm:$0xff]
    %v141 = vld [vmem:[%s1 + $0xb0] sm:$0xff]
    %v142 = vld [vmem:[%s1 + $0xb8] sm:$0xff]
    %v143 = vld [vmem:[%s1 + $0xc0] sm:$0xff]
    %v144 = vld [vmem:[%s1 + $0xc8] sm:$0xff]
    %v145 = vld [vmem:[%s1 + $0xd0] sm:$0xff]
    %v146 = vld [vmem:[%s1 + $0xd8] sm:$0xff]
    %v147 = vld [vmem:[%s1 + $0xe0] sm:$0xff]
    %v148 = vld [vmem:[%s1 + $0xe8] sm:$0xff]
    %v149 = vld [vmem:[%s1 + $0xf0] sm:$0xff]
    %v150 = vld [vmem:[%s1 + $0xf8] sm:$0xff]
    %v151 = vld [vmem:[%s1 + $0x100] sm:$0xff]
    %v152 = vld [vmem:[%s1 + $0x108] sm:$0xff]
    %v153 = vld [vmem:[%s1 + $0x110] sm:$0xff]
    %v154 = vld [vmem:[%s1 + $0x118] sm:$0xff]
    %v155 = vld [vmem:[%s1 + $0x120] sm:$0xff]
    %v156 = vld [vmem:[%s1 + $0x128] sm:$0xff]
    %v157 = vld [vmem:[%s1 + $0x130] sm:$0xff]
    %v158 = vld [vmem:[%s1 + $0x138] sm:$0xff]
    %v159 = vld [vmem:[%s1 + $0x140] sm:$0xff]
    %v160 = vld [vmem:[%s1 + $0x148] sm:$0xff]
    %v161 = vld [vmem:[%s1 + $0x150] sm:$0xff]
    %v162 = vld [vmem:[%s1 + $0x158] sm:$0xff]
    %v163 = vld [vmem:[%s1 + $0x160] sm:$0xff]
    %v164 = vld [vmem:[%s1 + $0x168] sm:$0xff]
    %v165 = vld [vmem:[%s1 + $0x170] sm:$0xff]
    %v166 = vld [vmem:[%s1 + $0x178] sm:$0xff]
    %v167 = vld [vmem:[%s1 + $0x180] sm:$0xff]
    %v168 = vld [vmem:[%s1 + $0x188] sm:$0xff]
    %v169 = vld [vmem:[%s1 + $0x190] sm:$0xff]
    %v170 = vld [vmem:[%s1 + $0x198] sm:$0xff]
    %v171 = vld [vmem:[%s1 + $0x1a0] sm:$0xff]
    %v172 = vld [vmem:[%s1 + $0x1a8] sm:$0xff]
    %v173 = vld [vmem:[%s1 + $0x1b0] sm:$0xff]
    %v174 = vld [vmem:[%s1 + $0x1b8] sm:$0xff]
    %v175 = vld [vmem:[%s1 + $0x1c0] sm:$0xff]
    %v176 = vld [vmem:[%s1 + $0x1c8] sm:$0xff]
    %v177 = vld [vmem:[%s1 + $0x1d0] sm:$0xff]
    %v178 = vld [vmem:[%s1 + $0x1d8] sm:$0xff]
    %v179 = vld [vmem:[%s1 + $0x1e0] sm:$0xff]
    %v180 = vld [vmem:[%s1 + $0x1e8] sm:$0xff]
    %v181 = vld [vmem:[%s1 + $0x1f0] sm:$0xff]
    %v182 = vld [vmem:[%s1 + $0x1f8] sm:$0xff]
    %v183 = vld [vmem:[%s1 + $0x200] sm:$0xff]
    %v184 = vld [vmem:[%s1 + $0x208] sm:$0xff]
    %v185 = vld [vmem:[%s1 + $0x210] sm:$0xff]
    %v186 = vld [vmem:[%s1 + $0x218] sm:$0xff]
    %v187 = vld [vmem:[%s1 + $0x220] sm:$0xff]
    %v188 = vld [vmem:[%s1 + $0x228] sm:$0xff]
    %v189 = vld [vmem:[%s1 + $0x230] sm:$0xff]
    %v190 = vld [vmem:[%s1 + $0x238] sm:$0xff]
    %v191 = vld [vmem:[%s1 + $0x240] sm:$0xff]
    %v192 = vld [vmem:[%s1 + $0x248] sm:$0xff]
    %v193 = vld [vmem:[%s1 + $0x250] sm:$0xff]
    %v194 = vld [vmem:[%s1 + $0x258] sm:$0xff]
    %v195 = vld [vmem:[%s1 + $0x260] sm:$0xff]
    %v196 = vld [vmem:[%s1 + $0x268] sm:$0xff]
    %v197 = vld [vmem:[%s1 + $0x270] sm:$0xff]
    %v198 = vld [vmem:[%s1 + $0x278] sm:$0xff]
    %v199 = vld [vmem:[%s1 + $0x280] sm:$0xff]
    %v200 = vld [vmem:[%s1 + $0x288] sm:$0xff]
    %v201 = vld [vmem:[%s1 + $0x290] sm:$0xff]
    %v202 = vld [vmem:[%s1 + $0x298] sm:$0xff]
    %v203 = vld [vmem:[%s1 + $0x2a0] sm:$0xff]
    %v204 = vld [vmem:[%s1 + $0x2a8] sm:$0xff]
    %v205 = vld [vmem:[%s1 + $0x2b0] sm:$0xff]
    %v206 = vld [vmem:[%s1 + $0x2b8] sm:$0xff]
    %v207 = vld [vmem:[%s1 + $0x2c0] sm:$0xff]
    %v208 = vld [vmem:[%s1 + $0x2c8] sm:$0xff]
    %v209 = vld [vmem:[%s1 + $0x2d0] sm:$0xff]
    %v210 = vld [vmem:[%s1 + $0x2d8] sm:$0xff]
    %v211 = vld [vmem:[%s1 + $0x2e0] sm:$0xff]
    %v212 = vld [vmem:[%s1 + $0x2e8] sm:$0xff]
    %v213 = vld [vmem:[%s1 + $0x2f0] sm:$0xff]
    %v214 = vld [vmem:[%s1 + $0x2f8] sm:$0xff]
    %v215 = vld [vmem:[%s1 + $0x300] sm:$0xff]
    %v216 = vld [vmem:[%s1 + $0x308] sm:$0xff]
    %v217 = vld [vmem:[%s1 + $0x310] sm:$0xff]
    %v218 = vld [vmem:[%s1 + $0x318] sm:$0xff]
    %v219 = vld [vmem:[%s1 + $0x320] sm:$0xff]
    %v220 = vld [vmem:[%s1 + $0x328] sm:$0xff]
    %v221 = vld [vmem:[%s1 + $0x330] sm:$0xff]
    %v222 = vld [vmem:[%s1 + $0x338] sm:$0xff]
    %v223 = vld [vmem:[%s1 + $0x340] sm:$0xff]
    %v224 = vld [vmem:[%s1 + $0x348] sm:$0xff]
    %v225 = vld [vmem:[%s1 + $0x350] sm:$0xff]
    %v226 = vld [vmem:[%s1 + $0x358] sm:$0xff]
    %v227 = vld [vmem:[%s1 + $0x360] sm:$0xff]
    %v228 = vld [vmem:[%s1 + $0x368] sm:$0xff]
    %v229 = vld [vmem:[%s1 + $0x370] sm:$0xff]
    %v230 = vld [vmem:[%s1 + $0x378] sm:$0xff]
    %v231 = vld [vmem:[%s1 + $0x380] sm:$0xff]
    %v232 = vld [vmem:[%s1 + $0x388] sm:$0xff]
    %v233 = vld [vmem:[%s1 + $0x390] sm:$0xff]
    %v234 = vld [vmem:[%s1 + $0x398] sm:$0xff]
    %v235 = vld [vmem:[%s1 + $0x3a0] sm:$0xff]
    %v236 = vld [vmem:[%s1 + $0x3a8] sm:$0xff]
    %v237 = vld [vmem:[%s1 + $0x3b0] sm:$0xff]
    %v238 = vld [vmem:[%s1 + $0x3b8] sm:$0xff]
    %v239 = vld [vmem:[%s1 + $0x3c0] sm:$0xff]
    %v240 = vld [vmem:[%s1 + $0x3c8] sm:$0xff]
    %v241 = vld [vmem:[%s1 + $0x3d0] sm:$0xff]
    %v242 = vld [vmem:[%s1 + $0x3d8] sm:$0xff]
    %v243 = vld [vmem:[%s1 + $0x3e0] sm:$0xff]
    %v244 = vld [vmem:[%s1 + $0x3e8] sm:$0xff]
    %v245 = vld [vmem:[%s1 + $0x3f0] sm:$0xff]
    %v246 = vld [vmem:[%s1 + $0x3f8] sm:$0xff]
    %v247 = vld [vmem:[%s1 + $0x400] sm:$0xff]
    %v248 = vld [vmem:[%s1 + $0x408] sm:$0xff]
    %v249 = vld [vmem:[%s1 + $0x410] sm:$0xff]
    %v250 = vld [vmem:[%s1 + $0x418] sm:$0xff]
    %v251 = vld [vmem:[%s1 + $0x420] sm:$0xff]
    %v252 = vld [vmem:[%s1 + $0x428] sm:$0xff]
    %v253 = vld [vmem:[%s1 + $0x430] sm:$0xff]
    %v254 = vld [vmem:[%s1 + $0x438] sm:$0xff]
    %v255 = vld [vmem:[%s1 + $0x440] sm:$0xff]
    %v256 = vld [vmem:[%s1 + $0x448] sm:$0xff]
    %v257 = vld [vmem:[%s1 + $0x450] sm:$0xff]
    %v258 = vld [vmem:[%s1 + $0x458] sm:$0xff]
    %v259 = vld [vmem:[%s1 + $0x460] sm:$0xff]
    %v260 = vld [vmem:[%s1 + $0x468] sm:$0xff]
    %v261 = vld [vmem:[%s1 + $0x470] sm:$0xff]
    %v262 = vld [vmem:[%s1 + $0x478] sm:$0xff]
    %v263 = vld [vmem:[%s1 + $0x480] sm:$0xff]
    %v264 = vld [vmem:[%s1 + $0x488] sm:$0xff]
    %v265 = vld [vmem:[%s1 + $0x490] sm:$0xff]
    %v266 = vld [vmem:[%s1 + $0x498] sm:$0xff]
    %v267 = vld [vmem:[%s1 + $0x4a0] sm:$0xff]
    %v268 = vld [vmem:[%s1 + $0x4a8] sm:$0xff]
    %v269 = vld [vmem:[%s1 + $0x4b0] sm:$0xff]
    %v270 = vld [vmem:[%s1 + $0x4b8] sm:$0xff]
    %v271 = vld [vmem:[%s1 + $0x4c0] sm:$0xff]
    %v272 = vld [vmem:[%s1 + $0x4c8] sm:$0xff]
    %v273 = vld [vmem:[%s1 + $0x4d0] sm:$0xff]
    %v274 = vld [vmem:[%s1 + $0x4d8] sm:$0xff]
    %v275 = vld [vmem:[%s1 + $0x4e0] sm:$0xff]
    %v276 = vld [vmem:[%s1 + $0x4e8] sm:$0xff]
    %v277 = vld [vmem:[%s1 + $0x4f0] sm:$0xff]
    %v278 = vld [vmem:[%s1 + $0x4f8] sm:$0xff]
    %v279 = vld [vmem:[%s1 + $0x500] sm:$0xff]
    %v280 = vld [vmem:[%s1 + $0x508] sm:$0xff]
    %v281 = vld [vmem:[%s1 + $0x510] sm:$0xff]
    %v282 = vld [vmem:[%s1 + $0x518] sm:$0xff]
    %v283 = vld [vmem:[%s1 + $0x520] sm:$0xff]
    %v284 = vld [vmem:[%s1 + $0x528] sm:$0xff]
    %v285 = vld [vmem:[%s1 + $0x530] sm:$0xff]
    %v286 = vld [vmem:[%s1 + $0x538] sm:$0xff]
    %v287 = vld [vmem:[%s1 + $0x540] sm:$0xff]
    %v288 = vld [vmem:[%s1 + $0x548] sm:$0xff]
    %v289 = vld [vmem:[%s1 + $0x550] sm:$0xff]
    %v290 = vld [vmem:[%s1 + $0x558] sm:$0xff]
    %v291 = vld [vmem:[%s1 + $0x560] sm:$0xff]
    %v292 = vld [vmem:[%s1 + $0x568] sm:$0xff]
    %v293 = vld [vmem:[%s1 + $0x570] sm:$0xff]
    %v294 = vld [vmem:[%s1 + $0x578] sm:$0xff]
    %v295 = vld [vmem:[%s1 + $0x580] sm:$0xff]
    %v296 = vld [vmem:[%s1 + $0x588] sm:$0xff]
    %v297 = vld [vmem:[%s1 + $0x590] sm:$0xff]
    %v298 = vld [vmem:[%s1 + $0x598] sm:$0xff]
    %v299 = vld [vmem:[%s1 + $0x5a0] sm:$0xff]
    %v300 = vld [vmem:[%s1 + $0x5a8] sm:$0xff]
    %v301 = vld [vmem:[%s1 + $0x5b0] sm:$0xff]
    %v302 = vld [vmem:[%s1 + $0x5b8] sm:$0xff]
    %v303 = vld [vmem:[%s1 + $0x5c0] sm:$0xff]
    %v304 = vld [vmem:[%s1 + $0x5c8] sm:$0xff]
    %v305 = vld [vmem:[%s1 + $0x5d0] sm:$0xff]
    %v306 = vld [vmem:[%s1 + $0x5d8] sm:$0xff]
    %v307 = vld [vmem:[%s1 + $0x5e0] sm:$0xff]
    %v308 = vld [vmem:[%s1 + $0x5e8] sm:$0xff]
    %v309 = vld [vmem:[%s1 + $0x5f0] sm:$0xff]
    %v310 = vld [vmem:[%s1 + $0x5f8] sm:$0xff]
    %v311 = vld [vmem:[%s1 + $0x600] sm:$0xff]
    %v312 = vld [vmem:[%s1 + $0x608] sm:$0xff]
    %v313 = vld [vmem:[%s1 + $0x610] sm:$0xff]
    %v314 = vld [vmem:[%s1 + $0x618] sm:$0xff]
    %v315 = vld [vmem:[%s1 + $0x620] sm:$0xff]
    %v316 = vld [vmem:[%s1 + $0x628] sm:$0xff]
    %v317 = vld [vmem:[%s1 + $0x630] sm:$0xff]
    %v318 = vld [vmem:[%s1 + $0x638] sm:$0xff]
    %v319 = vld [vmem:[%s1 + $0x640] sm:$0xff]
    %v320 = vld [vmem:[%s1 + $0x648] sm:$0xff]
    %v321 = vld [vmem:[%s1 + $0x650] sm:$0xff]
    %v322 = vld [vmem:[%s1 + $0x658] sm:$0xff]
    %v323 = vld [vmem:[%s1 + $0x660] sm:$0xff]
    %v324 = vld [vmem:[%s1 + $0x668] sm:$0xff]
    %v325 = vld [vmem:[%s1 + $0x670] sm:$0xff]
    %v326 = vld [vmem:[%s1 + $0x678] sm:$0xff]
    %v327 = vld [vmem:[%s1 + $0x680] sm:$0xff]
    %v328 = vld [vmem:[%s1 + $0x688] sm:$0xff]
    %v329 = vld [vmem:[%s1 + $0x690] sm:$0xff]
    %v330 = vld [vmem:[%s1 + $0x698] sm:$0xff]
    %v331 = vld [vmem:[%s1 + $0x6a0] sm:$0xff]
    %v332 = vld [vmem:[%s1 + $0x6a8] sm:$0xff]
    %v333 = vld [vmem:[%s1 + $0x6b0] sm:$0xff]
    %v334 = vld [vmem:[%s1 + $0x6b8] sm:$0xff]
    %v335 = vld [vmem:[%s1 + $0x6c0] sm:$0xff]
    %v336 = vld [vmem:[%s1 + $0x6c8] sm:$0xff]
    %v337 = vld [vmem:[%s1 + $0x6d0] sm:$0xff]
    %v338 = vld [vmem:[%s1 + $0x6d8] sm:$0xff]
    %v339 = vld [vmem:[%s1 + $0x6e0] sm:$0xff]
    %v340 = vld [vmem:[%s1 + $0x6e8] sm:$0xff]
    %v341 = vld [vmem:[%s1 + $0x6f0] sm:$0xff]
    %v342 = vld [vmem:[%s1 + $0x6f8] sm:$0xff]
    %v343 = vld [vmem:[%s1 + $0x700] sm:$0xff]
    %v344 = vld [vmem:[%s1 + $0x708] sm:$0xff]
    %v345 = vld [vmem:[%s1 + $0x710] sm:$0xff]
    %v346 = vld [vmem:[%s1 + $0x718] sm:$0xff]
    %v347 = vld [vmem:[%s1 + $0x720] sm:$0xff]
    %v348 = vld [vmem:[%s1 + $0x728] sm:$0xff]
    %v349 = vld [vmem:[%s1 + $0x730] sm:$0xff]
    %v350 = vld [vmem:[%s1 + $0x738] sm:$0xff]
    %v351 = vld [vmem:[%s1 + $0x740] sm:$0xff]
    %v352 = vld [vmem:[%s1 + $0x748] sm:$0xff]
    %v353 = vld [vmem:[%s1 + $0x750] sm:$0xff]
    %v354 = vld [vmem:[%s1 + $0x758] sm:$0xff]
    %v355 = vld [vmem:[%s1 + $0x760] sm:$0xff]
    %v356 = vld [vmem:[%s1 + $0x768] sm:$0xff]
    %v357 = vld [vmem:[%s1 + $0x770] sm:$0xff]
    %v358 = vld [vmem:[%s1 + $0x778] sm:$0xff]
    %v359 = vld [vmem:[%s1 + $0x780] sm:$0xff]
    %v360 = vld [vmem:[%s1 + $0x788] sm:$0xff]
    %v361 = vld [vmem:[%s1 + $0x790] sm:$0xff]
    %v362 = vld [vmem:[%s1 + $0x798] sm:$0xff]
    %v363 = vld [vmem:[%s1 + $0x7a0] sm:$0xff]
    %v364 = vld [vmem:[%s1 + $0x7a8] sm:$0xff]
    %v365 = vld [vmem:[%s1 + $0x7b0] sm:$0xff]
    %v366 = vld [vmem:[%s1 + $0x7b8] sm:$0xff]
    %v367 = vld [vmem:[%s1 + $0x7c0] sm:$0xff]
    %v368 = vld [vmem:[%s1 + $0x7c8] sm:$0xff]
    %v369 = vld [vmem:[%s1 + $0x7d0] sm:$0xff]
    %v370 = vld [vmem:[%s1 + $0x7d8] sm:$0xff]
    %v371 = vld [vmem:[%s1 + $0x7e0] sm:$0xff]
    %v372 = vld [vmem:[%s1 + $0x7e8] sm:$0xff]
    %v373 = vld [vmem:[%s1 + $0x7f0] sm:$0xff]
    %v374 = vld [vmem:[%s1 + $0x7f8] sm:$0xff]
    %v375 = vld [vmem:[%s1 + $0x800] sm:$0xff]
    %v376 = vld [vmem:[%s1 + $0x808] sm:$0xff]
    %v377 = vld [vmem:[%s1 + $0x810] sm:$0xff]
    %v378 = vld [vmem:[%s1 + $0x818] sm:$0xff]
    %v379 = vld [vmem:[%s1 + $0x820] sm:$0xff]
    %v380 = vld [vmem:[%s1 + $0x828] sm:$0xff]
    %v381 = vld [vmem:[%s1 + $0x830] sm:$0xff]
    %v382 = vld [vmem:[%s1 + $0x838] sm:$0xff]
    %v383 = vld [vmem:[%s1 + $0x840] sm:$0xff]
    %v384 = vld [vmem:[%s1 + $0x848] sm:$0xff]
    %v385 = vld [vmem:[%s1 + $0x850] sm:$0xff]
    %v386 = vld [vmem:[%s1 + $0x858] sm:$0xff]
    %v387 = vld [vmem:[%s1 + $0x860] sm:$0xff]
    %v388 = vld [vmem:[%s1 + $0x868] sm:$0xff]
    %v389 = vld [vmem:[%s1 + $0x870] sm:$0xff]
    %v390 = vld [vmem:[%s1 + $0x878] sm:$0xff]
    %v391 = vld [vmem:[%s1 + $0x880] sm:$0xff]
    %v392 = vld [vmem:[%s1 + $0x888] sm:$0xff]
    %v393 = vld [vmem:[%s1 + $0x890] sm:$0xff]
    %v394 = vld [vmem:[%s1 + $0x898] sm:$0xff]
    %v395 = vld [vmem:[%s1 + $0x8a0] sm:$0xff]
    %v396 = vld [vmem:[%s1 + $0x8a8] sm:$0xff]
    %v397 = vld [vmem:[%s1 + $0x8b0] sm:$0xff]
    %v398 = vld [vmem:[%s1 + $0x8b8] sm:$0xff]
    %v399 = vld [vmem:[%s1 + $0x8c0] sm:$0xff]
    %v400 = vld [vmem:[%s1 + $0x8c8] sm:$0xff]
    %v401 = vld [vmem:[%s1 + $0x8d0] sm:$0xff]
    %v402 = vld [vmem:[%s1 + $0x8d8] sm:$0xff]
    %v403 = vld [vmem:[%s1 + $0x8e0] sm:$0xff]
    %v404 = vld [vmem:[%s1 + $0x8e8] sm:$0xff]
    %v405 = vld [vmem:[%s1 + $0x8f0] sm:$0xff]
    %v406 = vld [vmem:[%s1 + $0x8f8] sm:$0xff]
    %v407 = vld [vmem:[%s1 + $0x900] sm:$0xff]
    %v408 = vld [vmem:[%s1 + $0x908] sm:$0xff]
    %v409 = vld [vmem:[%s1 + $0x910] sm:$0xff]
    %v410 = vld [vmem:[%s1 + $0x918] sm:$0xff]
    %v411 = vld [vmem:[%s1 + $0x920] sm:$0xff]
    %v412 = vld [vmem:[%s1 + $0x928] sm:$0xff]
    %v413 = vld [vmem:[%s1 + $0x930] sm:$0xff]
    %v414 = vld [vmem:[%s1 + $0x938] sm:$0xff]
    %v415 = vld [vmem:[%s1 + $0x940] sm:$0xff]
    %v416 = vld [vmem:[%s1 + $0x948] sm:$0xff]
    %v417 = vld [vmem:[%s1 + $0x950] sm:$0xff]
    %v418 = vld [vmem:[%s1 + $0x958] sm:$0xff]
    %v419 = vld [vmem:[%s1 + $0x960] sm:$0xff]
    %v420 = vld [vmem:[%s1 + $0x968] sm:$0xff]
    %v421 = vld [vmem:[%s1 + $0x970] sm:$0xff]
    %v422 = vld [vmem:[%s1 + $0x978] sm:$0xff]
    %v423 = vld [vmem:[%s1 + $0x980] sm:$0xff]
    %v424 = vld [vmem:[%s1 + $0x988] sm:$0xff]
    %v425 = vld [vmem:[%s1 + $0x990] sm:$0xff]
    %v426 = vld [vmem:[%s1 + $0x998] sm:$0xff]
    %v427 = vld [vmem:[%s1 + $0x9a0] sm:$0xff]
    %v428 = vld [vmem:[%s1 + $0x9a8] sm:$0xff]
    %v429 = vld [vmem:[%s1 + $0x9b0] sm:$0xff]
    %v430 = vld [vmem:[%s1 + $0x9b8] sm:$0xff]
    %v431 = vld [vmem:[%s1 + $0x9c0] sm:$0xff]
    %v432 = vld [vmem:[%s1 + $0x9c8] sm:$0xff]
    %v433 = vld [vmem:[%s1 + $0x9d0] sm:$0xff]
    %v434 = vld [vmem:[%s1 + $0x9d8] sm:$0xff]
    %v435 = vld [vmem:[%s1 + $0x9e0] sm:$0xff]
    %v436 = vld [vmem:[%s1 + $0x9e8] sm:$0xff]
    %v437 = vld [vmem:[%s1 + $0x9f0] sm:$0xff]
    %v438 = vld [vmem:[%s1 + $0x9f8] sm:$0xff]
    %v439 = vld [vmem:[%s1 + $0xa00] sm:$0xff]
    %v440 = vld [vmem:[%s1 + $0xa08] sm:$0xff]
    %v441 = vld [vmem:[%s1 + $0xa10] sm:$0xff]
    %v442 = vld [vmem:[%s1 + $0xa18] sm:$0xff]
    %v443 = vld [vmem:[%s1 + $0xa20] sm:$0xff]
    %v444 = vld [vmem:[%s1 + $0xa28] sm:$0xff]
    %v445 = vld [vmem:[%s1 + $0xa30] sm:$0xff]
    %v446 = vld [vmem:[%s1 + $0xa38] sm:$0xff]
    %v447 = vld [vmem:[%s1 + $0xa40] sm:$0xff]
    %v448 = vld [vmem:[%s1 + $0xa48] sm:$0xff]
    %v449 = vld [vmem:[%s1 + $0xa50] sm:$0xff]
    %v450 = vld [vmem:[%s1 + $0xa58] sm:$0xff]
    %v451 = vld [vmem:[%s1 + $0xa60] sm:$0xff]
    %v452 = vld [vmem:[%s1 + $0xa68] sm:$0xff]
    %v453 = vld [vmem:[%s1 + $0xa70] sm:$0xff]
    %v454 = vld [vmem:[%s1 + $0xa78] sm:$0xff]
    %v455 = vld [vmem:[%s1 + $0xa80] sm:$0xff]
    %v456 = vld [vmem:[%s1 + $0xa88] sm:$0xff]
    %v457 = vld [vmem:[%s1 + $0xa90] sm:$0xff]
    %v458 = vld [vmem:[%s1 + $0xa98] sm:$0xff]
    %v459 = vld [vmem:[%s1 + $0xaa0] sm:$0xff]
    %v460 = vld [vmem:[%s1 + $0xaa8] sm:$0xff]
    %v461 = vld [vmem:[%s1 + $0xab0] sm:$0xff]
    %v462 = vld [vmem:[%s1 + $0xab8] sm:$0xff]
    %v463 = vld [vmem:[%s1 + $0xac0] sm:$0xff]
    %v464 = vld [vmem:[%s1 + $0xac8] sm:$0xff]
    %v465 = vld [vmem:[%s1 + $0xad0] sm:$0xff]
    %v466 = vld [vmem:[%s1 + $0xad8] sm:$0xff]
    %v467 = vld [vmem:[%s1 + $0xae0] sm:$0xff]
    %v468 = vld [vmem:[%s1 + $0xae8] sm:$0xff]
    %v469 = vld [vmem:[%s1 + $0xaf0] sm:$0xff]
    %v470 = vld [vmem:[%s1 + $0xaf8] sm:$0xff]
    %v471 = vld [vmem:[%s1 + $0xb00] sm:$0xff]
    %v472 = vld [vmem:[%s1 + $0xb08] sm:$0xff]
    %v473 = vld [vmem:[%s1 + $0xb10] sm:$0xff]
    %v474 = vld [vmem:[%s1 + $0xb18] sm:$0xff]
    %v475 = vld [vmem:[%s1 + $0xb20] sm:$0xff]
    %v476 = vld [vmem:[%s1 + $0xb28] sm:$0xff]
    %v477 = vld [vmem:[%s1 + $0xb30] sm:$0xff]
    %v478 = vld [vmem:[%s1 + $0xb38] sm:$0xff]
    %v479 = vld [vmem:[%s1 + $0xb40] sm:$0xff]
    %v480 = vld [vmem:[%s1 + $0xb48] sm:$0xff]
    %v481 = vld [vmem:[%s1 + $0xb50] sm:$0xff]
    %v482 = vld [vmem:[%s1 + $0xb58] sm:$0xff]
    %v483 = vld [vmem:[%s1 + $0xb60] sm:$0xff]
    %v484 = vld [vmem:[%s1 + $0xb68] sm:$0xff]
    %v485 = vld [vmem:[%s1 + $0xb70] sm:$0xff]
    %v486 = vld [vmem:[%s1 + $0xb78] sm:$0xff]
    %v487 = vld [vmem:[%s1 + $0xb80] sm:$0xff]
    %v488 = vld [vmem:[%s1 + $0xb88] sm:$0xff]
    %v489 = vld [vmem:[%s1 + $0xb90] sm:$0xff]
    %v490 = vld [vmem:[%s1 + $0xb98] sm:$0xff]
    %v491 = vld [vmem:[%s1 + $0xba0] sm:$0xff]
    %v492 = vld [vmem:[%s1 + $0xba8] sm:$0xff]
    %v493 = vld [vmem:[%s1 + $0xbb0] sm:$0xff]
    %v494 = vld [vmem:[%s1 + $0xbb8] sm:$0xff]
    %v495 = vld [vmem:[%s1 + $0xbc0] sm:$0xff]
    %v496 = vld [vmem:[%s1 + $0xbc8] sm:$0xff]
    %v497 = vld [vmem:[%s1 + $0xbd0] sm:$0xff]
    %v498 = vld [vmem:[%s1 + $0xbd8] sm:$0xff]
    %v499 = vld [vmem:[%s1 + $0xbe0] sm:$0xff]
    %v500 = vld [vmem:[%s1 + $0xbe8] sm:$0xff]
    %v501 = vld [vmem:[%s1 + $0xbf0] sm:$0xff]
    %v502 = vld [vmem:[%s1 + $0xbf8] sm:$0xff]
    %v503 = vld [vmem:[%s1 + $0xc00] sm:$0xff]
    %v504 = vld [vmem:[%s1 + $0xc08] sm:$0xff]
    %v505 = vld [vmem:[%s1 + $0xc10] sm:$0xff]
    %v506 = vld [vmem:[%s1 + $0xc18] sm:$0xff]
    %v507 = vld [vmem:[%s1 + $0xc20] sm:$0xff]
    %v508 = vld [vmem:[%s1 + $0xc28] sm:$0xff]
    %v509 = vld [vmem:[%s1 + $0xc30] sm:$0xff]
    %v510 = vld [vmem:[%s1 + $0xc38] sm:$0xff]
    %v511 = vld [vmem:[%s1 + $0xc40] sm:$0xff]
    %v512 = vld [vmem:[%s1 + $0xc48] sm:$0xff]
    %v513 = vld [vmem:[%s1 + $0xc50] sm:$0xff]
    %v514 = vld [vmem:[%s1 + $0xc58] sm:$0xff]
    %v515 = vld [vmem:[%s1 + $0xc60] sm:$0xff]
    %v516 = vld [vmem:[%s1 + $0xc68] sm:$0xff]
    %v517 = vld [vmem:[%s1 + $0xc70] sm:$0xff]
    %v518 = vld [vmem:[%s1 + $0xc78] sm:$0xff]
    %v519 = vld [vmem:[%s1 + $0xc80] sm:$0xff]
    %v520 = vld [vmem:[%s1 + $0xc88] sm:$0xff]
    %v521 = vld [vmem:[%s1 + $0xc90] sm:$0xff]
    %v522 = vld [vmem:[%s1 + $0xc98] sm:$0xff]
    %v523 = vld [vmem:[%s1 + $0xca0] sm:$0xff]
    %v524 = vld [vmem:[%s1 + $0xca8] sm:$0xff]
    %v525 = vld [vmem:[%s1 + $0xcb0] sm:$0xff]
    %v526 = vld [vmem:[%s1 + $0xcb8] sm:$0xff]
    %v527 = vld [vmem:[%s1 + $0xcc0] sm:$0xff]
    %v528 = vld [vmem:[%s1 + $0xcc8] sm:$0xff]
    %v529 = vld [vmem:[%s1 + $0xcd0] sm:$0xff]
    %v530 = vld [vmem:[%s1 + $0xcd8] sm:$0xff]
    %v531 = vld [vmem:[%s1 + $0xce0] sm:$0xff]
    %v532 = vld [vmem:[%s1 + $0xce8] sm:$0xff]
    %v533 = vld [vmem:[%s1 + $0xcf0] sm:$0xff]
    %v534 = vld [vmem:[%s1 + $0xcf8] sm:$0xff]
    %v535 = vld [vmem:[%s1 + $0xd00] sm:$0xff]
    %v536 = vld [vmem:[%s1 + $0xd08] sm:$0xff]
    %v537 = vld [vmem:[%s1 + $0xd10] sm:$0xff]
    %v538 = vld [vmem:[%s1 + $0xd18] sm:$0xff]
    %v539 = vld [vmem:[%s1 + $0xd20] sm:$0xff]
    %v540 = vld [vmem:[%s1 + $0xd28] sm:$0xff]
    %v541 = vld [vmem:[%s1 + $0xd30] sm:$0xff]
    %v542 = vld [vmem:[%s1 + $0xd38] sm:$0xff]
    %v543 = vld [vmem:[%s1 + $0xd40] sm:$0xff]
    %v544 = vld [vmem:[%s1 + $0xd48] sm:$0xff]
    %v545 = vld [vmem:[%s1 + $0xd50] sm:$0xff]
    %v546 = vld [vmem:[%s1 + $0xd58] sm:$0xff]
    %v547 = vld [vmem:[%s1 + $0xd60] sm:$0xff]
    %v548 = vld [vmem:[%s1 + $0xd68] sm:$0xff]
    %v549 = vld [vmem:[%s1 + $0xd70] sm:$0xff]
    %v550 = vld [vmem:[%s1 + $0xd78] sm:$0xff]
    %v551 = vld [vmem:[%s1 + $0xd80] sm:$0xff]
    %v552 = vld [vmem:[%s1 + $0xd88] sm:$0xff]
    %v553 = vld [vmem:[%s1 + $0xd90] sm:$0xff]
    %v554 = vld [vmem:[%s1 + $0xd98] sm:$0xff]
    %v555 = vld [vmem:[%s1 + $0xda0] sm:$0xff]
    %v556 = vld [vmem:[%s1 + $0xda8] sm:$0xff]
    %v557 = vld [vmem:[%s1 + $0xdb0] sm:$0xff]
    %v558 = vld [vmem:[%s1 + $0xdb8] sm:$0xff]
    %v559 = vld [vmem:[%s1 + $0xdc0] sm:$0xff]
    %v560 = vld [vmem:[%s1 + $0xdc8] sm:$0xff]
    %v561 = vld [vmem:[%s1 + $0xdd0] sm:$0xff]
    %v562 = vld [vmem:[%s1 + $0xdd8] sm:$0xff]
    %v563 = vld [vmem:[%s1 + $0xde0] sm:$0xff]
    %v564 = vld [vmem:[%s1 + $0xde8] sm:$0xff]
    %v565 = vld [vmem:[%s1 + $0xdf0] sm:$0xff]
    %v566 = vld [vmem:[%s1 + $0xdf8] sm:$0xff]
    %v567 = vld [vmem:[%s1 + $0xe00] sm:$0xff]
    %v568 = vld [vmem:[%s1 + $0xe08] sm:$0xff]
    %v569 = vld [vmem:[%s1 + $0xe10] sm:$0xff]
    %v570 = vld [vmem:[%s1 + $0xe18] sm:$0xff]
    %v571 = vld [vmem:[%s1 + $0xe20] sm:$0xff]
    %v572 = vld [vmem:[%s1 + $0xe28] sm:$0xff]
    %v573 = vld [vmem:[%s1 + $0xe30] sm:$0xff]
    %v574 = vld [vmem:[%s1 + $0xe38] sm:$0xff]
    %v575 = vld [vmem:[%s1 + $0xe40] sm:$0xff]
    %v576 = vld [vmem:[%s1 + $0xe48] sm:$0xff]
    %v577 = vld [vmem:[%s1 + $0xe50] sm:$0xff]
    %v578 = vld [vmem:[%s1 + $0xe58] sm:$0xff]
    %v579 = vld [vmem:[%s1 + $0xe60] sm:$0xff]
    %v580 = vld [vmem:[%s1 + $0xe68] sm:$0xff]
    %v581 = vld [vmem:[%s1 + $0xe70] sm:$0xff]
    %v582 = vld [vmem:[%s1 + $0xe78] sm:$0xff]
    %v583 = vld [vmem:[%s1 + $0xe80] sm:$0xff]
    %v584 = vld [vmem:[%s1 + $0xe88] sm:$0xff]
    %v585 = vld [vmem:[%s1 + $0xe90] sm:$0xff]
    %v586 = vld [vmem:[%s1 + $0xe98] sm:$0xff]
    %v587 = vld [vmem:[%s1 + $0xea0] sm:$0xff]
    %v588 = vld [vmem:[%s1 + $0xea8] sm:$0xff]
    %v589 = vld [vmem:[%s1 + $0xeb0] sm:$0xff]
    %v590 = vld [vmem:[%s1 + $0xeb8] sm:$0xff]
    %v591 = vld [vmem:[%s1 + $0xec0] sm:$0xff]
    %v592 = vld [vmem:[%s1 + $0xec8] sm:$0xff]
    %v593 = vld [vmem:[%s1 + $0xed0] sm:$0xff]
    %v594 = vld [vmem:[%s1 + $0xed8] sm:$0xff]
    %v595 = vld [vmem:[%s1 + $0xee0] sm:$0xff]
    %v596 = vld [vmem:[%s1 + $0xee8] sm:$0xff]
    %v597 = vld [vmem:[%s1 + $0xef0] sm:$0xff]
    %v598 = vld [vmem:[%s1 + $0xef8] sm:$0xff]
    %v599 = vld [vmem:[%s1 + $0xf00] sm:$0xff]
    %v600 = vld [vmem:[%s1 + $0xf08] sm:$0xff]
    %v601 = vld [vmem:[%s1 + $0xf10] sm:$0xff]
    %v602 = vld [vmem:[%s1 + $0xf18] sm:$0xff]
    %v603 = vld [vmem:[%s1 + $0xf20] sm:$0xff]
    %v604 = vld [vmem:[%s1 + $0xf28] sm:$0xff]
    %v605 = vld [vmem:[%s1 + $0xf30] sm:$0xff]
    %v606 = vld [vmem:[%s1 + $0xf38] sm:$0xff]
    %v607 = vld [vmem:[%s1 + $0xf40] sm:$0xff]
    %v608 = vld [vmem:[%s1 + $0xf48] sm:$0xff]
    %v609 = vld [vmem:[%s1 + $0xf50] sm:$0xff]
    %v610 = vld [vmem:[%s1 + $0xf58] sm:$0xff]
    %v611 = vld [vmem:[%s1 + $0xf60] sm:$0xff]
    %v612 = vld [vmem:[%s1 + $0xf68] sm:$0xff]
    %v613 = vld [vmem:[%s1 + $0xf70] sm:$0xff]
    %v614 = vld [vmem:[%s1 + $0xf78] sm:$0xff]
    %v615 = vld [vmem:[%s1 + $0xf80] sm:$0xff]
    %v616 = vld [vmem:[%s1 + $0xf88] sm:$0xff]
    %v617 = vld [vmem:[%s1 + $0xf90] sm:$0xff]
    %v618 = vld [vmem:[%s1 + $0xf98] sm:$0xff]
    %v619 = vld [vmem:[%s1 + $0xfa0] sm:$0xff]
    %v620 = vld [vmem:[%s1 + $0xfa8] sm:$0xff]
    %v621 = vld [vmem:[%s1 + $0xfb0] sm:$0xff]
    %v622 = vld [vmem:[%s1 + $0xfb8] sm:$0xff]
    %v623 = vld [vmem:[%s1 + $0xfc0] sm:$0xff]
    %v624 = vld [vmem:[%s1 + $0xfc8] sm:$0xff]
    %v625 = vld [vmem:[%s1 + $0xfd0] sm:$0xff]
    %v626 = vld [vmem:[%s1 + $0xfd8] sm:$0xff]
    %v627 = vld [vmem:[%s1 + $0xfe0] sm:$0xff]
    %v628 = vld [vmem:[%s1 + $0xfe8] sm:$0xff]
    %v629 = vld [vmem:[%s1 + $0xff0] sm:$0xff]
    %v630 = vld [vmem:[%s1 + $0xff8] sm:$0xff]
    %v631 = vld [vmem:[%s1 + $0x1000] sm:$0xff]
    %v632 = vld [vmem:[%s1 + $0x1008] sm:$0xff]
    %v633 = vld [vmem:[%s1 + $0x1010] sm:$0xff]
    %v634 = vld [vmem:[%s1 + $0x1018] sm:$0xff]
    %v635 = vld [vmem:[%s1 + $0x1020] sm:$0xff]
    %v636 = vld [vmem:[%s1 + $0x1028] sm:$0xff]
    %v637 = vld [vmem:[%s1 + $0x1030] sm:$0xff]
    %v638 = vld [vmem:[%s1 + $0x1038] sm:$0xff]
    %v639 = vld [vmem:[%s1 + $0x1040] sm:$0xff]
    %v640 = vld [vmem:[%s1 + $0x1048] sm:$0xff]
    %v641 = vld [vmem:[%s1 + $0x1050] sm:$0xff]
    %v642 = vld [vmem:[%s1 + $0x1058] sm:$0xff]
    %v643 = vld [vmem:[%s1 + $0x1060] sm:$0xff]
    %v644 = vld [vmem:[%s1 + $0x1068] sm:$0xff]
    %v645 = vld [vmem:[%s1 + $0x1070] sm:$0xff]
    %v646 = vld [vmem:[%s1 + $0x1078] sm:$0xff]
    %v647 = vld [vmem:[%s1 + $0x1080] sm:$0xff]
    %v648 = vld [vmem:[%s1 + $0x1088] sm:$0xff]
    %v649 = vld [vmem:[%s1 + $0x1090] sm:$0xff]
    %v650 = vld [vmem:[%s1 + $0x1098] sm:$0xff]
    %v651 = vld [vmem:[%s1 + $0x10a0] sm:$0xff]
    %v652 = vld [vmem:[%s1 + $0x10a8] sm:$0xff]
    %v653 = vld [vmem:[%s1 + $0x10b0] sm:$0xff]
    %v654 = vld [vmem:[%s1 + $0x10b8] sm:$0xff]
    %v655 = vld [vmem:[%s1 + $0x10c0] sm:$0xff]
    %v656 = vld [vmem:[%s1 + $0x10c8] sm:$0xff]
    %v657 = vld [vmem:[%s1 + $0x10d0] sm:$0xff]
    %v658 = vld [vmem:[%s1 + $0x10d8] sm:$0xff]
    %v659 = vld [vmem:[%s1 + $0x10e0] sm:$0xff]
    %v660 = vld [vmem:[%s1 + $0x10e8] sm:$0xff]
    %v661 = vld [vmem:[%s1 + $0x10f0] sm:$0xff]
    %v662 = vld [vmem:[%s1 + $0x10f8] sm:$0xff]
    %v663 = vld [vmem:[%s1 + $0x1100] sm:$0xff]
    %v664 = vld [vmem:[%s1 + $0x1108] sm:$0xff]
    %v665 = vld [vmem:[%s1 + $0x1110] sm:$0xff]
    %v666 = vld [vmem:[%s1 + $0x1118] sm:$0xff]
    %v667 = vld [vmem:[%s1 + $0x1120] sm:$0xff]
    %v668 = vld [vmem:[%s1 + $0x1128] sm:$0xff]
    %v669 = vld [vmem:[%s1 + $0x1130] sm:$0xff]
    %v670 = vld [vmem:[%s1 + $0x1138] sm:$0xff]
    %v671 = vld [vmem:[%s1 + $0x1140] sm:$0xff]
    %v672 = vld [vmem:[%s1 + $0x1148] sm:$0xff]
    %v673 = vld [vmem:[%s1 + $0x1150] sm:$0xff]
    %v674 = vld [vmem:[%s1 + $0x1158] sm:$0xff]
    %v675 = vld [vmem:[%s1 + $0x1160] sm:$0xff]
    %v676 = vld [vmem:[%s1 + $0x1168] sm:$0xff]
    %v677 = vld [vmem:[%s1 + $0x1170] sm:$0xff]
    %v678 = vld [vmem:[%s1 + $0x1178] sm:$0xff]
    %v679 = vld [vmem:[%s1 + $0x1180] sm:$0xff]
    %v680 = vld [vmem:[%s1 + $0x1188] sm:$0xff]
    %v681 = vld [vmem:[%s1 + $0x1190] sm:$0xff]
    %v682 = vld [vmem:[%s1 + $0x1198] sm:$0xff]
    %v683 = vld [vmem:[%s1 + $0x11a0] sm:$0xff]
    %v684 = vld [vmem:[%s1 + $0x11a8] sm:$0xff]
    %v685 = vld [vmem:[%s1 + $0x11b0] sm:$0xff]
    %v686 = vld [vmem:[%s1 + $0x11b8] sm:$0xff]
    %v687 = vld [vmem:[%s1 + $0x11c0] sm:$0xff]
    %v688 = vld [vmem:[%s1 + $0x11c8] sm:$0xff]
    %v689 = vld [vmem:[%s1 + $0x11d0] sm:$0xff]
    %v690 = vld [vmem:[%s1 + $0x11d8] sm:$0xff]
    %v691 = vld [vmem:[%s1 + $0x11e0] sm:$0xff]
    %v692 = vld [vmem:[%s1 + $0x11e8] sm:$0xff]
    %v693 = vld [vmem:[%s1 + $0x11f0] sm:$0xff]
    %v694 = vld [vmem:[%s1 + $0x11f8] sm:$0xff]
    %v695 = vld [vmem:[%s1 + $0x1200] sm:$0xff]
    %v696 = vld [vmem:[%s1 + $0x1208] sm:$0xff]
    %v697 = vld [vmem:[%s1 + $0x1210] sm:$0xff]
    %v698 = vld [vmem:[%s1 + $0x1218] sm:$0xff]
    %v699 = vld [vmem:[%s1 + $0x1220] sm:$0xff]
    %v700 = vld [vmem:[%s1 + $0x1228] sm:$0xff]
    %v701 = vld [vmem:[%s1 + $0x1230] sm:$0xff]
    %v702 = vld [vmem:[%s1 + $0x1238] sm:$0xff]
    %v703 = vld [vmem:[%s1 + $0x1240] sm:$0xff]
    %v704 = vld [vmem:[%s1 + $0x1248] sm:$0xff]
    %v705 = vld [vmem:[%s1 + $0x1250] sm:$0xff]
    %v706 = vld [vmem:[%s1 + $0x1258] sm:$0xff]
    %v707 = vld [vmem:[%s1 + $0x1260] sm:$0xff]
    %v708 = vld [vmem:[%s1 + $0x1268] sm:$0xff]
    %v709 = vld [vmem:[%s1 + $0x1270] sm:$0xff]
    %v710 = vld [vmem:[%s1 + $0x1278] sm:$0xff]
    %v711 = vld [vmem:[%s1 + $0x1280] sm:$0xff]
    %v712 = vld [vmem:[%s1 + $0x1288] sm:$0xff]
    %v713 = vld [vmem:[%s1 + $0x1290] sm:$0xff]
    %v714 = vld [vmem:[%s1 + $0x1298] sm:$0xff]
    %v715 = vld [vmem:[%s1 + $0x12a0] sm:$0xff]
    %v716 = vld [vmem:[%s1 + $0x12a8] sm:$0xff]
    %v717 = vld [vmem:[%s1 + $0x12b0] sm:$0xff]
    %v718 = vld [vmem:[%s1 + $0x12b8] sm:$0xff]
    %v719 = vld [vmem:[%s1 + $0x12c0] sm:$0xff]
    %v720 = vld [vmem:[%s1 + $0x12c8] sm:$0xff]
    %v721 = vld [vmem:[%s1 + $0x12d0] sm:$0xff]
    %v722 = vld [vmem:[%s1 + $0x12d8] sm:$0xff]
    %v723 = vld [vmem:[%s1 + $0x12e0] sm:$0xff]
    %v724 = vld [vmem:[%s1 + $0x12e8] sm:$0xff]
    %v725 = vld [vmem:[%s1 + $0x12f0] sm:$0xff]
    %v726 = vld [vmem:[%s1 + $0x12f8] sm:$0xff]
    %v727 = vld [vmem:[%s1 + $0x1300] sm:$0xff]
    %v728 = vld [vmem:[%s1 + $0x1308] sm:$0xff]
    %v729 = vld [vmem:[%s1 + $0x1310] sm:$0xff]
    %v730 = vld [vmem:[%s1 + $0x1318] sm:$0xff]
    %v731 = vld [vmem:[%s1 + $0x1320] sm:$0xff]
    %v732 = vld [vmem:[%s1 + $0x1328] sm:$0xff]
    %v733 = vld [vmem:[%s1 + $0x1330] sm:$0xff]
    %v734 = vld [vmem:[%s1 + $0x1338] sm:$0xff]
    %v735 = vld [vmem:[%s1 + $0x1340] sm:$0xff]
    %v736 = vld [vmem:[%s1 + $0x1348] sm:$0xff]
    %v737 = vld [vmem:[%s1 + $0x1350] sm:$0xff]
    %v738 = vld [vmem:[%s1 + $0x1358] sm:$0xff]
    %v739 = vld [vmem:[%s1 + $0x1360] sm:$0xff]
    %v740 = vld [vmem:[%s1 + $0x1368] sm:$0xff]
    %v741 = vld [vmem:[%s1 + $0x1370] sm:$0xff]
    %v742 = vld [vmem:[%s1 + $0x1378] sm:$0xff]
    %v743 = vld [vmem:[%s1 + $0x1380] sm:$0xff]
    %v744 = vld [vmem:[%s1 + $0x1388] sm:$0xff]
    %v745 = vld [vmem:[%s1 + $0x1390] sm:$0xff]
    %v746 = vld [vmem:[%s1 + $0x1398] sm:$0xff]
    %v747 = vld [vmem:[%s1 + $0x13a0] sm:$0xff]
    %v748 = vld [vmem:[%s1 + $0x13a8] sm:$0xff]
    %v749 = vld [vmem:[%s1 + $0x13b0] sm:$0xff]
    %v750 = vld [vmem:[%s1 + $0x13b8] sm:$0xff]
    %v751 = vld [vmem:[%s1 + $0x13c0] sm:$0xff]
    %v752 = vld [vmem:[%s1 + $0x13c8] sm:$0xff]
    %v753 = vld [vmem:[%s1 + $0x13d0] sm:$0xff]
    %v754 = vld [vmem:[%s1 + $0x13d8] sm:$0xff]
    %v755 = vld [vmem:[%s1 + $0x13e0] sm:$0xff]
    %v756 = vld [vmem:[%s1 + $0x13e8] sm:$0xff]
    %v757 = vld [vmem:[%s1 + $0x13f0] sm:$0xff]
    %v758 = vld [vmem:[%s1 + $0x13f8] sm:$0xff]
    %v759 = vld [vmem:[%s1 + $0x1400] sm:$0xff]
    %v760 = vld [vmem:[%s1 + $0x1408] sm:$0xff]
    %v761 = vld [vmem:[%s1 + $0x1410] sm:$0xff]
    %v762 = vld [vmem:[%s1 + $0x1418] sm:$0xff]
    %v763 = vld [vmem:[%s1 + $0x1420] sm:$0xff]
    %v764 = vld [vmem:[%s1 + $0x1428] sm:$0xff]
    %v765 = vld [vmem:[%s1 + $0x1430] sm:$0xff]
    %v766 = vld [vmem:[%s1 + $0x1438] sm:$0xff]
    %v767 = vld [vmem:[%s1 + $0x1440] sm:$0xff]
    %v768 = vld [vmem:[%s1 + $0x1448] sm:$0xff]
    %v769 = vld [vmem:[%s1 + $0x1450] sm:$0xff]
    %v770 = vld [vmem:[%s1 + $0x1458] sm:$0xff]
    %v771 = vld [vmem:[%s1 + $0x1460] sm:$0xff]
    %v772 = vld [vmem:[%s1 + $0x1468] sm:$0xff]
    %v773 = vld [vmem:[%s1 + $0x1470] sm:$0xff]
    %v774 = vld [vmem:[%s1 + $0x1478] sm:$0xff]
    %v775 = vld [vmem:[%s1 + $0x1480] sm:$0xff]
    %v776 = vld [vmem:[%s1 + $0x1488] sm:$0xff]
    %v777 = vld [vmem:[%s1 + $0x1490] sm:$0xff]
    %v778 = vld [vmem:[%s1 + $0x1498] sm:$0xff]
    %v779 = vld [vmem:[%s1 + $0x14a0] sm:$0xff]
    %v780 = vld [vmem:[%s1 + $0x14a8] sm:$0xff]
    %v781 = vld [vmem:[%s1 + $0x14b0] sm:$0xff]
    %v782 = vld [vmem:[%s1 + $0x14b8] sm:$0xff]
    %v783 = vld [vmem:[%s1 + $0x14c0] sm:$0xff]
    %v784 = vld [vmem:[%s1 + $0x14c8] sm:$0xff]
    %v785 = vld [vmem:[%s1 + $0x14d0] sm:$0xff]
    %v786 = vld [vmem:[%s1 + $0x14d8] sm:$0xff]
    %v787 = vld [vmem:[%s1 + $0x14e0] sm:$0xff]
    %v788 = vld [vmem:[%s1 + $0x14e8] sm:$0xff]
    %v789 = vld [vmem:[%s1 + $0x14f0] sm:$0xff]
    %v790 = vld [vmem:[%s1 + $0x14f8] sm:$0xff]
    %v791 = vld [vmem:[%s1 + $0x1500] sm:$0xff]
    %v792 = vld [vmem:[%s1 + $0x1508] sm:$0xff]
    %v793 = vld [vmem:[%s1 + $0x1510] sm:$0xff]
    %v794 = vld [vmem:[%s1 + $0x1518] sm:$0xff]
    %v795 = vld [vmem:[%s1 + $0x1520] sm:$0xff]
    %v796 = vld [vmem:[%s1 + $0x1528] sm:$0xff]
    %v797 = vld [vmem:[%s1 + $0x1530] sm:$0xff]
    %v798 = vld [vmem:[%s1 + $0x1538] sm:$0xff]
    %v799 = vld [vmem:[%s1 + $0x1540] sm:$0xff]
    %v800 = vld [vmem:[%s1 + $0x1548] sm:$0xff]
    %v801 = vld [vmem:[%s1 + $0x1550] sm:$0xff]
    %v802 = vld [vmem:[%s1 + $0x1558] sm:$0xff]
    %v803 = vld [vmem:[%s1 + $0x1560] sm:$0xff]
    %v804 = vld [vmem:[%s1 + $0x1568] sm:$0xff]
    %v805 = vld [vmem:[%s1 + $0x1570] sm:$0xff]
    %v806 = vld [vmem:[%s1 + $0x1578] sm:$0xff]
    %v807 = vld [vmem:[%s1 + $0x1580] sm:$0xff]
    %v808 = vld [vmem:[%s1 + $0x1588] sm:$0xff]
    %v809 = vld [vmem:[%s1 + $0x1590] sm:$0xff]
    %v810 = vld [vmem:[%s1 + $0x1598] sm:$0xff]
    %v811 = vld [vmem:[%s1 + $0x15a0] sm:$0xff]
    %v812 = vld [vmem:[%s1 + $0x15a8] sm:$0xff]
    %v813 = vld [vmem:[%s1 + $0x15b0] sm:$0xff]
    %v814 = vld [vmem:[%s1 + $0x15b8] sm:$0xff]
    %v815 = vld [vmem:[%s1 + $0x15c0] sm:$0xff]
    %v816 = vld [vmem:[%s1 + $0x15c8] sm:$0xff]
    %v817 = vld [vmem:[%s1 + $0x15d0] sm:$0xff]
    %v818 = vld [vmem:[%s1 + $0x15d8] sm:$0xff]
    %v819 = vld [vmem:[%s1 + $0x15e0] sm:$0xff]
    %v820 = vld [vmem:[%s1 + $0x15e8] sm:$0xff]
    %v821 = vld [vmem:[%s1 + $0x15f0] sm:$0xff]
    %v822 = vld [vmem:[%s1 + $0x15f8] sm:$0xff]
    %v823 = vld [vmem:[%s1 + $0x1600] sm:$0xff]
    %v824 = vld [vmem:[%s1 + $0x1608] sm:$0xff]
    %v825 = vld [vmem:[%s1 + $0x1610] sm:$0xff]
    %v826 = vld [vmem:[%s1 + $0x1618] sm:$0xff]
    %v827 = vld [vmem:[%s1 + $0x1620] sm:$0xff]
    %v828 = vld [vmem:[%s1 + $0x1628] sm:$0xff]
    %v829 = vld [vmem:[%s1 + $0x1630] sm:$0xff]
    %v830 = vld [vmem:[%s1 + $0x1638] sm:$0xff]
    %v831 = vld [vmem:[%s1 + $0x1640] sm:$0xff]
    %v832 = vld [vmem:[%s1 + $0x1648] sm:$0xff]
    %v833 = vld [vmem:[%s1 + $0x1650] sm:$0xff]
    %v834 = vld [vmem:[%s1 + $0x1658] sm:$0xff]
    %v835 = vld [vmem:[%s1 + $0x1660] sm:$0xff]
    %v836 = vld [vmem:[%s1 + $0x1668] sm:$0xff]
    %v837 = vld [vmem:[%s1 + $0x1670] sm:$0xff]
    %v838 = vld [vmem:[%s1 + $0x1678] sm:$0xff]
    %v839 = vld [vmem:[%s1 + $0x1680] sm:$0xff]
    %v840 = vld [vmem:[%s1 + $0x1688] sm:$0xff]
    %v841 = vld [vmem:[%s1 + $0x1690] sm:$0xff]
    %v842 = vld [vmem:[%s1 + $0x1698] sm:$0xff]
    %v843 = vld [vmem:[%s1 + $0x16a0] sm:$0xff]
    %v844 = vld [vmem:[%s1 + $0x16a8] sm:$0xff]
    %v845 = vld [vmem:[%s1 + $0x16b0] sm:$0xff]
    %v846 = vld [vmem:[%s1 + $0x16b8] sm:$0xff]
    %v847 = vld [vmem:[%s1 + $0x16c0] sm:$0xff]
    %v848 = vld [vmem:[%s1 + $0x16c8] sm:$0xff]
    %v849 = vld [vmem:[%s1 + $0x16d0] sm:$0xff]
    %v850 = vld [vmem:[%s1 + $0x16d8] sm:$0xff]
    %v851 = vld [vmem:[%s1 + $0x16e0] sm:$0xff]
    %v852 = vld [vmem:[%s1 + $0x16e8] sm:$0xff]
    %v853 = vld [vmem:[%s1 + $0x16f0] sm:$0xff]
    %v854 = vld [vmem:[%s1 + $0x16f8] sm:$0xff]
    %v855 = vld [vmem:[%s1 + $0x1700] sm:$0xff]
    %v856 = vld [vmem:[%s1 + $0x1708] sm:$0xff]
    %v857 = vld [vmem:[%s1 + $0x1710] sm:$0xff]
    %v858 = vld [vmem:[%s1 + $0x1718] sm:$0xff]
    %v859 = vld [vmem:[%s1 + $0x1720] sm:$0xff]
    %v860 = vld [vmem:[%s1 + $0x1728] sm:$0xff]
    %v861 = vld [vmem:[%s1 + $0x1730] sm:$0xff]
    %v862 = vld [vmem:[%s1 + $0x1738] sm:$0xff]
    %v863 = vld [vmem:[%s1 + $0x1740] sm:$0xff]
    %v864 = vld [vmem:[%s1 + $0x1748] sm:$0xff]
    %v865 = vld [vmem:[%s1 + $0x1750] sm:$0xff]
    %v866 = vld [vmem:[%s1 + $0x1758] sm:$0xff]
    %v867 = vld [vmem:[%s1 + $0x1760] sm:$0xff]
    %v868 = vld [vmem:[%s1 + $0x1768] sm:$0xff]
    %v869 = vld [vmem:[%s1 + $0x1770] sm:$0xff]
    %v870 = vld [vmem:[%s1 + $0x1778] sm:$0xff]
    %v871 = vld [vmem:[%s1 + $0x1780] sm:$0xff]
    %v872 = vld [vmem:[%s1 + $0x1788] sm:$0xff]
    %v873 = vld [vmem:[%s1 + $0x1790] sm:$0xff]
    %v874 = vld [vmem:[%s1 + $0x1798] sm:$0xff]
    %v875 = vld [vmem:[%s1 + $0x17a0] sm:$0xff]
    %v876 = vld [vmem:[%s1 + $0x17a8] sm:$0xff]
    %v877 = vld [vmem:[%s1 + $0x17b0] sm:$0xff]
    %v878 = vld [vmem:[%s1 + $0x17b8] sm:$0xff]
    %v879 = vld [vmem:[%s1 + $0x17c0] sm:$0xff]
    %v880 = vld [vmem:[%s1 + $0x17c8] sm:$0xff]
    %v881 = vld [vmem:[%s1 + $0x17d0] sm:$0xff]
    %v882 = vld [vmem:[%s1 + $0x17d8] sm:$0xff]
    %v883 = vld [vmem:[%s1 + $0x17e0] sm:$0xff]
    %v884 = vld [vmem:[%s1 + $0x17e8] sm:$0xff]
    %v885 = vld [vmem:[%s1 + $0x17f0] sm:$0xff]
    %v886 = vld [vmem:[%s1 + $0x17f8] sm:$0xff]
    %v887 = vld [vmem:[%s1 + $0x1800] sm:$0xff]
    %v888 = vld [vmem:[%s1 + $0x1808] sm:$0xff]
    %v889 = vld [vmem:[%s1 + $0x1810] sm:$0xff]
    %v890 = vld [vmem:[%s1 + $0x1818] sm:$0xff]
    %v891 = vld [vmem:[%s1 + $0x1820] sm:$0xff]
    %v892 = vld [vmem:[%s1 + $0x1828] sm:$0xff]
    %v893 = vld [vmem:[%s1 + $0x1830] sm:$0xff]
    %v894 = vld [vmem:[%s1 + $0x1838] sm:$0xff]
    %v895 = vld [vmem:[%s1 + $0x1840] sm:$0xff]
    %v896 = vld [vmem:[%s1 + $0x1848] sm:$0xff]
    %v897 = vld [vmem:[%s1 + $0x1850] sm:$0xff]
    %v898 = vld [vmem:[%s1 + $0x1858] sm:$0xff]
    %v899 = vld [vmem:[%s1 + $0x1860] sm:$0xff]
    %v900 = vld [vmem:[%s1 + $0x1868] sm:$0xff]
    %v901 = vld [vmem:[%s1 + $0x1870] sm:$0xff]
    %v902 = vld [vmem:[%s1 + $0x1878] sm:$0xff]
    %v903 = vld [vmem:[%s2] sm:$0xf]
    %v905 = vperm.slane %v903, 0
    %v906 = vperm.slane %v903, 1
    %v907 = vperm.slane %v903, 2
    %v908 = vperm.slane %v903, 3
    %v1697 = vunpack.c.l.b16 %v119
    %v1698 = vunpack.c.h.b16 %v119
    %v1699 = vunpack.c.l.b16 %v120
    %v1700 = vunpack.c.h.b16 %v120
    %v1701 = vunpack.c.l.b16 %v121
    %v1702 = vunpack.c.h.b16 %v121
    %v1703 = vunpack.c.l.b16 %v122
    %v1704 = vunpack.c.h.b16 %v122
    %v1705 = vunpack.c.l.b16 %v123
    %v1706 = vunpack.c.h.b16 %v123
    %v1707 = vunpack.c.l.b16 %v124
    %v1708 = vunpack.c.h.b16 %v124
    %v1709 = vunpack.c.l.b16 %v125
    %v1710 = vunpack.c.h.b16 %v125
    %v1711 = vunpack.c.l.b16 %v126
    %v1712 = vunpack.c.h.b16 %v126
    %v1713 = vunpack.c.l.b16 %v127
    %v1714 = vunpack.c.h.b16 %v127
    %v1715 = vunpack.c.l.b16 %v128
    %v1716 = vunpack.c.h.b16 %v128
    %v1717 = vunpack.c.l.b16 %v129
    %v1718 = vunpack.c.h.b16 %v129
    %v1719 = vunpack.c.l.b16 %v130
    %v1720 = vunpack.c.h.b16 %v130
    %v1721 = vunpack.c.l.b16 %v131
    %v1722 = vunpack.c.h.b16 %v131
    %v1723 = vunpack.c.l.b16 %v132
    %v1724 = vunpack.c.h.b16 %v132
    %v1725 = vunpack.c.l.b16 %v133
    %v1726 = vunpack.c.h.b16 %v133
    %v1727 = vunpack.c.l.b16 %v134
    %v1728 = vunpack.c.h.b16 %v134
    %v1729 = vunpack.c.l.b16 %v135
    %v1730 = vunpack.c.h.b16 %v135
    %v1731 = vunpack.c.l.b16 %v136
    %v1732 = vunpack.c.h.b16 %v136
    %v1733 = vunpack.c.l.b16 %v137
    %v1734 = vunpack.c.h.b16 %v137
    %v1735 = vunpack.c.l.b16 %v138
    %v1736 = vunpack.c.h.b16 %v138
    %v1737 = vunpack.c.l.b16 %v139
    %v1738 = vunpack.c.h.b16 %v139
    %v1739 = vunpack.c.l.b16 %v140
    %v1740 = vunpack.c.h.b16 %v140
    %v1741 = vunpack.c.l.b16 %v141
    %v1742 = vunpack.c.h.b16 %v141
    %v1743 = vunpack.c.l.b16 %v142
    %v1744 = vunpack.c.h.b16 %v142
    %v1745 = vunpack.c.l.b16 %v143
    %v1746 = vunpack.c.h.b16 %v143
    %v1747 = vunpack.c.l.b16 %v144
    %v1748 = vunpack.c.h.b16 %v144
    %v1749 = vunpack.c.l.b16 %v145
    %v1750 = vunpack.c.h.b16 %v145
    %v1751 = vunpack.c.l.b16 %v146
    %v1752 = vunpack.c.h.b16 %v146
    %v1753 = vunpack.c.l.b16 %v147
    %v1754 = vunpack.c.h.b16 %v147
    %v1755 = vunpack.c.l.b16 %v148
    %v1756 = vunpack.c.h.b16 %v148
    %v1757 = vunpack.c.l.b16 %v149
    %v1758 = vunpack.c.h.b16 %v149
    %v1759 = vunpack.c.l.b16 %v150
    %v1760 = vunpack.c.h.b16 %v150
    %v1761 = vunpack.c.l.b16 %v151
    %v1762 = vunpack.c.h.b16 %v151
    %v1763 = vunpack.c.l.b16 %v152
    %v1764 = vunpack.c.h.b16 %v152
    %v1765 = vunpack.c.l.b16 %v153
    %v1766 = vunpack.c.h.b16 %v153
    %v1767 = vunpack.c.l.b16 %v154
    %v1768 = vunpack.c.h.b16 %v154
    %v1769 = vunpack.c.l.b16 %v155
    %v1770 = vunpack.c.h.b16 %v155
    %v1771 = vunpack.c.l.b16 %v156
    %v1772 = vunpack.c.h.b16 %v156
    %v1773 = vunpack.c.l.b16 %v157
    %v1774 = vunpack.c.h.b16 %v157
    %v1775 = vunpack.c.l.b16 %v158
    %v1776 = vunpack.c.h.b16 %v158
    %v1777 = vunpack.c.l.b16 %v159
    %v1778 = vunpack.c.h.b16 %v159
    %v1779 = vunpack.c.l.b16 %v160
    %v1780 = vunpack.c.h.b16 %v160
    %v1781 = vunpack.c.l.b16 %v161
    %v1782 = vunpack.c.h.b16 %v161
    %v1783 = vunpack.c.l.b16 %v162
    %v1784 = vunpack.c.h.b16 %v162
    %v1785 = vunpack.c.l.b16 %v163
    %v1786 = vunpack.c.h.b16 %v163
    %v1787 = vunpack.c.l.b16 %v164
    %v1788 = vunpack.c.h.b16 %v164
    %v1789 = vunpack.c.l.b16 %v165
    %v1790 = vunpack.c.h.b16 %v165
    %v1791 = vunpack.c.l.b16 %v166
    %v1792 = vunpack.c.h.b16 %v166
    %v1793 = vunpack.c.l.b16 %v167
    %v1794 = vunpack.c.h.b16 %v167
    %v1795 = vunpack.c.l.b16 %v168
    %v1796 = vunpack.c.h.b16 %v168
    %v1797 = vunpack.c.l.b16 %v169
    %v1798 = vunpack.c.h.b16 %v169
    %v1799 = vunpack.c.l.b16 %v170
    %v1800 = vunpack.c.h.b16 %v170
    %v1801 = vunpack.c.l.b16 %v171
    %v1802 = vunpack.c.h.b16 %v171
    %v1803 = vunpack.c.l.b16 %v172
    %v1804 = vunpack.c.h.b16 %v172
    %v1805 = vunpack.c.l.b16 %v173
    %v1806 = vunpack.c.h.b16 %v173
    %v1807 = vunpack.c.l.b16 %v174
    %v1808 = vunpack.c.h.b16 %v174
    %v1809 = vunpack.c.l.b16 %v175
    %v1810 = vunpack.c.h.b16 %v175
    %v1811 = vunpack.c.l.b16 %v176
    %v1812 = vunpack.c.h.b16 %v176
    %v1813 = vunpack.c.l.b16 %v177
    %v1814 = vunpack.c.h.b16 %v177
    %v1815 = vunpack.c.l.b16 %v178
    %v1816 = vunpack.c.h.b16 %v178
    %v1817 = vunpack.c.l.b16 %v179
    %v1818 = vunpack.c.h.b16 %v179
    %v1819 = vunpack.c.l.b16 %v180
    %v1820 = vunpack.c.h.b16 %v180
    %v1821 = vunpack.c.l.b16 %v181
    %v1822 = vunpack.c.h.b16 %v181
    %v1823 = vunpack.c.l.b16 %v182
    %v1824 = vunpack.c.h.b16 %v182
    %v1825 = vunpack.c.l.b16 %v183
    %v1826 = vunpack.c.h.b16 %v183
    %v1827 = vunpack.c.l.b16 %v184
    %v1828 = vunpack.c.h.b16 %v184
    %v1829 = vunpack.c.l.b16 %v185
    %v1830 = vunpack.c.h.b16 %v185
    %v1831 = vunpack.c.l.b16 %v186
    %v1832 = vunpack.c.h.b16 %v186
    %v1833 = vunpack.c.l.b16 %v187
    %v1834 = vunpack.c.h.b16 %v187
    %v1835 = vunpack.c.l.b16 %v188
    %v1836 = vunpack.c.h.b16 %v188
    %v1837 = vunpack.c.l.b16 %v189
    %v1838 = vunpack.c.h.b16 %v189
    %v1839 = vunpack.c.l.b16 %v190
    %v1840 = vunpack.c.h.b16 %v190
    %v1841 = vunpack.c.l.b16 %v191
    %v1842 = vunpack.c.h.b16 %v191
    %v1843 = vunpack.c.l.b16 %v192
    %v1844 = vunpack.c.h.b16 %v192
    %v1845 = vunpack.c.l.b16 %v193
    %v1846 = vunpack.c.h.b16 %v193
    %v1847 = vunpack.c.l.b16 %v194
    %v1848 = vunpack.c.h.b16 %v194
    %v1849 = vunpack.c.l.b16 %v195
    %v1850 = vunpack.c.h.b16 %v195
    %v1851 = vunpack.c.l.b16 %v196
    %v1852 = vunpack.c.h.b16 %v196
    %v1853 = vunpack.c.l.b16 %v197
    %v1854 = vunpack.c.h.b16 %v197
    %v1855 = vunpack.c.l.b16 %v198
    %v1856 = vunpack.c.h.b16 %v198
    %v1857 = vunpack.c.l.b16 %v199
    %v1858 = vunpack.c.h.b16 %v199
    %v1859 = vunpack.c.l.b16 %v200
    %v1860 = vunpack.c.h.b16 %v200
    %v1861 = vunpack.c.l.b16 %v201
    %v1862 = vunpack.c.h.b16 %v201
    %v1863 = vunpack.c.l.b16 %v202
    %v1864 = vunpack.c.h.b16 %v202
    %v1865 = vunpack.c.l.b16 %v203
    %v1866 = vunpack.c.h.b16 %v203
    %v1867 = vunpack.c.l.b16 %v204
    %v1868 = vunpack.c.h.b16 %v204
    %v1869 = vunpack.c.l.b16 %v205
    %v1870 = vunpack.c.h.b16 %v205
    %v1871 = vunpack.c.l.b16 %v206
    %v1872 = vunpack.c.h.b16 %v206
    %v1873 = vunpack.c.l.b16 %v207
    %v1874 = vunpack.c.h.b16 %v207
    %v1875 = vunpack.c.l.b16 %v208
    %v1876 = vunpack.c.h.b16 %v208
    %v1877 = vunpack.c.l.b16 %v209
    %v1878 = vunpack.c.h.b16 %v209
    %v1879 = vunpack.c.l.b16 %v210
    %v1880 = vunpack.c.h.b16 %v210
    %v1881 = vunpack.c.l.b16 %v211
    %v1882 = vunpack.c.h.b16 %v211
    %v1883 = vunpack.c.l.b16 %v212
    %v1884 = vunpack.c.h.b16 %v212
    %v1885 = vunpack.c.l.b16 %v213
    %v1886 = vunpack.c.h.b16 %v213
    %v1887 = vunpack.c.l.b16 %v214
    %v1888 = vunpack.c.h.b16 %v214
    %v1889 = vunpack.c.l.b16 %v215
    %v1890 = vunpack.c.h.b16 %v215
    %v1891 = vunpack.c.l.b16 %v216
    %v1892 = vunpack.c.h.b16 %v216
    %v1893 = vunpack.c.l.b16 %v217
    %v1894 = vunpack.c.h.b16 %v217
    %v1895 = vunpack.c.l.b16 %v218
    %v1896 = vunpack.c.h.b16 %v218
    %v1897 = vunpack.c.l.b16 %v219
    %v1898 = vunpack.c.h.b16 %v219
    %v1899 = vunpack.c.l.b16 %v220
    %v1900 = vunpack.c.h.b16 %v220
    %v1901 = vunpack.c.l.b16 %v221
    %v1902 = vunpack.c.h.b16 %v221
    %v1903 = vunpack.c.l.b16 %v222
    %v1904 = vunpack.c.h.b16 %v222
    %v1905 = vunpack.c.l.b16 %v223
    %v1906 = vunpack.c.h.b16 %v223
    %v1907 = vunpack.c.l.b16 %v224
    %v1908 = vunpack.c.h.b16 %v224
    %v1909 = vunpack.c.l.b16 %v225
    %v1910 = vunpack.c.h.b16 %v225
    %v1911 = vunpack.c.l.b16 %v226
    %v1912 = vunpack.c.h.b16 %v226
    %v1913 = vunpack.c.l.b16 %v227
    %v1914 = vunpack.c.h.b16 %v227
    %v1915 = vunpack.c.l.b16 %v228
    %v1916 = vunpack.c.h.b16 %v228
    %v1917 = vunpack.c.l.b16 %v229
    %v1918 = vunpack.c.h.b16 %v229
    %v1919 = vunpack.c.l.b16 %v230
    %v1920 = vunpack.c.h.b16 %v230
    %v1921 = vunpack.c.l.b16 %v231
    %v1922 = vunpack.c.h.b16 %v231
    %v1923 = vunpack.c.l.b16 %v232
    %v1924 = vunpack.c.h.b16 %v232
    %v1925 = vunpack.c.l.b16 %v233
    %v1926 = vunpack.c.h.b16 %v233
    %v1927 = vunpack.c.l.b16 %v234
    %v1928 = vunpack.c.h.b16 %v234
    %v1929 = vunpack.c.l.b16 %v235
    %v1930 = vunpack.c.h.b16 %v235
    %v1931 = vunpack.c.l.b16 %v236
    %v1932 = vunpack.c.h.b16 %v236
    %v1933 = vunpack.c.l.b16 %v237
    %v1934 = vunpack.c.h.b16 %v237
    %v1935 = vunpack.c.l.b16 %v238
    %v1936 = vunpack.c.h.b16 %v238
    %v1937 = vunpack.c.l.b16 %v239
    %v1938 = vunpack.c.h.b16 %v239
    %v1939 = vunpack.c.l.b16 %v240
    %v1940 = vunpack.c.h.b16 %v240
    %v1941 = vunpack.c.l.b16 %v241
    %v1942 = vunpack.c.h.b16 %v241
    %v1943 = vunpack.c.l.b16 %v242
    %v1944 = vunpack.c.h.b16 %v242
    %v1945 = vunpack.c.l.b16 %v243
    %v1946 = vunpack.c.h.b16 %v243
    %v1947 = vunpack.c.l.b16 %v244
    %v1948 = vunpack.c.h.b16 %v244
    %v1949 = vunpack.c.l.b16 %v245
    %v1950 = vunpack.c.h.b16 %v245
    %v1951 = vunpack.c.l.b16 %v246
    %v1952 = vunpack.c.h.b16 %v246
    %v1953 = vunpack.c.l.b16 %v247
    %v1954 = vunpack.c.h.b16 %v247
    %v1955 = vunpack.c.l.b16 %v248
    %v1956 = vunpack.c.h.b16 %v248
    %v1957 = vunpack.c.l.b16 %v249
    %v1958 = vunpack.c.h.b16 %v249
    %v1959 = vunpack.c.l.b16 %v250
    %v1960 = vunpack.c.h.b16 %v250
    %v1961 = vunpack.c.l.b16 %v251
    %v1962 = vunpack.c.h.b16 %v251
    %v1963 = vunpack.c.l.b16 %v252
    %v1964 = vunpack.c.h.b16 %v252
    %v1965 = vunpack.c.l.b16 %v253
    %v1966 = vunpack.c.h.b16 %v253
    %v1967 = vunpack.c.l.b16 %v254
    %v1968 = vunpack.c.h.b16 %v254
    %v1969 = vunpack.c.l.b16 %v255
    %v1970 = vunpack.c.h.b16 %v255
    %v1971 = vunpack.c.l.b16 %v256
    %v1972 = vunpack.c.h.b16 %v256
    %v1973 = vunpack.c.l.b16 %v257
    %v1974 = vunpack.c.h.b16 %v257
    %v1975 = vunpack.c.l.b16 %v258
    %v1976 = vunpack.c.h.b16 %v258
    %v1977 = vunpack.c.l.b16 %v259
    %v1978 = vunpack.c.h.b16 %v259
    %v1979 = vunpack.c.l.b16 %v260
    %v1980 = vunpack.c.h.b16 %v260
    %v1981 = vunpack.c.l.b16 %v261
    %v1982 = vunpack.c.h.b16 %v261
    %v1983 = vunpack.c.l.b16 %v262
    %v1984 = vunpack.c.h.b16 %v262
    %v1985 = vunpack.c.l.b16 %v263
    %v1986 = vunpack.c.h.b16 %v263
    %v1987 = vunpack.c.l.b16 %v264
    %v1988 = vunpack.c.h.b16 %v264
    %v1989 = vunpack.c.l.b16 %v265
    %v1990 = vunpack.c.h.b16 %v265
    %v1991 = vunpack.c.l.b16 %v266
    %v1992 = vunpack.c.h.b16 %v266
    %v1993 = vunpack.c.l.b16 %v267
    %v1994 = vunpack.c.h.b16 %v267
    %v1995 = vunpack.c.l.b16 %v268
    %v1996 = vunpack.c.h.b16 %v268
    %v1997 = vunpack.c.l.b16 %v269
    %v1998 = vunpack.c.h.b16 %v269
    %v1999 = vunpack.c.l.b16 %v270
    %v2000 = vunpack.c.h.b16 %v270
    %v2001 = vunpack.c.l.b16 %v271
    %v2002 = vunpack.c.h.b16 %v271
    %v2003 = vunpack.c.l.b16 %v272
    %v2004 = vunpack.c.h.b16 %v272
    %v2005 = vunpack.c.l.b16 %v273
    %v2006 = vunpack.c.h.b16 %v273
    %v2007 = vunpack.c.l.b16 %v274
    %v2008 = vunpack.c.h.b16 %v274
    %v2009 = vunpack.c.l.b16 %v275
    %v2010 = vunpack.c.h.b16 %v275
    %v2011 = vunpack.c.l.b16 %v276
    %v2012 = vunpack.c.h.b16 %v276
    %v2013 = vunpack.c.l.b16 %v277
    %v2014 = vunpack.c.h.b16 %v277
    %v2015 = vunpack.c.l.b16 %v278
    %v2016 = vunpack.c.h.b16 %v278
    %v2017 = vunpack.c.l.b16 %v279
    %v2018 = vunpack.c.h.b16 %v279
    %v2019 = vunpack.c.l.b16 %v280
    %v2020 = vunpack.c.h.b16 %v280
    %v2021 = vunpack.c.l.b16 %v281
    %v2022 = vunpack.c.h.b16 %v281
    %v2023 = vunpack.c.l.b16 %v282
    %v2024 = vunpack.c.h.b16 %v282
    %v2025 = vunpack.c.l.b16 %v283
    %v2026 = vunpack.c.h.b16 %v283
    %v2027 = vunpack.c.l.b16 %v284
    %v2028 = vunpack.c.h.b16 %v284
    %v2029 = vunpack.c.l.b16 %v285
    %v2030 = vunpack.c.h.b16 %v285
    %v2031 = vunpack.c.l.b16 %v286
    %v2032 = vunpack.c.h.b16 %v286
    %v2033 = vunpack.c.l.b16 %v287
    %v2034 = vunpack.c.h.b16 %v287
    %v2035 = vunpack.c.l.b16 %v288
    %v2036 = vunpack.c.h.b16 %v288
    %v2037 = vunpack.c.l.b16 %v289
    %v2038 = vunpack.c.h.b16 %v289
    %v2039 = vunpack.c.l.b16 %v290
    %v2040 = vunpack.c.h.b16 %v290
    %v2041 = vunpack.c.l.b16 %v291
    %v2042 = vunpack.c.h.b16 %v291
    %v2043 = vunpack.c.l.b16 %v292
    %v2044 = vunpack.c.h.b16 %v292
    %v2045 = vunpack.c.l.b16 %v293
    %v2046 = vunpack.c.h.b16 %v293
    %v2047 = vunpack.c.l.b16 %v294
    %v2048 = vunpack.c.h.b16 %v294
    %v2049 = vunpack.c.l.b16 %v295
    %v2050 = vunpack.c.h.b16 %v295
    %v2051 = vunpack.c.l.b16 %v296
    %v2052 = vunpack.c.h.b16 %v296
    %v2053 = vunpack.c.l.b16 %v297
    %v2054 = vunpack.c.h.b16 %v297
    %v2055 = vunpack.c.l.b16 %v298
    %v2056 = vunpack.c.h.b16 %v298
    %v2057 = vunpack.c.l.b16 %v299
    %v2058 = vunpack.c.h.b16 %v299
    %v2059 = vunpack.c.l.b16 %v300
    %v2060 = vunpack.c.h.b16 %v300
    %v2061 = vunpack.c.l.b16 %v301
    %v2062 = vunpack.c.h.b16 %v301
    %v2063 = vunpack.c.l.b16 %v302
    %v2064 = vunpack.c.h.b16 %v302
    %v2065 = vunpack.c.l.b16 %v303
    %v2066 = vunpack.c.h.b16 %v303
    %v2067 = vunpack.c.l.b16 %v304
    %v2068 = vunpack.c.h.b16 %v304
    %v2069 = vunpack.c.l.b16 %v305
    %v2070 = vunpack.c.h.b16 %v305
    %v2071 = vunpack.c.l.b16 %v306
    %v2072 = vunpack.c.h.b16 %v306
    %v2073 = vunpack.c.l.b16 %v307
    %v2074 = vunpack.c.h.b16 %v307
    %v2075 = vunpack.c.l.b16 %v308
    %v2076 = vunpack.c.h.b16 %v308
    %v2077 = vunpack.c.l.b16 %v309
    %v2078 = vunpack.c.h.b16 %v309
    %v2079 = vunpack.c.l.b16 %v310
    %v2080 = vunpack.c.h.b16 %v310
    %v2081 = vunpack.c.l.b16 %v311
    %v2082 = vunpack.c.h.b16 %v311
    %v2083 = vunpack.c.l.b16 %v312
    %v2084 = vunpack.c.h.b16 %v312
    %v2085 = vunpack.c.l.b16 %v313
    %v2086 = vunpack.c.h.b16 %v313
    %v2087 = vunpack.c.l.b16 %v314
    %v2088 = vunpack.c.h.b16 %v314
    %v2089 = vunpack.c.l.b16 %v315
    %v2090 = vunpack.c.h.b16 %v315
    %v2091 = vunpack.c.l.b16 %v316
    %v2092 = vunpack.c.h.b16 %v316
    %v2093 = vunpack.c.l.b16 %v317
    %v2094 = vunpack.c.h.b16 %v317
    %v2095 = vunpack.c.l.b16 %v318
    %v2096 = vunpack.c.h.b16 %v318
    %v2097 = vunpack.c.l.b16 %v319
    %v2098 = vunpack.c.h.b16 %v319
    %v2099 = vunpack.c.l.b16 %v320
    %v2100 = vunpack.c.h.b16 %v320
    %v2101 = vunpack.c.l.b16 %v321
    %v2102 = vunpack.c.h.b16 %v321
    %v2103 = vunpack.c.l.b16 %v322
    %v2104 = vunpack.c.h.b16 %v322
    %v2105 = vunpack.c.l.b16 %v323
    %v2106 = vunpack.c.h.b16 %v323
    %v2107 = vunpack.c.l.b16 %v324
    %v2108 = vunpack.c.h.b16 %v324
    %v2109 = vunpack.c.l.b16 %v325
    %v2110 = vunpack.c.h.b16 %v325
    %v2111 = vunpack.c.l.b16 %v326
    %v2112 = vunpack.c.h.b16 %v326
    %v2113 = vunpack.c.l.b16 %v327
    %v2114 = vunpack.c.h.b16 %v327
    %v2115 = vunpack.c.l.b16 %v328
    %v2116 = vunpack.c.h.b16 %v328
    %v2117 = vunpack.c.l.b16 %v329
    %v2118 = vunpack.c.h.b16 %v329
    %v2119 = vunpack.c.l.b16 %v330
    %v2120 = vunpack.c.h.b16 %v330
    %v2121 = vunpack.c.l.b16 %v331
    %v2122 = vunpack.c.h.b16 %v331
    %v2123 = vunpack.c.l.b16 %v332
    %v2124 = vunpack.c.h.b16 %v332
    %v2125 = vunpack.c.l.b16 %v333
    %v2126 = vunpack.c.h.b16 %v333
    %v2127 = vunpack.c.l.b16 %v334
    %v2128 = vunpack.c.h.b16 %v334
    %v2129 = vunpack.c.l.b16 %v335
    %v2130 = vunpack.c.h.b16 %v335
    %v2131 = vunpack.c.l.b16 %v336
    %v2132 = vunpack.c.h.b16 %v336
    %v2133 = vunpack.c.l.b16 %v337
    %v2134 = vunpack.c.h.b16 %v337
    %v2135 = vunpack.c.l.b16 %v338
    %v2136 = vunpack.c.h.b16 %v338
    %v2137 = vunpack.c.l.b16 %v339
    %v2138 = vunpack.c.h.b16 %v339
    %v2139 = vunpack.c.l.b16 %v340
    %v2140 = vunpack.c.h.b16 %v340
    %v2141 = vunpack.c.l.b16 %v341
    %v2142 = vunpack.c.h.b16 %v341
    %v2143 = vunpack.c.l.b16 %v342
    %v2144 = vunpack.c.h.b16 %v342
    %v2145 = vunpack.c.l.b16 %v343
    %v2146 = vunpack.c.h.b16 %v343
    %v2147 = vunpack.c.l.b16 %v344
    %v2148 = vunpack.c.h.b16 %v344
    %v2149 = vunpack.c.l.b16 %v345
    %v2150 = vunpack.c.h.b16 %v345
    %v2151 = vunpack.c.l.b16 %v346
    %v2152 = vunpack.c.h.b16 %v346
    %v2153 = vunpack.c.l.b16 %v347
    %v2154 = vunpack.c.h.b16 %v347
    %v2155 = vunpack.c.l.b16 %v348
    %v2156 = vunpack.c.h.b16 %v348
    %v2157 = vunpack.c.l.b16 %v349
    %v2158 = vunpack.c.h.b16 %v349
    %v2159 = vunpack.c.l.b16 %v350
    %v2160 = vunpack.c.h.b16 %v350
    %v2161 = vunpack.c.l.b16 %v351
    %v2162 = vunpack.c.h.b16 %v351
    %v2163 = vunpack.c.l.b16 %v352
    %v2164 = vunpack.c.h.b16 %v352
    %v2165 = vunpack.c.l.b16 %v353
    %v2166 = vunpack.c.h.b16 %v353
    %v2167 = vunpack.c.l.b16 %v354
    %v2168 = vunpack.c.h.b16 %v354
    %v2169 = vunpack.c.l.b16 %v355
    %v2170 = vunpack.c.h.b16 %v355
    %v2171 = vunpack.c.l.b16 %v356
    %v2172 = vunpack.c.h.b16 %v356
    %v2173 = vunpack.c.l.b16 %v357
    %v2174 = vunpack.c.h.b16 %v357
    %v2175 = vunpack.c.l.b16 %v358
    %v2176 = vunpack.c.h.b16 %v358
    %v2177 = vunpack.c.l.b16 %v359
    %v2178 = vunpack.c.h.b16 %v359
    %v2179 = vunpack.c.l.b16 %v360
    %v2180 = vunpack.c.h.b16 %v360
    %v2181 = vunpack.c.l.b16 %v361
    %v2182 = vunpack.c.h.b16 %v361
    %v2183 = vunpack.c.l.b16 %v362
    %v2184 = vunpack.c.h.b16 %v362
    %v2185 = vunpack.c.l.b16 %v363
    %v2186 = vunpack.c.h.b16 %v363
    %v2187 = vunpack.c.l.b16 %v364
    %v2188 = vunpack.c.h.b16 %v364
    %v2189 = vunpack.c.l.b16 %v365
    %v2190 = vunpack.c.h.b16 %v365
    %v2191 = vunpack.c.l.b16 %v366
    %v2192 = vunpack.c.h.b16 %v366
    %v2193 = vunpack.c.l.b16 %v367
    %v2194 = vunpack.c.h.b16 %v367
    %v2195 = vunpack.c.l.b16 %v368
    %v2196 = vunpack.c.h.b16 %v368
    %v2197 = vunpack.c.l.b16 %v369
    %v2198 = vunpack.c.h.b16 %v369
    %v2199 = vunpack.c.l.b16 %v370
    %v2200 = vunpack.c.h.b16 %v370
    %v2201 = vunpack.c.l.b16 %v371
    %v2202 = vunpack.c.h.b16 %v371
    %v2203 = vunpack.c.l.b16 %v372
    %v2204 = vunpack.c.h.b16 %v372
    %v2205 = vunpack.c.l.b16 %v373
    %v2206 = vunpack.c.h.b16 %v373
    %v2207 = vunpack.c.l.b16 %v374
    %v2208 = vunpack.c.h.b16 %v374
    %v2209 = vunpack.c.l.b16 %v375
    %v2210 = vunpack.c.h.b16 %v375
    %v2211 = vunpack.c.l.b16 %v376
    %v2212 = vunpack.c.h.b16 %v376
    %v2213 = vunpack.c.l.b16 %v377
    %v2214 = vunpack.c.h.b16 %v377
    %v2215 = vunpack.c.l.b16 %v378
    %v2216 = vunpack.c.h.b16 %v378
    %v2217 = vunpack.c.l.b16 %v379
    %v2218 = vunpack.c.h.b16 %v379
    %v2219 = vunpack.c.l.b16 %v380
    %v2220 = vunpack.c.h.b16 %v380
    %v2221 = vunpack.c.l.b16 %v381
    %v2222 = vunpack.c.h.b16 %v381
    %v2223 = vunpack.c.l.b16 %v382
    %v2224 = vunpack.c.h.b16 %v382
    %v2225 = vunpack.c.l.b16 %v383
    %v2226 = vunpack.c.h.b16 %v383
    %v2227 = vunpack.c.l.b16 %v384
    %v2228 = vunpack.c.h.b16 %v384
    %v2229 = vunpack.c.l.b16 %v385
    %v2230 = vunpack.c.h.b16 %v385
    %v2231 = vunpack.c.l.b16 %v386
    %v2232 = vunpack.c.h.b16 %v386
    %v2233 = vunpack.c.l.b16 %v387
    %v2234 = vunpack.c.h.b16 %v387
    %v2235 = vunpack.c.l.b16 %v388
    %v2236 = vunpack.c.h.b16 %v388
    %v2237 = vunpack.c.l.b16 %v389
    %v2238 = vunpack.c.h.b16 %v389
    %v2239 = vunpack.c.l.b16 %v390
    %v2240 = vunpack.c.h.b16 %v390
    %v2241 = vunpack.c.l.b16 %v391
    %v2242 = vunpack.c.h.b16 %v391
    %v2243 = vunpack.c.l.b16 %v392
    %v2244 = vunpack.c.h.b16 %v392
    %v2245 = vunpack.c.l.b16 %v393
    %v2246 = vunpack.c.h.b16 %v393
    %v2247 = vunpack.c.l.b16 %v394
    %v2248 = vunpack.c.h.b16 %v394
    %v2249 = vunpack.c.l.b16 %v395
    %v2250 = vunpack.c.h.b16 %v395
    %v2251 = vunpack.c.l.b16 %v396
    %v2252 = vunpack.c.h.b16 %v396
    %v2253 = vunpack.c.l.b16 %v397
    %v2254 = vunpack.c.h.b16 %v397
    %v2255 = vunpack.c.l.b16 %v398
    %v2256 = vunpack.c.h.b16 %v398
    %v2257 = vunpack.c.l.b16 %v399
    %v2258 = vunpack.c.h.b16 %v399
    %v2259 = vunpack.c.l.b16 %v400
    %v2260 = vunpack.c.h.b16 %v400
    %v2261 = vunpack.c.l.b16 %v401
    %v2262 = vunpack.c.h.b16 %v401
    %v2263 = vunpack.c.l.b16 %v402
    %v2264 = vunpack.c.h.b16 %v402
    %v2265 = vunpack.c.l.b16 %v403
    %v2266 = vunpack.c.h.b16 %v403
    %v2267 = vunpack.c.l.b16 %v404
    %v2268 = vunpack.c.h.b16 %v404
    %v2269 = vunpack.c.l.b16 %v405
    %v2270 = vunpack.c.h.b16 %v405
    %v2271 = vunpack.c.l.b16 %v406
    %v2272 = vunpack.c.h.b16 %v406
    %v2273 = vunpack.c.l.b16 %v407
    %v2274 = vunpack.c.h.b16 %v407
    %v2275 = vunpack.c.l.b16 %v408
    %v2276 = vunpack.c.h.b16 %v408
    %v2277 = vunpack.c.l.b16 %v409
    %v2278 = vunpack.c.h.b16 %v409
    %v2279 = vunpack.c.l.b16 %v410
    %v2280 = vunpack.c.h.b16 %v410
    %v2281 = vunpack.c.l.b16 %v411
    %v2282 = vunpack.c.h.b16 %v411
    %v2283 = vunpack.c.l.b16 %v412
    %v2284 = vunpack.c.h.b16 %v412
    %v2285 = vunpack.c.l.b16 %v413
    %v2286 = vunpack.c.h.b16 %v413
    %v2287 = vunpack.c.l.b16 %v414
    %v2288 = vunpack.c.h.b16 %v414
    %v2289 = vunpack.c.l.b16 %v415
    %v2290 = vunpack.c.h.b16 %v415
    %v2291 = vunpack.c.l.b16 %v416
    %v2292 = vunpack.c.h.b16 %v416
    %v2293 = vunpack.c.l.b16 %v417
    %v2294 = vunpack.c.h.b16 %v417
    %v2295 = vunpack.c.l.b16 %v418
    %v2296 = vunpack.c.h.b16 %v418
    %v2297 = vunpack.c.l.b16 %v419
    %v2298 = vunpack.c.h.b16 %v419
    %v2299 = vunpack.c.l.b16 %v420
    %v2300 = vunpack.c.h.b16 %v420
    %v2301 = vunpack.c.l.b16 %v421
    %v2302 = vunpack.c.h.b16 %v421
    %v2303 = vunpack.c.l.b16 %v422
    %v2304 = vunpack.c.h.b16 %v422
    %v2305 = vunpack.c.l.b16 %v423
    %v2306 = vunpack.c.h.b16 %v423
    %v2307 = vunpack.c.l.b16 %v424
    %v2308 = vunpack.c.h.b16 %v424
    %v2309 = vunpack.c.l.b16 %v425
    %v2310 = vunpack.c.h.b16 %v425
    %v2311 = vunpack.c.l.b16 %v426
    %v2312 = vunpack.c.h.b16 %v426
    %v2313 = vunpack.c.l.b16 %v427
    %v2314 = vunpack.c.h.b16 %v427
    %v2315 = vunpack.c.l.b16 %v428
    %v2316 = vunpack.c.h.b16 %v428
    %v2317 = vunpack.c.l.b16 %v429
    %v2318 = vunpack.c.h.b16 %v429
    %v2319 = vunpack.c.l.b16 %v430
    %v2320 = vunpack.c.h.b16 %v430
    %v2321 = vunpack.c.l.b16 %v431
    %v2322 = vunpack.c.h.b16 %v431
    %v2323 = vunpack.c.l.b16 %v432
    %v2324 = vunpack.c.h.b16 %v432
    %v2325 = vunpack.c.l.b16 %v433
    %v2326 = vunpack.c.h.b16 %v433
    %v2327 = vunpack.c.l.b16 %v434
    %v2328 = vunpack.c.h.b16 %v434
    %v2329 = vunpack.c.l.b16 %v435
    %v2330 = vunpack.c.h.b16 %v435
    %v2331 = vunpack.c.l.b16 %v436
    %v2332 = vunpack.c.h.b16 %v436
    %v2333 = vunpack.c.l.b16 %v437
    %v2334 = vunpack.c.h.b16 %v437
    %v2335 = vunpack.c.l.b16 %v438
    %v2336 = vunpack.c.h.b16 %v438
    %v2337 = vunpack.c.l.b16 %v439
    %v2338 = vunpack.c.h.b16 %v439
    %v2339 = vunpack.c.l.b16 %v440
    %v2340 = vunpack.c.h.b16 %v440
    %v2341 = vunpack.c.l.b16 %v441
    %v2342 = vunpack.c.h.b16 %v441
    %v2343 = vunpack.c.l.b16 %v442
    %v2344 = vunpack.c.h.b16 %v442
    %v2345 = vunpack.c.l.b16 %v443
    %v2346 = vunpack.c.h.b16 %v443
    %v2347 = vunpack.c.l.b16 %v444
    %v2348 = vunpack.c.h.b16 %v444
    %v2349 = vunpack.c.l.b16 %v445
    %v2350 = vunpack.c.h.b16 %v445
    %v2351 = vunpack.c.l.b16 %v446
    %v2352 = vunpack.c.h.b16 %v446
    %v2353 = vunpack.c.l.b16 %v447
    %v2354 = vunpack.c.h.b16 %v447
    %v2355 = vunpack.c.l.b16 %v448
    %v2356 = vunpack.c.h.b16 %v448
    %v2357 = vunpack.c.l.b16 %v449
    %v2358 = vunpack.c.h.b16 %v449
    %v2359 = vunpack.c.l.b16 %v450
    %v2360 = vunpack.c.h.b16 %v450
    %v2361 = vunpack.c.l.b16 %v451
    %v2362 = vunpack.c.h.b16 %v451
    %v2363 = vunpack.c.l.b16 %v452
    %v2364 = vunpack.c.h.b16 %v452
    %v2365 = vunpack.c.l.b16 %v453
    %v2366 = vunpack.c.h.b16 %v453
    %v2367 = vunpack.c.l.b16 %v454
    %v2368 = vunpack.c.h.b16 %v454
    %v2369 = vunpack.c.l.b16 %v455
    %v2370 = vunpack.c.h.b16 %v455
    %v2371 = vunpack.c.l.b16 %v456
    %v2372 = vunpack.c.h.b16 %v456
    %v2373 = vunpack.c.l.b16 %v457
    %v2374 = vunpack.c.h.b16 %v457
    %v2375 = vunpack.c.l.b16 %v458
    %v2376 = vunpack.c.h.b16 %v458
    %v2377 = vunpack.c.l.b16 %v459
    %v2378 = vunpack.c.h.b16 %v459
    %v2379 = vunpack.c.l.b16 %v460
    %v2380 = vunpack.c.h.b16 %v460
    %v2381 = vunpack.c.l.b16 %v461
    %v2382 = vunpack.c.h.b16 %v461
    %v2383 = vunpack.c.l.b16 %v462
    %v2384 = vunpack.c.h.b16 %v462
    %v2385 = vunpack.c.l.b16 %v463
    %v2386 = vunpack.c.h.b16 %v463
    %v2387 = vunpack.c.l.b16 %v464
    %v2388 = vunpack.c.h.b16 %v464
    %v2389 = vunpack.c.l.b16 %v465
    %v2390 = vunpack.c.h.b16 %v465
    %v2391 = vunpack.c.l.b16 %v466
    %v2392 = vunpack.c.h.b16 %v466
    %v2393 = vunpack.c.l.b16 %v467
    %v2394 = vunpack.c.h.b16 %v467
    %v2395 = vunpack.c.l.b16 %v468
    %v2396 = vunpack.c.h.b16 %v468
    %v2397 = vunpack.c.l.b16 %v469
    %v2398 = vunpack.c.h.b16 %v469
    %v2399 = vunpack.c.l.b16 %v470
    %v2400 = vunpack.c.h.b16 %v470
    %v2401 = vunpack.c.l.b16 %v471
    %v2402 = vunpack.c.h.b16 %v471
    %v2403 = vunpack.c.l.b16 %v472
    %v2404 = vunpack.c.h.b16 %v472
    %v2405 = vunpack.c.l.b16 %v473
    %v2406 = vunpack.c.h.b16 %v473
    %v2407 = vunpack.c.l.b16 %v474
    %v2408 = vunpack.c.h.b16 %v474
    %v2409 = vunpack.c.l.b16 %v475
    %v2410 = vunpack.c.h.b16 %v475
    %v2411 = vunpack.c.l.b16 %v476
    %v2412 = vunpack.c.h.b16 %v476
    %v2413 = vunpack.c.l.b16 %v477
    %v2414 = vunpack.c.h.b16 %v477
    %v2415 = vunpack.c.l.b16 %v478
    %v2416 = vunpack.c.h.b16 %v478
    %v2417 = vunpack.c.l.b16 %v479
    %v2418 = vunpack.c.h.b16 %v479
    %v2419 = vunpack.c.l.b16 %v480
    %v2420 = vunpack.c.h.b16 %v480
    %v2421 = vunpack.c.l.b16 %v481
    %v2422 = vunpack.c.h.b16 %v481
    %v2423 = vunpack.c.l.b16 %v482
    %v2424 = vunpack.c.h.b16 %v482
    %v2425 = vunpack.c.l.b16 %v483
    %v2426 = vunpack.c.h.b16 %v483
    %v2427 = vunpack.c.l.b16 %v484
    %v2428 = vunpack.c.h.b16 %v484
    %v2429 = vunpack.c.l.b16 %v485
    %v2430 = vunpack.c.h.b16 %v485
    %v2431 = vunpack.c.l.b16 %v486
    %v2432 = vunpack.c.h.b16 %v486
    %v2433 = vunpack.c.l.b16 %v487
    %v2434 = vunpack.c.h.b16 %v487
    %v2435 = vunpack.c.l.b16 %v488
    %v2436 = vunpack.c.h.b16 %v488
    %v2437 = vunpack.c.l.b16 %v489
    %v2438 = vunpack.c.h.b16 %v489
    %v2439 = vunpack.c.l.b16 %v490
    %v2440 = vunpack.c.h.b16 %v490
    %v2441 = vunpack.c.l.b16 %v491
    %v2442 = vunpack.c.h.b16 %v491
    %v2443 = vunpack.c.l.b16 %v492
    %v2444 = vunpack.c.h.b16 %v492
    %v2445 = vunpack.c.l.b16 %v493
    %v2446 = vunpack.c.h.b16 %v493
    %v2447 = vunpack.c.l.b16 %v494
    %v2448 = vunpack.c.h.b16 %v494
    %v2449 = vunpack.c.l.b16 %v495
    %v2450 = vunpack.c.h.b16 %v495
    %v2451 = vunpack.c.l.b16 %v496
    %v2452 = vunpack.c.h.b16 %v496
    %v2453 = vunpack.c.l.b16 %v497
    %v2454 = vunpack.c.h.b16 %v497
    %v2455 = vunpack.c.l.b16 %v498
    %v2456 = vunpack.c.h.b16 %v498
    %v2457 = vunpack.c.l.b16 %v499
    %v2458 = vunpack.c.h.b16 %v499
    %v2459 = vunpack.c.l.b16 %v500
    %v2460 = vunpack.c.h.b16 %v500
    %v2461 = vunpack.c.l.b16 %v501
    %v2462 = vunpack.c.h.b16 %v501
    %v2463 = vunpack.c.l.b16 %v502
    %v2464 = vunpack.c.h.b16 %v502
    %v2465 = vunpack.c.l.b16 %v503
    %v2466 = vunpack.c.h.b16 %v503
    %v2467 = vunpack.c.l.b16 %v504
    %v2468 = vunpack.c.h.b16 %v504
    %v2469 = vunpack.c.l.b16 %v505
    %v2470 = vunpack.c.h.b16 %v505
    %v2471 = vunpack.c.l.b16 %v506
    %v2472 = vunpack.c.h.b16 %v506
    %v2473 = vunpack.c.l.b16 %v507
    %v2474 = vunpack.c.h.b16 %v507
    %v2475 = vunpack.c.l.b16 %v508
    %v2476 = vunpack.c.h.b16 %v508
    %v2477 = vunpack.c.l.b16 %v509
    %v2478 = vunpack.c.h.b16 %v509
    %v2479 = vunpack.c.l.b16 %v510
    %v2480 = vunpack.c.h.b16 %v510
    %v2481 = vunpack.c.l.b16 %v511
    %v2482 = vunpack.c.h.b16 %v511
    %v2483 = vunpack.c.l.b16 %v512
    %v2484 = vunpack.c.h.b16 %v512
    %v2485 = vunpack.c.l.b16 %v513
    %v2486 = vunpack.c.h.b16 %v513
    %v2487 = vunpack.c.l.b16 %v514
    %v2488 = vunpack.c.h.b16 %v514
    %v2489 = vunpack.c.l.b16 %v515
    %v2490 = vunpack.c.h.b16 %v515
    %v2491 = vunpack.c.l.b16 %v516
    %v2492 = vunpack.c.h.b16 %v516
    %v2493 = vunpack.c.l.b16 %v517
    %v2494 = vunpack.c.h.b16 %v517
    %v2495 = vunpack.c.l.b16 %v518
    %v2496 = vunpack.c.h.b16 %v518
    %v2497 = vunpack.c.l.b16 %v519
    %v2498 = vunpack.c.h.b16 %v519
    %v2499 = vunpack.c.l.b16 %v520
    %v2500 = vunpack.c.h.b16 %v520
    %v2501 = vunpack.c.l.b16 %v521
    %v2502 = vunpack.c.h.b16 %v521
    %v2503 = vunpack.c.l.b16 %v522
    %v2504 = vunpack.c.h.b16 %v522
    %v2505 = vunpack.c.l.b16 %v523
    %v2506 = vunpack.c.h.b16 %v523
    %v2507 = vunpack.c.l.b16 %v524
    %v2508 = vunpack.c.h.b16 %v524
    %v2509 = vunpack.c.l.b16 %v525
    %v2510 = vunpack.c.h.b16 %v525
    %v2511 = vunpack.c.l.b16 %v526
    %v2512 = vunpack.c.h.b16 %v526
    %v2513 = vunpack.c.l.b16 %v527
    %v2514 = vunpack.c.h.b16 %v527
    %v2515 = vunpack.c.l.b16 %v528
    %v2516 = vunpack.c.h.b16 %v528
    %v2517 = vunpack.c.l.b16 %v529
    %v2518 = vunpack.c.h.b16 %v529
    %v2519 = vunpack.c.l.b16 %v530
    %v2520 = vunpack.c.h.b16 %v530
    %v2521 = vunpack.c.l.b16 %v531
    %v2522 = vunpack.c.h.b16 %v531
    %v2523 = vunpack.c.l.b16 %v532
    %v2524 = vunpack.c.h.b16 %v532
    %v2525 = vunpack.c.l.b16 %v533
    %v2526 = vunpack.c.h.b16 %v533
    %v2527 = vunpack.c.l.b16 %v534
    %v2528 = vunpack.c.h.b16 %v534
    %v2529 = vunpack.c.l.b16 %v535
    %v2530 = vunpack.c.h.b16 %v535
    %v2531 = vunpack.c.l.b16 %v536
    %v2532 = vunpack.c.h.b16 %v536
    %v2533 = vunpack.c.l.b16 %v537
    %v2534 = vunpack.c.h.b16 %v537
    %v2535 = vunpack.c.l.b16 %v538
    %v2536 = vunpack.c.h.b16 %v538
    %v2537 = vunpack.c.l.b16 %v539
    %v2538 = vunpack.c.h.b16 %v539
    %v2539 = vunpack.c.l.b16 %v540
    %v2540 = vunpack.c.h.b16 %v540
    %v2541 = vunpack.c.l.b16 %v541
    %v2542 = vunpack.c.h.b16 %v541
    %v2543 = vunpack.c.l.b16 %v542
    %v2544 = vunpack.c.h.b16 %v542
    %v2545 = vunpack.c.l.b16 %v543
    %v2546 = vunpack.c.h.b16 %v543
    %v2547 = vunpack.c.l.b16 %v544
    %v2548 = vunpack.c.h.b16 %v544
    %v2549 = vunpack.c.l.b16 %v545
    %v2550 = vunpack.c.h.b16 %v545
    %v2551 = vunpack.c.l.b16 %v546
    %v2552 = vunpack.c.h.b16 %v546
    %v2553 = vunpack.c.l.b16 %v547
    %v2554 = vunpack.c.h.b16 %v547
    %v2555 = vunpack.c.l.b16 %v548
    %v2556 = vunpack.c.h.b16 %v548
    %v2557 = vunpack.c.l.b16 %v549
    %v2558 = vunpack.c.h.b16 %v549
    %v2559 = vunpack.c.l.b16 %v550
    %v2560 = vunpack.c.h.b16 %v550
    %v2561 = vunpack.c.l.b16 %v551
    %v2562 = vunpack.c.h.b16 %v551
    %v2563 = vunpack.c.l.b16 %v552
    %v2564 = vunpack.c.h.b16 %v552
    %v2565 = vunpack.c.l.b16 %v553
    %v2566 = vunpack.c.h.b16 %v553
    %v2567 = vunpack.c.l.b16 %v554
    %v2568 = vunpack.c.h.b16 %v554
    %v2569 = vunpack.c.l.b16 %v555
    %v2570 = vunpack.c.h.b16 %v555
    %v2571 = vunpack.c.l.b16 %v556
    %v2572 = vunpack.c.h.b16 %v556
    %v2573 = vunpack.c.l.b16 %v557
    %v2574 = vunpack.c.h.b16 %v557
    %v2575 = vunpack.c.l.b16 %v558
    %v2576 = vunpack.c.h.b16 %v558
    %v2577 = vunpack.c.l.b16 %v559
    %v2578 = vunpack.c.h.b16 %v559
    %v2579 = vunpack.c.l.b16 %v560
    %v2580 = vunpack.c.h.b16 %v560
    %v2581 = vunpack.c.l.b16 %v561
    %v2582 = vunpack.c.h.b16 %v561
    %v2583 = vunpack.c.l.b16 %v562
    %v2584 = vunpack.c.h.b16 %v562
    %v2585 = vunpack.c.l.b16 %v563
    %v2586 = vunpack.c.h.b16 %v563
    %v2587 = vunpack.c.l.b16 %v564
    %v2588 = vunpack.c.h.b16 %v564
    %v2589 = vunpack.c.l.b16 %v565
    %v2590 = vunpack.c.h.b16 %v565
    %v2591 = vunpack.c.l.b16 %v566
    %v2592 = vunpack.c.h.b16 %v566
    %v2593 = vunpack.c.l.b16 %v567
    %v2594 = vunpack.c.h.b16 %v567
    %v2595 = vunpack.c.l.b16 %v568
    %v2596 = vunpack.c.h.b16 %v568
    %v2597 = vunpack.c.l.b16 %v569
    %v2598 = vunpack.c.h.b16 %v569
    %v2599 = vunpack.c.l.b16 %v570
    %v2600 = vunpack.c.h.b16 %v570
    %v2601 = vunpack.c.l.b16 %v571
    %v2602 = vunpack.c.h.b16 %v571
    %v2603 = vunpack.c.l.b16 %v572
    %v2604 = vunpack.c.h.b16 %v572
    %v2605 = vunpack.c.l.b16 %v573
    %v2606 = vunpack.c.h.b16 %v573
    %v2607 = vunpack.c.l.b16 %v574
    %v2608 = vunpack.c.h.b16 %v574
    %v2609 = vunpack.c.l.b16 %v575
    %v2610 = vunpack.c.h.b16 %v575
    %v2611 = vunpack.c.l.b16 %v576
    %v2612 = vunpack.c.h.b16 %v576
    %v2613 = vunpack.c.l.b16 %v577
    %v2614 = vunpack.c.h.b16 %v577
    %v2615 = vunpack.c.l.b16 %v578
    %v2616 = vunpack.c.h.b16 %v578
    %v2617 = vunpack.c.l.b16 %v579
    %v2618 = vunpack.c.h.b16 %v579
    %v2619 = vunpack.c.l.b16 %v580
    %v2620 = vunpack.c.h.b16 %v580
    %v2621 = vunpack.c.l.b16 %v581
    %v2622 = vunpack.c.h.b16 %v581
    %v2623 = vunpack.c.l.b16 %v582
    %v2624 = vunpack.c.h.b16 %v582
    %v2625 = vunpack.c.l.b16 %v583
    %v2626 = vunpack.c.h.b16 %v583
    %v2627 = vunpack.c.l.b16 %v584
    %v2628 = vunpack.c.h.b16 %v584
    %v2629 = vunpack.c.l.b16 %v585
    %v2630 = vunpack.c.h.b16 %v585
    %v2631 = vunpack.c.l.b16 %v586
    %v2632 = vunpack.c.h.b16 %v586
    %v2633 = vunpack.c.l.b16 %v587
    %v2634 = vunpack.c.h.b16 %v587
    %v2635 = vunpack.c.l.b16 %v588
    %v2636 = vunpack.c.h.b16 %v588
    %v2637 = vunpack.c.l.b16 %v589
    %v2638 = vunpack.c.h.b16 %v589
    %v2639 = vunpack.c.l.b16 %v590
    %v2640 = vunpack.c.h.b16 %v590
    %v2641 = vunpack.c.l.b16 %v591
    %v2642 = vunpack.c.h.b16 %v591
    %v2643 = vunpack.c.l.b16 %v592
    %v2644 = vunpack.c.h.b16 %v592
    %v2645 = vunpack.c.l.b16 %v593
    %v2646 = vunpack.c.h.b16 %v593
    %v2647 = vunpack.c.l.b16 %v594
    %v2648 = vunpack.c.h.b16 %v594
    %v2649 = vunpack.c.l.b16 %v595
    %v2650 = vunpack.c.h.b16 %v595
    %v2651 = vunpack.c.l.b16 %v596
    %v2652 = vunpack.c.h.b16 %v596
    %v2653 = vunpack.c.l.b16 %v597
    %v2654 = vunpack.c.h.b16 %v597
    %v2655 = vunpack.c.l.b16 %v598
    %v2656 = vunpack.c.h.b16 %v598
    %v2657 = vunpack.c.l.b16 %v599
    %v2658 = vunpack.c.h.b16 %v599
    %v2659 = vunpack.c.l.b16 %v600
    %v2660 = vunpack.c.h.b16 %v600
    %v2661 = vunpack.c.l.b16 %v601
    %v2662 = vunpack.c.h.b16 %v601
    %v2663 = vunpack.c.l.b16 %v602
    %v2664 = vunpack.c.h.b16 %v602
    %v2665 = vunpack.c.l.b16 %v603
    %v2666 = vunpack.c.h.b16 %v603
    %v2667 = vunpack.c.l.b16 %v604
    %v2668 = vunpack.c.h.b16 %v604
    %v2669 = vunpack.c.l.b16 %v605
    %v2670 = vunpack.c.h.b16 %v605
    %v2671 = vunpack.c.l.b16 %v606
    %v2672 = vunpack.c.h.b16 %v606
    %v2673 = vunpack.c.l.b16 %v607
    %v2674 = vunpack.c.h.b16 %v607
    %v2675 = vunpack.c.l.b16 %v608
    %v2676 = vunpack.c.h.b16 %v608
    %v2677 = vunpack.c.l.b16 %v609
    %v2678 = vunpack.c.h.b16 %v609
    %v2679 = vunpack.c.l.b16 %v610
    %v2680 = vunpack.c.h.b16 %v610
    %v2681 = vunpack.c.l.b16 %v611
    %v2682 = vunpack.c.h.b16 %v611
    %v2683 = vunpack.c.l.b16 %v612
    %v2684 = vunpack.c.h.b16 %v612
    %v2685 = vunpack.c.l.b16 %v613
    %v2686 = vunpack.c.h.b16 %v613
    %v2687 = vunpack.c.l.b16 %v614
    %v2688 = vunpack.c.h.b16 %v614
    %v2689 = vunpack.c.l.b16 %v615
    %v2690 = vunpack.c.h.b16 %v615
    %v2691 = vunpack.c.l.b16 %v616
    %v2692 = vunpack.c.h.b16 %v616
    %v2693 = vunpack.c.l.b16 %v617
    %v2694 = vunpack.c.h.b16 %v617
    %v2695 = vunpack.c.l.b16 %v618
    %v2696 = vunpack.c.h.b16 %v618
    %v2697 = vunpack.c.l.b16 %v619
    %v2698 = vunpack.c.h.b16 %v619
    %v2699 = vunpack.c.l.b16 %v620
    %v2700 = vunpack.c.h.b16 %v620
    %v2701 = vunpack.c.l.b16 %v621
    %v2702 = vunpack.c.h.b16 %v621
    %v2703 = vunpack.c.l.b16 %v622
    %v2704 = vunpack.c.h.b16 %v622
    %v2705 = vunpack.c.l.b16 %v623
    %v2706 = vunpack.c.h.b16 %v623
    %v2707 = vunpack.c.l.b16 %v624
    %v2708 = vunpack.c.h.b16 %v624
    %v2709 = vunpack.c.l.b16 %v625
    %v2710 = vunpack.c.h.b16 %v625
    %v2711 = vunpack.c.l.b16 %v626
    %v2712 = vunpack.c.h.b16 %v626
    %v2713 = vunpack.c.l.b16 %v627
    %v2714 = vunpack.c.h.b16 %v627
    %v2715 = vunpack.c.l.b16 %v628
    %v2716 = vunpack.c.h.b16 %v628
    %v2717 = vunpack.c.l.b16 %v629
    %v2718 = vunpack.c.h.b16 %v629
    %v2719 = vunpack.c.l.b16 %v630
    %v2720 = vunpack.c.h.b16 %v630
    %v2721 = vunpack.c.l.b16 %v631
    %v2722 = vunpack.c.h.b16 %v631
    %v2723 = vunpack.c.l.b16 %v632
    %v2724 = vunpack.c.h.b16 %v632
    %v2725 = vunpack.c.l.b16 %v633
    %v2726 = vunpack.c.h.b16 %v633
    %v2727 = vunpack.c.l.b16 %v634
    %v2728 = vunpack.c.h.b16 %v634
    %v2729 = vunpack.c.l.b16 %v635
    %v2730 = vunpack.c.h.b16 %v635
    %v2731 = vunpack.c.l.b16 %v636
    %v2732 = vunpack.c.h.b16 %v636
    %v2733 = vunpack.c.l.b16 %v637
    %v2734 = vunpack.c.h.b16 %v637
    %v2735 = vunpack.c.l.b16 %v638
    %v2736 = vunpack.c.h.b16 %v638
    %v2737 = vunpack.c.l.b16 %v639
    %v2738 = vunpack.c.h.b16 %v639
    %v2739 = vunpack.c.l.b16 %v640
    %v2740 = vunpack.c.h.b16 %v640
    %v2741 = vunpack.c.l.b16 %v641
    %v2742 = vunpack.c.h.b16 %v641
    %v2743 = vunpack.c.l.b16 %v642
    %v2744 = vunpack.c.h.b16 %v642
    %v2745 = vunpack.c.l.b16 %v643
    %v2746 = vunpack.c.h.b16 %v643
    %v2747 = vunpack.c.l.b16 %v644
    %v2748 = vunpack.c.h.b16 %v644
    %v2749 = vunpack.c.l.b16 %v645
    %v2750 = vunpack.c.h.b16 %v645
    %v2751 = vunpack.c.l.b16 %v646
    %v2752 = vunpack.c.h.b16 %v646
    %v2753 = vunpack.c.l.b16 %v647
    %v2754 = vunpack.c.h.b16 %v647
    %v2755 = vunpack.c.l.b16 %v648
    %v2756 = vunpack.c.h.b16 %v648
    %v2757 = vunpack.c.l.b16 %v649
    %v2758 = vunpack.c.h.b16 %v649
    %v2759 = vunpack.c.l.b16 %v650
    %v2760 = vunpack.c.h.b16 %v650
    %v2761 = vunpack.c.l.b16 %v651
    %v2762 = vunpack.c.h.b16 %v651
    %v2763 = vunpack.c.l.b16 %v652
    %v2764 = vunpack.c.h.b16 %v652
    %v2765 = vunpack.c.l.b16 %v653
    %v2766 = vunpack.c.h.b16 %v653
    %v2767 = vunpack.c.l.b16 %v654
    %v2768 = vunpack.c.h.b16 %v654
    %v2769 = vunpack.c.l.b16 %v655
    %v2770 = vunpack.c.h.b16 %v655
    %v2771 = vunpack.c.l.b16 %v656
    %v2772 = vunpack.c.h.b16 %v656
    %v2773 = vunpack.c.l.b16 %v657
    %v2774 = vunpack.c.h.b16 %v657
    %v2775 = vunpack.c.l.b16 %v658
    %v2776 = vunpack.c.h.b16 %v658
    %v2777 = vunpack.c.l.b16 %v659
    %v2778 = vunpack.c.h.b16 %v659
    %v2779 = vunpack.c.l.b16 %v660
    %v2780 = vunpack.c.h.b16 %v660
    %v2781 = vunpack.c.l.b16 %v661
    %v2782 = vunpack.c.h.b16 %v661
    %v2783 = vunpack.c.l.b16 %v662
    %v2784 = vunpack.c.h.b16 %v662
    %v2785 = vunpack.c.l.b16 %v663
    %v2786 = vunpack.c.h.b16 %v663
    %v2787 = vunpack.c.l.b16 %v664
    %v2788 = vunpack.c.h.b16 %v664
    %v2789 = vunpack.c.l.b16 %v665
    %v2790 = vunpack.c.h.b16 %v665
    %v2791 = vunpack.c.l.b16 %v666
    %v2792 = vunpack.c.h.b16 %v666
    %v2793 = vunpack.c.l.b16 %v667
    %v2794 = vunpack.c.h.b16 %v667
    %v2795 = vunpack.c.l.b16 %v668
    %v2796 = vunpack.c.h.b16 %v668
    %v2797 = vunpack.c.l.b16 %v669
    %v2798 = vunpack.c.h.b16 %v669
    %v2799 = vunpack.c.l.b16 %v670
    %v2800 = vunpack.c.h.b16 %v670
    %v2801 = vunpack.c.l.b16 %v671
    %v2802 = vunpack.c.h.b16 %v671
    %v2803 = vunpack.c.l.b16 %v672
    %v2804 = vunpack.c.h.b16 %v672
    %v2805 = vunpack.c.l.b16 %v673
    %v2806 = vunpack.c.h.b16 %v673
    %v2807 = vunpack.c.l.b16 %v674
    %v2808 = vunpack.c.h.b16 %v674
    %v2809 = vunpack.c.l.b16 %v675
    %v2810 = vunpack.c.h.b16 %v675
    %v2811 = vunpack.c.l.b16 %v676
    %v2812 = vunpack.c.h.b16 %v676
    %v2813 = vunpack.c.l.b16 %v677
    %v2814 = vunpack.c.h.b16 %v677
    %v2815 = vunpack.c.l.b16 %v678
    %v2816 = vunpack.c.h.b16 %v678
    %v2817 = vunpack.c.l.b16 %v679
    %v2818 = vunpack.c.h.b16 %v679
    %v2819 = vunpack.c.l.b16 %v680
    %v2820 = vunpack.c.h.b16 %v680
    %v2821 = vunpack.c.l.b16 %v681
    %v2822 = vunpack.c.h.b16 %v681
    %v2823 = vunpack.c.l.b16 %v682
    %v2824 = vunpack.c.h.b16 %v682
    %v2825 = vunpack.c.l.b16 %v683
    %v2826 = vunpack.c.h.b16 %v683
    %v2827 = vunpack.c.l.b16 %v684
    %v2828 = vunpack.c.h.b16 %v684
    %v2829 = vunpack.c.l.b16 %v685
    %v2830 = vunpack.c.h.b16 %v685
    %v2831 = vunpack.c.l.b16 %v686
    %v2832 = vunpack.c.h.b16 %v686
    %v2833 = vunpack.c.l.b16 %v687
    %v2834 = vunpack.c.h.b16 %v687
    %v2835 = vunpack.c.l.b16 %v688
    %v2836 = vunpack.c.h.b16 %v688
    %v2837 = vunpack.c.l.b16 %v689
    %v2838 = vunpack.c.h.b16 %v689
    %v2839 = vunpack.c.l.b16 %v690
    %v2840 = vunpack.c.h.b16 %v690
    %v2841 = vunpack.c.l.b16 %v691
    %v2842 = vunpack.c.h.b16 %v691
    %v2843 = vunpack.c.l.b16 %v692
    %v2844 = vunpack.c.h.b16 %v692
    %v2845 = vunpack.c.l.b16 %v693
    %v2846 = vunpack.c.h.b16 %v693
    %v2847 = vunpack.c.l.b16 %v694
    %v2848 = vunpack.c.h.b16 %v694
    %v2849 = vunpack.c.l.b16 %v695
    %v2850 = vunpack.c.h.b16 %v695
    %v2851 = vunpack.c.l.b16 %v696
    %v2852 = vunpack.c.h.b16 %v696
    %v2853 = vunpack.c.l.b16 %v697
    %v2854 = vunpack.c.h.b16 %v697
    %v2855 = vunpack.c.l.b16 %v698
    %v2856 = vunpack.c.h.b16 %v698
    %v2857 = vunpack.c.l.b16 %v699
    %v2858 = vunpack.c.h.b16 %v699
    %v2859 = vunpack.c.l.b16 %v700
    %v2860 = vunpack.c.h.b16 %v700
    %v2861 = vunpack.c.l.b16 %v701
    %v2862 = vunpack.c.h.b16 %v701
    %v2863 = vunpack.c.l.b16 %v702
    %v2864 = vunpack.c.h.b16 %v702
    %v2865 = vunpack.c.l.b16 %v703
    %v2866 = vunpack.c.h.b16 %v703
    %v2867 = vunpack.c.l.b16 %v704
    %v2868 = vunpack.c.h.b16 %v704
    %v2869 = vunpack.c.l.b16 %v705
    %v2870 = vunpack.c.h.b16 %v705
    %v2871 = vunpack.c.l.b16 %v706
    %v2872 = vunpack.c.h.b16 %v706
    %v2873 = vunpack.c.l.b16 %v707
    %v2874 = vunpack.c.h.b16 %v707
    %v2875 = vunpack.c.l.b16 %v708
    %v2876 = vunpack.c.h.b16 %v708
    %v2877 = vunpack.c.l.b16 %v709
    %v2878 = vunpack.c.h.b16 %v709
    %v2879 = vunpack.c.l.b16 %v710
    %v2880 = vunpack.c.h.b16 %v710
    %v2881 = vunpack.c.l.b16 %v711
    %v2882 = vunpack.c.h.b16 %v711
    %v2883 = vunpack.c.l.b16 %v712
    %v2884 = vunpack.c.h.b16 %v712
    %v2885 = vunpack.c.l.b16 %v713
    %v2886 = vunpack.c.h.b16 %v713
    %v2887 = vunpack.c.l.b16 %v714
    %v2888 = vunpack.c.h.b16 %v714
    %v2889 = vunpack.c.l.b16 %v715
    %v2890 = vunpack.c.h.b16 %v715
    %v2891 = vunpack.c.l.b16 %v716
    %v2892 = vunpack.c.h.b16 %v716
    %v2893 = vunpack.c.l.b16 %v717
    %v2894 = vunpack.c.h.b16 %v717
    %v2895 = vunpack.c.l.b16 %v718
    %v2896 = vunpack.c.h.b16 %v718
    %v2897 = vunpack.c.l.b16 %v719
    %v2898 = vunpack.c.h.b16 %v719
    %v2899 = vunpack.c.l.b16 %v720
    %v2900 = vunpack.c.h.b16 %v720
    %v2901 = vunpack.c.l.b16 %v721
    %v2902 = vunpack.c.h.b16 %v721
    %v2903 = vunpack.c.l.b16 %v722
    %v2904 = vunpack.c.h.b16 %v722
    %v2905 = vunpack.c.l.b16 %v723
    %v2906 = vunpack.c.h.b16 %v723
    %v2907 = vunpack.c.l.b16 %v724
    %v2908 = vunpack.c.h.b16 %v724
    %v2909 = vunpack.c.l.b16 %v725
    %v2910 = vunpack.c.h.b16 %v725
    %v2911 = vunpack.c.l.b16 %v726
    %v2912 = vunpack.c.h.b16 %v726
    %v2913 = vunpack.c.l.b16 %v727
    %v2914 = vunpack.c.h.b16 %v727
    %v2915 = vunpack.c.l.b16 %v728
    %v2916 = vunpack.c.h.b16 %v728
    %v2917 = vunpack.c.l.b16 %v729
    %v2918 = vunpack.c.h.b16 %v729
    %v2919 = vunpack.c.l.b16 %v730
    %v2920 = vunpack.c.h.b16 %v730
    %v2921 = vunpack.c.l.b16 %v731
    %v2922 = vunpack.c.h.b16 %v731
    %v2923 = vunpack.c.l.b16 %v732
    %v2924 = vunpack.c.h.b16 %v732
    %v2925 = vunpack.c.l.b16 %v733
    %v2926 = vunpack.c.h.b16 %v733
    %v2927 = vunpack.c.l.b16 %v734
    %v2928 = vunpack.c.h.b16 %v734
    %v2929 = vunpack.c.l.b16 %v735
    %v2930 = vunpack.c.h.b16 %v735
    %v2931 = vunpack.c.l.b16 %v736
    %v2932 = vunpack.c.h.b16 %v736
    %v2933 = vunpack.c.l.b16 %v737
    %v2934 = vunpack.c.h.b16 %v737
    %v2935 = vunpack.c.l.b16 %v738
    %v2936 = vunpack.c.h.b16 %v738
    %v2937 = vunpack.c.l.b16 %v739
    %v2938 = vunpack.c.h.b16 %v739
    %v2939 = vunpack.c.l.b16 %v740
    %v2940 = vunpack.c.h.b16 %v740
    %v2941 = vunpack.c.l.b16 %v741
    %v2942 = vunpack.c.h.b16 %v741
    %v2943 = vunpack.c.l.b16 %v742
    %v2944 = vunpack.c.h.b16 %v742
    %v2945 = vunpack.c.l.b16 %v743
    %v2946 = vunpack.c.h.b16 %v743
    %v2947 = vunpack.c.l.b16 %v744
    %v2948 = vunpack.c.h.b16 %v744
    %v2949 = vunpack.c.l.b16 %v745
    %v2950 = vunpack.c.h.b16 %v745
    %v2951 = vunpack.c.l.b16 %v746
    %v2952 = vunpack.c.h.b16 %v746
    %v2953 = vunpack.c.l.b16 %v747
    %v2954 = vunpack.c.h.b16 %v747
    %v2955 = vunpack.c.l.b16 %v748
    %v2956 = vunpack.c.h.b16 %v748
    %v2957 = vunpack.c.l.b16 %v749
    %v2958 = vunpack.c.h.b16 %v749
    %v2959 = vunpack.c.l.b16 %v750
    %v2960 = vunpack.c.h.b16 %v750
    %v2961 = vunpack.c.l.b16 %v751
    %v2962 = vunpack.c.h.b16 %v751
    %v2963 = vunpack.c.l.b16 %v752
    %v2964 = vunpack.c.h.b16 %v752
    %v2965 = vunpack.c.l.b16 %v753
    %v2966 = vunpack.c.h.b16 %v753
    %v2967 = vunpack.c.l.b16 %v754
    %v2968 = vunpack.c.h.b16 %v754
    %v2969 = vunpack.c.l.b16 %v755
    %v2970 = vunpack.c.h.b16 %v755
    %v2971 = vunpack.c.l.b16 %v756
    %v2972 = vunpack.c.h.b16 %v756
    %v2973 = vunpack.c.l.b16 %v757
    %v2974 = vunpack.c.h.b16 %v757
    %v2975 = vunpack.c.l.b16 %v758
    %v2976 = vunpack.c.h.b16 %v758
    %v2977 = vunpack.c.l.b16 %v759
    %v2978 = vunpack.c.h.b16 %v759
    %v2979 = vunpack.c.l.b16 %v760
    %v2980 = vunpack.c.h.b16 %v760
    %v2981 = vunpack.c.l.b16 %v761
    %v2982 = vunpack.c.h.b16 %v761
    %v2983 = vunpack.c.l.b16 %v762
    %v2984 = vunpack.c.h.b16 %v762
    %v2985 = vunpack.c.l.b16 %v763
    %v2986 = vunpack.c.h.b16 %v763
    %v2987 = vunpack.c.l.b16 %v764
    %v2988 = vunpack.c.h.b16 %v764
    %v2989 = vunpack.c.l.b16 %v765
    %v2990 = vunpack.c.h.b16 %v765
    %v2991 = vunpack.c.l.b16 %v766
    %v2992 = vunpack.c.h.b16 %v766
    %v2993 = vunpack.c.l.b16 %v767
    %v2994 = vunpack.c.h.b16 %v767
    %v2995 = vunpack.c.l.b16 %v768
    %v2996 = vunpack.c.h.b16 %v768
    %v2997 = vunpack.c.l.b16 %v769
    %v2998 = vunpack.c.h.b16 %v769
    %v2999 = vunpack.c.l.b16 %v770
    %v3000 = vunpack.c.h.b16 %v770
    %v3001 = vunpack.c.l.b16 %v771
    %v3002 = vunpack.c.h.b16 %v771
    %v3003 = vunpack.c.l.b16 %v772
    %v3004 = vunpack.c.h.b16 %v772
    %v3005 = vunpack.c.l.b16 %v773
    %v3006 = vunpack.c.h.b16 %v773
    %v3007 = vunpack.c.l.b16 %v774
    %v3008 = vunpack.c.h.b16 %v774
    %v3009 = vunpack.c.l.b16 %v775
    %v3010 = vunpack.c.h.b16 %v775
    %v3011 = vunpack.c.l.b16 %v776
    %v3012 = vunpack.c.h.b16 %v776
    %v3013 = vunpack.c.l.b16 %v777
    %v3014 = vunpack.c.h.b16 %v777
    %v3015 = vunpack.c.l.b16 %v778
    %v3016 = vunpack.c.h.b16 %v778
    %v3017 = vunpack.c.l.b16 %v779
    %v3018 = vunpack.c.h.b16 %v779
    %v3019 = vunpack.c.l.b16 %v780
    %v3020 = vunpack.c.h.b16 %v780
    %v3021 = vunpack.c.l.b16 %v781
    %v3022 = vunpack.c.h.b16 %v781
    %v3023 = vunpack.c.l.b16 %v782
    %v3024 = vunpack.c.h.b16 %v782
    %v3025 = vunpack.c.l.b16 %v783
    %v3026 = vunpack.c.h.b16 %v783
    %v3027 = vunpack.c.l.b16 %v784
    %v3028 = vunpack.c.h.b16 %v784
    %v3029 = vunpack.c.l.b16 %v785
    %v3030 = vunpack.c.h.b16 %v785
    %v3031 = vunpack.c.l.b16 %v786
    %v3032 = vunpack.c.h.b16 %v786
    %v3033 = vunpack.c.l.b16 %v787
    %v3034 = vunpack.c.h.b16 %v787
    %v3035 = vunpack.c.l.b16 %v788
    %v3036 = vunpack.c.h.b16 %v788
    %v3037 = vunpack.c.l.b16 %v789
    %v3038 = vunpack.c.h.b16 %v789
    %v3039 = vunpack.c.l.b16 %v790
    %v3040 = vunpack.c.h.b16 %v790
    %v3041 = vunpack.c.l.b16 %v791
    %v3042 = vunpack.c.h.b16 %v791
    %v3043 = vunpack.c.l.b16 %v792
    %v3044 = vunpack.c.h.b16 %v792
    %v3045 = vunpack.c.l.b16 %v793
    %v3046 = vunpack.c.h.b16 %v793
    %v3047 = vunpack.c.l.b16 %v794
    %v3048 = vunpack.c.h.b16 %v794
    %v3049 = vunpack.c.l.b16 %v795
    %v3050 = vunpack.c.h.b16 %v795
    %v3051 = vunpack.c.l.b16 %v796
    %v3052 = vunpack.c.h.b16 %v796
    %v3053 = vunpack.c.l.b16 %v797
    %v3054 = vunpack.c.h.b16 %v797
    %v3055 = vunpack.c.l.b16 %v798
    %v3056 = vunpack.c.h.b16 %v798
    %v3057 = vunpack.c.l.b16 %v799
    %v3058 = vunpack.c.h.b16 %v799
    %v3059 = vunpack.c.l.b16 %v800
    %v3060 = vunpack.c.h.b16 %v800
    %v3061 = vunpack.c.l.b16 %v801
    %v3062 = vunpack.c.h.b16 %v801
    %v3063 = vunpack.c.l.b16 %v802
    %v3064 = vunpack.c.h.b16 %v802
    %v3065 = vunpack.c.l.b16 %v803
    %v3066 = vunpack.c.h.b16 %v803
    %v3067 = vunpack.c.l.b16 %v804
    %v3068 = vunpack.c.h.b16 %v804
    %v3069 = vunpack.c.l.b16 %v805
    %v3070 = vunpack.c.h.b16 %v805
    %v3071 = vunpack.c.l.b16 %v806
    %v3072 = vunpack.c.h.b16 %v806
    %v3073 = vunpack.c.l.b16 %v807
    %v3074 = vunpack.c.h.b16 %v807
    %v3075 = vunpack.c.l.b16 %v808
    %v3076 = vunpack.c.h.b16 %v808
    %v3077 = vunpack.c.l.b16 %v809
    %v3078 = vunpack.c.h.b16 %v809
    %v3079 = vunpack.c.l.b16 %v810
    %v3080 = vunpack.c.h.b16 %v810
    %v3081 = vunpack.c.l.b16 %v811
    %v3082 = vunpack.c.h.b16 %v811
    %v3083 = vunpack.c.l.b16 %v812
    %v3084 = vunpack.c.h.b16 %v812
    %v3085 = vunpack.c.l.b16 %v813
    %v3086 = vunpack.c.h.b16 %v813
    %v3087 = vunpack.c.l.b16 %v814
    %v3088 = vunpack.c.h.b16 %v814
    %v3089 = vunpack.c.l.b16 %v815
    %v3090 = vunpack.c.h.b16 %v815
    %v3091 = vunpack.c.l.b16 %v816
    %v3092 = vunpack.c.h.b16 %v816
    %v3093 = vunpack.c.l.b16 %v817
    %v3094 = vunpack.c.h.b16 %v817
    %v3095 = vunpack.c.l.b16 %v818
    %v3096 = vunpack.c.h.b16 %v818
    %v3097 = vunpack.c.l.b16 %v819
    %v3098 = vunpack.c.h.b16 %v819
    %v3099 = vunpack.c.l.b16 %v820
    %v3100 = vunpack.c.h.b16 %v820
    %v3101 = vunpack.c.l.b16 %v821
    %v3102 = vunpack.c.h.b16 %v821
    %v3103 = vunpack.c.l.b16 %v822
    %v3104 = vunpack.c.h.b16 %v822
    %v3105 = vunpack.c.l.b16 %v823
    %v3106 = vunpack.c.h.b16 %v823
    %v3107 = vunpack.c.l.b16 %v824
    %v3108 = vunpack.c.h.b16 %v824
    %v3109 = vunpack.c.l.b16 %v825
    %v3110 = vunpack.c.h.b16 %v825
    %v3111 = vunpack.c.l.b16 %v826
    %v3112 = vunpack.c.h.b16 %v826
    %v3113 = vunpack.c.l.b16 %v827
    %v3114 = vunpack.c.h.b16 %v827
    %v3115 = vunpack.c.l.b16 %v828
    %v3116 = vunpack.c.h.b16 %v828
    %v3117 = vunpack.c.l.b16 %v829
    %v3118 = vunpack.c.h.b16 %v829
    %v3119 = vunpack.c.l.b16 %v830
    %v3120 = vunpack.c.h.b16 %v830
    %v3121 = vunpack.c.l.b16 %v831
    %v3122 = vunpack.c.h.b16 %v831
    %v3123 = vunpack.c.l.b16 %v832
    %v3124 = vunpack.c.h.b16 %v832
    %v3125 = vunpack.c.l.b16 %v833
    %v3126 = vunpack.c.h.b16 %v833
    %v3127 = vunpack.c.l.b16 %v834
    %v3128 = vunpack.c.h.b16 %v834
    %v3129 = vunpack.c.l.b16 %v835
    %v3130 = vunpack.c.h.b16 %v835
    %v3131 = vunpack.c.l.b16 %v836
    %v3132 = vunpack.c.h.b16 %v836
    %v3133 = vunpack.c.l.b16 %v837
    %v3134 = vunpack.c.h.b16 %v837
    %v3135 = vunpack.c.l.b16 %v838
    %v3136 = vunpack.c.h.b16 %v838
    %v3137 = vunpack.c.l.b16 %v839
    %v3138 = vunpack.c.h.b16 %v839
    %v3139 = vunpack.c.l.b16 %v840
    %v3140 = vunpack.c.h.b16 %v840
    %v3141 = vunpack.c.l.b16 %v841
    %v3142 = vunpack.c.h.b16 %v841
    %v3143 = vunpack.c.l.b16 %v842
    %v3144 = vunpack.c.h.b16 %v842
    %v3145 = vunpack.c.l.b16 %v843
    %v3146 = vunpack.c.h.b16 %v843
    %v3147 = vunpack.c.l.b16 %v844
    %v3148 = vunpack.c.h.b16 %v844
    %v3149 = vunpack.c.l.b16 %v845
    %v3150 = vunpack.c.h.b16 %v845
    %v3151 = vunpack.c.l.b16 %v846
    %v3152 = vunpack.c.h.b16 %v846
    %v3153 = vunpack.c.l.b16 %v847
    %v3154 = vunpack.c.h.b16 %v847
    %v3155 = vunpack.c.l.b16 %v848
    %v3156 = vunpack.c.h.b16 %v848
    %v3157 = vunpack.c.l.b16 %v849
    %v3158 = vunpack.c.h.b16 %v849
    %v3159 = vunpack.c.l.b16 %v850
    %v3160 = vunpack.c.h.b16 %v850
    %v3161 = vunpack.c.l.b16 %v851
    %v3162 = vunpack.c.h.b16 %v851
    %v3163 = vunpack.c.l.b16 %v852
    %v3164 = vunpack.c.h.b16 %v852
    %v3165 = vunpack.c.l.b16 %v853
    %v3166 = vunpack.c.h.b16 %v853
    %v3167 = vunpack.c.l.b16 %v854
    %v3168 = vunpack.c.h.b16 %v854
    %v3169 = vunpack.c.l.b16 %v855
    %v3170 = vunpack.c.h.b16 %v855
    %v3171 = vunpack.c.l.b16 %v856
    %v3172 = vunpack.c.h.b16 %v856
    %v3173 = vunpack.c.l.b16 %v857
    %v3174 = vunpack.c.h.b16 %v857
    %v3175 = vunpack.c.l.b16 %v858
    %v3176 = vunpack.c.h.b16 %v858
    %v3177 = vunpack.c.l.b16 %v859
    %v3178 = vunpack.c.h.b16 %v859
    %v3179 = vunpack.c.l.b16 %v860
    %v3180 = vunpack.c.h.b16 %v860
    %v3181 = vunpack.c.l.b16 %v861
    %v3182 = vunpack.c.h.b16 %v861
    %v3183 = vunpack.c.l.b16 %v862
    %v3184 = vunpack.c.h.b16 %v862
    %v3185 = vunpack.c.l.b16 %v863
    %v3186 = vunpack.c.h.b16 %v863
    %v3187 = vunpack.c.l.b16 %v864
    %v3188 = vunpack.c.h.b16 %v864
    %v3189 = vunpack.c.l.b16 %v865
    %v3190 = vunpack.c.h.b16 %v865
    %v3191 = vunpack.c.l.b16 %v866
    %v3192 = vunpack.c.h.b16 %v866
    %v3193 = vunpack.c.l.b16 %v867
    %v3194 = vunpack.c.h.b16 %v867
    %v3195 = vunpack.c.l.b16 %v868
    %v3196 = vunpack.c.h.b16 %v868
    %v3197 = vunpack.c.l.b16 %v869
    %v3198 = vunpack.c.h.b16 %v869
    %v3199 = vunpack.c.l.b16 %v870
    %v3200 = vunpack.c.h.b16 %v870
    %v3201 = vunpack.c.l.b16 %v871
    %v3202 = vunpack.c.h.b16 %v871
    %v3203 = vunpack.c.l.b16 %v872
    %v3204 = vunpack.c.h.b16 %v872
    %v3205 = vunpack.c.l.b16 %v873
    %v3206 = vunpack.c.h.b16 %v873
    %v3207 = vunpack.c.l.b16 %v874
    %v3208 = vunpack.c.h.b16 %v874
    %v3209 = vunpack.c.l.b16 %v875
    %v3210 = vunpack.c.h.b16 %v875
    %v3211 = vunpack.c.l.b16 %v876
    %v3212 = vunpack.c.h.b16 %v876
    %v3213 = vunpack.c.l.b16 %v877
    %v3214 = vunpack.c.h.b16 %v877
    %v3215 = vunpack.c.l.b16 %v878
    %v3216 = vunpack.c.h.b16 %v878
    %v3217 = vunpack.c.l.b16 %v879
    %v3218 = vunpack.c.h.b16 %v879
    %v3219 = vunpack.c.l.b16 %v880
    %v3220 = vunpack.c.h.b16 %v880
    %v3221 = vunpack.c.l.b16 %v881
    %v3222 = vunpack.c.h.b16 %v881
    %v3223 = vunpack.c.l.b16 %v882
    %v3224 = vunpack.c.h.b16 %v882
    %v3225 = vunpack.c.l.b16 %v883
    %v3226 = vunpack.c.h.b16 %v883
    %v3227 = vunpack.c.l.b16 %v884
    %v3228 = vunpack.c.h.b16 %v884
    %v3229 = vunpack.c.l.b16 %v885
    %v3230 = vunpack.c.h.b16 %v885
    %v3231 = vunpack.c.l.b16 %v886
    %v3232 = vunpack.c.h.b16 %v886
    %v3233 = vunpack.c.l.b16 %v887
    %v3234 = vunpack.c.h.b16 %v887
    %v3235 = vunpack.c.l.b16 %v888
    %v3236 = vunpack.c.h.b16 %v888
    %v3237 = vunpack.c.l.b16 %v889
    %v3238 = vunpack.c.h.b16 %v889
    %v3239 = vunpack.c.l.b16 %v890
    %v3240 = vunpack.c.h.b16 %v890
    %v3241 = vunpack.c.l.b16 %v891
    %v3242 = vunpack.c.h.b16 %v891
    %v3243 = vunpack.c.l.b16 %v892
    %v3244 = vunpack.c.h.b16 %v892
    %v3245 = vunpack.c.l.b16 %v893
    %v3246 = vunpack.c.h.b16 %v893
    %v3247 = vunpack.c.l.b16 %v894
    %v3248 = vunpack.c.h.b16 %v894
    %v3249 = vunpack.c.l.b16 %v895
    %v3250 = vunpack.c.h.b16 %v895
    %v3251 = vunpack.c.l.b16 %v896
    %v3252 = vunpack.c.h.b16 %v896
    %v3253 = vunpack.c.l.b16 %v897
    %v3254 = vunpack.c.h.b16 %v897
    %v3255 = vunpack.c.l.b16 %v898
    %v3256 = vunpack.c.h.b16 %v898
    %v3257 = vunpack.c.l.b16 %v899
    %v3258 = vunpack.c.h.b16 %v899
    %v3259 = vunpack.c.l.b16 %v900
    %v3260 = vunpack.c.h.b16 %v900
    %v3261 = vunpack.c.l.b16 %v901
    %v3262 = vunpack.c.h.b16 %v901
    %v3263 = vunpack.c.l.b16 %v902
    %v3264 = vunpack.c.h.b16 %v902
    %v3265 = vpack.c.b16 %v1701, %v1697
    %v3266 = vpack.c.b16 %v1702, %v1698
    %v3267 = vpack.c.b16 %v1703, %v1699
    %v3268 = vpack.c.b16 %v1704, %v1700
    %v3269 = vpack.c.b16 %v1709, %v1705
    %v3270 = vpack.c.b16 %v1710, %v1706
    %v3271 = vpack.c.b16 %v1711, %v1707
    %v3272 = vpack.c.b16 %v1712, %v1708
    %v3273 = vpack.c.b16 %v1717, %v1713
    %v3274 = vpack.c.b16 %v1718, %v1714
    %v3275 = vpack.c.b16 %v1719, %v1715
    %v3276 = vpack.c.b16 %v1720, %v1716
    %v3277 = vpack.c.b16 %v1725, %v1721
    %v3278 = vpack.c.b16 %v1726, %v1722
    %v3279 = vpack.c.b16 %v1727, %v1723
    %v3280 = vpack.c.b16 %v1728, %v1724
    %v3281 = vpack.c.b16 %v1733, %v1729
    %v3282 = vpack.c.b16 %v1734, %v1730
    %v3283 = vpack.c.b16 %v1735, %v1731
    %v3284 = vpack.c.b16 %v1736, %v1732
    %v3285 = vpack.c.b16 %v1741, %v1737
    %v3286 = vpack.c.b16 %v1742, %v1738
    %v3287 = vpack.c.b16 %v1743, %v1739
    %v3288 = vpack.c.b16 %v1744, %v1740
    %v3289 = vpack.c.b16 %v1749, %v1745
    %v3290 = vpack.c.b16 %v1750, %v1746
    %v3291 = vpack.c.b16 %v1751, %v1747
    %v3292 = vpack.c.b16 %v1752, %v1748
    %v3293 = vpack.c.b16 %v1757, %v1753
    %v3294 = vpack.c.b16 %v1758, %v1754
    %v3295 = vpack.c.b16 %v1759, %v1755
    %v3296 = vpack.c.b16 %v1760, %v1756
    %v3297 = vpack.c.b16 %v1765, %v1761
    %v3298 = vpack.c.b16 %v1766, %v1762
    %v3299 = vpack.c.b16 %v1767, %v1763
    %v3300 = vpack.c.b16 %v1768, %v1764
    %v3301 = vpack.c.b16 %v1773, %v1769
    %v3302 = vpack.c.b16 %v1774, %v1770
    %v3303 = vpack.c.b16 %v1775, %v1771
    %v3304 = vpack.c.b16 %v1776, %v1772
    %v3305 = vpack.c.b16 %v1781, %v1777
    %v3306 = vpack.c.b16 %v1782, %v1778
    %v3307 = vpack.c.b16 %v1783, %v1779
    %v3308 = vpack.c.b16 %v1784, %v1780
    %v3309 = vpack.c.b16 %v1789, %v1785
    %v3310 = vpack.c.b16 %v1790, %v1786
    %v3311 = vpack.c.b16 %v1791, %v1787
    %v3312 = vpack.c.b16 %v1792, %v1788
    %v3313 = vpack.c.b16 %v1797, %v1793
    %v3314 = vpack.c.b16 %v1798, %v1794
    %v3315 = vpack.c.b16 %v1799, %v1795
    %v3316 = vpack.c.b16 %v1800, %v1796
    %v3317 = vpack.c.b16 %v1805, %v1801
    %v3318 = vpack.c.b16 %v1806, %v1802
    %v3319 = vpack.c.b16 %v1807, %v1803
    %v3320 = vpack.c.b16 %v1808, %v1804
    %v3321 = vpack.c.b16 %v1813, %v1809
    %v3322 = vpack.c.b16 %v1814, %v1810
    %v3323 = vpack.c.b16 %v1815, %v1811
    %v3324 = vpack.c.b16 %v1816, %v1812
    %v3325 = vpack.c.b16 %v1821, %v1817
    %v3326 = vpack.c.b16 %v1822, %v1818
    %v3327 = vpack.c.b16 %v1823, %v1819
    %v3328 = vpack.c.b16 %v1824, %v1820
    %v3329 = vpack.c.b16 %v1829, %v1825
    %v3330 = vpack.c.b16 %v1830, %v1826
    %v3331 = vpack.c.b16 %v1831, %v1827
    %v3332 = vpack.c.b16 %v1832, %v1828
    %v3333 = vpack.c.b16 %v1837, %v1833
    %v3334 = vpack.c.b16 %v1838, %v1834
    %v3335 = vpack.c.b16 %v1839, %v1835
    %v3336 = vpack.c.b16 %v1840, %v1836
    %v3337 = vpack.c.b16 %v1845, %v1841
    %v3338 = vpack.c.b16 %v1846, %v1842
    %v3339 = vpack.c.b16 %v1847, %v1843
    %v3340 = vpack.c.b16 %v1848, %v1844
    %v3341 = vpack.c.b16 %v1853, %v1849
    %v3342 = vpack.c.b16 %v1854, %v1850
    %v3343 = vpack.c.b16 %v1855, %v1851
    %v3344 = vpack.c.b16 %v1856, %v1852
    %v3345 = vpack.c.b16 %v1861, %v1857
    %v3346 = vpack.c.b16 %v1862, %v1858
    %v3347 = vpack.c.b16 %v1863, %v1859
    %v3348 = vpack.c.b16 %v1864, %v1860
    %v3349 = vpack.c.b16 %v1869, %v1865
    %v3350 = vpack.c.b16 %v1870, %v1866
    %v3351 = vpack.c.b16 %v1871, %v1867
    %v3352 = vpack.c.b16 %v1872, %v1868
    %v3353 = vpack.c.b16 %v1877, %v1873
    %v3354 = vpack.c.b16 %v1878, %v1874
    %v3355 = vpack.c.b16 %v1879, %v1875
    %v3356 = vpack.c.b16 %v1880, %v1876
    %v3357 = vpack.c.b16 %v1885, %v1881
    %v3358 = vpack.c.b16 %v1886, %v1882
    %v3359 = vpack.c.b16 %v1887, %v1883
    %v3360 = vpack.c.b16 %v1888, %v1884
    %v3361 = vpack.c.b16 %v1893, %v1889
    %v3362 = vpack.c.b16 %v1894, %v1890
    %v3363 = vpack.c.b16 %v1895, %v1891
    %v3364 = vpack.c.b16 %v1896, %v1892
    %v3365 = vpack.c.b16 %v1901, %v1897
    %v3366 = vpack.c.b16 %v1902, %v1898
    %v3367 = vpack.c.b16 %v1903, %v1899
    %v3368 = vpack.c.b16 %v1904, %v1900
    %v3369 = vpack.c.b16 %v1909, %v1905
    %v3370 = vpack.c.b16 %v1910, %v1906
    %v3371 = vpack.c.b16 %v1911, %v1907
    %v3372 = vpack.c.b16 %v1912, %v1908
    %v3373 = vpack.c.b16 %v1917, %v1913
    %v3374 = vpack.c.b16 %v1918, %v1914
    %v3375 = vpack.c.b16 %v1919, %v1915
    %v3376 = vpack.c.b16 %v1920, %v1916
    %v3377 = vpack.c.b16 %v1925, %v1921
    %v3378 = vpack.c.b16 %v1926, %v1922
    %v3379 = vpack.c.b16 %v1927, %v1923
    %v3380 = vpack.c.b16 %v1928, %v1924
    %v3381 = vpack.c.b16 %v1933, %v1929
    %v3382 = vpack.c.b16 %v1934, %v1930
    %v3383 = vpack.c.b16 %v1935, %v1931
    %v3384 = vpack.c.b16 %v1936, %v1932
    %v3385 = vpack.c.b16 %v1941, %v1937
    %v3386 = vpack.c.b16 %v1942, %v1938
    %v3387 = vpack.c.b16 %v1943, %v1939
    %v3388 = vpack.c.b16 %v1944, %v1940
    %v3389 = vpack.c.b16 %v1949, %v1945
    %v3390 = vpack.c.b16 %v1950, %v1946
    %v3391 = vpack.c.b16 %v1951, %v1947
    %v3392 = vpack.c.b16 %v1952, %v1948
    %v3393 = vpack.c.b16 %v1957, %v1953
    %v3394 = vpack.c.b16 %v1958, %v1954
    %v3395 = vpack.c.b16 %v1959, %v1955
    %v3396 = vpack.c.b16 %v1960, %v1956
    %v3397 = vpack.c.b16 %v1965, %v1961
    %v3398 = vpack.c.b16 %v1966, %v1962
    %v3399 = vpack.c.b16 %v1967, %v1963
    %v3400 = vpack.c.b16 %v1968, %v1964
    %v3401 = vpack.c.b16 %v1973, %v1969
    %v3402 = vpack.c.b16 %v1974, %v1970
    %v3403 = vpack.c.b16 %v1975, %v1971
    %v3404 = vpack.c.b16 %v1976, %v1972
    %v3405 = vpack.c.b16 %v1981, %v1977
    %v3406 = vpack.c.b16 %v1982, %v1978
    %v3407 = vpack.c.b16 %v1983, %v1979
    %v3408 = vpack.c.b16 %v1984, %v1980
    %v3409 = vpack.c.b16 %v1989, %v1985
    %v3410 = vpack.c.b16 %v1990, %v1986
    %v3411 = vpack.c.b16 %v1991, %v1987
    %v3412 = vpack.c.b16 %v1992, %v1988
    %v3413 = vpack.c.b16 %v1997, %v1993
    %v3414 = vpack.c.b16 %v1998, %v1994
    %v3415 = vpack.c.b16 %v1999, %v1995
    %v3416 = vpack.c.b16 %v2000, %v1996
    %v3417 = vpack.c.b16 %v2005, %v2001
    %v3418 = vpack.c.b16 %v2006, %v2002
    %v3419 = vpack.c.b16 %v2007, %v2003
    %v3420 = vpack.c.b16 %v2008, %v2004
    %v3421 = vpack.c.b16 %v2013, %v2009
    %v3422 = vpack.c.b16 %v2014, %v2010
    %v3423 = vpack.c.b16 %v2015, %v2011
    %v3424 = vpack.c.b16 %v2016, %v2012
    %v3425 = vpack.c.b16 %v2021, %v2017
    %v3426 = vpack.c.b16 %v2022, %v2018
    %v3427 = vpack.c.b16 %v2023, %v2019
    %v3428 = vpack.c.b16 %v2024, %v2020
    %v3429 = vpack.c.b16 %v2029, %v2025
    %v3430 = vpack.c.b16 %v2030, %v2026
    %v3431 = vpack.c.b16 %v2031, %v2027
    %v3432 = vpack.c.b16 %v2032, %v2028
    %v3433 = vpack.c.b16 %v2037, %v2033
    %v3434 = vpack.c.b16 %v2038, %v2034
    %v3435 = vpack.c.b16 %v2039, %v2035
    %v3436 = vpack.c.b16 %v2040, %v2036
    %v3437 = vpack.c.b16 %v2045, %v2041
    %v3438 = vpack.c.b16 %v2046, %v2042
    %v3439 = vpack.c.b16 %v2047, %v2043
    %v3440 = vpack.c.b16 %v2048, %v2044
    %v3441 = vpack.c.b16 %v2053, %v2049
    %v3442 = vpack.c.b16 %v2054, %v2050
    %v3443 = vpack.c.b16 %v2055, %v2051
    %v3444 = vpack.c.b16 %v2056, %v2052
    %v3445 = vpack.c.b16 %v2061, %v2057
    %v3446 = vpack.c.b16 %v2062, %v2058
    %v3447 = vpack.c.b16 %v2063, %v2059
    %v3448 = vpack.c.b16 %v2064, %v2060
    %v3449 = vpack.c.b16 %v2069, %v2065
    %v3450 = vpack.c.b16 %v2070, %v2066
    %v3451 = vpack.c.b16 %v2071, %v2067
    %v3452 = vpack.c.b16 %v2072, %v2068
    %v3453 = vpack.c.b16 %v2077, %v2073
    %v3454 = vpack.c.b16 %v2078, %v2074
    %v3455 = vpack.c.b16 %v2079, %v2075
    %v3456 = vpack.c.b16 %v2080, %v2076
    %v3457 = vpack.c.b16 %v2085, %v2081
    %v3458 = vpack.c.b16 %v2086, %v2082
    %v3459 = vpack.c.b16 %v2087, %v2083
    %v3460 = vpack.c.b16 %v2088, %v2084
    %v3461 = vpack.c.b16 %v2093, %v2089
    %v3462 = vpack.c.b16 %v2094, %v2090
    %v3463 = vpack.c.b16 %v2095, %v2091
    %v3464 = vpack.c.b16 %v2096, %v2092
    %v3465 = vpack.c.b16 %v2101, %v2097
    %v3466 = vpack.c.b16 %v2102, %v2098
    %v3467 = vpack.c.b16 %v2103, %v2099
    %v3468 = vpack.c.b16 %v2104, %v2100
    %v3469 = vpack.c.b16 %v2109, %v2105
    %v3470 = vpack.c.b16 %v2110, %v2106
    %v3471 = vpack.c.b16 %v2111, %v2107
    %v3472 = vpack.c.b16 %v2112, %v2108
    %v3473 = vpack.c.b16 %v2117, %v2113
    %v3474 = vpack.c.b16 %v2118, %v2114
    %v3475 = vpack.c.b16 %v2119, %v2115
    %v3476 = vpack.c.b16 %v2120, %v2116
    %v3477 = vpack.c.b16 %v2125, %v2121
    %v3478 = vpack.c.b16 %v2126, %v2122
    %v3479 = vpack.c.b16 %v2127, %v2123
    %v3480 = vpack.c.b16 %v2128, %v2124
    %v3481 = vpack.c.b16 %v2133, %v2129
    %v3482 = vpack.c.b16 %v2134, %v2130
    %v3483 = vpack.c.b16 %v2135, %v2131
    %v3484 = vpack.c.b16 %v2136, %v2132
    %v3485 = vpack.c.b16 %v2141, %v2137
    %v3486 = vpack.c.b16 %v2142, %v2138
    %v3487 = vpack.c.b16 %v2143, %v2139
    %v3488 = vpack.c.b16 %v2144, %v2140
    %v3489 = vpack.c.b16 %v2149, %v2145
    %v3490 = vpack.c.b16 %v2150, %v2146
    %v3491 = vpack.c.b16 %v2151, %v2147
    %v3492 = vpack.c.b16 %v2152, %v2148
    %v3493 = vpack.c.b16 %v2157, %v2153
    %v3494 = vpack.c.b16 %v2158, %v2154
    %v3495 = vpack.c.b16 %v2159, %v2155
    %v3496 = vpack.c.b16 %v2160, %v2156
    %v3497 = vpack.c.b16 %v2165, %v2161
    %v3498 = vpack.c.b16 %v2166, %v2162
    %v3499 = vpack.c.b16 %v2167, %v2163
    %v3500 = vpack.c.b16 %v2168, %v2164
    %v3501 = vpack.c.b16 %v2173, %v2169
    %v3502 = vpack.c.b16 %v2174, %v2170
    %v3503 = vpack.c.b16 %v2175, %v2171
    %v3504 = vpack.c.b16 %v2176, %v2172
    %v3505 = vpack.c.b16 %v2181, %v2177
    %v3506 = vpack.c.b16 %v2182, %v2178
    %v3507 = vpack.c.b16 %v2183, %v2179
    %v3508 = vpack.c.b16 %v2184, %v2180
    %v3509 = vpack.c.b16 %v2189, %v2185
    %v3510 = vpack.c.b16 %v2190, %v2186
    %v3511 = vpack.c.b16 %v2191, %v2187
    %v3512 = vpack.c.b16 %v2192, %v2188
    %v3513 = vpack.c.b16 %v2197, %v2193
    %v3514 = vpack.c.b16 %v2198, %v2194
    %v3515 = vpack.c.b16 %v2199, %v2195
    %v3516 = vpack.c.b16 %v2200, %v2196
    %v3517 = vpack.c.b16 %v2205, %v2201
    %v3518 = vpack.c.b16 %v2206, %v2202
    %v3519 = vpack.c.b16 %v2207, %v2203
    %v3520 = vpack.c.b16 %v2208, %v2204
    %v3521 = vpack.c.b16 %v2213, %v2209
    %v3522 = vpack.c.b16 %v2214, %v2210
    %v3523 = vpack.c.b16 %v2215, %v2211
    %v3524 = vpack.c.b16 %v2216, %v2212
    %v3525 = vpack.c.b16 %v2221, %v2217
    %v3526 = vpack.c.b16 %v2222, %v2218
    %v3527 = vpack.c.b16 %v2223, %v2219
    %v3528 = vpack.c.b16 %v2224, %v2220
    %v3529 = vpack.c.b16 %v2229, %v2225
    %v3530 = vpack.c.b16 %v2230, %v2226
    %v3531 = vpack.c.b16 %v2231, %v2227
    %v3532 = vpack.c.b16 %v2232, %v2228
    %v3533 = vpack.c.b16 %v2237, %v2233
    %v3534 = vpack.c.b16 %v2238, %v2234
    %v3535 = vpack.c.b16 %v2239, %v2235
    %v3536 = vpack.c.b16 %v2240, %v2236
    %v3537 = vpack.c.b16 %v2245, %v2241
    %v3538 = vpack.c.b16 %v2246, %v2242
    %v3539 = vpack.c.b16 %v2247, %v2243
    %v3540 = vpack.c.b16 %v2248, %v2244
    %v3541 = vpack.c.b16 %v2253, %v2249
    %v3542 = vpack.c.b16 %v2254, %v2250
    %v3543 = vpack.c.b16 %v2255, %v2251
    %v3544 = vpack.c.b16 %v2256, %v2252
    %v3545 = vpack.c.b16 %v2261, %v2257
    %v3546 = vpack.c.b16 %v2262, %v2258
    %v3547 = vpack.c.b16 %v2263, %v2259
    %v3548 = vpack.c.b16 %v2264, %v2260
    %v3549 = vpack.c.b16 %v2269, %v2265
    %v3550 = vpack.c.b16 %v2270, %v2266
    %v3551 = vpack.c.b16 %v2271, %v2267
    %v3552 = vpack.c.b16 %v2272, %v2268
    %v3553 = vpack.c.b16 %v2277, %v2273
    %v3554 = vpack.c.b16 %v2278, %v2274
    %v3555 = vpack.c.b16 %v2279, %v2275
    %v3556 = vpack.c.b16 %v2280, %v2276
    %v3557 = vpack.c.b16 %v2285, %v2281
    %v3558 = vpack.c.b16 %v2286, %v2282
    %v3559 = vpack.c.b16 %v2287, %v2283
    %v3560 = vpack.c.b16 %v2288, %v2284
    %v3561 = vpack.c.b16 %v2293, %v2289
    %v3562 = vpack.c.b16 %v2294, %v2290
    %v3563 = vpack.c.b16 %v2295, %v2291
    %v3564 = vpack.c.b16 %v2296, %v2292
    %v3565 = vpack.c.b16 %v2301, %v2297
    %v3566 = vpack.c.b16 %v2302, %v2298
    %v3567 = vpack.c.b16 %v2303, %v2299
    %v3568 = vpack.c.b16 %v2304, %v2300
    %v3569 = vpack.c.b16 %v2309, %v2305
    %v3570 = vpack.c.b16 %v2310, %v2306
    %v3571 = vpack.c.b16 %v2311, %v2307
    %v3572 = vpack.c.b16 %v2312, %v2308
    %v3573 = vpack.c.b16 %v2317, %v2313
    %v3574 = vpack.c.b16 %v2318, %v2314
    %v3575 = vpack.c.b16 %v2319, %v2315
    %v3576 = vpack.c.b16 %v2320, %v2316
    %v3577 = vpack.c.b16 %v2325, %v2321
    %v3578 = vpack.c.b16 %v2326, %v2322
    %v3579 = vpack.c.b16 %v2327, %v2323
    %v3580 = vpack.c.b16 %v2328, %v2324
    %v3581 = vpack.c.b16 %v2333, %v2329
    %v3582 = vpack.c.b16 %v2334, %v2330
    %v3583 = vpack.c.b16 %v2335, %v2331
    %v3584 = vpack.c.b16 %v2336, %v2332
    %v3585 = vpack.c.b16 %v2341, %v2337
    %v3586 = vpack.c.b16 %v2342, %v2338
    %v3587 = vpack.c.b16 %v2343, %v2339
    %v3588 = vpack.c.b16 %v2344, %v2340
    %v3589 = vpack.c.b16 %v2349, %v2345
    %v3590 = vpack.c.b16 %v2350, %v2346
    %v3591 = vpack.c.b16 %v2351, %v2347
    %v3592 = vpack.c.b16 %v2352, %v2348
    %v3593 = vpack.c.b16 %v2357, %v2353
    %v3594 = vpack.c.b16 %v2358, %v2354
    %v3595 = vpack.c.b16 %v2359, %v2355
    %v3596 = vpack.c.b16 %v2360, %v2356
    %v3597 = vpack.c.b16 %v2365, %v2361
    %v3598 = vpack.c.b16 %v2366, %v2362
    %v3599 = vpack.c.b16 %v2367, %v2363
    %v3600 = vpack.c.b16 %v2368, %v2364
    %v3601 = vpack.c.b16 %v2373, %v2369
    %v3602 = vpack.c.b16 %v2374, %v2370
    %v3603 = vpack.c.b16 %v2375, %v2371
    %v3604 = vpack.c.b16 %v2376, %v2372
    %v3605 = vpack.c.b16 %v2381, %v2377
    %v3606 = vpack.c.b16 %v2382, %v2378
    %v3607 = vpack.c.b16 %v2383, %v2379
    %v3608 = vpack.c.b16 %v2384, %v2380
    %v3609 = vpack.c.b16 %v2389, %v2385
    %v3610 = vpack.c.b16 %v2390, %v2386
    %v3611 = vpack.c.b16 %v2391, %v2387
    %v3612 = vpack.c.b16 %v2392, %v2388
    %v3613 = vpack.c.b16 %v2397, %v2393
    %v3614 = vpack.c.b16 %v2398, %v2394
    %v3615 = vpack.c.b16 %v2399, %v2395
    %v3616 = vpack.c.b16 %v2400, %v2396
    %v3617 = vpack.c.b16 %v2405, %v2401
    %v3618 = vpack.c.b16 %v2406, %v2402
    %v3619 = vpack.c.b16 %v2407, %v2403
    %v3620 = vpack.c.b16 %v2408, %v2404
    %v3621 = vpack.c.b16 %v2413, %v2409
    %v3622 = vpack.c.b16 %v2414, %v2410
    %v3623 = vpack.c.b16 %v2415, %v2411
    %v3624 = vpack.c.b16 %v2416, %v2412
    %v3625 = vpack.c.b16 %v2421, %v2417
    %v3626 = vpack.c.b16 %v2422, %v2418
    %v3627 = vpack.c.b16 %v2423, %v2419
    %v3628 = vpack.c.b16 %v2424, %v2420
    %v3629 = vpack.c.b16 %v2429, %v2425
    %v3630 = vpack.c.b16 %v2430, %v2426
    %v3631 = vpack.c.b16 %v2431, %v2427
    %v3632 = vpack.c.b16 %v2432, %v2428
    %v3633 = vpack.c.b16 %v2437, %v2433
    %v3634 = vpack.c.b16 %v2438, %v2434
    %v3635 = vpack.c.b16 %v2439, %v2435
    %v3636 = vpack.c.b16 %v2440, %v2436
    %v3637 = vpack.c.b16 %v2445, %v2441
    %v3638 = vpack.c.b16 %v2446, %v2442
    %v3639 = vpack.c.b16 %v2447, %v2443
    %v3640 = vpack.c.b16 %v2448, %v2444
    %v3641 = vpack.c.b16 %v2453, %v2449
    %v3642 = vpack.c.b16 %v2454, %v2450
    %v3643 = vpack.c.b16 %v2455, %v2451
    %v3644 = vpack.c.b16 %v2456, %v2452
    %v3645 = vpack.c.b16 %v2461, %v2457
    %v3646 = vpack.c.b16 %v2462, %v2458
    %v3647 = vpack.c.b16 %v2463, %v2459
    %v3648 = vpack.c.b16 %v2464, %v2460
    %v3649 = vpack.c.b16 %v2469, %v2465
    %v3650 = vpack.c.b16 %v2470, %v2466
    %v3651 = vpack.c.b16 %v2471, %v2467
    %v3652 = vpack.c.b16 %v2472, %v2468
    %v3653 = vpack.c.b16 %v2477, %v2473
    %v3654 = vpack.c.b16 %v2478, %v2474
    %v3655 = vpack.c.b16 %v2479, %v2475
    %v3656 = vpack.c.b16 %v2480, %v2476
    %v3657 = vpack.c.b16 %v2485, %v2481
    %v3658 = vpack.c.b16 %v2486, %v2482
    %v3659 = vpack.c.b16 %v2487, %v2483
    %v3660 = vpack.c.b16 %v2488, %v2484
    %v3661 = vpack.c.b16 %v2493, %v2489
    %v3662 = vpack.c.b16 %v2494, %v2490
    %v3663 = vpack.c.b16 %v2495, %v2491
    %v3664 = vpack.c.b16 %v2496, %v2492
    %v3665 = vpack.c.b16 %v2501, %v2497
    %v3666 = vpack.c.b16 %v2502, %v2498
    %v3667 = vpack.c.b16 %v2503, %v2499
    %v3668 = vpack.c.b16 %v2504, %v2500
    %v3669 = vpack.c.b16 %v2509, %v2505
    %v3670 = vpack.c.b16 %v2510, %v2506
    %v3671 = vpack.c.b16 %v2511, %v2507
    %v3672 = vpack.c.b16 %v2512, %v2508
    %v3673 = vpack.c.b16 %v2517, %v2513
    %v3674 = vpack.c.b16 %v2518, %v2514
    %v3675 = vpack.c.b16 %v2519, %v2515
    %v3676 = vpack.c.b16 %v2520, %v2516
    %v3677 = vpack.c.b16 %v2525, %v2521
    %v3678 = vpack.c.b16 %v2526, %v2522
    %v3679 = vpack.c.b16 %v2527, %v2523
    %v3680 = vpack.c.b16 %v2528, %v2524
    %v3681 = vpack.c.b16 %v2533, %v2529
    %v3682 = vpack.c.b16 %v2534, %v2530
    %v3683 = vpack.c.b16 %v2535, %v2531
    %v3684 = vpack.c.b16 %v2536, %v2532
    %v3685 = vpack.c.b16 %v2541, %v2537
    %v3686 = vpack.c.b16 %v2542, %v2538
    %v3687 = vpack.c.b16 %v2543, %v2539
    %v3688 = vpack.c.b16 %v2544, %v2540
    %v3689 = vpack.c.b16 %v2549, %v2545
    %v3690 = vpack.c.b16 %v2550, %v2546
    %v3691 = vpack.c.b16 %v2551, %v2547
    %v3692 = vpack.c.b16 %v2552, %v2548
    %v3693 = vpack.c.b16 %v2557, %v2553
    %v3694 = vpack.c.b16 %v2558, %v2554
    %v3695 = vpack.c.b16 %v2559, %v2555
    %v3696 = vpack.c.b16 %v2560, %v2556
    %v3697 = vpack.c.b16 %v2565, %v2561
    %v3698 = vpack.c.b16 %v2566, %v2562
    %v3699 = vpack.c.b16 %v2567, %v2563
    %v3700 = vpack.c.b16 %v2568, %v2564
    %v3701 = vpack.c.b16 %v2573, %v2569
    %v3702 = vpack.c.b16 %v2574, %v2570
    %v3703 = vpack.c.b16 %v2575, %v2571
    %v3704 = vpack.c.b16 %v2576, %v2572
    %v3705 = vpack.c.b16 %v2581, %v2577
    %v3706 = vpack.c.b16 %v2582, %v2578
    %v3707 = vpack.c.b16 %v2583, %v2579
    %v3708 = vpack.c.b16 %v2584, %v2580
    %v3709 = vpack.c.b16 %v2589, %v2585
    %v3710 = vpack.c.b16 %v2590, %v2586
    %v3711 = vpack.c.b16 %v2591, %v2587
    %v3712 = vpack.c.b16 %v2592, %v2588
    %v3713 = vpack.c.b16 %v2597, %v2593
    %v3714 = vpack.c.b16 %v2598, %v2594
    %v3715 = vpack.c.b16 %v2599, %v2595
    %v3716 = vpack.c.b16 %v2600, %v2596
    %v3717 = vpack.c.b16 %v2605, %v2601
    %v3718 = vpack.c.b16 %v2606, %v2602
    %v3719 = vpack.c.b16 %v2607, %v2603
    %v3720 = vpack.c.b16 %v2608, %v2604
    %v3721 = vpack.c.b16 %v2613, %v2609
    %v3722 = vpack.c.b16 %v2614, %v2610
    %v3723 = vpack.c.b16 %v2615, %v2611
    %v3724 = vpack.c.b16 %v2616, %v2612
    %v3725 = vpack.c.b16 %v2621, %v2617
    %v3726 = vpack.c.b16 %v2622, %v2618
    %v3727 = vpack.c.b16 %v2623, %v2619
    %v3728 = vpack.c.b16 %v2624, %v2620
    %v3729 = vpack.c.b16 %v2629, %v2625
    %v3730 = vpack.c.b16 %v2630, %v2626
    %v3731 = vpack.c.b16 %v2631, %v2627
    %v3732 = vpack.c.b16 %v2632, %v2628
    %v3733 = vpack.c.b16 %v2637, %v2633
    %v3734 = vpack.c.b16 %v2638, %v2634
    %v3735 = vpack.c.b16 %v2639, %v2635
    %v3736 = vpack.c.b16 %v2640, %v2636
    %v3737 = vpack.c.b16 %v2645, %v2641
    %v3738 = vpack.c.b16 %v2646, %v2642
    %v3739 = vpack.c.b16 %v2647, %v2643
    %v3740 = vpack.c.b16 %v2648, %v2644
    %v3741 = vpack.c.b16 %v2653, %v2649
    %v3742 = vpack.c.b16 %v2654, %v2650
    %v3743 = vpack.c.b16 %v2655, %v2651
    %v3744 = vpack.c.b16 %v2656, %v2652
    %v3745 = vpack.c.b16 %v2661, %v2657
    %v3746 = vpack.c.b16 %v2662, %v2658
    %v3747 = vpack.c.b16 %v2663, %v2659
    %v3748 = vpack.c.b16 %v2664, %v2660
    %v3749 = vpack.c.b16 %v2669, %v2665
    %v3750 = vpack.c.b16 %v2670, %v2666
    %v3751 = vpack.c.b16 %v2671, %v2667
    %v3752 = vpack.c.b16 %v2672, %v2668
    %v3753 = vpack.c.b16 %v2677, %v2673
    %v3754 = vpack.c.b16 %v2678, %v2674
    %v3755 = vpack.c.b16 %v2679, %v2675
    %v3756 = vpack.c.b16 %v2680, %v2676
    %v3757 = vpack.c.b16 %v2685, %v2681
    %v3758 = vpack.c.b16 %v2686, %v2682
    %v3759 = vpack.c.b16 %v2687, %v2683
    %v3760 = vpack.c.b16 %v2688, %v2684
    %v3761 = vpack.c.b16 %v2693, %v2689
    %v3762 = vpack.c.b16 %v2694, %v2690
    %v3763 = vpack.c.b16 %v2695, %v2691
    %v3764 = vpack.c.b16 %v2696, %v2692
    %v3765 = vpack.c.b16 %v2701, %v2697
    %v3766 = vpack.c.b16 %v2702, %v2698
    %v3767 = vpack.c.b16 %v2703, %v2699
    %v3768 = vpack.c.b16 %v2704, %v2700
    %v3769 = vpack.c.b16 %v2709, %v2705
    %v3770 = vpack.c.b16 %v2710, %v2706
    %v3771 = vpack.c.b16 %v2711, %v2707
    %v3772 = vpack.c.b16 %v2712, %v2708
    %v3773 = vpack.c.b16 %v2717, %v2713
    %v3774 = vpack.c.b16 %v2718, %v2714
    %v3775 = vpack.c.b16 %v2719, %v2715
    %v3776 = vpack.c.b16 %v2720, %v2716
    %v3777 = vpack.c.b16 %v2725, %v2721
    %v3778 = vpack.c.b16 %v2726, %v2722
    %v3779 = vpack.c.b16 %v2727, %v2723
    %v3780 = vpack.c.b16 %v2728, %v2724
    %v3781 = vpack.c.b16 %v2733, %v2729
    %v3782 = vpack.c.b16 %v2734, %v2730
    %v3783 = vpack.c.b16 %v2735, %v2731
    %v3784 = vpack.c.b16 %v2736, %v2732
    %v3785 = vpack.c.b16 %v2741, %v2737
    %v3786 = vpack.c.b16 %v2742, %v2738
    %v3787 = vpack.c.b16 %v2743, %v2739
    %v3788 = vpack.c.b16 %v2744, %v2740
    %v3789 = vpack.c.b16 %v2749, %v2745
    %v3790 = vpack.c.b16 %v2750, %v2746
    %v3791 = vpack.c.b16 %v2751, %v2747
    %v3792 = vpack.c.b16 %v2752, %v2748
    %v3793 = vpack.c.b16 %v2757, %v2753
    %v3794 = vpack.c.b16 %v2758, %v2754
    %v3795 = vpack.c.b16 %v2759, %v2755
    %v3796 = vpack.c.b16 %v2760, %v2756
    %v3797 = vpack.c.b16 %v2765, %v2761
    %v3798 = vpack.c.b16 %v2766, %v2762
    %v3799 = vpack.c.b16 %v2767, %v2763
    %v3800 = vpack.c.b16 %v2768, %v2764
    %v3801 = vpack.c.b16 %v2773, %v2769
    %v3802 = vpack.c.b16 %v2774, %v2770
    %v3803 = vpack.c.b16 %v2775, %v2771
    %v3804 = vpack.c.b16 %v2776, %v2772
    %v3805 = vpack.c.b16 %v2781, %v2777
    %v3806 = vpack.c.b16 %v2782, %v2778
    %v3807 = vpack.c.b16 %v2783, %v2779
    %v3808 = vpack.c.b16 %v2784, %v2780
    %v3809 = vpack.c.b16 %v2789, %v2785
    %v3810 = vpack.c.b16 %v2790, %v2786
    %v3811 = vpack.c.b16 %v2791, %v2787
    %v3812 = vpack.c.b16 %v2792, %v2788
    %v3813 = vpack.c.b16 %v2797, %v2793
    %v3814 = vpack.c.b16 %v2798, %v2794
    %v3815 = vpack.c.b16 %v2799, %v2795
    %v3816 = vpack.c.b16 %v2800, %v2796
    %v3817 = vpack.c.b16 %v2805, %v2801
    %v3818 = vpack.c.b16 %v2806, %v2802
    %v3819 = vpack.c.b16 %v2807, %v2803
    %v3820 = vpack.c.b16 %v2808, %v2804
    %v3821 = vpack.c.b16 %v2813, %v2809
    %v3822 = vpack.c.b16 %v2814, %v2810
    %v3823 = vpack.c.b16 %v2815, %v2811
    %v3824 = vpack.c.b16 %v2816, %v2812
    %v3825 = vpack.c.b16 %v2821, %v2817
    %v3826 = vpack.c.b16 %v2822, %v2818
    %v3827 = vpack.c.b16 %v2823, %v2819
    %v3828 = vpack.c.b16 %v2824, %v2820
    %v3829 = vpack.c.b16 %v2829, %v2825
    %v3830 = vpack.c.b16 %v2830, %v2826
    %v3831 = vpack.c.b16 %v2831, %v2827
    %v3832 = vpack.c.b16 %v2832, %v2828
    %v3833 = vpack.c.b16 %v2837, %v2833
    %v3834 = vpack.c.b16 %v2838, %v2834
    %v3835 = vpack.c.b16 %v2839, %v2835
    %v3836 = vpack.c.b16 %v2840, %v2836
    %v3837 = vpack.c.b16 %v2845, %v2841
    %v3838 = vpack.c.b16 %v2846, %v2842
    %v3839 = vpack.c.b16 %v2847, %v2843
    %v3840 = vpack.c.b16 %v2848, %v2844
    %v3841 = vpack.c.b16 %v2853, %v2849
    %v3842 = vpack.c.b16 %v2854, %v2850
    %v3843 = vpack.c.b16 %v2855, %v2851
    %v3844 = vpack.c.b16 %v2856, %v2852
    %v3845 = vpack.c.b16 %v2861, %v2857
    %v3846 = vpack.c.b16 %v2862, %v2858
    %v3847 = vpack.c.b16 %v2863, %v2859
    %v3848 = vpack.c.b16 %v2864, %v2860
    %v3849 = vpack.c.b16 %v2869, %v2865
    %v3850 = vpack.c.b16 %v2870, %v2866
    %v3851 = vpack.c.b16 %v2871, %v2867
    %v3852 = vpack.c.b16 %v2872, %v2868
    %v3853 = vpack.c.b16 %v2877, %v2873
    %v3854 = vpack.c.b16 %v2878, %v2874
    %v3855 = vpack.c.b16 %v2879, %v2875
    %v3856 = vpack.c.b16 %v2880, %v2876
    %v3857 = vpack.c.b16 %v2885, %v2881
    %v3858 = vpack.c.b16 %v2886, %v2882
    %v3859 = vpack.c.b16 %v2887, %v2883
    %v3860 = vpack.c.b16 %v2888, %v2884
    %v3861 = vpack.c.b16 %v2893, %v2889
    %v3862 = vpack.c.b16 %v2894, %v2890
    %v3863 = vpack.c.b16 %v2895, %v2891
    %v3864 = vpack.c.b16 %v2896, %v2892
    %v3865 = vpack.c.b16 %v2901, %v2897
    %v3866 = vpack.c.b16 %v2902, %v2898
    %v3867 = vpack.c.b16 %v2903, %v2899
    %v3868 = vpack.c.b16 %v2904, %v2900
    %v3869 = vpack.c.b16 %v2909, %v2905
    %v3870 = vpack.c.b16 %v2910, %v2906
    %v3871 = vpack.c.b16 %v2911, %v2907
    %v3872 = vpack.c.b16 %v2912, %v2908
    %v3873 = vpack.c.b16 %v2917, %v2913
    %v3874 = vpack.c.b16 %v2918, %v2914
    %v3875 = vpack.c.b16 %v2919, %v2915
    %v3876 = vpack.c.b16 %v2920, %v2916
    %v3877 = vpack.c.b16 %v2925, %v2921
    %v3878 = vpack.c.b16 %v2926, %v2922
    %v3879 = vpack.c.b16 %v2927, %v2923
    %v3880 = vpack.c.b16 %v2928, %v2924
    %v3881 = vpack.c.b16 %v2933, %v2929
    %v3882 = vpack.c.b16 %v2934, %v2930
    %v3883 = vpack.c.b16 %v2935, %v2931
    %v3884 = vpack.c.b16 %v2936, %v2932
    %v3885 = vpack.c.b16 %v2941, %v2937
    %v3886 = vpack.c.b16 %v2942, %v2938
    %v3887 = vpack.c.b16 %v2943, %v2939
    %v3888 = vpack.c.b16 %v2944, %v2940
    %v3889 = vpack.c.b16 %v2949, %v2945
    %v3890 = vpack.c.b16 %v2950, %v2946
    %v3891 = vpack.c.b16 %v2951, %v2947
    %v3892 = vpack.c.b16 %v2952, %v2948
    %v3893 = vpack.c.b16 %v2957, %v2953
    %v3894 = vpack.c.b16 %v2958, %v2954
    %v3895 = vpack.c.b16 %v2959, %v2955
    %v3896 = vpack.c.b16 %v2960, %v2956
    %v3897 = vpack.c.b16 %v2965, %v2961
    %v3898 = vpack.c.b16 %v2966, %v2962
    %v3899 = vpack.c.b16 %v2967, %v2963
    %v3900 = vpack.c.b16 %v2968, %v2964
    %v3901 = vpack.c.b16 %v2973, %v2969
    %v3902 = vpack.c.b16 %v2974, %v2970
    %v3903 = vpack.c.b16 %v2975, %v2971
    %v3904 = vpack.c.b16 %v2976, %v2972
    %v3905 = vpack.c.b16 %v2981, %v2977
    %v3906 = vpack.c.b16 %v2982, %v2978
    %v3907 = vpack.c.b16 %v2983, %v2979
    %v3908 = vpack.c.b16 %v2984, %v2980
    %v3909 = vpack.c.b16 %v2989, %v2985
    %v3910 = vpack.c.b16 %v2990, %v2986
    %v3911 = vpack.c.b16 %v2991, %v2987
    %v3912 = vpack.c.b16 %v2992, %v2988
    %v3913 = vpack.c.b16 %v2997, %v2993
    %v3914 = vpack.c.b16 %v2998, %v2994
    %v3915 = vpack.c.b16 %v2999, %v2995
    %v3916 = vpack.c.b16 %v3000, %v2996
    %v3917 = vpack.c.b16 %v3005, %v3001
    %v3918 = vpack.c.b16 %v3006, %v3002
    %v3919 = vpack.c.b16 %v3007, %v3003
    %v3920 = vpack.c.b16 %v3008, %v3004
    %v3921 = vpack.c.b16 %v3013, %v3009
    %v3922 = vpack.c.b16 %v3014, %v3010
    %v3923 = vpack.c.b16 %v3015, %v3011
    %v3924 = vpack.c.b16 %v3016, %v3012
    %v3925 = vpack.c.b16 %v3021, %v3017
    %v3926 = vpack.c.b16 %v3022, %v3018
    %v3927 = vpack.c.b16 %v3023, %v3019
    %v3928 = vpack.c.b16 %v3024, %v3020
    %v3929 = vpack.c.b16 %v3029, %v3025
    %v3930 = vpack.c.b16 %v3030, %v3026
    %v3931 = vpack.c.b16 %v3031, %v3027
    %v3932 = vpack.c.b16 %v3032, %v3028
    %v3933 = vpack.c.b16 %v3037, %v3033
    %v3934 = vpack.c.b16 %v3038, %v3034
    %v3935 = vpack.c.b16 %v3039, %v3035
    %v3936 = vpack.c.b16 %v3040, %v3036
    %v3937 = vpack.c.b16 %v3045, %v3041
    %v3938 = vpack.c.b16 %v3046, %v3042
    %v3939 = vpack.c.b16 %v3047, %v3043
    %v3940 = vpack.c.b16 %v3048, %v3044
    %v3941 = vpack.c.b16 %v3053, %v3049
    %v3942 = vpack.c.b16 %v3054, %v3050
    %v3943 = vpack.c.b16 %v3055, %v3051
    %v3944 = vpack.c.b16 %v3056, %v3052
    %v3945 = vpack.c.b16 %v3061, %v3057
    %v3946 = vpack.c.b16 %v3062, %v3058
    %v3947 = vpack.c.b16 %v3063, %v3059
    %v3948 = vpack.c.b16 %v3064, %v3060
    %v3949 = vpack.c.b16 %v3069, %v3065
    %v3950 = vpack.c.b16 %v3070, %v3066
    %v3951 = vpack.c.b16 %v3071, %v3067
    %v3952 = vpack.c.b16 %v3072, %v3068
    %v3953 = vpack.c.b16 %v3077, %v3073
    %v3954 = vpack.c.b16 %v3078, %v3074
    %v3955 = vpack.c.b16 %v3079, %v3075
    %v3956 = vpack.c.b16 %v3080, %v3076
    %v3957 = vpack.c.b16 %v3085, %v3081
    %v3958 = vpack.c.b16 %v3086, %v3082
    %v3959 = vpack.c.b16 %v3087, %v3083
    %v3960 = vpack.c.b16 %v3088, %v3084
    %v3961 = vpack.c.b16 %v3093, %v3089
    %v3962 = vpack.c.b16 %v3094, %v3090
    %v3963 = vpack.c.b16 %v3095, %v3091
    %v3964 = vpack.c.b16 %v3096, %v3092
    %v3965 = vpack.c.b16 %v3101, %v3097
    %v3966 = vpack.c.b16 %v3102, %v3098
    %v3967 = vpack.c.b16 %v3103, %v3099
    %v3968 = vpack.c.b16 %v3104, %v3100
    %v3969 = vpack.c.b16 %v3109, %v3105
    %v3970 = vpack.c.b16 %v3110, %v3106
    %v3971 = vpack.c.b16 %v3111, %v3107
    %v3972 = vpack.c.b16 %v3112, %v3108
    %v3973 = vpack.c.b16 %v3117, %v3113
    %v3974 = vpack.c.b16 %v3118, %v3114
    %v3975 = vpack.c.b16 %v3119, %v3115
    %v3976 = vpack.c.b16 %v3120, %v3116
    %v3977 = vpack.c.b16 %v3125, %v3121
    %v3978 = vpack.c.b16 %v3126, %v3122
    %v3979 = vpack.c.b16 %v3127, %v3123
    %v3980 = vpack.c.b16 %v3128, %v3124
    %v3981 = vpack.c.b16 %v3133, %v3129
    %v3982 = vpack.c.b16 %v3134, %v3130
    %v3983 = vpack.c.b16 %v3135, %v3131
    %v3984 = vpack.c.b16 %v3136, %v3132
    %v3985 = vpack.c.b16 %v3141, %v3137
    %v3986 = vpack.c.b16 %v3142, %v3138
    %v3987 = vpack.c.b16 %v3143, %v3139
    %v3988 = vpack.c.b16 %v3144, %v3140
    %v3989 = vpack.c.b16 %v3149, %v3145
    %v3990 = vpack.c.b16 %v3150, %v3146
    %v3991 = vpack.c.b16 %v3151, %v3147
    %v3992 = vpack.c.b16 %v3152, %v3148
    %v3993 = vpack.c.b16 %v3157, %v3153
    %v3994 = vpack.c.b16 %v3158, %v3154
    %v3995 = vpack.c.b16 %v3159, %v3155
    %v3996 = vpack.c.b16 %v3160, %v3156
    %v3997 = vpack.c.b16 %v3165, %v3161
    %v3998 = vpack.c.b16 %v3166, %v3162
    %v3999 = vpack.c.b16 %v3167, %v3163
    %v4000 = vpack.c.b16 %v3168, %v3164
    %v4001 = vpack.c.b16 %v3173, %v3169
    %v4002 = vpack.c.b16 %v3174, %v3170
    %v4003 = vpack.c.b16 %v3175, %v3171
    %v4004 = vpack.c.b16 %v3176, %v3172
    %v4005 = vpack.c.b16 %v3181, %v3177
    %v4006 = vpack.c.b16 %v3182, %v3178
    %v4007 = vpack.c.b16 %v3183, %v3179
    %v4008 = vpack.c.b16 %v3184, %v3180
    %v4009 = vpack.c.b16 %v3189, %v3185
    %v4010 = vpack.c.b16 %v3190, %v3186
    %v4011 = vpack.c.b16 %v3191, %v3187
    %v4012 = vpack.c.b16 %v3192, %v3188
    %v4013 = vpack.c.b16 %v3197, %v3193
    %v4014 = vpack.c.b16 %v3198, %v3194
    %v4015 = vpack.c.b16 %v3199, %v3195
    %v4016 = vpack.c.b16 %v3200, %v3196
    %v4017 = vpack.c.b16 %v3205, %v3201
    %v4018 = vpack.c.b16 %v3206, %v3202
    %v4019 = vpack.c.b16 %v3207, %v3203
    %v4020 = vpack.c.b16 %v3208, %v3204
    %v4021 = vpack.c.b16 %v3213, %v3209
    %v4022 = vpack.c.b16 %v3214, %v3210
    %v4023 = vpack.c.b16 %v3215, %v3211
    %v4024 = vpack.c.b16 %v3216, %v3212
    %v4025 = vpack.c.b16 %v3221, %v3217
    %v4026 = vpack.c.b16 %v3222, %v3218
    %v4027 = vpack.c.b16 %v3223, %v3219
    %v4028 = vpack.c.b16 %v3224, %v3220
    %v4029 = vpack.c.b16 %v3229, %v3225
    %v4030 = vpack.c.b16 %v3230, %v3226
    %v4031 = vpack.c.b16 %v3231, %v3227
    %v4032 = vpack.c.b16 %v3232, %v3228
    %v4033 = vpack.c.b16 %v3237, %v3233
    %v4034 = vpack.c.b16 %v3238, %v3234
    %v4035 = vpack.c.b16 %v3239, %v3235
    %v4036 = vpack.c.b16 %v3240, %v3236
    %v4037 = vpack.c.b16 %v3245, %v3241
    %v4038 = vpack.c.b16 %v3246, %v3242
    %v4039 = vpack.c.b16 %v3247, %v3243
    %v4040 = vpack.c.b16 %v3248, %v3244
    %v4041 = vpack.c.b16 %v3253, %v3249
    %v4042 = vpack.c.b16 %v3254, %v3250
    %v4043 = vpack.c.b16 %v3255, %v3251
    %v4044 = vpack.c.b16 %v3256, %v3252
    %v4045 = vpack.c.b16 %v3261, %v3257
    %v4046 = vpack.c.b16 %v3262, %v3258
    %v4047 = vpack.c.b16 %v3263, %v3259
    %v4048 = vpack.c.b16 %v3264, %v3260
    %vm4833 = vcmask 523264
    %v4835 = vsel %vm4833, %v118, 0
    %4837 = vmatpush.bf16.msra.mxu0 %v3293
    %4838 = vmatpush.bf16.msra.mxu0 %v3289
    %4839 = vmatpush.bf16.msra.mxu0 %v3285
    %4840 = vmatpush.bf16.msra.mxu0 %v3281
    %4841 = vmatpush.bf16.msra.mxu0 %v3277
    %4842 = vmatpush.bf16.msra.mxu0 %v3273
    %4843 = vmatpush.bf16.msra.mxu0 %v3269
    %4844 = vmatpush.bf16.msra.mxu0 %v3265
    %4845 = vmatmul.bf16.gmra.mxu0 %v94
    %v4846 = vpop.f32.mrf.mxu0
    %v4847 = vadd.f32 %v905, %v4846
    %v4848 = vpop.f32.mrf.mxu0
    %4849 = vdwg.mxu0
    %4850 = vmatpush.bf16.msra.mxu0 %v3325
    %4851 = vmatpush.bf16.msra.mxu0 %v3321
    %4852 = vmatpush.bf16.msra.mxu0 %v3317
    %4853 = vmatpush.bf16.msra.mxu0 %v3313
    %4854 = vmatpush.bf16.msra.mxu0 %v3309
    %4855 = vmatpush.bf16.msra.mxu0 %v3305
    %4856 = vmatpush.bf16.msra.mxu0 %v3301
    %4857 = vmatpush.bf16.msra.mxu0 %v3297
    %4858 = vmatmul.bf16.gmra.mxu0 %v95
    %v4859 = vpop.f32.mrf.mxu0
    %v4860 = vadd.f32 %v4847, %v4859
    %v4861 = vpop.f32.mrf.mxu0
    %4862 = vdwg.mxu0
    %4863 = vmatpush.bf16.msra.mxu0 %v3357
    %4864 = vmatpush.bf16.msra.mxu0 %v3353
    %4865 = vmatpush.bf16.msra.mxu0 %v3349
    %4866 = vmatpush.bf16.msra.mxu0 %v3345
    %4867 = vmatpush.bf16.msra.mxu0 %v3341
    %4868 = vmatpush.bf16.msra.mxu0 %v3337
    %4869 = vmatpush.bf16.msra.mxu0 %v3333
    %4870 = vmatpush.bf16.msra.mxu0 %v3329
    %4871 = vmatmul.bf16.gmra.mxu0 %v96
    %v4872 = vpop.f32.mrf.mxu0
    %v4873 = vadd.f32 %v4860, %v4872
    %v4874 = vpop.f32.mrf.mxu0
    %4875 = vdwg.mxu0
    %4876 = vmatpush.bf16.msra.mxu0 %v3389
    %4877 = vmatpush.bf16.msra.mxu0 %v3385
    %4878 = vmatpush.bf16.msra.mxu0 %v3381
    %4879 = vmatpush.bf16.msra.mxu0 %v3377
    %4880 = vmatpush.bf16.msra.mxu0 %v3373
    %4881 = vmatpush.bf16.msra.mxu0 %v3369
    %4882 = vmatpush.bf16.msra.mxu0 %v3365
    %4883 = vmatpush.bf16.msra.mxu0 %v3361
    %4884 = vmatmul.bf16.gmra.mxu0 %v97
    %v4885 = vpop.f32.mrf.mxu0
    %v4886 = vadd.f32 %v4873, %v4885
    %v4887 = vpop.f32.mrf.mxu0
    %4888 = vdwg.mxu0
    %4889 = vmatpush.bf16.msra.mxu0 %v3421
    %4890 = vmatpush.bf16.msra.mxu0 %v3417
    %4891 = vmatpush.bf16.msra.mxu0 %v3413
    %4892 = vmatpush.bf16.msra.mxu0 %v3409
    %4893 = vmatpush.bf16.msra.mxu0 %v3405
    %4894 = vmatpush.bf16.msra.mxu0 %v3401
    %4895 = vmatpush.bf16.msra.mxu0 %v3397
    %4896 = vmatpush.bf16.msra.mxu0 %v3393
    %4897 = vmatmul.bf16.gmra.mxu0 %v98
    %v4898 = vpop.f32.mrf.mxu0
    %v4899 = vadd.f32 %v4886, %v4898
    %v4900 = vpop.f32.mrf.mxu0
    %4901 = vdwg.mxu0
    %4902 = vmatpush.bf16.msra.mxu0 %v3453
    %4903 = vmatpush.bf16.msra.mxu0 %v3449
    %4904 = vmatpush.bf16.msra.mxu0 %v3445
    %4905 = vmatpush.bf16.msra.mxu0 %v3441
    %4906 = vmatpush.bf16.msra.mxu0 %v3437
    %4907 = vmatpush.bf16.msra.mxu0 %v3433
    %4908 = vmatpush.bf16.msra.mxu0 %v3429
    %4909 = vmatpush.bf16.msra.mxu0 %v3425
    %4910 = vmatmul.bf16.gmra.mxu0 %v99
    %v4911 = vpop.f32.mrf.mxu0
    %v4912 = vadd.f32 %v4899, %v4911
    %v4913 = vpop.f32.mrf.mxu0
    %4914 = vdwg.mxu0
    %4915 = vmatpush.bf16.msra.mxu0 %v3485
    %4916 = vmatpush.bf16.msra.mxu0 %v3481
    %4917 = vmatpush.bf16.msra.mxu0 %v3477
    %4918 = vmatpush.bf16.msra.mxu0 %v3473
    %4919 = vmatpush.bf16.msra.mxu0 %v3469
    %4920 = vmatpush.bf16.msra.mxu0 %v3465
    %4921 = vmatpush.bf16.msra.mxu0 %v3461
    %4922 = vmatpush.bf16.msra.mxu0 %v3457
    %4923 = vmatmul.bf16.gmra.mxu0 %v100
    %v4924 = vpop.f32.mrf.mxu0
    %v4925 = vadd.f32 %v4912, %v4924
    %v4926 = vpop.f32.mrf.mxu0
    %4927 = vdwg.mxu0
    %4928 = vmatpush.bf16.msra.mxu0 %v3517
    %4929 = vmatpush.bf16.msra.mxu0 %v3513
    %4930 = vmatpush.bf16.msra.mxu0 %v3509
    %4931 = vmatpush.bf16.msra.mxu0 %v3505
    %4932 = vmatpush.bf16.msra.mxu0 %v3501
    %4933 = vmatpush.bf16.msra.mxu0 %v3497
    %4934 = vmatpush.bf16.msra.mxu0 %v3493
    %4935 = vmatpush.bf16.msra.mxu0 %v3489
    %4936 = vmatmul.bf16.gmra.mxu0 %v101
    %v4937 = vpop.f32.mrf.mxu0
    %v4938 = vadd.f32 %v4925, %v4937
    %v4939 = vpop.f32.mrf.mxu0
    %4940 = vdwg.mxu0
    %4941 = vmatpush.bf16.msra.mxu0 %v3549
    %4942 = vmatpush.bf16.msra.mxu0 %v3545
    %4943 = vmatpush.bf16.msra.mxu0 %v3541
    %4944 = vmatpush.bf16.msra.mxu0 %v3537
    %4945 = vmatpush.bf16.msra.mxu0 %v3533
    %4946 = vmatpush.bf16.msra.mxu0 %v3529
    %4947 = vmatpush.bf16.msra.mxu0 %v3525
    %4948 = vmatpush.bf16.msra.mxu0 %v3521
    %4949 = vmatmul.bf16.gmra.mxu0 %v102
    %v4950 = vpop.f32.mrf.mxu0
    %v4951 = vadd.f32 %v4938, %v4950
    %v4952 = vpop.f32.mrf.mxu0
    %4953 = vdwg.mxu0
    %4954 = vmatpush.bf16.msra.mxu0 %v3581
    %4955 = vmatpush.bf16.msra.mxu0 %v3577
    %4956 = vmatpush.bf16.msra.mxu0 %v3573
    %4957 = vmatpush.bf16.msra.mxu0 %v3569
    %4958 = vmatpush.bf16.msra.mxu0 %v3565
    %4959 = vmatpush.bf16.msra.mxu0 %v3561
    %4960 = vmatpush.bf16.msra.mxu0 %v3557
    %4961 = vmatpush.bf16.msra.mxu0 %v3553
    %4962 = vmatmul.bf16.gmra.mxu0 %v103
    %v4963 = vpop.f32.mrf.mxu0
    %v4964 = vadd.f32 %v4951, %v4963
    %v4965 = vpop.f32.mrf.mxu0
    %4966 = vdwg.mxu0
    %4967 = vmatpush.bf16.msra.mxu0 %v3613
    %4968 = vmatpush.bf16.msra.mxu0 %v3609
    %4969 = vmatpush.bf16.msra.mxu0 %v3605
    %4970 = vmatpush.bf16.msra.mxu0 %v3601
    %4971 = vmatpush.bf16.msra.mxu0 %v3597
    %4972 = vmatpush.bf16.msra.mxu0 %v3593
    %4973 = vmatpush.bf16.msra.mxu0 %v3589
    %4974 = vmatpush.bf16.msra.mxu0 %v3585
    %4975 = vmatmul.bf16.gmra.mxu0 %v104
    %v4976 = vpop.f32.mrf.mxu0
    %v4977 = vadd.f32 %v4964, %v4976
    %v4978 = vpop.f32.mrf.mxu0
    %4979 = vdwg.mxu0
    %4980 = vmatpush.bf16.msra.mxu0 %v3645
    %4981 = vmatpush.bf16.msra.mxu0 %v3641
    %4982 = vmatpush.bf16.msra.mxu0 %v3637
    %4983 = vmatpush.bf16.msra.mxu0 %v3633
    %4984 = vmatpush.bf16.msra.mxu0 %v3629
    %4985 = vmatpush.bf16.msra.mxu0 %v3625
    %4986 = vmatpush.bf16.msra.mxu0 %v3621
    %4987 = vmatpush.bf16.msra.mxu0 %v3617
    %4988 = vmatmul.bf16.gmra.mxu0 %v105
    %v4989 = vpop.f32.mrf.mxu0
    %v4990 = vadd.f32 %v4977, %v4989
    %v4991 = vpop.f32.mrf.mxu0
    %4992 = vdwg.mxu0
    %4993 = vmatpush.bf16.msra.mxu0 %v3677
    %4994 = vmatpush.bf16.msra.mxu0 %v3673
    %4995 = vmatpush.bf16.msra.mxu0 %v3669
    %4996 = vmatpush.bf16.msra.mxu0 %v3665
    %4997 = vmatpush.bf16.msra.mxu0 %v3661
    %4998 = vmatpush.bf16.msra.mxu0 %v3657
    %4999 = vmatpush.bf16.msra.mxu0 %v3653
    %5000 = vmatpush.bf16.msra.mxu0 %v3649
    %5001 = vmatmul.bf16.gmra.mxu0 %v106
    %v5002 = vpop.f32.mrf.mxu0
    %v5003 = vadd.f32 %v4990, %v5002
    %v5004 = vpop.f32.mrf.mxu0
    %5005 = vdwg.mxu0
    %5006 = vmatpush.bf16.msra.mxu0 %v3709
    %5007 = vmatpush.bf16.msra.mxu0 %v3705
    %5008 = vmatpush.bf16.msra.mxu0 %v3701
    %5009 = vmatpush.bf16.msra.mxu0 %v3697
    %5010 = vmatpush.bf16.msra.mxu0 %v3693
    %5011 = vmatpush.bf16.msra.mxu0 %v3689
    %5012 = vmatpush.bf16.msra.mxu0 %v3685
    %5013 = vmatpush.bf16.msra.mxu0 %v3681
    %5014 = vmatmul.bf16.gmra.mxu0 %v107
    %v5015 = vpop.f32.mrf.mxu0
    %v5016 = vadd.f32 %v5003, %v5015
    %v5017 = vpop.f32.mrf.mxu0
    %5018 = vdwg.mxu0
    %5019 = vmatpush.bf16.msra.mxu0 %v3741
    %5020 = vmatpush.bf16.msra.mxu0 %v3737
    %5021 = vmatpush.bf16.msra.mxu0 %v3733
    %5022 = vmatpush.bf16.msra.mxu0 %v3729
    %5023 = vmatpush.bf16.msra.mxu0 %v3725
    %5024 = vmatpush.bf16.msra.mxu0 %v3721
    %5025 = vmatpush.bf16.msra.mxu0 %v3717
    %5026 = vmatpush.bf16.msra.mxu0 %v3713
    %5027 = vmatmul.bf16.gmra.mxu0 %v108
    %v5028 = vpop.f32.mrf.mxu0
    %v5029 = vadd.f32 %v5016, %v5028
    %v5030 = vpop.f32.mrf.mxu0
    %5031 = vdwg.mxu0
    %5032 = vmatpush.bf16.msra.mxu0 %v3773
    %5033 = vmatpush.bf16.msra.mxu0 %v3769
    %5034 = vmatpush.bf16.msra.mxu0 %v3765
    %5035 = vmatpush.bf16.msra.mxu0 %v3761
    %5036 = vmatpush.bf16.msra.mxu0 %v3757
    %5037 = vmatpush.bf16.msra.mxu0 %v3753
    %5038 = vmatpush.bf16.msra.mxu0 %v3749
    %5039 = vmatpush.bf16.msra.mxu0 %v3745
    %5040 = vmatmul.bf16.gmra.mxu0 %v109
    %v5041 = vpop.f32.mrf.mxu0
    %v5042 = vadd.f32 %v5029, %v5041
    %v5043 = vpop.f32.mrf.mxu0
    %5044 = vdwg.mxu0
    %5045 = vmatpush.bf16.msra.mxu0 %v3805
    %5046 = vmatpush.bf16.msra.mxu0 %v3801
    %5047 = vmatpush.bf16.msra.mxu0 %v3797
    %5048 = vmatpush.bf16.msra.mxu0 %v3793
    %5049 = vmatpush.bf16.msra.mxu0 %v3789
    %5050 = vmatpush.bf16.msra.mxu0 %v3785
    %5051 = vmatpush.bf16.msra.mxu0 %v3781
    %5052 = vmatpush.bf16.msra.mxu0 %v3777
    %5053 = vmatmul.bf16.gmra.mxu0 %v110
    %v5054 = vpop.f32.mrf.mxu0
    %v5055 = vadd.f32 %v5042, %v5054
    %v5056 = vpop.f32.mrf.mxu0
    %5057 = vdwg.mxu0
    %5058 = vmatpush.bf16.msra.mxu0 %v3837
    %5059 = vmatpush.bf16.msra.mxu0 %v3833
    %5060 = vmatpush.bf16.msra.mxu0 %v3829
    %5061 = vmatpush.bf16.msra.mxu0 %v3825
    %5062 = vmatpush.bf16.msra.mxu0 %v3821
    %5063 = vmatpush.bf16.msra.mxu0 %v3817
    %5064 = vmatpush.bf16.msra.mxu0 %v3813
    %5065 = vmatpush.bf16.msra.mxu0 %v3809
    %5066 = vmatmul.bf16.gmra.mxu0 %v111
    %v5067 = vpop.f32.mrf.mxu0
    %v5068 = vadd.f32 %v5055, %v5067
    %v5069 = vpop.f32.mrf.mxu0
    %5070 = vdwg.mxu0
    %5071 = vmatpush.bf16.msra.mxu0 %v3869
    %5072 = vmatpush.bf16.msra.mxu0 %v3865
    %5073 = vmatpush.bf16.msra.mxu0 %v3861
    %5074 = vmatpush.bf16.msra.mxu0 %v3857
    %5075 = vmatpush.bf16.msra.mxu0 %v3853
    %5076 = vmatpush.bf16.msra.mxu0 %v3849
    %5077 = vmatpush.bf16.msra.mxu0 %v3845
    %5078 = vmatpush.bf16.msra.mxu0 %v3841
    %5079 = vmatmul.bf16.gmra.mxu0 %v112
    %v5080 = vpop.f32.mrf.mxu0
    %v5081 = vadd.f32 %v5068, %v5080
    %v5082 = vpop.f32.mrf.mxu0
    %5083 = vdwg.mxu0
    %5084 = vmatpush.bf16.msra.mxu0 %v3901
    %5085 = vmatpush.bf16.msra.mxu0 %v3897
    %5086 = vmatpush.bf16.msra.mxu0 %v3893
    %5087 = vmatpush.bf16.msra.mxu0 %v3889
    %5088 = vmatpush.bf16.msra.mxu0 %v3885
    %5089 = vmatpush.bf16.msra.mxu0 %v3881
    %5090 = vmatpush.bf16.msra.mxu0 %v3877
    %5091 = vmatpush.bf16.msra.mxu0 %v3873
    %5092 = vmatmul.bf16.gmra.mxu0 %v113
    %v5093 = vpop.f32.mrf.mxu0
    %v5094 = vadd.f32 %v5081, %v5093
    %v5095 = vpop.f32.mrf.mxu0
    %5096 = vdwg.mxu0
    %5097 = vmatpush.bf16.msra.mxu0 %v3933
    %5098 = vmatpush.bf16.msra.mxu0 %v3929
    %5099 = vmatpush.bf16.msra.mxu0 %v3925
    %5100 = vmatpush.bf16.msra.mxu0 %v3921
    %5101 = vmatpush.bf16.msra.mxu0 %v3917
    %5102 = vmatpush.bf16.msra.mxu0 %v3913
    %5103 = vmatpush.bf16.msra.mxu0 %v3909
    %5104 = vmatpush.bf16.msra.mxu0 %v3905
    %5105 = vmatmul.bf16.gmra.mxu0 %v114
    %v5106 = vpop.f32.mrf.mxu0
    %v5107 = vadd.f32 %v5094, %v5106
    %v5108 = vpop.f32.mrf.mxu0
    %5109 = vdwg.mxu0
    %5110 = vmatpush.bf16.msra.mxu0 %v3965
    %5111 = vmatpush.bf16.msra.mxu0 %v3961
    %5112 = vmatpush.bf16.msra.mxu0 %v3957
    %5113 = vmatpush.bf16.msra.mxu0 %v3953
    %5114 = vmatpush.bf16.msra.mxu0 %v3949
    %5115 = vmatpush.bf16.msra.mxu0 %v3945
    %5116 = vmatpush.bf16.msra.mxu0 %v3941
    %5117 = vmatpush.bf16.msra.mxu0 %v3937
    %5118 = vmatmul.bf16.gmra.mxu0 %v115
    %v5119 = vpop.f32.mrf.mxu0
    %v5120 = vadd.f32 %v5107, %v5119
    %v5121 = vpop.f32.mrf.mxu0
    %5122 = vdwg.mxu0
    %5123 = vmatpush.bf16.msra.mxu0 %v3997
    %5124 = vmatpush.bf16.msra.mxu0 %v3993
    %5125 = vmatpush.bf16.msra.mxu0 %v3989
    %5126 = vmatpush.bf16.msra.mxu0 %v3985
    %5127 = vmatpush.bf16.msra.mxu0 %v3981
    %5128 = vmatpush.bf16.msra.mxu0 %v3977
    %5129 = vmatpush.bf16.msra.mxu0 %v3973
    %5130 = vmatpush.bf16.msra.mxu0 %v3969
    %5131 = vmatmul.bf16.gmra.mxu0 %v116
    %v5132 = vpop.f32.mrf.mxu0
    %v5133 = vadd.f32 %v5120, %v5132
    %v5134 = vpop.f32.mrf.mxu0
    %5135 = vdwg.mxu0
    %5136 = vmatpush.bf16.msra.mxu0 %v4029
    %5137 = vmatpush.bf16.msra.mxu0 %v4025
    %5138 = vmatpush.bf16.msra.mxu0 %v4021
    %5139 = vmatpush.bf16.msra.mxu0 %v4017
    %5140 = vmatpush.bf16.msra.mxu0 %v4013
    %5141 = vmatpush.bf16.msra.mxu0 %v4009
    %5142 = vmatpush.bf16.msra.mxu0 %v4005
    %5143 = vmatpush.bf16.msra.mxu0 %v4001
    %5144 = vmatmul.bf16.gmra.mxu0 %v117
    %v5145 = vpop.f32.mrf.mxu0
    %v5146 = vadd.f32 %v5133, %v5145
    %v5147 = vpop.f32.mrf.mxu0
    %5148 = vdwg.mxu0
    %5149 = vmatpush.bf16.msra.mxu0 0
    %5150 = vmatpush.bf16.msra.mxu0 0
    %5151 = vmatpush.bf16.msra.mxu0 0
    %5152 = vmatpush.bf16.msra.mxu0 0
    %5153 = vmatpush.bf16.msra.mxu0 %v4045
    %5154 = vmatpush.bf16.msra.mxu0 %v4041
    %5155 = vmatpush.bf16.msra.mxu0 %v4037
    %5156 = vmatpush.bf16.msra.mxu0 %v4033
    %5157 = vmatmul.bf16.gmra.mxu0 %v4835
    %v5158 = vpop.f32.mrf.mxu0
    %v5159 = vadd.f32 %v5146, %v5158
    %v5160 = vpop.f32.mrf.mxu0
    %5161 = vdwg.mxu0
    %5162 = vmatpush.bf16.msra.mxu0 %v3294
    %5163 = vmatpush.bf16.msra.mxu0 %v3290
    %5164 = vmatpush.bf16.msra.mxu0 %v3286
    %5165 = vmatpush.bf16.msra.mxu0 %v3282
    %5166 = vmatpush.bf16.msra.mxu0 %v3278
    %5167 = vmatpush.bf16.msra.mxu0 %v3274
    %5168 = vmatpush.bf16.msra.mxu0 %v3270
    %5169 = vmatpush.bf16.msra.mxu0 %v3266
    %5170 = vmatmul.bf16.gmra.mxu0 %v94
    %v5171 = vpop.f32.mrf.mxu0
    %v5172 = vadd.f32 %v906, %v5171
    %v5173 = vpop.f32.mrf.mxu0
    %5174 = vdwg.mxu0
    %5175 = vmatpush.bf16.msra.mxu0 %v3326
    %5176 = vmatpush.bf16.msra.mxu0 %v3322
    %5177 = vmatpush.bf16.msra.mxu0 %v3318
    %5178 = vmatpush.bf16.msra.mxu0 %v3314
    %5179 = vmatpush.bf16.msra.mxu0 %v3310
    %5180 = vmatpush.bf16.msra.mxu0 %v3306
    %5181 = vmatpush.bf16.msra.mxu0 %v3302
    %5182 = vmatpush.bf16.msra.mxu0 %v3298
    %5183 = vmatmul.bf16.gmra.mxu0 %v95
    %v5184 = vpop.f32.mrf.mxu0
    %v5185 = vadd.f32 %v5172, %v5184
    %v5186 = vpop.f32.mrf.mxu0
    %5187 = vdwg.mxu0
    %5188 = vmatpush.bf16.msra.mxu0 %v3358
    %5189 = vmatpush.bf16.msra.mxu0 %v3354
    %5190 = vmatpush.bf16.msra.mxu0 %v3350
    %5191 = vmatpush.bf16.msra.mxu0 %v3346
    %5192 = vmatpush.bf16.msra.mxu0 %v3342
    %5193 = vmatpush.bf16.msra.mxu0 %v3338
    %5194 = vmatpush.bf16.msra.mxu0 %v3334
    %5195 = vmatpush.bf16.msra.mxu0 %v3330
    %5196 = vmatmul.bf16.gmra.mxu0 %v96
    %v5197 = vpop.f32.mrf.mxu0
    %v5198 = vadd.f32 %v5185, %v5197
    %v5199 = vpop.f32.mrf.mxu0
    %5200 = vdwg.mxu0
    %5201 = vmatpush.bf16.msra.mxu0 %v3390
    %5202 = vmatpush.bf16.msra.mxu0 %v3386
    %5203 = vmatpush.bf16.msra.mxu0 %v3382
    %5204 = vmatpush.bf16.msra.mxu0 %v3378
    %5205 = vmatpush.bf16.msra.mxu0 %v3374
    %5206 = vmatpush.bf16.msra.mxu0 %v3370
    %5207 = vmatpush.bf16.msra.mxu0 %v3366
    %5208 = vmatpush.bf16.msra.mxu0 %v3362
    %5209 = vmatmul.bf16.gmra.mxu0 %v97
    %v5210 = vpop.f32.mrf.mxu0
    %v5211 = vadd.f32 %v5198, %v5210
    %v5212 = vpop.f32.mrf.mxu0
    %5213 = vdwg.mxu0
    %5214 = vmatpush.bf16.msra.mxu0 %v3422
    %5215 = vmatpush.bf16.msra.mxu0 %v3418
    %5216 = vmatpush.bf16.msra.mxu0 %v3414
    %5217 = vmatpush.bf16.msra.mxu0 %v3410
    %5218 = vmatpush.bf16.msra.mxu0 %v3406
    %5219 = vmatpush.bf16.msra.mxu0 %v3402
    %5220 = vmatpush.bf16.msra.mxu0 %v3398
    %5221 = vmatpush.bf16.msra.mxu0 %v3394
    %5222 = vmatmul.bf16.gmra.mxu0 %v98
    %v5223 = vpop.f32.mrf.mxu0
    %v5224 = vadd.f32 %v5211, %v5223
    %v5225 = vpop.f32.mrf.mxu0
    %5226 = vdwg.mxu0
    %5227 = vmatpush.bf16.msra.mxu0 %v3454
    %5228 = vmatpush.bf16.msra.mxu0 %v3450
    %5229 = vmatpush.bf16.msra.mxu0 %v3446
    %5230 = vmatpush.bf16.msra.mxu0 %v3442
    %5231 = vmatpush.bf16.msra.mxu0 %v3438
    %5232 = vmatpush.bf16.msra.mxu0 %v3434
    %5233 = vmatpush.bf16.msra.mxu0 %v3430
    %5234 = vmatpush.bf16.msra.mxu0 %v3426
    %5235 = vmatmul.bf16.gmra.mxu0 %v99
    %v5236 = vpop.f32.mrf.mxu0
    %v5237 = vadd.f32 %v5224, %v5236
    %v5238 = vpop.f32.mrf.mxu0
    %5239 = vdwg.mxu0
    %5240 = vmatpush.bf16.msra.mxu0 %v3486
    %5241 = vmatpush.bf16.msra.mxu0 %v3482
    %5242 = vmatpush.bf16.msra.mxu0 %v3478
    %5243 = vmatpush.bf16.msra.mxu0 %v3474
    %5244 = vmatpush.bf16.msra.mxu0 %v3470
    %5245 = vmatpush.bf16.msra.mxu0 %v3466
    %5246 = vmatpush.bf16.msra.mxu0 %v3462
    %5247 = vmatpush.bf16.msra.mxu0 %v3458
    %5248 = vmatmul.bf16.gmra.mxu0 %v100
    %v5249 = vpop.f32.mrf.mxu0
    %v5250 = vadd.f32 %v5237, %v5249
    %v5251 = vpop.f32.mrf.mxu0
    %5252 = vdwg.mxu0
    %5253 = vmatpush.bf16.msra.mxu0 %v3518
    %5254 = vmatpush.bf16.msra.mxu0 %v3514
    %5255 = vmatpush.bf16.msra.mxu0 %v3510
    %5256 = vmatpush.bf16.msra.mxu0 %v3506
    %5257 = vmatpush.bf16.msra.mxu0 %v3502
    %5258 = vmatpush.bf16.msra.mxu0 %v3498
    %5259 = vmatpush.bf16.msra.mxu0 %v3494
    %5260 = vmatpush.bf16.msra.mxu0 %v3490
    %5261 = vmatmul.bf16.gmra.mxu0 %v101
    %v5262 = vpop.f32.mrf.mxu0
    %v5263 = vadd.f32 %v5250, %v5262
    %v5264 = vpop.f32.mrf.mxu0
    %5265 = vdwg.mxu0
    %5266 = vmatpush.bf16.msra.mxu0 %v3550
    %5267 = vmatpush.bf16.msra.mxu0 %v3546
    %5268 = vmatpush.bf16.msra.mxu0 %v3542
    %5269 = vmatpush.bf16.msra.mxu0 %v3538
    %5270 = vmatpush.bf16.msra.mxu0 %v3534
    %5271 = vmatpush.bf16.msra.mxu0 %v3530
    %5272 = vmatpush.bf16.msra.mxu0 %v3526
    %5273 = vmatpush.bf16.msra.mxu0 %v3522
    %5274 = vmatmul.bf16.gmra.mxu0 %v102
    %v5275 = vpop.f32.mrf.mxu0
    %v5276 = vadd.f32 %v5263, %v5275
    %v5277 = vpop.f32.mrf.mxu0
    %5278 = vdwg.mxu0
    %5279 = vmatpush.bf16.msra.mxu0 %v3582
    %5280 = vmatpush.bf16.msra.mxu0 %v3578
    %5281 = vmatpush.bf16.msra.mxu0 %v3574
    %5282 = vmatpush.bf16.msra.mxu0 %v3570
    %5283 = vmatpush.bf16.msra.mxu0 %v3566
    %5284 = vmatpush.bf16.msra.mxu0 %v3562
    %5285 = vmatpush.bf16.msra.mxu0 %v3558
    %5286 = vmatpush.bf16.msra.mxu0 %v3554
    %5287 = vmatmul.bf16.gmra.mxu0 %v103
    %v5288 = vpop.f32.mrf.mxu0
    %v5289 = vadd.f32 %v5276, %v5288
    %v5290 = vpop.f32.mrf.mxu0
    %5291 = vdwg.mxu0
    %5292 = vmatpush.bf16.msra.mxu0 %v3614
    %5293 = vmatpush.bf16.msra.mxu0 %v3610
    %5294 = vmatpush.bf16.msra.mxu0 %v3606
    %5295 = vmatpush.bf16.msra.mxu0 %v3602
    %5296 = vmatpush.bf16.msra.mxu0 %v3598
    %5297 = vmatpush.bf16.msra.mxu0 %v3594
    %5298 = vmatpush.bf16.msra.mxu0 %v3590
    %5299 = vmatpush.bf16.msra.mxu0 %v3586
    %5300 = vmatmul.bf16.gmra.mxu0 %v104
    %v5301 = vpop.f32.mrf.mxu0
    %v5302 = vadd.f32 %v5289, %v5301
    %v5303 = vpop.f32.mrf.mxu0
    %5304 = vdwg.mxu0
    %5305 = vmatpush.bf16.msra.mxu0 %v3646
    %5306 = vmatpush.bf16.msra.mxu0 %v3642
    %5307 = vmatpush.bf16.msra.mxu0 %v3638
    %5308 = vmatpush.bf16.msra.mxu0 %v3634
    %5309 = vmatpush.bf16.msra.mxu0 %v3630
    %5310 = vmatpush.bf16.msra.mxu0 %v3626
    %5311 = vmatpush.bf16.msra.mxu0 %v3622
    %5312 = vmatpush.bf16.msra.mxu0 %v3618
    %5313 = vmatmul.bf16.gmra.mxu0 %v105
    %v5314 = vpop.f32.mrf.mxu0
    %v5315 = vadd.f32 %v5302, %v5314
    %v5316 = vpop.f32.mrf.mxu0
    %5317 = vdwg.mxu0
    %5318 = vmatpush.bf16.msra.mxu0 %v3678
    %5319 = vmatpush.bf16.msra.mxu0 %v3674
    %5320 = vmatpush.bf16.msra.mxu0 %v3670
    %5321 = vmatpush.bf16.msra.mxu0 %v3666
    %5322 = vmatpush.bf16.msra.mxu0 %v3662
    %5323 = vmatpush.bf16.msra.mxu0 %v3658
    %5324 = vmatpush.bf16.msra.mxu0 %v3654
    %5325 = vmatpush.bf16.msra.mxu0 %v3650
    %5326 = vmatmul.bf16.gmra.mxu0 %v106
    %v5327 = vpop.f32.mrf.mxu0
    %v5328 = vadd.f32 %v5315, %v5327
    %v5329 = vpop.f32.mrf.mxu0
    %5330 = vdwg.mxu0
    %5331 = vmatpush.bf16.msra.mxu0 %v3710
    %5332 = vmatpush.bf16.msra.mxu0 %v3706
    %5333 = vmatpush.bf16.msra.mxu0 %v3702
    %5334 = vmatpush.bf16.msra.mxu0 %v3698
    %5335 = vmatpush.bf16.msra.mxu0 %v3694
    %5336 = vmatpush.bf16.msra.mxu0 %v3690
    %5337 = vmatpush.bf16.msra.mxu0 %v3686
    %5338 = vmatpush.bf16.msra.mxu0 %v3682
    %5339 = vmatmul.bf16.gmra.mxu0 %v107
    %v5340 = vpop.f32.mrf.mxu0
    %v5341 = vadd.f32 %v5328, %v5340
    %v5342 = vpop.f32.mrf.mxu0
    %5343 = vdwg.mxu0
    %5344 = vmatpush.bf16.msra.mxu0 %v3742
    %5345 = vmatpush.bf16.msra.mxu0 %v3738
    %5346 = vmatpush.bf16.msra.mxu0 %v3734
    %5347 = vmatpush.bf16.msra.mxu0 %v3730
    %5348 = vmatpush.bf16.msra.mxu0 %v3726
    %5349 = vmatpush.bf16.msra.mxu0 %v3722
    %5350 = vmatpush.bf16.msra.mxu0 %v3718
    %5351 = vmatpush.bf16.msra.mxu0 %v3714
    %5352 = vmatmul.bf16.gmra.mxu0 %v108
    %v5353 = vpop.f32.mrf.mxu0
    %v5354 = vadd.f32 %v5341, %v5353
    %v5355 = vpop.f32.mrf.mxu0
    %5356 = vdwg.mxu0
    %5357 = vmatpush.bf16.msra.mxu0 %v3774
    %5358 = vmatpush.bf16.msra.mxu0 %v3770
    %5359 = vmatpush.bf16.msra.mxu0 %v3766
    %5360 = vmatpush.bf16.msra.mxu0 %v3762
    %5361 = vmatpush.bf16.msra.mxu0 %v3758
    %5362 = vmatpush.bf16.msra.mxu0 %v3754
    %5363 = vmatpush.bf16.msra.mxu0 %v3750
    %5364 = vmatpush.bf16.msra.mxu0 %v3746
    %5365 = vmatmul.bf16.gmra.mxu0 %v109
    %v5366 = vpop.f32.mrf.mxu0
    %v5367 = vadd.f32 %v5354, %v5366
    %v5368 = vpop.f32.mrf.mxu0
    %5369 = vdwg.mxu0
    %5370 = vmatpush.bf16.msra.mxu0 %v3806
    %5371 = vmatpush.bf16.msra.mxu0 %v3802
    %5372 = vmatpush.bf16.msra.mxu0 %v3798
    %5373 = vmatpush.bf16.msra.mxu0 %v3794
    %5374 = vmatpush.bf16.msra.mxu0 %v3790
    %5375 = vmatpush.bf16.msra.mxu0 %v3786
    %5376 = vmatpush.bf16.msra.mxu0 %v3782
    %5377 = vmatpush.bf16.msra.mxu0 %v3778
    %5378 = vmatmul.bf16.gmra.mxu0 %v110
    %v5379 = vpop.f32.mrf.mxu0
    %v5380 = vadd.f32 %v5367, %v5379
    %v5381 = vpop.f32.mrf.mxu0
    %5382 = vdwg.mxu0
    %5383 = vmatpush.bf16.msra.mxu0 %v3838
    %5384 = vmatpush.bf16.msra.mxu0 %v3834
    %5385 = vmatpush.bf16.msra.mxu0 %v3830
    %5386 = vmatpush.bf16.msra.mxu0 %v3826
    %5387 = vmatpush.bf16.msra.mxu0 %v3822
    %5388 = vmatpush.bf16.msra.mxu0 %v3818
    %5389 = vmatpush.bf16.msra.mxu0 %v3814
    %5390 = vmatpush.bf16.msra.mxu0 %v3810
    %5391 = vmatmul.bf16.gmra.mxu0 %v111
    %v5392 = vpop.f32.mrf.mxu0
    %v5393 = vadd.f32 %v5380, %v5392
    %v5394 = vpop.f32.mrf.mxu0
    %5395 = vdwg.mxu0
    %5396 = vmatpush.bf16.msra.mxu0 %v3870
    %5397 = vmatpush.bf16.msra.mxu0 %v3866
    %5398 = vmatpush.bf16.msra.mxu0 %v3862
    %5399 = vmatpush.bf16.msra.mxu0 %v3858
    %5400 = vmatpush.bf16.msra.mxu0 %v3854
    %5401 = vmatpush.bf16.msra.mxu0 %v3850
    %5402 = vmatpush.bf16.msra.mxu0 %v3846
    %5403 = vmatpush.bf16.msra.mxu0 %v3842
    %5404 = vmatmul.bf16.gmra.mxu0 %v112
    %v5405 = vpop.f32.mrf.mxu0
    %v5406 = vadd.f32 %v5393, %v5405
    %v5407 = vpop.f32.mrf.mxu0
    %5408 = vdwg.mxu0
    %5409 = vmatpush.bf16.msra.mxu0 %v3902
    %5410 = vmatpush.bf16.msra.mxu0 %v3898
    %5411 = vmatpush.bf16.msra.mxu0 %v3894
    %5412 = vmatpush.bf16.msra.mxu0 %v3890
    %5413 = vmatpush.bf16.msra.mxu0 %v3886
    %5414 = vmatpush.bf16.msra.mxu0 %v3882
    %5415 = vmatpush.bf16.msra.mxu0 %v3878
    %5416 = vmatpush.bf16.msra.mxu0 %v3874
    %5417 = vmatmul.bf16.gmra.mxu0 %v113
    %v5418 = vpop.f32.mrf.mxu0
    %v5419 = vadd.f32 %v5406, %v5418
    %v5420 = vpop.f32.mrf.mxu0
    %5421 = vdwg.mxu0
    %5422 = vmatpush.bf16.msra.mxu0 %v3934
    %5423 = vmatpush.bf16.msra.mxu0 %v3930
    %5424 = vmatpush.bf16.msra.mxu0 %v3926
    %5425 = vmatpush.bf16.msra.mxu0 %v3922
    %5426 = vmatpush.bf16.msra.mxu0 %v3918
    %5427 = vmatpush.bf16.msra.mxu0 %v3914
    %5428 = vmatpush.bf16.msra.mxu0 %v3910
    %5429 = vmatpush.bf16.msra.mxu0 %v3906
    %5430 = vmatmul.bf16.gmra.mxu0 %v114
    %v5431 = vpop.f32.mrf.mxu0
    %v5432 = vadd.f32 %v5419, %v5431
    %v5433 = vpop.f32.mrf.mxu0
    %5434 = vdwg.mxu0
    %5435 = vmatpush.bf16.msra.mxu0 %v3966
    %5436 = vmatpush.bf16.msra.mxu0 %v3962
    %5437 = vmatpush.bf16.msra.mxu0 %v3958
    %5438 = vmatpush.bf16.msra.mxu0 %v3954
    %5439 = vmatpush.bf16.msra.mxu0 %v3950
    %5440 = vmatpush.bf16.msra.mxu0 %v3946
    %5441 = vmatpush.bf16.msra.mxu0 %v3942
    %5442 = vmatpush.bf16.msra.mxu0 %v3938
    %5443 = vmatmul.bf16.gmra.mxu0 %v115
    %v5444 = vpop.f32.mrf.mxu0
    %v5445 = vadd.f32 %v5432, %v5444
    %v5446 = vpop.f32.mrf.mxu0
    %5447 = vdwg.mxu0
    %5448 = vmatpush.bf16.msra.mxu0 %v3998
    %5449 = vmatpush.bf16.msra.mxu0 %v3994
    %5450 = vmatpush.bf16.msra.mxu0 %v3990
    %5451 = vmatpush.bf16.msra.mxu0 %v3986
    %5452 = vmatpush.bf16.msra.mxu0 %v3982
    %5453 = vmatpush.bf16.msra.mxu0 %v3978
    %5454 = vmatpush.bf16.msra.mxu0 %v3974
    %5455 = vmatpush.bf16.msra.mxu0 %v3970
    %5456 = vmatmul.bf16.gmra.mxu0 %v116
    %v5457 = vpop.f32.mrf.mxu0
    %v5458 = vadd.f32 %v5445, %v5457
    %v5459 = vpop.f32.mrf.mxu0
    %5460 = vdwg.mxu0
    %5461 = vmatpush.bf16.msra.mxu0 %v4030
    %5462 = vmatpush.bf16.msra.mxu0 %v4026
    %5463 = vmatpush.bf16.msra.mxu0 %v4022
    %5464 = vmatpush.bf16.msra.mxu0 %v4018
    %5465 = vmatpush.bf16.msra.mxu0 %v4014
    %5466 = vmatpush.bf16.msra.mxu0 %v4010
    %5467 = vmatpush.bf16.msra.mxu0 %v4006
    %5468 = vmatpush.bf16.msra.mxu0 %v4002
    %5469 = vmatmul.bf16.gmra.mxu0 %v117
    %v5470 = vpop.f32.mrf.mxu0
    %v5471 = vadd.f32 %v5458, %v5470
    %v5472 = vpop.f32.mrf.mxu0
    %5473 = vdwg.mxu0
    %5474 = vmatpush.bf16.msra.mxu0 0
    %5475 = vmatpush.bf16.msra.mxu0 0
    %5476 = vmatpush.bf16.msra.mxu0 0
    %5477 = vmatpush.bf16.msra.mxu0 0
    %5478 = vmatpush.bf16.msra.mxu0 %v4046
    %5479 = vmatpush.bf16.msra.mxu0 %v4042
    %5480 = vmatpush.bf16.msra.mxu0 %v4038
    %5481 = vmatpush.bf16.msra.mxu0 %v4034
    %5482 = vmatmul.bf16.gmra.mxu0 %v4835
    %v5483 = vpop.f32.mrf.mxu0
    %v5484 = vadd.f32 %v5471, %v5483
    %v5485 = vpop.f32.mrf.mxu0
    %5486 = vdwg.mxu0
    %5487 = vmatpush.bf16.msra.mxu0 %v3295
    %5488 = vmatpush.bf16.msra.mxu0 %v3291
    %5489 = vmatpush.bf16.msra.mxu0 %v3287
    %5490 = vmatpush.bf16.msra.mxu0 %v3283
    %5491 = vmatpush.bf16.msra.mxu0 %v3279
    %5492 = vmatpush.bf16.msra.mxu0 %v3275
    %5493 = vmatpush.bf16.msra.mxu0 %v3271
    %5494 = vmatpush.bf16.msra.mxu0 %v3267
    %5495 = vmatmul.bf16.gmra.mxu0 %v94
    %v5496 = vpop.f32.mrf.mxu0
    %v5497 = vadd.f32 %v907, %v5496
    %v5498 = vpop.f32.mrf.mxu0
    %5499 = vdwg.mxu0
    %5500 = vmatpush.bf16.msra.mxu0 %v3327
    %5501 = vmatpush.bf16.msra.mxu0 %v3323
    %5502 = vmatpush.bf16.msra.mxu0 %v3319
    %5503 = vmatpush.bf16.msra.mxu0 %v3315
    %5504 = vmatpush.bf16.msra.mxu0 %v3311
    %5505 = vmatpush.bf16.msra.mxu0 %v3307
    %5506 = vmatpush.bf16.msra.mxu0 %v3303
    %5507 = vmatpush.bf16.msra.mxu0 %v3299
    %5508 = vmatmul.bf16.gmra.mxu0 %v95
    %v5509 = vpop.f32.mrf.mxu0
    %v5510 = vadd.f32 %v5497, %v5509
    %v5511 = vpop.f32.mrf.mxu0
    %5512 = vdwg.mxu0
    %5513 = vmatpush.bf16.msra.mxu0 %v3359
    %5514 = vmatpush.bf16.msra.mxu0 %v3355
    %5515 = vmatpush.bf16.msra.mxu0 %v3351
    %5516 = vmatpush.bf16.msra.mxu0 %v3347
    %5517 = vmatpush.bf16.msra.mxu0 %v3343
    %5518 = vmatpush.bf16.msra.mxu0 %v3339
    %5519 = vmatpush.bf16.msra.mxu0 %v3335
    %5520 = vmatpush.bf16.msra.mxu0 %v3331
    %5521 = vmatmul.bf16.gmra.mxu0 %v96
    %v5522 = vpop.f32.mrf.mxu0
    %v5523 = vadd.f32 %v5510, %v5522
    %v5524 = vpop.f32.mrf.mxu0
    %5525 = vdwg.mxu0
    %5526 = vmatpush.bf16.msra.mxu0 %v3391
    %5527 = vmatpush.bf16.msra.mxu0 %v3387
    %5528 = vmatpush.bf16.msra.mxu0 %v3383
    %5529 = vmatpush.bf16.msra.mxu0 %v3379
    %5530 = vmatpush.bf16.msra.mxu0 %v3375
    %5531 = vmatpush.bf16.msra.mxu0 %v3371
    %5532 = vmatpush.bf16.msra.mxu0 %v3367
    %5533 = vmatpush.bf16.msra.mxu0 %v3363
    %5534 = vmatmul.bf16.gmra.mxu0 %v97
    %v5535 = vpop.f32.mrf.mxu0
    %v5536 = vadd.f32 %v5523, %v5535
    %v5537 = vpop.f32.mrf.mxu0
    %5538 = vdwg.mxu0
    %5539 = vmatpush.bf16.msra.mxu0 %v3423
    %5540 = vmatpush.bf16.msra.mxu0 %v3419
    %5541 = vmatpush.bf16.msra.mxu0 %v3415
    %5542 = vmatpush.bf16.msra.mxu0 %v3411
    %5543 = vmatpush.bf16.msra.mxu0 %v3407
    %5544 = vmatpush.bf16.msra.mxu0 %v3403
    %5545 = vmatpush.bf16.msra.mxu0 %v3399
    %5546 = vmatpush.bf16.msra.mxu0 %v3395
    %5547 = vmatmul.bf16.gmra.mxu0 %v98
    %v5548 = vpop.f32.mrf.mxu0
    %v5549 = vadd.f32 %v5536, %v5548
    %v5550 = vpop.f32.mrf.mxu0
    %5551 = vdwg.mxu0
    %5552 = vmatpush.bf16.msra.mxu0 %v3455
    %5553 = vmatpush.bf16.msra.mxu0 %v3451
    %5554 = vmatpush.bf16.msra.mxu0 %v3447
    %5555 = vmatpush.bf16.msra.mxu0 %v3443
    %5556 = vmatpush.bf16.msra.mxu0 %v3439
    %5557 = vmatpush.bf16.msra.mxu0 %v3435
    %5558 = vmatpush.bf16.msra.mxu0 %v3431
    %5559 = vmatpush.bf16.msra.mxu0 %v3427
    %5560 = vmatmul.bf16.gmra.mxu0 %v99
    %v5561 = vpop.f32.mrf.mxu0
    %v5562 = vadd.f32 %v5549, %v5561
    %v5563 = vpop.f32.mrf.mxu0
    %5564 = vdwg.mxu0
    %5565 = vmatpush.bf16.msra.mxu0 %v3487
    %5566 = vmatpush.bf16.msra.mxu0 %v3483
    %5567 = vmatpush.bf16.msra.mxu0 %v3479
    %5568 = vmatpush.bf16.msra.mxu0 %v3475
    %5569 = vmatpush.bf16.msra.mxu0 %v3471
    %5570 = vmatpush.bf16.msra.mxu0 %v3467
    %5571 = vmatpush.bf16.msra.mxu0 %v3463
    %5572 = vmatpush.bf16.msra.mxu0 %v3459
    %5573 = vmatmul.bf16.gmra.mxu0 %v100
    %v5574 = vpop.f32.mrf.mxu0
    %v5575 = vadd.f32 %v5562, %v5574
    %v5576 = vpop.f32.mrf.mxu0
    %5577 = vdwg.mxu0
    %5578 = vmatpush.bf16.msra.mxu0 %v3519
    %5579 = vmatpush.bf16.msra.mxu0 %v3515
    %5580 = vmatpush.bf16.msra.mxu0 %v3511
    %5581 = vmatpush.bf16.msra.mxu0 %v3507
    %5582 = vmatpush.bf16.msra.mxu0 %v3503
    %5583 = vmatpush.bf16.msra.mxu0 %v3499
    %5584 = vmatpush.bf16.msra.mxu0 %v3495
    %5585 = vmatpush.bf16.msra.mxu0 %v3491
    %5586 = vmatmul.bf16.gmra.mxu0 %v101
    %v5587 = vpop.f32.mrf.mxu0
    %v5588 = vadd.f32 %v5575, %v5587
    %v5589 = vpop.f32.mrf.mxu0
    %5590 = vdwg.mxu0
    %5591 = vmatpush.bf16.msra.mxu0 %v3551
    %5592 = vmatpush.bf16.msra.mxu0 %v3547
    %5593 = vmatpush.bf16.msra.mxu0 %v3543
    %5594 = vmatpush.bf16.msra.mxu0 %v3539
    %5595 = vmatpush.bf16.msra.mxu0 %v3535
    %5596 = vmatpush.bf16.msra.mxu0 %v3531
    %5597 = vmatpush.bf16.msra.mxu0 %v3527
    %5598 = vmatpush.bf16.msra.mxu0 %v3523
    %5599 = vmatmul.bf16.gmra.mxu0 %v102
    %v5600 = vpop.f32.mrf.mxu0
    %v5601 = vadd.f32 %v5588, %v5600
    %v5602 = vpop.f32.mrf.mxu0
    %5603 = vdwg.mxu0
    %5604 = vmatpush.bf16.msra.mxu0 %v3583
    %5605 = vmatpush.bf16.msra.mxu0 %v3579
    %5606 = vmatpush.bf16.msra.mxu0 %v3575
    %5607 = vmatpush.bf16.msra.mxu0 %v3571
    %5608 = vmatpush.bf16.msra.mxu0 %v3567
    %5609 = vmatpush.bf16.msra.mxu0 %v3563
    %5610 = vmatpush.bf16.msra.mxu0 %v3559
    %5611 = vmatpush.bf16.msra.mxu0 %v3555
    %5612 = vmatmul.bf16.gmra.mxu0 %v103
    %v5613 = vpop.f32.mrf.mxu0
    %v5614 = vadd.f32 %v5601, %v5613
    %v5615 = vpop.f32.mrf.mxu0
    %5616 = vdwg.mxu0
    %5617 = vmatpush.bf16.msra.mxu0 %v3615
    %5618 = vmatpush.bf16.msra.mxu0 %v3611
    %5619 = vmatpush.bf16.msra.mxu0 %v3607
    %5620 = vmatpush.bf16.msra.mxu0 %v3603
    %5621 = vmatpush.bf16.msra.mxu0 %v3599
    %5622 = vmatpush.bf16.msra.mxu0 %v3595
    %5623 = vmatpush.bf16.msra.mxu0 %v3591
    %5624 = vmatpush.bf16.msra.mxu0 %v3587
    %5625 = vmatmul.bf16.gmra.mxu0 %v104
    %v5626 = vpop.f32.mrf.mxu0
    %v5627 = vadd.f32 %v5614, %v5626
    %v5628 = vpop.f32.mrf.mxu0
    %5629 = vdwg.mxu0
    %5630 = vmatpush.bf16.msra.mxu0 %v3647
    %5631 = vmatpush.bf16.msra.mxu0 %v3643
    %5632 = vmatpush.bf16.msra.mxu0 %v3639
    %5633 = vmatpush.bf16.msra.mxu0 %v3635
    %5634 = vmatpush.bf16.msra.mxu0 %v3631
    %5635 = vmatpush.bf16.msra.mxu0 %v3627
    %5636 = vmatpush.bf16.msra.mxu0 %v3623
    %5637 = vmatpush.bf16.msra.mxu0 %v3619
    %5638 = vmatmul.bf16.gmra.mxu0 %v105
    %v5639 = vpop.f32.mrf.mxu0
    %v5640 = vadd.f32 %v5627, %v5639
    %v5641 = vpop.f32.mrf.mxu0
    %5642 = vdwg.mxu0
    %5643 = vmatpush.bf16.msra.mxu0 %v3679
    %5644 = vmatpush.bf16.msra.mxu0 %v3675
    %5645 = vmatpush.bf16.msra.mxu0 %v3671
    %5646 = vmatpush.bf16.msra.mxu0 %v3667
    %5647 = vmatpush.bf16.msra.mxu0 %v3663
    %5648 = vmatpush.bf16.msra.mxu0 %v3659
    %5649 = vmatpush.bf16.msra.mxu0 %v3655
    %5650 = vmatpush.bf16.msra.mxu0 %v3651
    %5651 = vmatmul.bf16.gmra.mxu0 %v106
    %v5652 = vpop.f32.mrf.mxu0
    %v5653 = vadd.f32 %v5640, %v5652
    %v5654 = vpop.f32.mrf.mxu0
    %5655 = vdwg.mxu0
    %5656 = vmatpush.bf16.msra.mxu0 %v3711
    %5657 = vmatpush.bf16.msra.mxu0 %v3707
    %5658 = vmatpush.bf16.msra.mxu0 %v3703
    %5659 = vmatpush.bf16.msra.mxu0 %v3699
    %5660 = vmatpush.bf16.msra.mxu0 %v3695
    %5661 = vmatpush.bf16.msra.mxu0 %v3691
    %5662 = vmatpush.bf16.msra.mxu0 %v3687
    %5663 = vmatpush.bf16.msra.mxu0 %v3683
    %5664 = vmatmul.bf16.gmra.mxu0 %v107
    %v5665 = vpop.f32.mrf.mxu0
    %v5666 = vadd.f32 %v5653, %v5665
    %v5667 = vpop.f32.mrf.mxu0
    %5668 = vdwg.mxu0
    %5669 = vmatpush.bf16.msra.mxu0 %v3743
    %5670 = vmatpush.bf16.msra.mxu0 %v3739
    %5671 = vmatpush.bf16.msra.mxu0 %v3735
    %5672 = vmatpush.bf16.msra.mxu0 %v3731
    %5673 = vmatpush.bf16.msra.mxu0 %v3727
    %5674 = vmatpush.bf16.msra.mxu0 %v3723
    %5675 = vmatpush.bf16.msra.mxu0 %v3719
    %5676 = vmatpush.bf16.msra.mxu0 %v3715
    %5677 = vmatmul.bf16.gmra.mxu0 %v108
    %v5678 = vpop.f32.mrf.mxu0
    %v5679 = vadd.f32 %v5666, %v5678
    %v5680 = vpop.f32.mrf.mxu0
    %5681 = vdwg.mxu0
    %5682 = vmatpush.bf16.msra.mxu0 %v3775
    %5683 = vmatpush.bf16.msra.mxu0 %v3771
    %5684 = vmatpush.bf16.msra.mxu0 %v3767
    %5685 = vmatpush.bf16.msra.mxu0 %v3763
    %5686 = vmatpush.bf16.msra.mxu0 %v3759
    %5687 = vmatpush.bf16.msra.mxu0 %v3755
    %5688 = vmatpush.bf16.msra.mxu0 %v3751
    %5689 = vmatpush.bf16.msra.mxu0 %v3747
    %5690 = vmatmul.bf16.gmra.mxu0 %v109
    %v5691 = vpop.f32.mrf.mxu0
    %v5692 = vadd.f32 %v5679, %v5691
    %v5693 = vpop.f32.mrf.mxu0
    %5694 = vdwg.mxu0
    %5695 = vmatpush.bf16.msra.mxu0 %v3807
    %5696 = vmatpush.bf16.msra.mxu0 %v3803
    %5697 = vmatpush.bf16.msra.mxu0 %v3799
    %5698 = vmatpush.bf16.msra.mxu0 %v3795
    %5699 = vmatpush.bf16.msra.mxu0 %v3791
    %5700 = vmatpush.bf16.msra.mxu0 %v3787
    %5701 = vmatpush.bf16.msra.mxu0 %v3783
    %5702 = vmatpush.bf16.msra.mxu0 %v3779
    %5703 = vmatmul.bf16.gmra.mxu0 %v110
    %v5704 = vpop.f32.mrf.mxu0
    %v5705 = vadd.f32 %v5692, %v5704
    %v5706 = vpop.f32.mrf.mxu0
    %5707 = vdwg.mxu0
    %5708 = vmatpush.bf16.msra.mxu0 %v3839
    %5709 = vmatpush.bf16.msra.mxu0 %v3835
    %5710 = vmatpush.bf16.msra.mxu0 %v3831
    %5711 = vmatpush.bf16.msra.mxu0 %v3827
    %5712 = vmatpush.bf16.msra.mxu0 %v3823
    %5713 = vmatpush.bf16.msra.mxu0 %v3819
    %5714 = vmatpush.bf16.msra.mxu0 %v3815
    %5715 = vmatpush.bf16.msra.mxu0 %v3811
    %5716 = vmatmul.bf16.gmra.mxu0 %v111
    %v5717 = vpop.f32.mrf.mxu0
    %v5718 = vadd.f32 %v5705, %v5717
    %v5719 = vpop.f32.mrf.mxu0
    %5720 = vdwg.mxu0
    %5721 = vmatpush.bf16.msra.mxu0 %v3871
    %5722 = vmatpush.bf16.msra.mxu0 %v3867
    %5723 = vmatpush.bf16.msra.mxu0 %v3863
    %5724 = vmatpush.bf16.msra.mxu0 %v3859
    %5725 = vmatpush.bf16.msra.mxu0 %v3855
    %5726 = vmatpush.bf16.msra.mxu0 %v3851
    %5727 = vmatpush.bf16.msra.mxu0 %v3847
    %5728 = vmatpush.bf16.msra.mxu0 %v3843
    %5729 = vmatmul.bf16.gmra.mxu0 %v112
    %v5730 = vpop.f32.mrf.mxu0
    %v5731 = vadd.f32 %v5718, %v5730
    %v5732 = vpop.f32.mrf.mxu0
    %5733 = vdwg.mxu0
    %5734 = vmatpush.bf16.msra.mxu0 %v3903
    %5735 = vmatpush.bf16.msra.mxu0 %v3899
    %5736 = vmatpush.bf16.msra.mxu0 %v3895
    %5737 = vmatpush.bf16.msra.mxu0 %v3891
    %5738 = vmatpush.bf16.msra.mxu0 %v3887
    %5739 = vmatpush.bf16.msra.mxu0 %v3883
    %5740 = vmatpush.bf16.msra.mxu0 %v3879
    %5741 = vmatpush.bf16.msra.mxu0 %v3875
    %5742 = vmatmul.bf16.gmra.mxu0 %v113
    %v5743 = vpop.f32.mrf.mxu0
    %v5744 = vadd.f32 %v5731, %v5743
    %v5745 = vpop.f32.mrf.mxu0
    %5746 = vdwg.mxu0
    %5747 = vmatpush.bf16.msra.mxu0 %v3935
    %5748 = vmatpush.bf16.msra.mxu0 %v3931
    %5749 = vmatpush.bf16.msra.mxu0 %v3927
    %5750 = vmatpush.bf16.msra.mxu0 %v3923
    %5751 = vmatpush.bf16.msra.mxu0 %v3919
    %5752 = vmatpush.bf16.msra.mxu0 %v3915
    %5753 = vmatpush.bf16.msra.mxu0 %v3911
    %5754 = vmatpush.bf16.msra.mxu0 %v3907
    %5755 = vmatmul.bf16.gmra.mxu0 %v114
    %v5756 = vpop.f32.mrf.mxu0
    %v5757 = vadd.f32 %v5744, %v5756
    %v5758 = vpop.f32.mrf.mxu0
    %5759 = vdwg.mxu0
    %5760 = vmatpush.bf16.msra.mxu0 %v3967
    %5761 = vmatpush.bf16.msra.mxu0 %v3963
    %5762 = vmatpush.bf16.msra.mxu0 %v3959
    %5763 = vmatpush.bf16.msra.mxu0 %v3955
    %5764 = vmatpush.bf16.msra.mxu0 %v3951
    %5765 = vmatpush.bf16.msra.mxu0 %v3947
    %5766 = vmatpush.bf16.msra.mxu0 %v3943
    %5767 = vmatpush.bf16.msra.mxu0 %v3939
    %5768 = vmatmul.bf16.gmra.mxu0 %v115
    %v5769 = vpop.f32.mrf.mxu0
    %v5770 = vadd.f32 %v5757, %v5769
    %v5771 = vpop.f32.mrf.mxu0
    %5772 = vdwg.mxu0
    %5773 = vmatpush.bf16.msra.mxu0 %v3999
    %5774 = vmatpush.bf16.msra.mxu0 %v3995
    %5775 = vmatpush.bf16.msra.mxu0 %v3991
    %5776 = vmatpush.bf16.msra.mxu0 %v3987
    %5777 = vmatpush.bf16.msra.mxu0 %v3983
    %5778 = vmatpush.bf16.msra.mxu0 %v3979
    %5779 = vmatpush.bf16.msra.mxu0 %v3975
    %5780 = vmatpush.bf16.msra.mxu0 %v3971
    %5781 = vmatmul.bf16.gmra.mxu0 %v116
    %v5782 = vpop.f32.mrf.mxu0
    %v5783 = vadd.f32 %v5770, %v5782
    %v5784 = vpop.f32.mrf.mxu0
    %5785 = vdwg.mxu0
    %5786 = vmatpush.bf16.msra.mxu0 %v4031
    %5787 = vmatpush.bf16.msra.mxu0 %v4027
    %5788 = vmatpush.bf16.msra.mxu0 %v4023
    %5789 = vmatpush.bf16.msra.mxu0 %v4019
    %5790 = vmatpush.bf16.msra.mxu0 %v4015
    %5791 = vmatpush.bf16.msra.mxu0 %v4011
    %5792 = vmatpush.bf16.msra.mxu0 %v4007
    %5793 = vmatpush.bf16.msra.mxu0 %v4003
    %5794 = vmatmul.bf16.gmra.mxu0 %v117
    %v5795 = vpop.f32.mrf.mxu0
    %v5796 = vadd.f32 %v5783, %v5795
    %v5797 = vpop.f32.mrf.mxu0
    %5798 = vdwg.mxu0
    %5799 = vmatpush.bf16.msra.mxu0 0
    %5800 = vmatpush.bf16.msra.mxu0 0
    %5801 = vmatpush.bf16.msra.mxu0 0
    %5802 = vmatpush.bf16.msra.mxu0 0
    %5803 = vmatpush.bf16.msra.mxu0 %v4047
    %5804 = vmatpush.bf16.msra.mxu0 %v4043
    %5805 = vmatpush.bf16.msra.mxu0 %v4039
    %5806 = vmatpush.bf16.msra.mxu0 %v4035
    %5807 = vmatmul.bf16.gmra.mxu0 %v4835
    %v5808 = vpop.f32.mrf.mxu0
    %v5809 = vadd.f32 %v5796, %v5808
    %v5810 = vpop.f32.mrf.mxu0
    %5811 = vdwg.mxu0
    %5812 = vmatpush.bf16.msra.mxu0 %v3296
    %5813 = vmatpush.bf16.msra.mxu0 %v3292
    %5814 = vmatpush.bf16.msra.mxu0 %v3288
    %5815 = vmatpush.bf16.msra.mxu0 %v3284
    %5816 = vmatpush.bf16.msra.mxu0 %v3280
    %5817 = vmatpush.bf16.msra.mxu0 %v3276
    %5818 = vmatpush.bf16.msra.mxu0 %v3272
    %5819 = vmatpush.bf16.msra.mxu0 %v3268
    %5820 = vmatmul.bf16.gmra.mxu0 %v94
    %v5821 = vpop.f32.mrf.mxu0
    %v5822 = vadd.f32 %v908, %v5821
    %v5823 = vpop.f32.mrf.mxu0
    %5824 = vdwg.mxu0
    %5825 = vmatpush.bf16.msra.mxu0 %v3328
    %5826 = vmatpush.bf16.msra.mxu0 %v3324
    %5827 = vmatpush.bf16.msra.mxu0 %v3320
    %5828 = vmatpush.bf16.msra.mxu0 %v3316
    %5829 = vmatpush.bf16.msra.mxu0 %v3312
    %5830 = vmatpush.bf16.msra.mxu0 %v3308
    %5831 = vmatpush.bf16.msra.mxu0 %v3304
    %5832 = vmatpush.bf16.msra.mxu0 %v3300
    %5833 = vmatmul.bf16.gmra.mxu0 %v95
    %v5834 = vpop.f32.mrf.mxu0
    %v5835 = vadd.f32 %v5822, %v5834
    %v5836 = vpop.f32.mrf.mxu0
    %5837 = vdwg.mxu0
    %5838 = vmatpush.bf16.msra.mxu0 %v3360
    %5839 = vmatpush.bf16.msra.mxu0 %v3356
    %5840 = vmatpush.bf16.msra.mxu0 %v3352
    %5841 = vmatpush.bf16.msra.mxu0 %v3348
    %5842 = vmatpush.bf16.msra.mxu0 %v3344
    %5843 = vmatpush.bf16.msra.mxu0 %v3340
    %5844 = vmatpush.bf16.msra.mxu0 %v3336
    %5845 = vmatpush.bf16.msra.mxu0 %v3332
    %5846 = vmatmul.bf16.gmra.mxu0 %v96
    %v5847 = vpop.f32.mrf.mxu0
    %v5848 = vadd.f32 %v5835, %v5847
    %v5849 = vpop.f32.mrf.mxu0
    %5850 = vdwg.mxu0
    %5851 = vmatpush.bf16.msra.mxu0 %v3392
    %5852 = vmatpush.bf16.msra.mxu0 %v3388
    %5853 = vmatpush.bf16.msra.mxu0 %v3384
    %5854 = vmatpush.bf16.msra.mxu0 %v3380
    %5855 = vmatpush.bf16.msra.mxu0 %v3376
    %5856 = vmatpush.bf16.msra.mxu0 %v3372
    %5857 = vmatpush.bf16.msra.mxu0 %v3368
    %5858 = vmatpush.bf16.msra.mxu0 %v3364
    %5859 = vmatmul.bf16.gmra.mxu0 %v97
    %v5860 = vpop.f32.mrf.mxu0
    %v5861 = vadd.f32 %v5848, %v5860
    %v5862 = vpop.f32.mrf.mxu0
    %5863 = vdwg.mxu0
    %5864 = vmatpush.bf16.msra.mxu0 %v3424
    %5865 = vmatpush.bf16.msra.mxu0 %v3420
    %5866 = vmatpush.bf16.msra.mxu0 %v3416
    %5867 = vmatpush.bf16.msra.mxu0 %v3412
    %5868 = vmatpush.bf16.msra.mxu0 %v3408
    %5869 = vmatpush.bf16.msra.mxu0 %v3404
    %5870 = vmatpush.bf16.msra.mxu0 %v3400
    %5871 = vmatpush.bf16.msra.mxu0 %v3396
    %5872 = vmatmul.bf16.gmra.mxu0 %v98
    %v5873 = vpop.f32.mrf.mxu0
    %v5874 = vadd.f32 %v5861, %v5873
    %v5875 = vpop.f32.mrf.mxu0
    %5876 = vdwg.mxu0
    %5877 = vmatpush.bf16.msra.mxu0 %v3456
    %5878 = vmatpush.bf16.msra.mxu0 %v3452
    %5879 = vmatpush.bf16.msra.mxu0 %v3448
    %5880 = vmatpush.bf16.msra.mxu0 %v3444
    %5881 = vmatpush.bf16.msra.mxu0 %v3440
    %5882 = vmatpush.bf16.msra.mxu0 %v3436
    %5883 = vmatpush.bf16.msra.mxu0 %v3432
    %5884 = vmatpush.bf16.msra.mxu0 %v3428
    %5885 = vmatmul.bf16.gmra.mxu0 %v99
    %v5886 = vpop.f32.mrf.mxu0
    %v5887 = vadd.f32 %v5874, %v5886
    %v5888 = vpop.f32.mrf.mxu0
    %5889 = vdwg.mxu0
    %5890 = vmatpush.bf16.msra.mxu0 %v3488
    %5891 = vmatpush.bf16.msra.mxu0 %v3484
    %5892 = vmatpush.bf16.msra.mxu0 %v3480
    %5893 = vmatpush.bf16.msra.mxu0 %v3476
    %5894 = vmatpush.bf16.msra.mxu0 %v3472
    %5895 = vmatpush.bf16.msra.mxu0 %v3468
    %5896 = vmatpush.bf16.msra.mxu0 %v3464
    %5897 = vmatpush.bf16.msra.mxu0 %v3460
    %5898 = vmatmul.bf16.gmra.mxu0 %v100
    %v5899 = vpop.f32.mrf.mxu0
    %v5900 = vadd.f32 %v5887, %v5899
    %v5901 = vpop.f32.mrf.mxu0
    %5902 = vdwg.mxu0
    %5903 = vmatpush.bf16.msra.mxu0 %v3520
    %5904 = vmatpush.bf16.msra.mxu0 %v3516
    %5905 = vmatpush.bf16.msra.mxu0 %v3512
    %5906 = vmatpush.bf16.msra.mxu0 %v3508
    %5907 = vmatpush.bf16.msra.mxu0 %v3504
    %5908 = vmatpush.bf16.msra.mxu0 %v3500
    %5909 = vmatpush.bf16.msra.mxu0 %v3496
    %5910 = vmatpush.bf16.msra.mxu0 %v3492
    %5911 = vmatmul.bf16.gmra.mxu0 %v101
    %v5912 = vpop.f32.mrf.mxu0
    %v5913 = vadd.f32 %v5900, %v5912
    %v5914 = vpop.f32.mrf.mxu0
    %5915 = vdwg.mxu0
    %5916 = vmatpush.bf16.msra.mxu0 %v3552
    %5917 = vmatpush.bf16.msra.mxu0 %v3548
    %5918 = vmatpush.bf16.msra.mxu0 %v3544
    %5919 = vmatpush.bf16.msra.mxu0 %v3540
    %5920 = vmatpush.bf16.msra.mxu0 %v3536
    %5921 = vmatpush.bf16.msra.mxu0 %v3532
    %5922 = vmatpush.bf16.msra.mxu0 %v3528
    %5923 = vmatpush.bf16.msra.mxu0 %v3524
    %5924 = vmatmul.bf16.gmra.mxu0 %v102
    %v5925 = vpop.f32.mrf.mxu0
    %v5926 = vadd.f32 %v5913, %v5925
    %v5927 = vpop.f32.mrf.mxu0
    %5928 = vdwg.mxu0
    %5929 = vmatpush.bf16.msra.mxu0 %v3584
    %5930 = vmatpush.bf16.msra.mxu0 %v3580
    %5931 = vmatpush.bf16.msra.mxu0 %v3576
    %5932 = vmatpush.bf16.msra.mxu0 %v3572
    %5933 = vmatpush.bf16.msra.mxu0 %v3568
    %5934 = vmatpush.bf16.msra.mxu0 %v3564
    %5935 = vmatpush.bf16.msra.mxu0 %v3560
    %5936 = vmatpush.bf16.msra.mxu0 %v3556
    %5937 = vmatmul.bf16.gmra.mxu0 %v103
    %v5938 = vpop.f32.mrf.mxu0
    %v5939 = vadd.f32 %v5926, %v5938
    %v5940 = vpop.f32.mrf.mxu0
    %5941 = vdwg.mxu0
    %5942 = vmatpush.bf16.msra.mxu0 %v3616
    %5943 = vmatpush.bf16.msra.mxu0 %v3612
    %5944 = vmatpush.bf16.msra.mxu0 %v3608
    %5945 = vmatpush.bf16.msra.mxu0 %v3604
    %5946 = vmatpush.bf16.msra.mxu0 %v3600
    %5947 = vmatpush.bf16.msra.mxu0 %v3596
    %5948 = vmatpush.bf16.msra.mxu0 %v3592
    %5949 = vmatpush.bf16.msra.mxu0 %v3588
    %5950 = vmatmul.bf16.gmra.mxu0 %v104
    %v5951 = vpop.f32.mrf.mxu0
    %v5952 = vadd.f32 %v5939, %v5951
    %v5953 = vpop.f32.mrf.mxu0
    %5954 = vdwg.mxu0
    %5955 = vmatpush.bf16.msra.mxu0 %v3648
    %5956 = vmatpush.bf16.msra.mxu0 %v3644
    %5957 = vmatpush.bf16.msra.mxu0 %v3640
    %5958 = vmatpush.bf16.msra.mxu0 %v3636
    %5959 = vmatpush.bf16.msra.mxu0 %v3632
    %5960 = vmatpush.bf16.msra.mxu0 %v3628
    %5961 = vmatpush.bf16.msra.mxu0 %v3624
    %5962 = vmatpush.bf16.msra.mxu0 %v3620
    %5963 = vmatmul.bf16.gmra.mxu0 %v105
    %v5964 = vpop.f32.mrf.mxu0
    %v5965 = vadd.f32 %v5952, %v5964
    %v5966 = vpop.f32.mrf.mxu0
    %5967 = vdwg.mxu0
    %5968 = vmatpush.bf16.msra.mxu0 %v3680
    %5969 = vmatpush.bf16.msra.mxu0 %v3676
    %5970 = vmatpush.bf16.msra.mxu0 %v3672
    %5971 = vmatpush.bf16.msra.mxu0 %v3668
    %5972 = vmatpush.bf16.msra.mxu0 %v3664
    %5973 = vmatpush.bf16.msra.mxu0 %v3660
    %5974 = vmatpush.bf16.msra.mxu0 %v3656
    %5975 = vmatpush.bf16.msra.mxu0 %v3652
    %5976 = vmatmul.bf16.gmra.mxu0 %v106
    %v5977 = vpop.f32.mrf.mxu0
    %v5978 = vadd.f32 %v5965, %v5977
    %v5979 = vpop.f32.mrf.mxu0
    %5980 = vdwg.mxu0
    %5981 = vmatpush.bf16.msra.mxu0 %v3712
    %5982 = vmatpush.bf16.msra.mxu0 %v3708
    %5983 = vmatpush.bf16.msra.mxu0 %v3704
    %5984 = vmatpush.bf16.msra.mxu0 %v3700
    %5985 = vmatpush.bf16.msra.mxu0 %v3696
    %5986 = vmatpush.bf16.msra.mxu0 %v3692
    %5987 = vmatpush.bf16.msra.mxu0 %v3688
    %5988 = vmatpush.bf16.msra.mxu0 %v3684
    %5989 = vmatmul.bf16.gmra.mxu0 %v107
    %v5990 = vpop.f32.mrf.mxu0
    %v5991 = vadd.f32 %v5978, %v5990
    %v5992 = vpop.f32.mrf.mxu0
    %5993 = vdwg.mxu0
    %5994 = vmatpush.bf16.msra.mxu0 %v3744
    %5995 = vmatpush.bf16.msra.mxu0 %v3740
    %5996 = vmatpush.bf16.msra.mxu0 %v3736
    %5997 = vmatpush.bf16.msra.mxu0 %v3732
    %5998 = vmatpush.bf16.msra.mxu0 %v3728
    %5999 = vmatpush.bf16.msra.mxu0 %v3724
    %6000 = vmatpush.bf16.msra.mxu0 %v3720
    %6001 = vmatpush.bf16.msra.mxu0 %v3716
    %6002 = vmatmul.bf16.gmra.mxu0 %v108
    %v6003 = vpop.f32.mrf.mxu0
    %v6004 = vadd.f32 %v5991, %v6003
    %v6005 = vpop.f32.mrf.mxu0
    %6006 = vdwg.mxu0
    %6007 = vmatpush.bf16.msra.mxu0 %v3776
    %6008 = vmatpush.bf16.msra.mxu0 %v3772
    %6009 = vmatpush.bf16.msra.mxu0 %v3768
    %6010 = vmatpush.bf16.msra.mxu0 %v3764
    %6011 = vmatpush.bf16.msra.mxu0 %v3760
    %6012 = vmatpush.bf16.msra.mxu0 %v3756
    %6013 = vmatpush.bf16.msra.mxu0 %v3752
    %6014 = vmatpush.bf16.msra.mxu0 %v3748
    %6015 = vmatmul.bf16.gmra.mxu0 %v109
    %v6016 = vpop.f32.mrf.mxu0
    %v6017 = vadd.f32 %v6004, %v6016
    %v6018 = vpop.f32.mrf.mxu0
    %6019 = vdwg.mxu0
    %6020 = vmatpush.bf16.msra.mxu0 %v3808
    %6021 = vmatpush.bf16.msra.mxu0 %v3804
    %6022 = vmatpush.bf16.msra.mxu0 %v3800
    %6023 = vmatpush.bf16.msra.mxu0 %v3796
    %6024 = vmatpush.bf16.msra.mxu0 %v3792
    %6025 = vmatpush.bf16.msra.mxu0 %v3788
    %6026 = vmatpush.bf16.msra.mxu0 %v3784
    %6027 = vmatpush.bf16.msra.mxu0 %v3780
    %6028 = vmatmul.bf16.gmra.mxu0 %v110
    %v6029 = vpop.f32.mrf.mxu0
    %v6030 = vadd.f32 %v6017, %v6029
    %v6031 = vpop.f32.mrf.mxu0
    %6032 = vdwg.mxu0
    %6033 = vmatpush.bf16.msra.mxu0 %v3840
    %6034 = vmatpush.bf16.msra.mxu0 %v3836
    %6035 = vmatpush.bf16.msra.mxu0 %v3832
    %6036 = vmatpush.bf16.msra.mxu0 %v3828
    %6037 = vmatpush.bf16.msra.mxu0 %v3824
    %6038 = vmatpush.bf16.msra.mxu0 %v3820
    %6039 = vmatpush.bf16.msra.mxu0 %v3816
    %6040 = vmatpush.bf16.msra.mxu0 %v3812
    %6041 = vmatmul.bf16.gmra.mxu0 %v111
    %v6042 = vpop.f32.mrf.mxu0
    %v6043 = vadd.f32 %v6030, %v6042
    %v6044 = vpop.f32.mrf.mxu0
    %6045 = vdwg.mxu0
    %6046 = vmatpush.bf16.msra.mxu0 %v3872
    %6047 = vmatpush.bf16.msra.mxu0 %v3868
    %6048 = vmatpush.bf16.msra.mxu0 %v3864
    %6049 = vmatpush.bf16.msra.mxu0 %v3860
    %6050 = vmatpush.bf16.msra.mxu0 %v3856
    %6051 = vmatpush.bf16.msra.mxu0 %v3852
    %6052 = vmatpush.bf16.msra.mxu0 %v3848
    %6053 = vmatpush.bf16.msra.mxu0 %v3844
    %6054 = vmatmul.bf16.gmra.mxu0 %v112
    %v6055 = vpop.f32.mrf.mxu0
    %v6056 = vadd.f32 %v6043, %v6055
    %v6057 = vpop.f32.mrf.mxu0
    %6058 = vdwg.mxu0
    %6059 = vmatpush.bf16.msra.mxu0 %v3904
    %6060 = vmatpush.bf16.msra.mxu0 %v3900
    %6061 = vmatpush.bf16.msra.mxu0 %v3896
    %6062 = vmatpush.bf16.msra.mxu0 %v3892
    %6063 = vmatpush.bf16.msra.mxu0 %v3888
    %6064 = vmatpush.bf16.msra.mxu0 %v3884
    %6065 = vmatpush.bf16.msra.mxu0 %v3880
    %6066 = vmatpush.bf16.msra.mxu0 %v3876
    %6067 = vmatmul.bf16.gmra.mxu0 %v113
    %v6068 = vpop.f32.mrf.mxu0
    %v6069 = vadd.f32 %v6056, %v6068
    %v6070 = vpop.f32.mrf.mxu0
    %6071 = vdwg.mxu0
    %6072 = vmatpush.bf16.msra.mxu0 %v3936
    %6073 = vmatpush.bf16.msra.mxu0 %v3932
    %6074 = vmatpush.bf16.msra.mxu0 %v3928
    %6075 = vmatpush.bf16.msra.mxu0 %v3924
    %6076 = vmatpush.bf16.msra.mxu0 %v3920
    %6077 = vmatpush.bf16.msra.mxu0 %v3916
    %6078 = vmatpush.bf16.msra.mxu0 %v3912
    %6079 = vmatpush.bf16.msra.mxu0 %v3908
    %6080 = vmatmul.bf16.gmra.mxu0 %v114
    %v6081 = vpop.f32.mrf.mxu0
    %v6082 = vadd.f32 %v6069, %v6081
    %v6083 = vpop.f32.mrf.mxu0
    %6084 = vdwg.mxu0
    %6085 = vmatpush.bf16.msra.mxu0 %v3968
    %6086 = vmatpush.bf16.msra.mxu0 %v3964
    %6087 = vmatpush.bf16.msra.mxu0 %v3960
    %6088 = vmatpush.bf16.msra.mxu0 %v3956
    %6089 = vmatpush.bf16.msra.mxu0 %v3952
    %6090 = vmatpush.bf16.msra.mxu0 %v3948
    %6091 = vmatpush.bf16.msra.mxu0 %v3944
    %6092 = vmatpush.bf16.msra.mxu0 %v3940
    %6093 = vmatmul.bf16.gmra.mxu0 %v115
    %v6094 = vpop.f32.mrf.mxu0
    %v6095 = vadd.f32 %v6082, %v6094
    %v6096 = vpop.f32.mrf.mxu0
    %6097 = vdwg.mxu0
    %6098 = vmatpush.bf16.msra.mxu0 %v4000
    %6099 = vmatpush.bf16.msra.mxu0 %v3996
    %6100 = vmatpush.bf16.msra.mxu0 %v3992
    %6101 = vmatpush.bf16.msra.mxu0 %v3988
    %6102 = vmatpush.bf16.msra.mxu0 %v3984
    %6103 = vmatpush.bf16.msra.mxu0 %v3980
    %6104 = vmatpush.bf16.msra.mxu0 %v3976
    %6105 = vmatpush.bf16.msra.mxu0 %v3972
    %6106 = vmatmul.bf16.gmra.mxu0 %v116
    %v6107 = vpop.f32.mrf.mxu0
    %v6108 = vadd.f32 %v6095, %v6107
    %v6109 = vpop.f32.mrf.mxu0
    %6110 = vdwg.mxu0
    %6111 = vmatpush.bf16.msra.mxu0 %v4032
    %6112 = vmatpush.bf16.msra.mxu0 %v4028
    %6113 = vmatpush.bf16.msra.mxu0 %v4024
    %6114 = vmatpush.bf16.msra.mxu0 %v4020
    %6115 = vmatpush.bf16.msra.mxu0 %v4016
    %6116 = vmatpush.bf16.msra.mxu0 %v4012
    %6117 = vmatpush.bf16.msra.mxu0 %v4008
    %6118 = vmatpush.bf16.msra.mxu0 %v4004
    %6119 = vmatmul.bf16.gmra.mxu0 %v117
    %v6120 = vpop.f32.mrf.mxu0
    %v6121 = vadd.f32 %v6108, %v6120
    %v6122 = vpop.f32.mrf.mxu0
    %6123 = vdwg.mxu0
    %6124 = vmatpush.bf16.msra.mxu0 0
    %6125 = vmatpush.bf16.msra.mxu0 0
    %6126 = vmatpush.bf16.msra.mxu0 0
    %6127 = vmatpush.bf16.msra.mxu0 0
    %6128 = vmatpush.bf16.msra.mxu0 %v4048
    %6129 = vmatpush.bf16.msra.mxu0 %v4044
    %6130 = vmatpush.bf16.msra.mxu0 %v4040
    %6131 = vmatpush.bf16.msra.mxu0 %v4036
    %6132 = vmatmul.bf16.gmra.mxu0 %v4835
    %v6133 = vpop.f32.mrf.mxu0
    %v6134 = vadd.f32 %v6121, %v6133
    %v6135 = vpop.f32.mrf.mxu0
    %6136 = vdwg.mxu0
    %v6137 = vmax.f32 %v5159, 0.0
    %v6138 = vmax.f32 %v5484, 0.0
    %v6139 = vmax.f32 %v5809, 0.0
    %v6140 = vmax.f32 %v6134, 0.0
    %v6141 = vpack.c.bf16 %v6137, %v6137
    %v6142 = vpack.c.bf16 %v6138, %v6138
    %v6143 = vpack.c.bf16 %v6139, %v6139
    %v6144 = vpack.c.bf16 %v6140, %v6140
    %v6145 = vld [vmem:[%s3] sm:$0xf]
    %v6146 = vld [vmem:[%s3 + $0x4] sm:$0xf]
    %v6147 = vld [vmem:[%s3 + $0x8] sm:$0xf]
    %v6148 = vld [vmem:[%s3 + $0xc] sm:$0xf]
    %v6149 = vld [vmem:[%s3 + $0x10] sm:$0xf]
    %v6150 = vld [vmem:[%s3 + $0x14] sm:$0xf]
    %v6151 = vld [vmem:[%s3 + $0x18] sm:$0xf]
    %v6152 = vld [vmem:[%s3 + $0x1c] sm:$0xf]
    %v6153 = vld [vmem:[%s3 + $0x20] sm:$0xf]
    %v6154 = vld [vmem:[%s3 + $0x24] sm:$0xf]
    %v6155 = vld [vmem:[%s3 + $0x28] sm:$0xf]
    %v6156 = vld [vmem:[%s3 + $0x2c] sm:$0xf]
    %v6157 = vld [vmem:[%s3 + $0x30] sm:$0xf]
    %v6158 = vld [vmem:[%s3 + $0x34] sm:$0xf]
    %v6159 = vld [vmem:[%s3 + $0x38] sm:$0xf]
    %v6160 = vld [vmem:[%s3 + $0x3c] sm:$0xf]
    %v6161 = vld [vmem:[%s3 + $0x40] sm:$0xf]
    %v6162 = vld [vmem:[%s3 + $0x44] sm:$0xf]
    %v6163 = vld [vmem:[%s3 + $0x48] sm:$0xf]
    %v6164 = vld [vmem:[%s3 + $0x4c] sm:$0xf]
    %v6165 = vld [vmem:[%s3 + $0x50] sm:$0xf]
    %v6166 = vld [vmem:[%s3 + $0x54] sm:$0xf]
    %v6167 = vld [vmem:[%s3 + $0x58] sm:$0xf]
    %v6168 = vld [vmem:[%s3 + $0x5c] sm:$0xf]
    %v6169 = vld [vmem:[%s3 + $0x60] sm:$0xf]
    %v6170 = vld [vmem:[%s3 + $0x64] sm:$0xf]
    %v6171 = vld [vmem:[%s3 + $0x68] sm:$0xf]
    %v6172 = vld [vmem:[%s3 + $0x6c] sm:$0xf]
    %v6173 = vld [vmem:[%s3 + $0x70] sm:$0xf]
    %v6174 = vld [vmem:[%s3 + $0x74] sm:$0xf]
    %v6175 = vld [vmem:[%s3 + $0x78] sm:$0xf]
    %v6176 = vld [vmem:[%s3 + $0x7c] sm:$0xf]
    %v6177 = vld [vmem:[%s3 + $0x80] sm:$0xf]
    %v6178 = vld [vmem:[%s3 + $0x84] sm:$0xf]
    %v6179 = vld [vmem:[%s3 + $0x88] sm:$0xf]
    %v6180 = vld [vmem:[%s3 + $0x8c] sm:$0xf]
    %v6181 = vld [vmem:[%s3 + $0x90] sm:$0xf]
    %v6182 = vld [vmem:[%s3 + $0x94] sm:$0xf]
    %v6183 = vld [vmem:[%s3 + $0x98] sm:$0xf]
    %v6184 = vld [vmem:[%s3 + $0x9c] sm:$0xf]
    %v6185 = vld [vmem:[%s3 + $0xa0] sm:$0xf]
    %v6186 = vld [vmem:[%s3 + $0xa4] sm:$0xf]
    %v6187 = vld [vmem:[%s3 + $0xa8] sm:$0xf]
    %v6188 = vld [vmem:[%s3 + $0xac] sm:$0xf]
    %v6189 = vld [vmem:[%s3 + $0xb0] sm:$0xf]
    %v6190 = vld [vmem:[%s3 + $0xb4] sm:$0xf]
    %v6191 = vld [vmem:[%s3 + $0xb8] sm:$0xf]
    %v6192 = vld [vmem:[%s3 + $0xbc] sm:$0xf]
    %v6193 = vld [vmem:[%s3 + $0xc0] sm:$0xf]
    %v6194 = vld [vmem:[%s3 + $0xc4] sm:$0xf]
    %v6195 = vld [vmem:[%s3 + $0xc8] sm:$0xf]
    %v6196 = vld [vmem:[%s3 + $0xcc] sm:$0xf]
    %v6197 = vld [vmem:[%s3 + $0xd0] sm:$0xf]
    %v6198 = vld [vmem:[%s3 + $0xd4] sm:$0xf]
    %v6199 = vld [vmem:[%s3 + $0xd8] sm:$0xf]
    %v6200 = vld [vmem:[%s3 + $0xdc] sm:$0xf]
    %v6201 = vld [vmem:[%s3 + $0xe0] sm:$0xf]
    %v6202 = vld [vmem:[%s3 + $0xe4] sm:$0xf]
    %v6203 = vld [vmem:[%s3 + $0xe8] sm:$0xf]
    %v6204 = vld [vmem:[%s3 + $0xec] sm:$0xf]
    %v6205 = vld [vmem:[%s3 + $0xf0] sm:$0xf]
    %v6206 = vld [vmem:[%s3 + $0xf4] sm:$0xf]
    %v6207 = vld [vmem:[%s3 + $0xf8] sm:$0xf]
    %v6208 = vld [vmem:[%s3 + $0xfc] sm:$0xf]
    %v6209 = vld [vmem:[%s4] sm:$0x1]
    %v6211 = vperm.slane %v6209, 0
    %v6277 = vunpack.c.l.b16 %v6145
    %v6278 = vunpack.c.l.b16 %v6146
    %v6279 = vunpack.c.l.b16 %v6147
    %v6280 = vunpack.c.l.b16 %v6148
    %v6281 = vunpack.c.l.b16 %v6149
    %v6282 = vunpack.c.l.b16 %v6150
    %v6283 = vunpack.c.l.b16 %v6151
    %v6284 = vunpack.c.l.b16 %v6152
    %v6285 = vunpack.c.l.b16 %v6153
    %v6286 = vunpack.c.l.b16 %v6154
    %v6287 = vunpack.c.l.b16 %v6155
    %v6288 = vunpack.c.l.b16 %v6156
    %v6289 = vunpack.c.l.b16 %v6157
    %v6290 = vunpack.c.l.b16 %v6158
    %v6291 = vunpack.c.l.b16 %v6159
    %v6292 = vunpack.c.l.b16 %v6160
    %v6293 = vunpack.c.l.b16 %v6161
    %v6294 = vunpack.c.l.b16 %v6162
    %v6295 = vunpack.c.l.b16 %v6163
    %v6296 = vunpack.c.l.b16 %v6164
    %v6297 = vunpack.c.l.b16 %v6165
    %v6298 = vunpack.c.l.b16 %v6166
    %v6299 = vunpack.c.l.b16 %v6167
    %v6300 = vunpack.c.l.b16 %v6168
    %v6301 = vunpack.c.l.b16 %v6169
    %v6302 = vunpack.c.l.b16 %v6170
    %v6303 = vunpack.c.l.b16 %v6171
    %v6304 = vunpack.c.l.b16 %v6172
    %v6305 = vunpack.c.l.b16 %v6173
    %v6306 = vunpack.c.l.b16 %v6174
    %v6307 = vunpack.c.l.b16 %v6175
    %v6308 = vunpack.c.l.b16 %v6176
    %v6309 = vunpack.c.l.b16 %v6177
    %v6310 = vunpack.c.l.b16 %v6178
    %v6311 = vunpack.c.l.b16 %v6179
    %v6312 = vunpack.c.l.b16 %v6180
    %v6313 = vunpack.c.l.b16 %v6181
    %v6314 = vunpack.c.l.b16 %v6182
    %v6315 = vunpack.c.l.b16 %v6183
    %v6316 = vunpack.c.l.b16 %v6184
    %v6317 = vunpack.c.l.b16 %v6185
    %v6318 = vunpack.c.l.b16 %v6186
    %v6319 = vunpack.c.l.b16 %v6187
    %v6320 = vunpack.c.l.b16 %v6188
    %v6321 = vunpack.c.l.b16 %v6189
    %v6322 = vunpack.c.l.b16 %v6190
    %v6323 = vunpack.c.l.b16 %v6191
    %v6324 = vunpack.c.l.b16 %v6192
    %v6325 = vunpack.c.l.b16 %v6193
    %v6326 = vunpack.c.l.b16 %v6194
    %v6327 = vunpack.c.l.b16 %v6195
    %v6328 = vunpack.c.l.b16 %v6196
    %v6329 = vunpack.c.l.b16 %v6197
    %v6330 = vunpack.c.l.b16 %v6198
    %v6331 = vunpack.c.l.b16 %v6199
    %v6332 = vunpack.c.l.b16 %v6200
    %v6333 = vunpack.c.l.b16 %v6201
    %v6334 = vunpack.c.l.b16 %v6202
    %v6335 = vunpack.c.l.b16 %v6203
    %v6336 = vunpack.c.l.b16 %v6204
    %v6337 = vunpack.c.l.b16 %v6205
    %v6338 = vunpack.c.l.b16 %v6206
    %v6339 = vunpack.c.l.b16 %v6207
    %v6340 = vunpack.c.l.b16 %v6208
    %v6341 = vpack.c.b16 %v6278, %v6277
    %v6342 = vpack.c.b16 %v6280, %v6279
    %v6343 = vpack.c.b16 %v6282, %v6281
    %v6344 = vpack.c.b16 %v6284, %v6283
    %v6345 = vpack.c.b16 %v6286, %v6285
    %v6346 = vpack.c.b16 %v6288, %v6287
    %v6347 = vpack.c.b16 %v6290, %v6289
    %v6348 = vpack.c.b16 %v6292, %v6291
    %v6349 = vpack.c.b16 %v6294, %v6293
    %v6350 = vpack.c.b16 %v6296, %v6295
    %v6351 = vpack.c.b16 %v6298, %v6297
    %v6352 = vpack.c.b16 %v6300, %v6299
    %v6353 = vpack.c.b16 %v6302, %v6301
    %v6354 = vpack.c.b16 %v6304, %v6303
    %v6355 = vpack.c.b16 %v6306, %v6305
    %v6356 = vpack.c.b16 %v6308, %v6307
    %v6357 = vpack.c.b16 %v6310, %v6309
    %v6358 = vpack.c.b16 %v6312, %v6311
    %v6359 = vpack.c.b16 %v6314, %v6313
    %v6360 = vpack.c.b16 %v6316, %v6315
    %v6361 = vpack.c.b16 %v6318, %v6317
    %v6362 = vpack.c.b16 %v6320, %v6319
    %v6363 = vpack.c.b16 %v6322, %v6321
    %v6364 = vpack.c.b16 %v6324, %v6323
    %v6365 = vpack.c.b16 %v6326, %v6325
    %v6366 = vpack.c.b16 %v6328, %v6327
    %v6367 = vpack.c.b16 %v6330, %v6329
    %v6368 = vpack.c.b16 %v6332, %v6331
    %v6369 = vpack.c.b16 %v6334, %v6333
    %v6370 = vpack.c.b16 %v6336, %v6335
    %v6371 = vpack.c.b16 %v6338, %v6337
    %v6372 = vpack.c.b16 %v6340, %v6339
    %6405 = vmatpush.bf16.msra.mxu0 %v6348
    %6406 = vmatpush.bf16.msra.mxu0 %v6347
    %6407 = vmatpush.bf16.msra.mxu0 %v6346
    %6408 = vmatpush.bf16.msra.mxu0 %v6345
    %6409 = vmatpush.bf16.msra.mxu0 %v6344
    %6410 = vmatpush.bf16.msra.mxu0 %v6343
    %6411 = vmatpush.bf16.msra.mxu0 %v6342
    %6412 = vmatpush.bf16.msra.mxu0 %v6341
    %6413 = vmatmul.bf16.gmra.mxu0 %v6141
    %v6414 = vpop.f32.mrf.mxu0
    %v6415 = vadd.f32 %v6211, %v6414
    %v6416 = vpop.f32.mrf.mxu0
    %6417 = vdwg.mxu0
    %6418 = vmatpush.bf16.msra.mxu0 %v6356
    %6419 = vmatpush.bf16.msra.mxu0 %v6355
    %6420 = vmatpush.bf16.msra.mxu0 %v6354
    %6421 = vmatpush.bf16.msra.mxu0 %v6353
    %6422 = vmatpush.bf16.msra.mxu0 %v6352
    %6423 = vmatpush.bf16.msra.mxu0 %v6351
    %6424 = vmatpush.bf16.msra.mxu0 %v6350
    %6425 = vmatpush.bf16.msra.mxu0 %v6349
    %6426 = vmatmul.bf16.gmra.mxu0 %v6142
    %v6427 = vpop.f32.mrf.mxu0
    %v6428 = vadd.f32 %v6415, %v6427
    %v6429 = vpop.f32.mrf.mxu0
    %6430 = vdwg.mxu0
    %6431 = vmatpush.bf16.msra.mxu0 %v6364
    %6432 = vmatpush.bf16.msra.mxu0 %v6363
    %6433 = vmatpush.bf16.msra.mxu0 %v6362
    %6434 = vmatpush.bf16.msra.mxu0 %v6361
    %6435 = vmatpush.bf16.msra.mxu0 %v6360
    %6436 = vmatpush.bf16.msra.mxu0 %v6359
    %6437 = vmatpush.bf16.msra.mxu0 %v6358
    %6438 = vmatpush.bf16.msra.mxu0 %v6357
    %6439 = vmatmul.bf16.gmra.mxu0 %v6143
    %v6440 = vpop.f32.mrf.mxu0
    %v6441 = vadd.f32 %v6428, %v6440
    %v6442 = vpop.f32.mrf.mxu0
    %6443 = vdwg.mxu0
    %6444 = vmatpush.bf16.msra.mxu0 %v6372
    %6445 = vmatpush.bf16.msra.mxu0 %v6371
    %6446 = vmatpush.bf16.msra.mxu0 %v6370
    %6447 = vmatpush.bf16.msra.mxu0 %v6369
    %6448 = vmatpush.bf16.msra.mxu0 %v6368
    %6449 = vmatpush.bf16.msra.mxu0 %v6367
    %6450 = vmatpush.bf16.msra.mxu0 %v6366
    %6451 = vmatpush.bf16.msra.mxu0 %v6365
    %6452 = vmatmul.bf16.gmra.mxu0 %v6144
    %v6453 = vpop.f32.mrf.mxu0
    %v6454 = vadd.f32 %v6441, %v6453
    %v6455 = vpop.f32.mrf.mxu0
    %6456 = vdwg.mxu0
    %vm6457 = vcmask 25600
    %6458 = vst.msk [vmem:[#allocation2] sm:$0x3] %vm6457, %v6454
    // Predicated region
    $region22: #{qnetwork_forward.7} parent=1 // pred_check
      _
    $region23: #{qnetwork_forward.7} parent=1 // pred_check_branch
      %6460 = sbr.rel (0) target = $region25
    $region24: #{qnetwork_forward.7} parent=1 // pred_region
      %6462 = vsyncadd [#allocation3], 0
      %s6464 = sshll.u32 [#allocation2], 4
      %s6465 = int_to_ptr.vmem [resolvable:$true] %s6464
      %s6466 = sshll.u32 %s5, 4
      %s6467 = int_to_ptr.hbm [resolvable:$true] %s6466
      %6469 = dma.vmem_to_hbm [thread:$0]  %s6465, 32, %s6467, [#allocation3]
    $region25: #{qnetwork_forward.7} parent=1 // pred_fallthru
      _
    // Predicated region
    $region26: #{qnetwork_forward.7} parent=1 // pred_check
      _
    $region27: #{qnetwork_forward.7} parent=1 // pred_check_branch
      %6471 = sbr.rel (0) target = $region29
    $region28: #{qnetwork_forward.7} parent=1 // pred_region
      %6473 = dma.done [#allocation3], 32
    $region29: #{qnetwork_forward.7} parent=1 // pred_fallthru
      _
    %6474 = vsyncpa [#allocation3], 1

</llo_original>
